<compile_context>
chip_gen: v7x
topology: tpu7x:2x2x1
jax: 0.10.0
libtpu: 0.0.40
codegen_flags: <defaults>
</compile_context>

<pallas_src>
import math
from functools import partial

import jax
import jax.numpy as jnp
from jax.experimental import pallas as pl
from jax.experimental.pallas import tpu as pltpu


# Matmul operand dtype.  jnp.bfloat16 roughly doubles MXU throughput and halves
# VMEM traffic on v6e/v7x (accumulation stays f32 via preferred_element_type);
# f32 is kept as the default for closest numerical parity with the torch ref.
MM_DTYPE = jnp.float32


# --------------------------------------------------------------------------- helpers

def _mm(a, b):
    return jnp.dot(a.astype(MM_DTYPE), b.astype(MM_DTYPE),
                   preferred_element_type=jnp.float32)


def _mm_nt(a, b):
    # a @ b.T without materializing the transpose (contract on last dims).
    return jax.lax.dot_general(
        a.astype(MM_DTYPE), b.astype(MM_DTYPE),
        dimension_numbers=(((1,), (1,)), ((), ())),
        preferred_element_type=jnp.float32)


def _erf(x):
    # Abramowitz & Stegun 7.1.26 (max abs err ~1.5e-7): exact-GELU to ~f32
    # precision using only exp/mul/add so it is guaranteed to lower in Mosaic.
    a1, a2, a3, a4, a5 = 0.254829592, -0.284496736, 1.421413741, -1.453152027, 1.061405429
    p = 0.3275911
    sgn = jnp.where(x >= 0.0, 1.0, -1.0)
    ax = jnp.abs(x)
    t = 1.0 / (1.0 + p * ax)
    poly = ((((a5 * t + a4) * t + a3) * t + a2) * t + a1) * t
    return sgn * (1.0 - poly * jnp.exp(-ax * ax))


def _gelu_exact(x):
    return 0.5 * x * (1.0 + _erf(x * (1.0 / math.sqrt(2.0))))


def _layernorm(x, w, b, eps):
    mu = jnp.mean(x, axis=-1, keepdims=True)
    var = jnp.mean(jnp.square(x - mu), axis=-1, keepdims=True)
    return (x - mu) * jax.lax.rsqrt(var + eps) * w + b


# --------------------------------------------------------------------------- kernel

def _nest_level_kernel(x_ref, pos_ref, mask_ref,
                       ln1_w_ref, ln1_b_ref, qkv_w_ref, qkv_b_ref,
                       proj_w_ref, proj_b_ref, ln2_w_ref, ln2_b_ref,
                       fc1_w_ref, fc1_b_ref, fc2_w_ref, fc2_b_ref,
                       o_ref, *, depth, num_heads, eps):
    """pos-embed add + `depth` NesT TransformerLayers on one (M, C) token tile.

    M = T_TILE * N tokens; attention is block-diagonal over image blocks via
    the additive mask (0 within a block, -1e30 across blocks).
    """
    # x + self.pos_embed
    x = x_ref[0].astype(jnp.float32) + pos_ref[...]          # (M, C)
    mask = mask_ref[...]                                      # (M, M) additive
    M, C = x.shape
    Dh = C // num_heads
    scale = Dh ** -0.5

    for d in range(depth):                                    # static unroll
        # ---- y = norm1(x) ----
        y = _layernorm(x, ln1_w_ref[d], ln1_b_ref[d], eps)

        # ---- Attention (block-diagonal over the M tokens of this tile) ----
        # qkv column layout matches torch: [q | k | v], each head-major.
        qkv = _mm(y, qkv_w_ref[d]) + qkv_b_ref[d]             # (M, 3C)

        heads = []
        for h in range(num_heads):
            q = qkv[:, h * Dh:(h + 1) * Dh] * scale
            k = qkv[:, C + h * Dh:C + (h + 1) * Dh]
            v = qkv[:, 2 * C + h * Dh:2 * C + (h + 1) * Dh]
            s = _mm_nt(q, k) + mask                           # (M, M)
            s = s - jnp.max(s, axis=-1, keepdims=True)
            p = jnp.exp(s)                                    # masked entries -> 0
            p = p / jnp.sum(p, axis=-1, keepdims=True)        # softmax
            heads.append(_mm(p, v))                           # (M, Dh)

        # NesT's post-attention channel permutation (c = d*num_heads + h) is
        # folded into proj_w rows in the wrapper, so the concatenated
        # head-major output feeds ONE fused (M,C)@(C,C) proj matmul.
        attn = jnp.concatenate(heads, axis=-1)                # (M, C)
        attn = _mm(attn, proj_w_ref[d]) + proj_b_ref[d]
        x = x + attn                                          # residual

        # ---- MLP on norm2(x) ----
        y = _layernorm(x, ln2_w_ref[d], ln2_b_ref[d], eps)
        h1 = _mm(y, fc1_w_ref[d]) + fc1_b_ref[d]
        h1 = _gelu_exact(h1)
        x = x + _mm(h1, fc2_w_ref[d]) + fc2_b_ref[d]          # residual

    o_ref[0] = x.astype(o_ref.dtype)


# --------------------------------------------------------------------------- wrapper

def _nest_level_pallas(x, pos, mask, p, *, num_heads, n_tok, t_tile, eps=1e-6):
    """x: (B, T*N, C) flattened blockified tokens; pos: (T*N, C); mask: (M, M)."""
    B, TN, C = x.shape
    T = TN // n_tok
    M = t_tile * n_tok
    depth = p["qkv_w"].shape[0]
    Hm = p["fc1_w"].shape[-1]

    def wspec(shape):                       # full-array weight block, resident
        return pl.BlockSpec(shape, lambda b, t: (0, 0, 0))

    kern = partial(_nest_level_kernel, depth=depth, num_heads=num_heads, eps=eps)

    return pl.pallas_call(
        kern,
        out_shape=jax.ShapeDtypeStruct((B, TN, C), x.dtype),
        grid=(B, T // t_tile),
        in_specs=[
            pl.BlockSpec((1, M, C), lambda b, t: (b, t, 0)),     # x
            pl.BlockSpec((M, C), lambda b, t: (t, 0)),           # pos (no modulo)
            pl.BlockSpec((M, M), lambda b, t: (0, 0)),           # block-diag mask
            wspec((depth, 1, C)), wspec((depth, 1, C)),           # norm1 w / b
            wspec((depth, C, 3 * C)), wspec((depth, 1, 3 * C)),   # qkv
            wspec((depth, C, C)), wspec((depth, 1, C)),           # proj (row-permuted)
            wspec((depth, 1, C)), wspec((depth, 1, C)),           # norm2
            wspec((depth, C, Hm)), wspec((depth, 1, Hm)),         # fc1
            wspec((depth, Hm, C)), wspec((depth, 1, C)),          # fc2
        ],
        out_specs=pl.BlockSpec((1, M, C), lambda b, t: (b, t, 0)),
        compiler_params=pltpu.CompilerParams(
            dimension_semantics=("parallel", "parallel")),
    )(x, pos, mask,
      p["ln1_w"], p["ln1_b"], p["qkv_w"], p["qkv_b"], p["proj_w"], p["proj_b"],
      p["ln2_w"], p["ln2_b"], p["fc1_w"], p["fc1_b"], p["fc2_w"], p["fc2_b"])


# --------------------------------------------------------------------------- glue (plain JAX)

def blockify(x, block_size):
    """(B, H, W, C) -> (B, T, N, C), same semantics as timm blockify."""
    B, H, W, C = x.shape
    assert H % block_size == 0 and W % block_size == 0
    gh, gw = H // block_size, W // block_size
    x = x.reshape(B, gh, block_size, gw, block_size, C)
    x = jnp.transpose(x, (0, 1, 3, 2, 4, 5))
    return x.reshape(B, gh * gw, block_size * block_size, C)


def deblockify(x, block_size):
    """(B, T, N, C) -> (B, H, W, C), same semantics as timm deblockify."""
    B, T, _, C = x.shape
    g = int(math.sqrt(T))
    x = x.reshape(B, g, g, block_size, block_size, C)
    x = jnp.transpose(x, (0, 1, 3, 2, 4, 5))
    return x.reshape(B, g * block_size, g * block_size, C)


def init_nest_level_params(key, *, num_blocks, seq_length, embed_dim, num_heads,
                           depth, mlp_ratio):
    C = embed_dim
    Dh = C // num_heads
    hidden = int(C * mlp_ratio)
    f32 = jnp.float32
    keys = iter(jax.random.split(key, 1 + depth * 8))

    # nn.Parameter(torch.zeros(1, T, N, C)) -- synthetic deterministic (non-zero) init
    pos_embed = 0.02 * jax.random.normal(next(keys), (num_blocks, seq_length, C), f32)

    def linear(kw, kb, fan_in, fan_out):
        bound = 1.0 / math.sqrt(fan_in)
        w = jax.random.uniform(kw, (fan_out, fan_in), f32, -bound, bound)  # torch (out, in)
        b = jax.random.uniform(kb, (fan_out,), f32, -bound, bound)
        return w, b

    # Row permutation folding NesT's attention-output channel order (c = d*num_heads + h)
    # into proj weight rows so the kernel uses standard head-major order (r = h*Dh + d).
    perm = jnp.arange(C).reshape(Dh, num_heads).T.reshape(C)

    layers = []
    for _ in range(depth):
        qkv_w, qkv_b = linear(next(keys), next(keys), C, 3 * C)
        proj_w, proj_b = linear(next(keys), next(keys), C, C)
        fc1_w, fc1_b = linear(next(keys), next(keys), C, hidden)
        fc2_w, fc2_b = linear(next(keys), next(keys), hidden, C)
        layers.append(dict(
            ln1_w=jnp.ones((1, C), f32), ln1_b=jnp.zeros((1, C), f32),
            qkv_w=qkv_w.T, qkv_b=qkv_b.reshape(1, 3 * C),
            proj_w=proj_w.T[perm, :], proj_b=proj_b.reshape(1, C),
            ln2_w=jnp.ones((1, C), f32), ln2_b=jnp.zeros((1, C), f32),
            fc1_w=fc1_w.T, fc1_b=fc1_b.reshape(1, hidden),
            fc2_w=fc2_w.T, fc2_b=fc2_b.reshape(1, C),
        ))
    # Stack all layers on a leading depth axis so the whole encoder runs inside
    # one fused kernel with the activations resident in VMEM.
    stacked = {k: jnp.stack([lp[k] for lp in layers]) for k in layers[0]}
    return dict(pos_embed=pos_embed, layers=stacked)


def nest_level_forward(x, params, *, block_size, num_heads, t_tile=8):
    """NestLevel.forward: expects x as (B, C, H, W), returns (B, C, H, W)."""
    # self.pool = nn.Identity()  (prev_embed_dim=None)
    # TODO(synk): ConvPool (3x3 conv + LayerNorm + maxpool) path is only built when
    # prev_embed_dim is not None; this instance uses the default Identity pool.
    B = x.shape[0]
    x = jnp.transpose(x, (0, 2, 3, 1))                 # NCHW -> NHWC
    x = blockify(x, block_size)                        # (B, T, N, C)
    _, T, N, C = x.shape

    # T_TILE image blocks per grid step (M = T_TILE*N token rows per tile).
    t_tile = min(t_tile, T)
    while T % t_tile:
        t_tile -= 1
    M = t_tile * N

    # Block-diagonal additive attention mask (0 within an image block, -1e30 across).
    blk = jnp.repeat(jnp.arange(t_tile, dtype=jnp.int32), N)
    mask = jnp.where(blk[:, None] == blk[None, :], 0.0, -1e30).astype(jnp.float32)

    x = x.reshape(B, T * N, C)
    pos = params["pos_embed"].reshape(T * N, C)

    x = _nest_level_pallas(x, pos, mask, params["layers"],
                           num_heads=num_heads, n_tok=N, t_tile=t_tile)

    x = x.reshape(B, T, N, C)
    x = deblockify(x, block_size)                      # (B, H, W, C)
    return jnp.transpose(x, (0, 3, 1, 2))              # -> NCHW


# --------------------------------------------------------------------------- main

if __name__ == "__main__":
    # Small NestLevel config
    B, embed_dim, H, W = 2, 64, 16, 16
    block_size = 4
    num_heads = 4
    depth = 2
    mlp_ratio = 4.0
    num_blocks = (H // block_size) * (W // block_size)   # 16
    seq_length = block_size * block_size                 # 16

    key = jax.random.PRNGKey(0)
    kx, kp = jax.random.split(key)
    x = jax.random.normal(kx, (B, embed_dim, H, W), jnp.float32)

    params = init_nest_level_params(
        kp, num_blocks=num_blocks, seq_length=seq_length, embed_dim=embed_dim,
        num_heads=num_heads, depth=depth, mlp_ratio=mlp_ratio)

    out = nest_level_forward(x, params, block_size=block_size, num_heads=num_heads)
    out = jax.block_until_ready(out)

    assert out.shape == (B, embed_dim, H, W), out.shape
    assert bool(jnp.all(jnp.isfinite(out)))
    print("KERNEL_OK")
</pallas_src>

<mosaic_0001>
module attributes {stable_mosaic.version = 11 : i64} {
  func.func @_nest_level_kernel(%arg0: i32, %arg1: i32, %arg2: memref<1x128x64xf32, #tpu.memory_space<vmem>>, %arg3: memref<128x64xf32, #tpu.memory_space<vmem>>, %arg4: memref<128x128xf32, #tpu.memory_space<vmem>>, %arg5: memref<2x1x64xf32, #tpu.memory_space<vmem>>, %arg6: memref<2x1x64xf32, #tpu.memory_space<vmem>>, %arg7: memref<2x64x192xf32, #tpu.memory_space<vmem>>, %arg8: memref<2x1x192xf32, #tpu.memory_space<vmem>>, %arg9: memref<2x64x64xf32, #tpu.memory_space<vmem>>, %arg10: memref<2x1x64xf32, #tpu.memory_space<vmem>>, %arg11: memref<2x1x64xf32, #tpu.memory_space<vmem>>, %arg12: memref<2x1x64xf32, #tpu.memory_space<vmem>>, %arg13: memref<2x64x256xf32, #tpu.memory_space<vmem>>, %arg14: memref<2x1x256xf32, #tpu.memory_space<vmem>>, %arg15: memref<2x256x64xf32, #tpu.memory_space<vmem>>, %arg16: memref<2x1x64xf32, #tpu.memory_space<vmem>>, %arg17: memref<1x128x64xf32, #tpu.memory_space<vmem>>) attributes {dimension_semantics = [#tpu.dimension_semantics<parallel>, #tpu.dimension_semantics<parallel>], iteration_bounds = array<i64: 2, 2>, scalar_prefetch = 0 : i64, scratch_operands = 0 : i64, tpu.core_type = #tpu.core_type<tc>, window_params = [{transform_indices = @transform_0, window_bounds = array<i64: 1, 128, 64>}, {transform_indices = @transform_1, window_bounds = array<i64: 128, 64>}, {pipeline_mode = #tpu.pipeline_mode<synchronous>, transform_indices = @transform_2, window_bounds = array<i64: 128, 128>}, {pipeline_mode = #tpu.pipeline_mode<synchronous>, transform_indices = @transform_3, window_bounds = array<i64: 2, 1, 64>}, {pipeline_mode = #tpu.pipeline_mode<synchronous>, transform_indices = @transform_4, window_bounds = array<i64: 2, 1, 64>}, {pipeline_mode = #tpu.pipeline_mode<synchronous>, transform_indices = @transform_5, window_bounds = array<i64: 2, 64, 192>}, {pipeline_mode = #tpu.pipeline_mode<synchronous>, transform_indices = @transform_6, window_bounds = array<i64: 2, 1, 192>}, {pipeline_mode = #tpu.pipeline_mode<synchronous>, transform_indices = @transform_7, window_bounds = array<i64: 2, 64, 64>}, {pipeline_mode = #tpu.pipeline_mode<synchronous>, transform_indices = @transform_8, window_bounds = array<i64: 2, 1, 64>}, {pipeline_mode = #tpu.pipeline_mode<synchronous>, transform_indices = @transform_9, window_bounds = array<i64: 2, 1, 64>}, {pipeline_mode = #tpu.pipeline_mode<synchronous>, transform_indices = @transform_10, window_bounds = array<i64: 2, 1, 64>}, {pipeline_mode = #tpu.pipeline_mode<synchronous>, transform_indices = @transform_11, window_bounds = array<i64: 2, 64, 256>}, {pipeline_mode = #tpu.pipeline_mode<synchronous>, transform_indices = @transform_12, window_bounds = array<i64: 2, 1, 256>}, {pipeline_mode = #tpu.pipeline_mode<synchronous>, transform_indices = @transform_13, window_bounds = array<i64: 2, 256, 64>}, {pipeline_mode = #tpu.pipeline_mode<synchronous>, transform_indices = @transform_14, window_bounds = array<i64: 2, 1, 64>}, {transform_indices = @transform_15, window_bounds = array<i64: 1, 128, 64>}]} {
    %c0 = arith.constant 0 : index
    %c0_0 = arith.constant 0 : index
    %c0_1 = arith.constant 0 : index
    %0 = vector.load %arg2[%c0, %c0_0, %c0_1] : memref<1x128x64xf32, #tpu.memory_space<vmem>>, vector<1x128x64xf32>
    %1 = vector.shape_cast %0 : vector<1x128x64xf32> to vector<128x64xf32>
    %c0_2 = arith.constant 0 : index
    %c0_3 = arith.constant 0 : index
    %2 = vector.load %arg3[%c0_2, %c0_3] : memref<128x64xf32, #tpu.memory_space<vmem>>, vector<128x64xf32>
    %3 = arith.addf %1, %2 : vector<128x64xf32>
    %c0_4 = arith.constant 0 : index
    %c0_5 = arith.constant 0 : index
    %4 = vector.load %arg4[%c0_4, %c0_5] : memref<128x128xf32, #tpu.memory_space<vmem>>, vector<128x128xf32>
    %c0_6 = arith.constant 0 : index
    %c0_7 = arith.constant 0 : index
    %c0_8 = arith.constant 0 : index
    %5 = vector.load %arg5[%c0_6, %c0_7, %c0_8] : memref<2x1x64xf32, #tpu.memory_space<vmem>>, vector<1x1x64xf32>
    %6 = vector.shape_cast %5 : vector<1x1x64xf32> to vector<1x64xf32>
    %c0_9 = arith.constant 0 : index
    %c0_10 = arith.constant 0 : index
    %c0_11 = arith.constant 0 : index
    %7 = vector.load %arg6[%c0_9, %c0_10, %c0_11] : memref<2x1x64xf32, #tpu.memory_space<vmem>>, vector<1x1x64xf32>
    %8 = vector.shape_cast %7 : vector<1x1x64xf32> to vector<1x64xf32>
    %cst = arith.constant dense<0.000000e+00> : vector<128xf32>
    %9 = vector.multi_reduction <add>, %3, %cst [1] : vector<128x64xf32> to vector<128xf32>
    %10 = vector.shape_cast %9 : vector<128xf32> to vector<128x1xf32>
    %cst_12 = arith.constant 6.400000e+01 : f32
    %11 = vector.broadcast %cst_12 : f32 to vector<128x1xf32>
    %12 = arith.divf %10, %11 : vector<128x1xf32>
    %13 = vector.broadcast %12 : vector<128x1xf32> to vector<128x64xf32>
    %14 = arith.subf %3, %13 : vector<128x64xf32>
    %15 = arith.mulf %14, %14 : vector<128x64xf32>
    %cst_13 = arith.constant dense<0.000000e+00> : vector<128xf32>
    %16 = vector.multi_reduction <add>, %15, %cst_13 [1] : vector<128x64xf32> to vector<128xf32>
    %17 = vector.shape_cast %16 : vector<128xf32> to vector<128x1xf32>
    %cst_14 = arith.constant 6.400000e+01 : f32
    %18 = vector.broadcast %cst_14 : f32 to vector<128x1xf32>
    %19 = arith.divf %17, %18 : vector<128x1xf32>
    %20 = vector.broadcast %12 : vector<128x1xf32> to vector<128x64xf32>
    %21 = arith.subf %3, %20 : vector<128x64xf32>
    %cst_15 = arith.constant 9.99999997E-7 : f32
    %22 = vector.broadcast %cst_15 : f32 to vector<128x1xf32>
    %23 = arith.addf %19, %22 : vector<128x1xf32>
    %24 = math.rsqrt %23 : vector<128x1xf32>
    %25 = vector.broadcast %24 : vector<128x1xf32> to vector<128x64xf32>
    %26 = arith.mulf %21, %25 : vector<128x64xf32>
    %27 = vector.broadcast %6 : vector<1x64xf32> to vector<128x64xf32>
    %28 = arith.mulf %26, %27 : vector<128x64xf32>
    %29 = vector.broadcast %8 : vector<1x64xf32> to vector<128x64xf32>
    %30 = arith.addf %28, %29 : vector<128x64xf32>
    %c0_16 = arith.constant 0 : index
    %c0_17 = arith.constant 0 : index
    %c0_18 = arith.constant 0 : index
    %31 = vector.load %arg7[%c0_16, %c0_17, %c0_18] : memref<2x64x192xf32, #tpu.memory_space<vmem>>, vector<1x64x192xf32>
    %32 = vector.shape_cast %31 : vector<1x64x192xf32> to vector<64x192xf32>
    %cst_19 = arith.constant dense<0.000000e+00> : vector<128x192xf32>
    %33 = tpu.matmul %30, %32, %cst_19 {dimension_numbers = #tpu.dot_dimension_numbers<[1], [0], [0], [1], [0, 0, 1, 1], [], []>} : vector<128x64xf32>, vector<64x192xf32>, vector<128x192xf32> -> vector<128x192xf32>
    %c0_20 = arith.constant 0 : index
    %c0_21 = arith.constant 0 : index
    %c0_22 = arith.constant 0 : index
    %34 = vector.load %arg8[%c0_20, %c0_21, %c0_22] : memref<2x1x192xf32, #tpu.memory_space<vmem>>, vector<1x1x192xf32>
    %35 = vector.shape_cast %34 : vector<1x1x192xf32> to vector<1x192xf32>
    %36 = vector.broadcast %35 : vector<1x192xf32> to vector<128x192xf32>
    %37 = arith.addf %33, %36 : vector<128x192xf32>
    %38 = vector.extract_strided_slice %37 {offsets = [0, 0], sizes = [128, 16], strides = [1, 1]} : vector<128x192xf32> to vector<128x16xf32>
    %cst_23 = arith.constant 2.500000e-01 : f32
    %39 = vector.broadcast %cst_23 : f32 to vector<128x16xf32>
    %40 = arith.mulf %38, %39 : vector<128x16xf32>
    %41 = vector.extract_strided_slice %37 {offsets = [0, 64], sizes = [128, 16], strides = [1, 1]} : vector<128x192xf32> to vector<128x16xf32>
    %42 = vector.extract_strided_slice %37 {offsets = [0, 128], sizes = [128, 16], strides = [1, 1]} : vector<128x192xf32> to vector<128x16xf32>
    %cst_24 = arith.constant dense<0.000000e+00> : vector<128x128xf32>
    %43 = tpu.matmul %40, %41, %cst_24 {dimension_numbers = #tpu.dot_dimension_numbers<[1], [1], [0], [0], [0, 0, 1, 0], [], []>} : vector<128x16xf32>, vector<128x16xf32>, vector<128x128xf32> -> vector<128x128xf32>
    %44 = arith.addf %43, %4 : vector<128x128xf32>
    %cst_25 = arith.constant dense<0xFF800000> : vector<128xf32>
    %45 = vector.multi_reduction <maximumf>, %44, %cst_25 [1] : vector<128x128xf32> to vector<128xf32>
    %46 = vector.shape_cast %45 : vector<128xf32> to vector<128x1xf32>
    %47 = vector.broadcast %46 : vector<128x1xf32> to vector<128x128xf32>
    %48 = arith.subf %44, %47 : vector<128x128xf32>
    %49 = math.exp %48 : vector<128x128xf32>
    %cst_26 = arith.constant dense<0.000000e+00> : vector<128xf32>
    %50 = vector.multi_reduction <add>, %49, %cst_26 [1] : vector<128x128xf32> to vector<128xf32>
    %51 = vector.shape_cast %50 : vector<128xf32> to vector<128x1xf32>
    %52 = vector.broadcast %51 : vector<128x1xf32> to vector<128x128xf32>
    %53 = arith.divf %49, %52 : vector<128x128xf32>
    %cst_27 = arith.constant dense<0.000000e+00> : vector<128x16xf32>
    %54 = tpu.matmul %53, %42, %cst_27 {dimension_numbers = #tpu.dot_dimension_numbers<[1], [0], [0], [1], [0, 0, 1, 1], [], []>} : vector<128x128xf32>, vector<128x16xf32>, vector<128x16xf32> -> vector<128x16xf32>
    %55 = vector.extract_strided_slice %37 {offsets = [0, 16], sizes = [128, 16], strides = [1, 1]} : vector<128x192xf32> to vector<128x16xf32>
    %cst_28 = arith.constant 2.500000e-01 : f32
    %56 = vector.broadcast %cst_28 : f32 to vector<128x16xf32>
    %57 = arith.mulf %55, %56 : vector<128x16xf32>
    %58 = vector.extract_strided_slice %37 {offsets = [0, 80], sizes = [128, 16], strides = [1, 1]} : vector<128x192xf32> to vector<128x16xf32>
    %59 = vector.extract_strided_slice %37 {offsets = [0, 144], sizes = [128, 16], strides = [1, 1]} : vector<128x192xf32> to vector<128x16xf32>
    %cst_29 = arith.constant dense<0.000000e+00> : vector<128x128xf32>
    %60 = tpu.matmul %57, %58, %cst_29 {dimension_numbers = #tpu.dot_dimension_numbers<[1], [1], [0], [0], [0, 0, 1, 0], [], []>} : vector<128x16xf32>, vector<128x16xf32>, vector<128x128xf32> -> vector<128x128xf32>
    %61 = arith.addf %60, %4 : vector<128x128xf32>
    %cst_30 = arith.constant dense<0xFF800000> : vector<128xf32>
    %62 = vector.multi_reduction <maximumf>, %61, %cst_30 [1] : vector<128x128xf32> to vector<128xf32>
    %63 = vector.shape_cast %62 : vector<128xf32> to vector<128x1xf32>
    %64 = vector.broadcast %63 : vector<128x1xf32> to vector<128x128xf32>
    %65 = arith.subf %61, %64 : vector<128x128xf32>
    %66 = math.exp %65 : vector<128x128xf32>
    %cst_31 = arith.constant dense<0.000000e+00> : vector<128xf32>
    %67 = vector.multi_reduction <add>, %66, %cst_31 [1] : vector<128x128xf32> to vector<128xf32>
    %68 = vector.shape_cast %67 : vector<128xf32> to vector<128x1xf32>
    %69 = vector.broadcast %68 : vector<128x1xf32> to vector<128x128xf32>
    %70 = arith.divf %66, %69 : vector<128x128xf32>
    %cst_32 = arith.constant dense<0.000000e+00> : vector<128x16xf32>
    %71 = tpu.matmul %70, %59, %cst_32 {dimension_numbers = #tpu.dot_dimension_numbers<[1], [0], [0], [1], [0, 0, 1, 1], [], []>} : vector<128x128xf32>, vector<128x16xf32>, vector<128x16xf32> -> vector<128x16xf32>
    %72 = vector.extract_strided_slice %37 {offsets = [0, 32], sizes = [128, 16], strides = [1, 1]} : vector<128x192xf32> to vector<128x16xf32>
    %cst_33 = arith.constant 2.500000e-01 : f32
    %73 = vector.broadcast %cst_33 : f32 to vector<128x16xf32>
    %74 = arith.mulf %72, %73 : vector<128x16xf32>
    %75 = vector.extract_strided_slice %37 {offsets = [0, 96], sizes = [128, 16], strides = [1, 1]} : vector<128x192xf32> to vector<128x16xf32>
    %76 = vector.extract_strided_slice %37 {offsets = [0, 160], sizes = [128, 16], strides = [1, 1]} : vector<128x192xf32> to vector<128x16xf32>
    %cst_34 = arith.constant dense<0.000000e+00> : vector<128x128xf32>
    %77 = tpu.matmul %74, %75, %cst_34 {dimension_numbers = #tpu.dot_dimension_numbers<[1], [1], [0], [0], [0, 0, 1, 0], [], []>} : vector<128x16xf32>, vector<128x16xf32>, vector<128x128xf32> -> vector<128x128xf32>
    %78 = arith.addf %77, %4 : vector<128x128xf32>
    %cst_35 = arith.constant dense<0xFF800000> : vector<128xf32>
    %79 = vector.multi_reduction <maximumf>, %78, %cst_35 [1] : vector<128x128xf32> to vector<128xf32>
    %80 = vector.shape_cast %79 : vector<128xf32> to vector<128x1xf32>
    %81 = vector.broadcast %80 : vector<128x1xf32> to vector<128x128xf32>
    %82 = arith.subf %78, %81 : vector<128x128xf32>
    %83 = math.exp %82 : vector<128x128xf32>
    %cst_36 = arith.constant dense<0.000000e+00> : vector<128xf32>
    %84 = vector.multi_reduction <add>, %83, %cst_36 [1] : vector<128x128xf32> to vector<128xf32>
    %85 = vector.shape_cast %84 : vector<128xf32> to vector<128x1xf32>
    %86 = vector.broadcast %85 : vector<128x1xf32> to vector<128x128xf32>
    %87 = arith.divf %83, %86 : vector<128x128xf32>
    %cst_37 = arith.constant dense<0.000000e+00> : vector<128x16xf32>
    %88 = tpu.matmul %87, %76, %cst_37 {dimension_numbers = #tpu.dot_dimension_numbers<[1], [0], [0], [1], [0, 0, 1, 1], [], []>} : vector<128x128xf32>, vector<128x16xf32>, vector<128x16xf32> -> vector<128x16xf32>
    %89 = vector.extract_strided_slice %37 {offsets = [0, 48], sizes = [128, 16], strides = [1, 1]} : vector<128x192xf32> to vector<128x16xf32>
    %cst_38 = arith.constant 2.500000e-01 : f32
    %90 = vector.broadcast %cst_38 : f32 to vector<128x16xf32>
    %91 = arith.mulf %89, %90 : vector<128x16xf32>
    %92 = vector.extract_strided_slice %37 {offsets = [0, 112], sizes = [128, 16], strides = [1, 1]} : vector<128x192xf32> to vector<128x16xf32>
    %93 = vector.extract_strided_slice %37 {offsets = [0, 176], sizes = [128, 16], strides = [1, 1]} : vector<128x192xf32> to vector<128x16xf32>
    %cst_39 = arith.constant dense<0.000000e+00> : vector<128x128xf32>
    %94 = tpu.matmul %91, %92, %cst_39 {dimension_numbers = #tpu.dot_dimension_numbers<[1], [1], [0], [0], [0, 0, 1, 0], [], []>} : vector<128x16xf32>, vector<128x16xf32>, vector<128x128xf32> -> vector<128x128xf32>
    %95 = arith.addf %94, %4 : vector<128x128xf32>
    %cst_40 = arith.constant dense<0xFF800000> : vector<128xf32>
    %96 = vector.multi_reduction <maximumf>, %95, %cst_40 [1] : vector<128x128xf32> to vector<128xf32>
    %97 = vector.shape_cast %96 : vector<128xf32> to vector<128x1xf32>
    %98 = vector.broadcast %97 : vector<128x1xf32> to vector<128x128xf32>
    %99 = arith.subf %95, %98 : vector<128x128xf32>
    %100 = math.exp %99 : vector<128x128xf32>
    %cst_41 = arith.constant dense<0.000000e+00> : vector<128xf32>
    %101 = vector.multi_reduction <add>, %100, %cst_41 [1] : vector<128x128xf32> to vector<128xf32>
    %102 = vector.shape_cast %101 : vector<128xf32> to vector<128x1xf32>
    %103 = vector.broadcast %102 : vector<128x1xf32> to vector<128x128xf32>
    %104 = arith.divf %100, %103 : vector<128x128xf32>
    %cst_42 = arith.constant dense<0.000000e+00> : vector<128x16xf32>
    %105 = tpu.matmul %104, %93, %cst_42 {dimension_numbers = #tpu.dot_dimension_numbers<[1], [0], [0], [1], [0, 0, 1, 1], [], []>} : vector<128x128xf32>, vector<128x16xf32>, vector<128x16xf32> -> vector<128x16xf32>
    %106 = tpu.concatenate %54, %71, %88, %105 in 1 : vector<128x16xf32>, vector<128x16xf32>, vector<128x16xf32>, vector<128x16xf32> -> vector<128x64xf32>
    %c0_43 = arith.constant 0 : index
    %c0_44 = arith.constant 0 : index
    %c0_45 = arith.constant 0 : index
    %107 = vector.load %arg9[%c0_43, %c0_44, %c0_45] : memref<2x64x64xf32, #tpu.memory_space<vmem>>, vector<1x64x64xf32>
    %108 = vector.shape_cast %107 : vector<1x64x64xf32> to vector<64x64xf32>
    %cst_46 = arith.constant dense<0.000000e+00> : vector<128x64xf32>
    %109 = tpu.matmul %106, %108, %cst_46 {dimension_numbers = #tpu.dot_dimension_numbers<[1], [0], [0], [1], [0, 0, 1, 1], [], []>} : vector<128x64xf32>, vector<64x64xf32>, vector<128x64xf32> -> vector<128x64xf32>
    %c0_47 = arith.constant 0 : index
    %c0_48 = arith.constant 0 : index
    %c0_49 = arith.constant 0 : index
    %110 = vector.load %arg10[%c0_47, %c0_48, %c0_49] : memref<2x1x64xf32, #tpu.memory_space<vmem>>, vector<1x1x64xf32>
    %111 = vector.shape_cast %110 : vector<1x1x64xf32> to vector<1x64xf32>
    %112 = vector.broadcast %111 : vector<1x64xf32> to vector<128x64xf32>
    %113 = arith.addf %109, %112 : vector<128x64xf32>
    %114 = arith.addf %3, %113 : vector<128x64xf32>
    %c0_50 = arith.constant 0 : index
    %c0_51 = arith.constant 0 : index
    %c0_52 = arith.constant 0 : index
    %115 = vector.load %arg11[%c0_50, %c0_51, %c0_52] : memref<2x1x64xf32, #tpu.memory_space<vmem>>, vector<1x1x64xf32>
    %116 = vector.shape_cast %115 : vector<1x1x64xf32> to vector<1x64xf32>
    %c0_53 = arith.constant 0 : index
    %c0_54 = arith.constant 0 : index
    %c0_55 = arith.constant 0 : index
    %117 = vector.load %arg12[%c0_53, %c0_54, %c0_55] : memref<2x1x64xf32, #tpu.memory_space<vmem>>, vector<1x1x64xf32>
    %118 = vector.shape_cast %117 : vector<1x1x64xf32> to vector<1x64xf32>
    %cst_56 = arith.constant dense<0.000000e+00> : vector<128xf32>
    %119 = vector.multi_reduction <add>, %114, %cst_56 [1] : vector<128x64xf32> to vector<128xf32>
    %120 = vector.shape_cast %119 : vector<128xf32> to vector<128x1xf32>
    %cst_57 = arith.constant 6.400000e+01 : f32
    %121 = vector.broadcast %cst_57 : f32 to vector<128x1xf32>
    %122 = arith.divf %120, %121 : vector<128x1xf32>
    %123 = vector.broadcast %122 : vector<128x1xf32> to vector<128x64xf32>
    %124 = arith.subf %114, %123 : vector<128x64xf32>
    %125 = arith.mulf %124, %124 : vector<128x64xf32>
    %cst_58 = arith.constant dense<0.000000e+00> : vector<128xf32>
    %126 = vector.multi_reduction <add>, %125, %cst_58 [1] : vector<128x64xf32> to vector<128xf32>
    %127 = vector.shape_cast %126 : vector<128xf32> to vector<128x1xf32>
    %cst_59 = arith.constant 6.400000e+01 : f32
    %128 = vector.broadcast %cst_59 : f32 to vector<128x1xf32>
    %129 = arith.divf %127, %128 : vector<128x1xf32>
    %130 = vector.broadcast %122 : vector<128x1xf32> to vector<128x64xf32>
    %131 = arith.subf %114, %130 : vector<128x64xf32>
    %cst_60 = arith.constant 9.99999997E-7 : f32
    %132 = vector.broadcast %cst_60 : f32 to vector<128x1xf32>
    %133 = arith.addf %129, %132 : vector<128x1xf32>
    %134 = math.rsqrt %133 : vector<128x1xf32>
    %135 = vector.broadcast %134 : vector<128x1xf32> to vector<128x64xf32>
    %136 = arith.mulf %131, %135 : vector<128x64xf32>
    %137 = vector.broadcast %116 : vector<1x64xf32> to vector<128x64xf32>
    %138 = arith.mulf %136, %137 : vector<128x64xf32>
    %139 = vector.broadcast %118 : vector<1x64xf32> to vector<128x64xf32>
    %140 = arith.addf %138, %139 : vector<128x64xf32>
    %c0_61 = arith.constant 0 : index
    %c0_62 = arith.constant 0 : index
    %c0_63 = arith.constant 0 : index
    %141 = vector.load %arg13[%c0_61, %c0_62, %c0_63] : memref<2x64x256xf32, #tpu.memory_space<vmem>>, vector<1x64x256xf32>
    %142 = vector.shape_cast %141 : vector<1x64x256xf32> to vector<64x256xf32>
    %cst_64 = arith.constant dense<0.000000e+00> : vector<128x256xf32>
    %143 = tpu.matmul %140, %142, %cst_64 {dimension_numbers = #tpu.dot_dimension_numbers<[1], [0], [0], [1], [0, 0, 1, 1], [], []>} : vector<128x64xf32>, vector<64x256xf32>, vector<128x256xf32> -> vector<128x256xf32>
    %c0_65 = arith.constant 0 : index
    %c0_66 = arith.constant 0 : index
    %c0_67 = arith.constant 0 : index
    %144 = vector.load %arg14[%c0_65, %c0_66, %c0_67] : memref<2x1x256xf32, #tpu.memory_space<vmem>>, vector<1x1x256xf32>
    %145 = vector.shape_cast %144 : vector<1x1x256xf32> to vector<1x256xf32>
    %146 = vector.broadcast %145 : vector<1x256xf32> to vector<128x256xf32>
    %147 = arith.addf %143, %146 : vector<128x256xf32>
    %cst_68 = arith.constant 5.000000e-01 : f32
    %148 = vector.broadcast %cst_68 : f32 to vector<128x256xf32>
    %149 = arith.mulf %148, %147 : vector<128x256xf32>
    %cst_69 = arith.constant 0.707106769 : f32
    %150 = vector.broadcast %cst_69 : f32 to vector<128x256xf32>
    %151 = arith.mulf %147, %150 : vector<128x256xf32>
    %cst_70 = arith.constant 0.000000e+00 : f32
    %152 = vector.broadcast %cst_70 : f32 to vector<128x256xf32>
    %153 = arith.cmpf oge, %151, %152 : vector<128x256xf32>
    %cst_71 = arith.constant 1.000000e+00 : f32
    %cst_72 = arith.constant -1.000000e+00 : f32
    %154 = vector.broadcast %cst_71 : f32 to vector<128x256xf32>
    %155 = vector.broadcast %cst_72 : f32 to vector<128x256xf32>
    %156 = arith.select %153, %154, %155 : vector<128x256xi1>, vector<128x256xf32>
    %157 = math.absf %151 : vector<128x256xf32>
    %cst_73 = arith.constant 0.327591091 : f32
    %158 = vector.broadcast %cst_73 : f32 to vector<128x256xf32>
    %159 = arith.mulf %158, %157 : vector<128x256xf32>
    %cst_74 = arith.constant 1.000000e+00 : f32
    %160 = vector.broadcast %cst_74 : f32 to vector<128x256xf32>
    %161 = arith.addf %160, %159 : vector<128x256xf32>
    %cst_75 = arith.constant 1.000000e+00 : f32
    %162 = vector.broadcast %cst_75 : f32 to vector<128x256xf32>
    %163 = arith.divf %162, %161 : vector<128x256xf32>
    %cst_76 = arith.constant 1.06140542 : f32
    %164 = vector.broadcast %cst_76 : f32 to vector<128x256xf32>
    %165 = arith.mulf %164, %163 : vector<128x256xf32>
    %cst_77 = arith.constant -1.45315206 : f32
    %166 = vector.broadcast %cst_77 : f32 to vector<128x256xf32>
    %167 = arith.addf %165, %166 : vector<128x256xf32>
    %168 = arith.mulf %167, %163 : vector<128x256xf32>
    %cst_78 = arith.constant 1.42141378 : f32
    %169 = vector.broadcast %cst_78 : f32 to vector<128x256xf32>
    %170 = arith.addf %168, %169 : vector<128x256xf32>
    %171 = arith.mulf %170, %163 : vector<128x256xf32>
    %cst_79 = arith.constant -0.284496725 : f32
    %172 = vector.broadcast %cst_79 : f32 to vector<128x256xf32>
    %173 = arith.addf %171, %172 : vector<128x256xf32>
    %174 = arith.mulf %173, %163 : vector<128x256xf32>
    %cst_80 = arith.constant 0.254829586 : f32
    %175 = vector.broadcast %cst_80 : f32 to vector<128x256xf32>
    %176 = arith.addf %174, %175 : vector<128x256xf32>
    %177 = arith.mulf %176, %163 : vector<128x256xf32>
    %cst_81 = arith.constant 0.000000e+00 : f32
    %178 = vector.broadcast %cst_81 : f32 to vector<128x256xf32>
    %179 = arith.subf %178, %157 : vector<128x256xf32>
    %180 = arith.mulf %179, %157 : vector<128x256xf32>
    %181 = math.exp %180 : vector<128x256xf32>
    %182 = arith.mulf %177, %181 : vector<128x256xf32>
    %cst_82 = arith.constant 1.000000e+00 : f32
    %183 = vector.broadcast %cst_82 : f32 to vector<128x256xf32>
    %184 = arith.subf %183, %182 : vector<128x256xf32>
    %185 = arith.mulf %156, %184 : vector<128x256xf32>
    %cst_83 = arith.constant 1.000000e+00 : f32
    %186 = vector.broadcast %cst_83 : f32 to vector<128x256xf32>
    %187 = arith.addf %186, %185 : vector<128x256xf32>
    %188 = arith.mulf %149, %187 : vector<128x256xf32>
    %c0_84 = arith.constant 0 : index
    %c0_85 = arith.constant 0 : index
    %c0_86 = arith.constant 0 : index
    %189 = vector.load %arg15[%c0_84, %c0_85, %c0_86] : memref<2x256x64xf32, #tpu.memory_space<vmem>>, vector<1x256x64xf32>
    %190 = vector.shape_cast %189 : vector<1x256x64xf32> to vector<256x64xf32>
    %cst_87 = arith.constant dense<0.000000e+00> : vector<128x64xf32>
    %191 = tpu.matmul %188, %190, %cst_87 {dimension_numbers = #tpu.dot_dimension_numbers<[1], [0], [0], [1], [0, 0, 1, 1], [], []>} : vector<128x256xf32>, vector<256x64xf32>, vector<128x64xf32> -> vector<128x64xf32>
    %192 = arith.addf %114, %191 : vector<128x64xf32>
    %c0_88 = arith.constant 0 : index
    %c0_89 = arith.constant 0 : index
    %c0_90 = arith.constant 0 : index
    %193 = vector.load %arg16[%c0_88, %c0_89, %c0_90] : memref<2x1x64xf32, #tpu.memory_space<vmem>>, vector<1x1x64xf32>
    %194 = vector.shape_cast %193 : vector<1x1x64xf32> to vector<1x64xf32>
    %195 = vector.broadcast %194 : vector<1x64xf32> to vector<128x64xf32>
    %196 = arith.addf %192, %195 : vector<128x64xf32>
    %c1 = arith.constant 1 : index
    %c0_91 = arith.constant 0 : index
    %c0_92 = arith.constant 0 : index
    %197 = vector.load %arg5[%c1, %c0_91, %c0_92] : memref<2x1x64xf32, #tpu.memory_space<vmem>>, vector<1x1x64xf32>
    %198 = vector.shape_cast %197 : vector<1x1x64xf32> to vector<1x64xf32>
    %c1_93 = arith.constant 1 : index
    %c0_94 = arith.constant 0 : index
    %c0_95 = arith.constant 0 : index
    %199 = vector.load %arg6[%c1_93, %c0_94, %c0_95] : memref<2x1x64xf32, #tpu.memory_space<vmem>>, vector<1x1x64xf32>
    %200 = vector.shape_cast %199 : vector<1x1x64xf32> to vector<1x64xf32>
    %cst_96 = arith.constant dense<0.000000e+00> : vector<128xf32>
    %201 = vector.multi_reduction <add>, %196, %cst_96 [1] : vector<128x64xf32> to vector<128xf32>
    %202 = vector.shape_cast %201 : vector<128xf32> to vector<128x1xf32>
    %cst_97 = arith.constant 6.400000e+01 : f32
    %203 = vector.broadcast %cst_97 : f32 to vector<128x1xf32>
    %204 = arith.divf %202, %203 : vector<128x1xf32>
    %205 = vector.broadcast %204 : vector<128x1xf32> to vector<128x64xf32>
    %206 = arith.subf %196, %205 : vector<128x64xf32>
    %207 = arith.mulf %206, %206 : vector<128x64xf32>
    %cst_98 = arith.constant dense<0.000000e+00> : vector<128xf32>
    %208 = vector.multi_reduction <add>, %207, %cst_98 [1] : vector<128x64xf32> to vector<128xf32>
    %209 = vector.shape_cast %208 : vector<128xf32> to vector<128x1xf32>
    %cst_99 = arith.constant 6.400000e+01 : f32
    %210 = vector.broadcast %cst_99 : f32 to vector<128x1xf32>
    %211 = arith.divf %209, %210 : vector<128x1xf32>
    %212 = vector.broadcast %204 : vector<128x1xf32> to vector<128x64xf32>
    %213 = arith.subf %196, %212 : vector<128x64xf32>
    %cst_100 = arith.constant 9.99999997E-7 : f32
    %214 = vector.broadcast %cst_100 : f32 to vector<128x1xf32>
    %215 = arith.addf %211, %214 : vector<128x1xf32>
    %216 = math.rsqrt %215 : vector<128x1xf32>
    %217 = vector.broadcast %216 : vector<128x1xf32> to vector<128x64xf32>
    %218 = arith.mulf %213, %217 : vector<128x64xf32>
    %219 = vector.broadcast %198 : vector<1x64xf32> to vector<128x64xf32>
    %220 = arith.mulf %218, %219 : vector<128x64xf32>
    %221 = vector.broadcast %200 : vector<1x64xf32> to vector<128x64xf32>
    %222 = arith.addf %220, %221 : vector<128x64xf32>
    %c1_101 = arith.constant 1 : index
    %c0_102 = arith.constant 0 : index
    %c0_103 = arith.constant 0 : index
    %223 = vector.load %arg7[%c1_101, %c0_102, %c0_103] : memref<2x64x192xf32, #tpu.memory_space<vmem>>, vector<1x64x192xf32>
    %224 = vector.shape_cast %223 : vector<1x64x192xf32> to vector<64x192xf32>
    %cst_104 = arith.constant dense<0.000000e+00> : vector<128x192xf32>
    %225 = tpu.matmul %222, %224, %cst_104 {dimension_numbers = #tpu.dot_dimension_numbers<[1], [0], [0], [1], [0, 0, 1, 1], [], []>} : vector<128x64xf32>, vector<64x192xf32>, vector<128x192xf32> -> vector<128x192xf32>
    %c1_105 = arith.constant 1 : index
    %c0_106 = arith.constant 0 : index
    %c0_107 = arith.constant 0 : index
    %226 = vector.load %arg8[%c1_105, %c0_106, %c0_107] : memref<2x1x192xf32, #tpu.memory_space<vmem>>, vector<1x1x192xf32>
    %227 = vector.shape_cast %226 : vector<1x1x192xf32> to vector<1x192xf32>
    %228 = vector.broadcast %227 : vector<1x192xf32> to vector<128x192xf32>
    %229 = arith.addf %225, %228 : vector<128x192xf32>
    %230 = vector.extract_strided_slice %229 {offsets = [0, 0], sizes = [128, 16], strides = [1, 1]} : vector<128x192xf32> to vector<128x16xf32>
    %cst_108 = arith.constant 2.500000e-01 : f32
    %231 = vector.broadcast %cst_108 : f32 to vector<128x16xf32>
    %232 = arith.mulf %230, %231 : vector<128x16xf32>
    %233 = vector.extract_strided_slice %229 {offsets = [0, 64], sizes = [128, 16], strides = [1, 1]} : vector<128x192xf32> to vector<128x16xf32>
    %234 = vector.extract_strided_slice %229 {offsets = [0, 128], sizes = [128, 16], strides = [1, 1]} : vector<128x192xf32> to vector<128x16xf32>
    %cst_109 = arith.constant dense<0.000000e+00> : vector<128x128xf32>
    %235 = tpu.matmul %232, %233, %cst_109 {dimension_numbers = #tpu.dot_dimension_numbers<[1], [1], [0], [0], [0, 0, 1, 0], [], []>} : vector<128x16xf32>, vector<128x16xf32>, vector<128x128xf32> -> vector<128x128xf32>
    %236 = arith.addf %235, %4 : vector<128x128xf32>
    %cst_110 = arith.constant dense<0xFF800000> : vector<128xf32>
    %237 = vector.multi_reduction <maximumf>, %236, %cst_110 [1] : vector<128x128xf32> to vector<128xf32>
    %238 = vector.shape_cast %237 : vector<128xf32> to vector<128x1xf32>
    %239 = vector.broadcast %238 : vector<128x1xf32> to vector<128x128xf32>
    %240 = arith.subf %236, %239 : vector<128x128xf32>
    %241 = math.exp %240 : vector<128x128xf32>
    %cst_111 = arith.constant dense<0.000000e+00> : vector<128xf32>
    %242 = vector.multi_reduction <add>, %241, %cst_111 [1] : vector<128x128xf32> to vector<128xf32>
    %243 = vector.shape_cast %242 : vector<128xf32> to vector<128x1xf32>
    %244 = vector.broadcast %243 : vector<128x1xf32> to vector<128x128xf32>
    %245 = arith.divf %241, %244 : vector<128x128xf32>
    %cst_112 = arith.constant dense<0.000000e+00> : vector<128x16xf32>
    %246 = tpu.matmul %245, %234, %cst_112 {dimension_numbers = #tpu.dot_dimension_numbers<[1], [0], [0], [1], [0, 0, 1, 1], [], []>} : vector<128x128xf32>, vector<128x16xf32>, vector<128x16xf32> -> vector<128x16xf32>
    %247 = vector.extract_strided_slice %229 {offsets = [0, 16], sizes = [128, 16], strides = [1, 1]} : vector<128x192xf32> to vector<128x16xf32>
    %cst_113 = arith.constant 2.500000e-01 : f32
    %248 = vector.broadcast %cst_113 : f32 to vector<128x16xf32>
    %249 = arith.mulf %247, %248 : vector<128x16xf32>
    %250 = vector.extract_strided_slice %229 {offsets = [0, 80], sizes = [128, 16], strides = [1, 1]} : vector<128x192xf32> to vector<128x16xf32>
    %251 = vector.extract_strided_slice %229 {offsets = [0, 144], sizes = [128, 16], strides = [1, 1]} : vector<128x192xf32> to vector<128x16xf32>
    %cst_114 = arith.constant dense<0.000000e+00> : vector<128x128xf32>
    %252 = tpu.matmul %249, %250, %cst_114 {dimension_numbers = #tpu.dot_dimension_numbers<[1], [1], [0], [0], [0, 0, 1, 0], [], []>} : vector<128x16xf32>, vector<128x16xf32>, vector<128x128xf32> -> vector<128x128xf32>
    %253 = arith.addf %252, %4 : vector<128x128xf32>
    %cst_115 = arith.constant dense<0xFF800000> : vector<128xf32>
    %254 = vector.multi_reduction <maximumf>, %253, %cst_115 [1] : vector<128x128xf32> to vector<128xf32>
    %255 = vector.shape_cast %254 : vector<128xf32> to vector<128x1xf32>
    %256 = vector.broadcast %255 : vector<128x1xf32> to vector<128x128xf32>
    %257 = arith.subf %253, %256 : vector<128x128xf32>
    %258 = math.exp %257 : vector<128x128xf32>
    %cst_116 = arith.constant dense<0.000000e+00> : vector<128xf32>
    %259 = vector.multi_reduction <add>, %258, %cst_116 [1] : vector<128x128xf32> to vector<128xf32>
    %260 = vector.shape_cast %259 : vector<128xf32> to vector<128x1xf32>
    %261 = vector.broadcast %260 : vector<128x1xf32> to vector<128x128xf32>
    %262 = arith.divf %258, %261 : vector<128x128xf32>
    %cst_117 = arith.constant dense<0.000000e+00> : vector<128x16xf32>
    %263 = tpu.matmul %262, %251, %cst_117 {dimension_numbers = #tpu.dot_dimension_numbers<[1], [0], [0], [1], [0, 0, 1, 1], [], []>} : vector<128x128xf32>, vector<128x16xf32>, vector<128x16xf32> -> vector<128x16xf32>
    %264 = vector.extract_strided_slice %229 {offsets = [0, 32], sizes = [128, 16], strides = [1, 1]} : vector<128x192xf32> to vector<128x16xf32>
    %cst_118 = arith.constant 2.500000e-01 : f32
    %265 = vector.broadcast %cst_118 : f32 to vector<128x16xf32>
    %266 = arith.mulf %264, %265 : vector<128x16xf32>
    %267 = vector.extract_strided_slice %229 {offsets = [0, 96], sizes = [128, 16], strides = [1, 1]} : vector<128x192xf32> to vector<128x16xf32>
    %268 = vector.extract_strided_slice %229 {offsets = [0, 160], sizes = [128, 16], strides = [1, 1]} : vector<128x192xf32> to vector<128x16xf32>
    %cst_119 = arith.constant dense<0.000000e+00> : vector<128x128xf32>
    %269 = tpu.matmul %266, %267, %cst_119 {dimension_numbers = #tpu.dot_dimension_numbers<[1], [1], [0], [0], [0, 0, 1, 0], [], []>} : vector<128x16xf32>, vector<128x16xf32>, vector<128x128xf32> -> vector<128x128xf32>
    %270 = arith.addf %269, %4 : vector<128x128xf32>
    %cst_120 = arith.constant dense<0xFF800000> : vector<128xf32>
    %271 = vector.multi_reduction <maximumf>, %270, %cst_120 [1] : vector<128x128xf32> to vector<128xf32>
    %272 = vector.shape_cast %271 : vector<128xf32> to vector<128x1xf32>
    %273 = vector.broadcast %272 : vector<128x1xf32> to vector<128x128xf32>
    %274 = arith.subf %270, %273 : vector<128x128xf32>
    %275 = math.exp %274 : vector<128x128xf32>
    %cst_121 = arith.constant dense<0.000000e+00> : vector<128xf32>
    %276 = vector.multi_reduction <add>, %275, %cst_121 [1] : vector<128x128xf32> to vector<128xf32>
    %277 = vector.shape_cast %276 : vector<128xf32> to vector<128x1xf32>
    %278 = vector.broadcast %277 : vector<128x1xf32> to vector<128x128xf32>
    %279 = arith.divf %275, %278 : vector<128x128xf32>
    %cst_122 = arith.constant dense<0.000000e+00> : vector<128x16xf32>
    %280 = tpu.matmul %279, %268, %cst_122 {dimension_numbers = #tpu.dot_dimension_numbers<[1], [0], [0], [1], [0, 0, 1, 1], [], []>} : vector<128x128xf32>, vector<128x16xf32>, vector<128x16xf32> -> vector<128x16xf32>
    %281 = vector.extract_strided_slice %229 {offsets = [0, 48], sizes = [128, 16], strides = [1, 1]} : vector<128x192xf32> to vector<128x16xf32>
    %cst_123 = arith.constant 2.500000e-01 : f32
    %282 = vector.broadcast %cst_123 : f32 to vector<128x16xf32>
    %283 = arith.mulf %281, %282 : vector<128x16xf32>
    %284 = vector.extract_strided_slice %229 {offsets = [0, 112], sizes = [128, 16], strides = [1, 1]} : vector<128x192xf32> to vector<128x16xf32>
    %285 = vector.extract_strided_slice %229 {offsets = [0, 176], sizes = [128, 16], strides = [1, 1]} : vector<128x192xf32> to vector<128x16xf32>
    %cst_124 = arith.constant dense<0.000000e+00> : vector<128x128xf32>
    %286 = tpu.matmul %283, %284, %cst_124 {dimension_numbers = #tpu.dot_dimension_numbers<[1], [1], [0], [0], [0, 0, 1, 0], [], []>} : vector<128x16xf32>, vector<128x16xf32>, vector<128x128xf32> -> vector<128x128xf32>
    %287 = arith.addf %286, %4 : vector<128x128xf32>
    %cst_125 = arith.constant dense<0xFF800000> : vector<128xf32>
    %288 = vector.multi_reduction <maximumf>, %287, %cst_125 [1] : vector<128x128xf32> to vector<128xf32>
    %289 = vector.shape_cast %288 : vector<128xf32> to vector<128x1xf32>
    %290 = vector.broadcast %289 : vector<128x1xf32> to vector<128x128xf32>
    %291 = arith.subf %287, %290 : vector<128x128xf32>
    %292 = math.exp %291 : vector<128x128xf32>
    %cst_126 = arith.constant dense<0.000000e+00> : vector<128xf32>
    %293 = vector.multi_reduction <add>, %292, %cst_126 [1] : vector<128x128xf32> to vector<128xf32>
    %294 = vector.shape_cast %293 : vector<128xf32> to vector<128x1xf32>
    %295 = vector.broadcast %294 : vector<128x1xf32> to vector<128x128xf32>
    %296 = arith.divf %292, %295 : vector<128x128xf32>
    %cst_127 = arith.constant dense<0.000000e+00> : vector<128x16xf32>
    %297 = tpu.matmul %296, %285, %cst_127 {dimension_numbers = #tpu.dot_dimension_numbers<[1], [0], [0], [1], [0, 0, 1, 1], [], []>} : vector<128x128xf32>, vector<128x16xf32>, vector<128x16xf32> -> vector<128x16xf32>
    %298 = tpu.concatenate %246, %263, %280, %297 in 1 : vector<128x16xf32>, vector<128x16xf32>, vector<128x16xf32>, vector<128x16xf32> -> vector<128x64xf32>
    %c1_128 = arith.constant 1 : index
    %c0_129 = arith.constant 0 : index
    %c0_130 = arith.constant 0 : index
    %299 = vector.load %arg9[%c1_128, %c0_129, %c0_130] : memref<2x64x64xf32, #tpu.memory_space<vmem>>, vector<1x64x64xf32>
    %300 = vector.shape_cast %299 : vector<1x64x64xf32> to vector<64x64xf32>
    %cst_131 = arith.constant dense<0.000000e+00> : vector<128x64xf32>
    %301 = tpu.matmul %298, %300, %cst_131 {dimension_numbers = #tpu.dot_dimension_numbers<[1], [0], [0], [1], [0, 0, 1, 1], [], []>} : vector<128x64xf32>, vector<64x64xf32>, vector<128x64xf32> -> vector<128x64xf32>
    %c1_132 = arith.constant 1 : index
    %c0_133 = arith.constant 0 : index
    %c0_134 = arith.constant 0 : index
    %302 = vector.load %arg10[%c1_132, %c0_133, %c0_134] : memref<2x1x64xf32, #tpu.memory_space<vmem>>, vector<1x1x64xf32>
    %303 = vector.shape_cast %302 : vector<1x1x64xf32> to vector<1x64xf32>
    %304 = vector.broadcast %303 : vector<1x64xf32> to vector<128x64xf32>
    %305 = arith.addf %301, %304 : vector<128x64xf32>
    %306 = arith.addf %196, %305 : vector<128x64xf32>
    %c1_135 = arith.constant 1 : index
    %c0_136 = arith.constant 0 : index
    %c0_137 = arith.constant 0 : index
    %307 = vector.load %arg11[%c1_135, %c0_136, %c0_137] : memref<2x1x64xf32, #tpu.memory_space<vmem>>, vector<1x1x64xf32>
    %308 = vector.shape_cast %307 : vector<1x1x64xf32> to vector<1x64xf32>
    %c1_138 = arith.constant 1 : index
    %c0_139 = arith.constant 0 : index
    %c0_140 = arith.constant 0 : index
    %309 = vector.load %arg12[%c1_138, %c0_139, %c0_140] : memref<2x1x64xf32, #tpu.memory_space<vmem>>, vector<1x1x64xf32>
    %310 = vector.shape_cast %309 : vector<1x1x64xf32> to vector<1x64xf32>
    %cst_141 = arith.constant dense<0.000000e+00> : vector<128xf32>
    %311 = vector.multi_reduction <add>, %306, %cst_141 [1] : vector<128x64xf32> to vector<128xf32>
    %312 = vector.shape_cast %311 : vector<128xf32> to vector<128x1xf32>
    %cst_142 = arith.constant 6.400000e+01 : f32
    %313 = vector.broadcast %cst_142 : f32 to vector<128x1xf32>
    %314 = arith.divf %312, %313 : vector<128x1xf32>
    %315 = vector.broadcast %314 : vector<128x1xf32> to vector<128x64xf32>
    %316 = arith.subf %306, %315 : vector<128x64xf32>
    %317 = arith.mulf %316, %316 : vector<128x64xf32>
    %cst_143 = arith.constant dense<0.000000e+00> : vector<128xf32>
    %318 = vector.multi_reduction <add>, %317, %cst_143 [1] : vector<128x64xf32> to vector<128xf32>
    %319 = vector.shape_cast %318 : vector<128xf32> to vector<128x1xf32>
    %cst_144 = arith.constant 6.400000e+01 : f32
    %320 = vector.broadcast %cst_144 : f32 to vector<128x1xf32>
    %321 = arith.divf %319, %320 : vector<128x1xf32>
    %322 = vector.broadcast %314 : vector<128x1xf32> to vector<128x64xf32>
    %323 = arith.subf %306, %322 : vector<128x64xf32>
    %cst_145 = arith.constant 9.99999997E-7 : f32
    %324 = vector.broadcast %cst_145 : f32 to vector<128x1xf32>
    %325 = arith.addf %321, %324 : vector<128x1xf32>
    %326 = math.rsqrt %325 : vector<128x1xf32>
    %327 = vector.broadcast %326 : vector<128x1xf32> to vector<128x64xf32>
    %328 = arith.mulf %323, %327 : vector<128x64xf32>
    %329 = vector.broadcast %308 : vector<1x64xf32> to vector<128x64xf32>
    %330 = arith.mulf %328, %329 : vector<128x64xf32>
    %331 = vector.broadcast %310 : vector<1x64xf32> to vector<128x64xf32>
    %332 = arith.addf %330, %331 : vector<128x64xf32>
    %c1_146 = arith.constant 1 : index
    %c0_147 = arith.constant 0 : index
    %c0_148 = arith.constant 0 : index
    %333 = vector.load %arg13[%c1_146, %c0_147, %c0_148] : memref<2x64x256xf32, #tpu.memory_space<vmem>>, vector<1x64x256xf32>
    %334 = vector.shape_cast %333 : vector<1x64x256xf32> to vector<64x256xf32>
    %cst_149 = arith.constant dense<0.000000e+00> : vector<128x256xf32>
    %335 = tpu.matmul %332, %334, %cst_149 {dimension_numbers = #tpu.dot_dimension_numbers<[1], [0], [0], [1], [0, 0, 1, 1], [], []>} : vector<128x64xf32>, vector<64x256xf32>, vector<128x256xf32> -> vector<128x256xf32>
    %c1_150 = arith.constant 1 : index
    %c0_151 = arith.constant 0 : index
    %c0_152 = arith.constant 0 : index
    %336 = vector.load %arg14[%c1_150, %c0_151, %c0_152] : memref<2x1x256xf32, #tpu.memory_space<vmem>>, vector<1x1x256xf32>
    %337 = vector.shape_cast %336 : vector<1x1x256xf32> to vector<1x256xf32>
    %338 = vector.broadcast %337 : vector<1x256xf32> to vector<128x256xf32>
    %339 = arith.addf %335, %338 : vector<128x256xf32>
    %cst_153 = arith.constant 5.000000e-01 : f32
    %340 = vector.broadcast %cst_153 : f32 to vector<128x256xf32>
    %341 = arith.mulf %340, %339 : vector<128x256xf32>
    %cst_154 = arith.constant 0.707106769 : f32
    %342 = vector.broadcast %cst_154 : f32 to vector<128x256xf32>
    %343 = arith.mulf %339, %342 : vector<128x256xf32>
    %cst_155 = arith.constant 0.000000e+00 : f32
    %344 = vector.broadcast %cst_155 : f32 to vector<128x256xf32>
    %345 = arith.cmpf oge, %343, %344 : vector<128x256xf32>
    %cst_156 = arith.constant 1.000000e+00 : f32
    %cst_157 = arith.constant -1.000000e+00 : f32
    %346 = vector.broadcast %cst_156 : f32 to vector<128x256xf32>
    %347 = vector.broadcast %cst_157 : f32 to vector<128x256xf32>
    %348 = arith.select %345, %346, %347 : vector<128x256xi1>, vector<128x256xf32>
    %349 = math.absf %343 : vector<128x256xf32>
    %cst_158 = arith.constant 0.327591091 : f32
    %350 = vector.broadcast %cst_158 : f32 to vector<128x256xf32>
    %351 = arith.mulf %350, %349 : vector<128x256xf32>
    %cst_159 = arith.constant 1.000000e+00 : f32
    %352 = vector.broadcast %cst_159 : f32 to vector<128x256xf32>
    %353 = arith.addf %352, %351 : vector<128x256xf32>
    %cst_160 = arith.constant 1.000000e+00 : f32
    %354 = vector.broadcast %cst_160 : f32 to vector<128x256xf32>
    %355 = arith.divf %354, %353 : vector<128x256xf32>
    %cst_161 = arith.constant 1.06140542 : f32
    %356 = vector.broadcast %cst_161 : f32 to vector<128x256xf32>
    %357 = arith.mulf %356, %355 : vector<128x256xf32>
    %cst_162 = arith.constant -1.45315206 : f32
    %358 = vector.broadcast %cst_162 : f32 to vector<128x256xf32>
    %359 = arith.addf %357, %358 : vector<128x256xf32>
    %360 = arith.mulf %359, %355 : vector<128x256xf32>
    %cst_163 = arith.constant 1.42141378 : f32
    %361 = vector.broadcast %cst_163 : f32 to vector<128x256xf32>
    %362 = arith.addf %360, %361 : vector<128x256xf32>
    %363 = arith.mulf %362, %355 : vector<128x256xf32>
    %cst_164 = arith.constant -0.284496725 : f32
    %364 = vector.broadcast %cst_164 : f32 to vector<128x256xf32>
    %365 = arith.addf %363, %364 : vector<128x256xf32>
    %366 = arith.mulf %365, %355 : vector<128x256xf32>
    %cst_165 = arith.constant 0.254829586 : f32
    %367 = vector.broadcast %cst_165 : f32 to vector<128x256xf32>
    %368 = arith.addf %366, %367 : vector<128x256xf32>
    %369 = arith.mulf %368, %355 : vector<128x256xf32>
    %cst_166 = arith.constant 0.000000e+00 : f32
    %370 = vector.broadcast %cst_166 : f32 to vector<128x256xf32>
    %371 = arith.subf %370, %349 : vector<128x256xf32>
    %372 = arith.mulf %371, %349 : vector<128x256xf32>
    %373 = math.exp %372 : vector<128x256xf32>
    %374 = arith.mulf %369, %373 : vector<128x256xf32>
    %cst_167 = arith.constant 1.000000e+00 : f32
    %375 = vector.broadcast %cst_167 : f32 to vector<128x256xf32>
    %376 = arith.subf %375, %374 : vector<128x256xf32>
    %377 = arith.mulf %348, %376 : vector<128x256xf32>
    %cst_168 = arith.constant 1.000000e+00 : f32
    %378 = vector.broadcast %cst_168 : f32 to vector<128x256xf32>
    %379 = arith.addf %378, %377 : vector<128x256xf32>
    %380 = arith.mulf %341, %379 : vector<128x256xf32>
    %c1_169 = arith.constant 1 : index
    %c0_170 = arith.constant 0 : index
    %c0_171 = arith.constant 0 : index
    %381 = vector.load %arg15[%c1_169, %c0_170, %c0_171] : memref<2x256x64xf32, #tpu.memory_space<vmem>>, vector<1x256x64xf32>
    %382 = vector.shape_cast %381 : vector<1x256x64xf32> to vector<256x64xf32>
    %cst_172 = arith.constant dense<0.000000e+00> : vector<128x64xf32>
    %383 = tpu.matmul %380, %382, %cst_172 {dimension_numbers = #tpu.dot_dimension_numbers<[1], [0], [0], [1], [0, 0, 1, 1], [], []>} : vector<128x256xf32>, vector<256x64xf32>, vector<128x64xf32> -> vector<128x64xf32>
    %384 = arith.addf %306, %383 : vector<128x64xf32>
    %c1_173 = arith.constant 1 : index
    %c0_174 = arith.constant 0 : index
    %c0_175 = arith.constant 0 : index
    %385 = vector.load %arg16[%c1_173, %c0_174, %c0_175] : memref<2x1x64xf32, #tpu.memory_space<vmem>>, vector<1x1x64xf32>
    %386 = vector.shape_cast %385 : vector<1x1x64xf32> to vector<1x64xf32>
    %387 = vector.broadcast %386 : vector<1x64xf32> to vector<128x64xf32>
    %388 = arith.addf %384, %387 : vector<128x64xf32>
    %c0_176 = arith.constant 0 : index
    %c0_177 = arith.constant 0 : index
    %c0_178 = arith.constant 0 : index
    %389 = vector.load %arg17[%c0_176, %c0_177, %c0_178] : memref<1x128x64xf32, #tpu.memory_space<vmem>>, vector<1x128x64xf32>
    %390 = vector.shape_cast %389 : vector<1x128x64xf32> to vector<128x64xf32>
    %391 = vector.shape_cast %388 : vector<128x64xf32> to vector<1x128x64xf32>
    tpu.vector_store %arg17[%c0_176, %c0_177, %c0_178], %391 {strides = array<i32>} : memref<1x128x64xf32, #tpu.memory_space<vmem>>, vector<1x128x64xf32>,
    return
  }
  func.func @transform_0(%arg0: i32, %arg1: i32) -> (i32, i32, i32) {
    %c0_i32 = arith.constant 0 : i32
    %c0_i32_0 = arith.constant 0 : i32
    return %arg0, %arg1, %c0_i32 : i32, i32, i32
  }
  func.func @transform_1(%arg0: i32, %arg1: i32) -> (i32, i32) {
    %c0_i32 = arith.constant 0 : i32
    %c0_i32_0 = arith.constant 0 : i32
    return %arg1, %c0_i32 : i32, i32
  }
  func.func @transform_2(%arg0: i32, %arg1: i32) -> (i32, i32) {
    %c0_i32 = arith.constant 0 : i32
    %c0_i32_0 = arith.constant 0 : i32
    %c0_i32_1 = arith.constant 0 : i32
    return %c0_i32, %c0_i32_0 : i32, i32
  }
  func.func @transform_3(%arg0: i32, %arg1: i32) -> (i32, i32, i32) {
    %c0_i32 = arith.constant 0 : i32
    %c0_i32_0 = arith.constant 0 : i32
    %c0_i32_1 = arith.constant 0 : i32
    %c0_i32_2 = arith.constant 0 : i32
    return %c0_i32, %c0_i32_0, %c0_i32_1 : i32, i32, i32
  }
  func.func @transform_4(%arg0: i32, %arg1: i32) -> (i32, i32, i32) {
    %c0_i32 = arith.constant 0 : i32
    %c0_i32_0 = arith.constant 0 : i32
    %c0_i32_1 = arith.constant 0 : i32
    %c0_i32_2 = arith.constant 0 : i32
    return %c0_i32, %c0_i32_0, %c0_i32_1 : i32, i32, i32
  }
  func.func @transform_5(%arg0: i32, %arg1: i32) -> (i32, i32, i32) {
    %c0_i32 = arith.constant 0 : i32
    %c0_i32_0 = arith.constant 0 : i32
    %c0_i32_1 = arith.constant 0 : i32
    %c0_i32_2 = arith.constant 0 : i32
    return %c0_i32, %c0_i32_0, %c0_i32_1 : i32, i32, i32
  }
  func.func @transform_6(%arg0: i32, %arg1: i32) -> (i32, i32, i32) {
    %c0_i32 = arith.constant 0 : i32
    %c0_i32_0 = arith.constant 0 : i32
    %c0_i32_1 = arith.constant 0 : i32
    %c0_i32_2 = arith.constant 0 : i32
    return %c0_i32, %c0_i32_0, %c0_i32_1 : i32, i32, i32
  }
  func.func @transform_7(%arg0: i32, %arg1: i32) -> (i32, i32, i32) {
    %c0_i32 = arith.constant 0 : i32
    %c0_i32_0 = arith.constant 0 : i32
    %c0_i32_1 = arith.constant 0 : i32
    %c0_i32_2 = arith.constant 0 : i32
    return %c0_i32, %c0_i32_0, %c0_i32_1 : i32, i32, i32
  }
  func.func @transform_8(%arg0: i32, %arg1: i32) -> (i32, i32, i32) {
    %c0_i32 = arith.constant 0 : i32
    %c0_i32_0 = arith.constant 0 : i32
    %c0_i32_1 = arith.constant 0 : i32
    %c0_i32_2 = arith.constant 0 : i32
    return %c0_i32, %c0_i32_0, %c0_i32_1 : i32, i32, i32
  }
  func.func @transform_9(%arg0: i32, %arg1: i32) -> (i32, i32, i32) {
    %c0_i32 = arith.constant 0 : i32
    %c0_i32_0 = arith.constant 0 : i32
    %c0_i32_1 = arith.constant 0 : i32
    %c0_i32_2 = arith.constant 0 : i32
    return %c0_i32, %c0_i32_0, %c0_i32_1 : i32, i32, i32
  }
  func.func @transform_10(%arg0: i32, %arg1: i32) -> (i32, i32, i32) {
    %c0_i32 = arith.constant 0 : i32
    %c0_i32_0 = arith.constant 0 : i32
    %c0_i32_1 = arith.constant 0 : i32
    %c0_i32_2 = arith.constant 0 : i32
    return %c0_i32, %c0_i32_0, %c0_i32_1 : i32, i32, i32
  }
  func.func @transform_11(%arg0: i32, %arg1: i32) -> (i32, i32, i32) {
    %c0_i32 = arith.constant 0 : i32
    %c0_i32_0 = arith.constant 0 : i32
    %c0_i32_1 = arith.constant 0 : i32
    %c0_i32_2 = arith.constant 0 : i32
    return %c0_i32, %c0_i32_0, %c0_i32_1 : i32, i32, i32
  }
  func.func @transform_12(%arg0: i32, %arg1: i32) -> (i32, i32, i32) {
    %c0_i32 = arith.constant 0 : i32
    %c0_i32_0 = arith.constant 0 : i32
    %c0_i32_1 = arith.constant 0 : i32
    %c0_i32_2 = arith.constant 0 : i32
    return %c0_i32, %c0_i32_0, %c0_i32_1 : i32, i32, i32
  }
  func.func @transform_13(%arg0: i32, %arg1: i32) -> (i32, i32, i32) {
    %c0_i32 = arith.constant 0 : i32
    %c0_i32_0 = arith.constant 0 : i32
    %c0_i32_1 = arith.constant 0 : i32
    %c0_i32_2 = arith.constant 0 : i32
    return %c0_i32, %c0_i32_0, %c0_i32_1 : i32, i32, i32
  }
  func.func @transform_14(%arg0: i32, %arg1: i32) -> (i32, i32, i32) {
    %c0_i32 = arith.constant 0 : i32
    %c0_i32_0 = arith.constant 0 : i32
    %c0_i32_1 = arith.constant 0 : i32
    %c0_i32_2 = arith.constant 0 : i32
    return %c0_i32, %c0_i32_0, %c0_i32_1 : i32, i32, i32
  }
  func.func @transform_15(%arg0: i32, %arg1: i32) -> (i32, i32, i32) {
    %c0_i32 = arith.constant 0 : i32
    %c0_i32_0 = arith.constant 0 : i32
    return %arg0, %arg1, %c0_i32 : i32, i32, i32
  }
}

</mosaic_0001>

<llo_original>
// kernel: tpu_custom_call.1
$region0: #{tpu_custom_call.1}
  #allocation0 [shape = 'u32[]', space=smem, size = 0x4, offset = 0x4, fixed_abs, tag = 'smem constant byte address 0x4 - core index']
  #allocation1 [shape = 'u32[144,128]{1,0:T(1,128)}', space=vmem, size = 0x12000, scoped, tag = 'internal scratch']
  %s0 = inlined_call_operand.vmem [shape: f32[2,256,64], index: 0, kind: input, shape index: {}]
  %s1 = inlined_call_operand.vmem [shape: f32[256,64], index: 1, kind: input, shape index: {}]
  %s2 = inlined_call_operand.vmem [shape: f32[128,128], index: 2, kind: input, shape index: {}]
  %s3 = inlined_call_operand.vmem [shape: f32[2,1,64], index: 3, kind: input, shape index: {}]
  %s4 = inlined_call_operand.vmem [shape: f32[2,1,64], index: 4, kind: input, shape index: {}]
  %s5 = inlined_call_operand.vmem [shape: f32[2,64,192], index: 5, kind: input, shape index: {}]
  %s6 = inlined_call_operand.vmem [shape: f32[2,1,192], index: 6, kind: input, shape index: {}]
  %s7 = inlined_call_operand.vmem [shape: f32[2,64,64], index: 7, kind: input, shape index: {}]
  %s8 = inlined_call_operand.vmem [shape: f32[2,1,64], index: 8, kind: input, shape index: {}]
  %s9 = inlined_call_operand.vmem [shape: f32[2,1,64], index: 9, kind: input, shape index: {}]
  %s10 = inlined_call_operand.vmem [shape: f32[2,1,64], index: 10, kind: input, shape index: {}]
  %s11 = inlined_call_operand.vmem [shape: f32[2,64,256], index: 11, kind: input, shape index: {}]
  %s12 = inlined_call_operand.vmem [shape: f32[2,1,256], index: 12, kind: input, shape index: {}]
  %s13 = inlined_call_operand.vmem [shape: f32[2,256,64], index: 13, kind: input, shape index: {}]
  %s14 = inlined_call_operand.vmem [shape: f32[2,1,64], index: 14, kind: input, shape index: {}]
  %s15 = inlined_call_operand.vmem [shape: f32[2,256,64], index: 15, kind: output, shape index: {}]
  %s16 = sld [smem:[#allocation0]]
  $region93: #{tpu_custom_call.1} parent=0
    _
  %s18 = ssub.s32 1, %s16
  %s19 = scalar_select 0, %s18, %s16
  loop: start=0, step=1, limit=6
  $region2: #{tpu_custom_call.1} parent=0 // loop_pre_header
    _
  $region3: #{tpu_custom_call.1} parent=0 // loop_header
    %s21 = sphi 0, %s25
    %p22 = scmp.ge.s32.totalorder %s21, 6
    %s28 = sphi 0, %s40
    %s29 = sphi 0, %s36
    %s30 = sphi 0, %s28
    %s31 = sphi 0, %s29
    %s32 = sphi 0, %s30
    %s33 = sphi 0, %s31
    %s45 = sphi 0, %s47
    %s48 = sphi 0, %s45
    %s49 = sphi 0, %s48
    %s65 = sphi 0, %s49
    %s71 = sphi 0, %s73
    %s74 = sphi 0, %s71
    %s75 = sphi 0, %s74
    %s91 = sphi 0, %s75
    %s95 = sphi 0, %s95
    %s97 = sphi 0, %s95
    %s98 = sphi 0, %s97
    %s112 = sphi 0, %s98
    %s116 = sphi 0, %s116
    %s118 = sphi 0, %s116
    %s119 = sphi 0, %s118
    %s133 = sphi 0, %s119
    %s137 = sphi 0, %s137
    %s139 = sphi 0, %s137
    %s140 = sphi 0, %s139
    %s154 = sphi 0, %s140
    %s158 = sphi 0, %s158
    %s160 = sphi 0, %s158
    %s161 = sphi 0, %s160
    %s175 = sphi 0, %s161
    %s179 = sphi 0, %s179
    %s181 = sphi 0, %s179
    %s182 = sphi 0, %s181
    %s196 = sphi 0, %s182
    %s200 = sphi 0, %s200
    %s202 = sphi 0, %s200
    %s203 = sphi 0, %s202
    %s217 = sphi 0, %s203
    %s221 = sphi 0, %s221
    %s223 = sphi 0, %s221
    %s224 = sphi 0, %s223
    %s238 = sphi 0, %s224
    %s242 = sphi 0, %s242
    %s244 = sphi 0, %s242
    %s245 = sphi 0, %s244
    %s259 = sphi 0, %s245
    %s263 = sphi 0, %s263
    %s265 = sphi 0, %s263
    %s266 = sphi 0, %s265
    %s280 = sphi 0, %s266
    %s284 = sphi 0, %s284
    %s286 = sphi 0, %s284
    %s287 = sphi 0, %s286
    %s301 = sphi 0, %s287
    %s305 = sphi 0, %s305
    %s307 = sphi 0, %s305
    %s308 = sphi 0, %s307
    %s322 = sphi 0, %s308
    %s326 = sphi 0, %s326
    %s328 = sphi 0, %s326
    %s329 = sphi 0, %s328
    %s343 = sphi 0, %s329
    %s347 = sphi 0, %s347
    %s349 = sphi 0, %s347
    %s350 = sphi 0, %s349
    %s364 = sphi 0, %s350
    %s372 = sphi 0, %s374
    %s375 = sphi 0, %s372
    %s376 = sphi 0, %s375
    %s392 = sphi 0, %s376
  $region4: #{tpu_custom_call.1} parent=0 // loop_header_branch
    %24 = sbr.rel (%p22) target = $region8
  $region5: #{tpu_custom_call.1} parent=0 // loop_body
    %s26 = ssub.s32 %s21, 1
    %s27 = ssub.s32 %s21, 2
    %s34 = sadd.s32 1, %s29
    %p35 = scmp.ge.s32.totalorder %s34, 2
    %s36 = scalar_select %p35, 0, %s34
    %s37 = sadd.s32 1, %s28
    %s38 = scalar_select %p35, %s37, %s28
    %p39 = scmp.ge.s32.totalorder %s38, 2
    %s40 = scalar_select %p39, 0, %s38
    %s41 = ssub.s32 %s28, %s40
    %s42 = ssub.s32 %s29, %s36
    %s43 = sor.u32 %s41, %s42
    %p44 = scmp.eq.s32.totalorder %s43, 0
    %s46 = sadd.s32 %s45, 1
    %s47 = scalar_select %p44, %s45, %s46
    %p50 = pneg %p44
    %p51 = scmp.eq.s32.totalorder %s21, 3
    %p52 = por %p50, %p51
    %p53 = scmp.ne.s32.totalorder %s45, %s48
    %p54 = scmp.eq.s32.totalorder %s21, 0
    %p55 = por %p53, %p54
    %p56 = scmp.ne.s32.totalorder %s45, %s48
    %p57 = scmp.eq.s32.totalorder %s26, 3
    %p58 = por %p56, %p57
    %p59 = scmp.ne.s32.totalorder %s48, %s49
    %p60 = scmp.eq.s32.totalorder %s26, 0
    %p61 = por %p59, %p60
    %p62 = scmp.ne.s32.totalorder %s48, %s49
    %p63 = scmp.eq.s32.totalorder %s27, 3
    %p64 = por %p62, %p63
    %p66 = scmp.ne.s32.totalorder %s49, %s65
    %p67 = scmp.eq.s32.totalorder %s27, 0
    %p68 = por %p66, %p67
    %s69 = ssub.s32 %s29, %s36
    %p70 = scmp.eq.s32.totalorder %s69, 0
    %s72 = sadd.s32 %s71, 1
    %s73 = scalar_select %p70, %s71, %s72
    %p76 = pneg %p70
    %p77 = scmp.eq.s32.totalorder %s21, 3
    %p78 = por %p76, %p77
    %p79 = scmp.ne.s32.totalorder %s71, %s74
    %p80 = scmp.eq.s32.totalorder %s21, 0
    %p81 = por %p79, %p80
    %p82 = scmp.ne.s32.totalorder %s71, %s74
    %p83 = scmp.eq.s32.totalorder %s26, 3
    %p84 = por %p82, %p83
    %p85 = scmp.ne.s32.totalorder %s74, %s75
    %p86 = scmp.eq.s32.totalorder %s26, 0
    %p87 = por %p85, %p86
    %p88 = scmp.ne.s32.totalorder %s74, %s75
    %p89 = scmp.eq.s32.totalorder %s27, 3
    %p90 = por %p88, %p89
    %p92 = scmp.ne.s32.totalorder %s75, %s91
    %p93 = scmp.eq.s32.totalorder %s27, 0
    %p94 = por %p92, %p93
    %s96 = sadd.s32 %s95, 1
    %p99 = scmp.eq.s32.totalorder %s21, 3
    %p100 = scmp.ne.s32.totalorder %s95, %s97
    %p101 = scmp.eq.s32.totalorder %s21, 0
    %p102 = por %p100, %p101
    %p103 = scmp.ne.s32.totalorder %s95, %s97
    %p104 = scmp.eq.s32.totalorder %s26, 3
    %p105 = por %p103, %p104
    %p106 = scmp.ne.s32.totalorder %s97, %s98
    %p107 = scmp.eq.s32.totalorder %s26, 0
    %p108 = por %p106, %p107
    %p109 = scmp.ne.s32.totalorder %s97, %s98
    %p110 = scmp.eq.s32.totalorder %s27, 3
    %p111 = por %p109, %p110
    %p113 = scmp.ne.s32.totalorder %s98, %s112
    %p114 = scmp.eq.s32.totalorder %s27, 0
    %p115 = por %p113, %p114
    %s117 = sadd.s32 %s116, 1
    %p120 = scmp.eq.s32.totalorder %s21, 3
    %p121 = scmp.ne.s32.totalorder %s116, %s118
    %p122 = scmp.eq.s32.totalorder %s21, 0
    %p123 = por %p121, %p122
    %p124 = scmp.ne.s32.totalorder %s116, %s118
    %p125 = scmp.eq.s32.totalorder %s26, 3
    %p126 = por %p124, %p125
    %p127 = scmp.ne.s32.totalorder %s118, %s119
    %p128 = scmp.eq.s32.totalorder %s26, 0
    %p129 = por %p127, %p128
    %p130 = scmp.ne.s32.totalorder %s118, %s119
    %p131 = scmp.eq.s32.totalorder %s27, 3
    %p132 = por %p130, %p131
    %p134 = scmp.ne.s32.totalorder %s119, %s133
    %p135 = scmp.eq.s32.totalorder %s27, 0
    %p136 = por %p134, %p135
    %s138 = sadd.s32 %s137, 1
    %p141 = scmp.eq.s32.totalorder %s21, 3
    %p142 = scmp.ne.s32.totalorder %s137, %s139
    %p143 = scmp.eq.s32.totalorder %s21, 0
    %p144 = por %p142, %p143
    %p145 = scmp.ne.s32.totalorder %s137, %s139
    %p146 = scmp.eq.s32.totalorder %s26, 3
    %p147 = por %p145, %p146
    %p148 = scmp.ne.s32.totalorder %s139, %s140
    %p149 = scmp.eq.s32.totalorder %s26, 0
    %p150 = por %p148, %p149
    %p151 = scmp.ne.s32.totalorder %s139, %s140
    %p152 = scmp.eq.s32.totalorder %s27, 3
    %p153 = por %p151, %p152
    %p155 = scmp.ne.s32.totalorder %s140, %s154
    %p156 = scmp.eq.s32.totalorder %s27, 0
    %p157 = por %p155, %p156
    %s159 = sadd.s32 %s158, 1
    %p162 = scmp.eq.s32.totalorder %s21, 3
    %p163 = scmp.ne.s32.totalorder %s158, %s160
    %p164 = scmp.eq.s32.totalorder %s21, 0
    %p165 = por %p163, %p164
    %p166 = scmp.ne.s32.totalorder %s158, %s160
    %p167 = scmp.eq.s32.totalorder %s26, 3
    %p168 = por %p166, %p167
    %p169 = scmp.ne.s32.totalorder %s160, %s161
    %p170 = scmp.eq.s32.totalorder %s26, 0
    %p171 = por %p169, %p170
    %p172 = scmp.ne.s32.totalorder %s160, %s161
    %p173 = scmp.eq.s32.totalorder %s27, 3
    %p174 = por %p172, %p173
    %p176 = scmp.ne.s32.totalorder %s161, %s175
    %p177 = scmp.eq.s32.totalorder %s27, 0
    %p178 = por %p176, %p177
    %s180 = sadd.s32 %s179, 1
    %p183 = scmp.eq.s32.totalorder %s21, 3
    %p184 = scmp.ne.s32.totalorder %s179, %s181
    %p185 = scmp.eq.s32.totalorder %s21, 0
    %p186 = por %p184, %p185
    %p187 = scmp.ne.s32.totalorder %s179, %s181
    %p188 = scmp.eq.s32.totalorder %s26, 3
    %p189 = por %p187, %p188
    %p190 = scmp.ne.s32.totalorder %s181, %s182
    %p191 = scmp.eq.s32.totalorder %s26, 0
    %p192 = por %p190, %p191
    %p193 = scmp.ne.s32.totalorder %s181, %s182
    %p194 = scmp.eq.s32.totalorder %s27, 3
    %p195 = por %p193, %p194
    %p197 = scmp.ne.s32.totalorder %s182, %s196
    %p198 = scmp.eq.s32.totalorder %s27, 0
    %p199 = por %p197, %p198
    %s201 = sadd.s32 %s200, 1
    %p204 = scmp.eq.s32.totalorder %s21, 3
    %p205 = scmp.ne.s32.totalorder %s200, %s202
    %p206 = scmp.eq.s32.totalorder %s21, 0
    %p207 = por %p205, %p206
    %p208 = scmp.ne.s32.totalorder %s200, %s202
    %p209 = scmp.eq.s32.totalorder %s26, 3
    %p210 = por %p208, %p209
    %p211 = scmp.ne.s32.totalorder %s202, %s203
    %p212 = scmp.eq.s32.totalorder %s26, 0
    %p213 = por %p211, %p212
    %p214 = scmp.ne.s32.totalorder %s202, %s203
    %p215 = scmp.eq.s32.totalorder %s27, 3
    %p216 = por %p214, %p215
    %p218 = scmp.ne.s32.totalorder %s203, %s217
    %p219 = scmp.eq.s32.totalorder %s27, 0
    %p220 = por %p218, %p219
    %s222 = sadd.s32 %s221, 1
    %p225 = scmp.eq.s32.totalorder %s21, 3
    %p226 = scmp.ne.s32.totalorder %s221, %s223
    %p227 = scmp.eq.s32.totalorder %s21, 0
    %p228 = por %p226, %p227
    %p229 = scmp.ne.s32.totalorder %s221, %s223
    %p230 = scmp.eq.s32.totalorder %s26, 3
    %p231 = por %p229, %p230
    %p232 = scmp.ne.s32.totalorder %s223, %s224
    %p233 = scmp.eq.s32.totalorder %s26, 0
    %p234 = por %p232, %p233
    %p235 = scmp.ne.s32.totalorder %s223, %s224
    %p236 = scmp.eq.s32.totalorder %s27, 3
    %p237 = por %p235, %p236
    %p239 = scmp.ne.s32.totalorder %s224, %s238
    %p240 = scmp.eq.s32.totalorder %s27, 0
    %p241 = por %p239, %p240
    %s243 = sadd.s32 %s242, 1
    %p246 = scmp.eq.s32.totalorder %s21, 3
    %p247 = scmp.ne.s32.totalorder %s242, %s244
    %p248 = scmp.eq.s32.totalorder %s21, 0
    %p249 = por %p247, %p248
    %p250 = scmp.ne.s32.totalorder %s242, %s244
    %p251 = scmp.eq.s32.totalorder %s26, 3
    %p252 = por %p250, %p251
    %p253 = scmp.ne.s32.totalorder %s244, %s245
    %p254 = scmp.eq.s32.totalorder %s26, 0
    %p255 = por %p253, %p254
    %p256 = scmp.ne.s32.totalorder %s244, %s245
    %p257 = scmp.eq.s32.totalorder %s27, 3
    %p258 = por %p256, %p257
    %p260 = scmp.ne.s32.totalorder %s245, %s259
    %p261 = scmp.eq.s32.totalorder %s27, 0
    %p262 = por %p260, %p261
    %s264 = sadd.s32 %s263, 1
    %p267 = scmp.eq.s32.totalorder %s21, 3
    %p268 = scmp.ne.s32.totalorder %s263, %s265
    %p269 = scmp.eq.s32.totalorder %s21, 0
    %p270 = por %p268, %p269
    %p271 = scmp.ne.s32.totalorder %s263, %s265
    %p272 = scmp.eq.s32.totalorder %s26, 3
    %p273 = por %p271, %p272
    %p274 = scmp.ne.s32.totalorder %s265, %s266
    %p275 = scmp.eq.s32.totalorder %s26, 0
    %p276 = por %p274, %p275
    %p277 = scmp.ne.s32.totalorder %s265, %s266
    %p278 = scmp.eq.s32.totalorder %s27, 3
    %p279 = por %p277, %p278
    %p281 = scmp.ne.s32.totalorder %s266, %s280
    %p282 = scmp.eq.s32.totalorder %s27, 0
    %p283 = por %p281, %p282
    %s285 = sadd.s32 %s284, 1
    %p288 = scmp.eq.s32.totalorder %s21, 3
    %p289 = scmp.ne.s32.totalorder %s284, %s286
    %p290 = scmp.eq.s32.totalorder %s21, 0
    %p291 = por %p289, %p290
    %p292 = scmp.ne.s32.totalorder %s284, %s286
    %p293 = scmp.eq.s32.totalorder %s26, 3
    %p294 = por %p292, %p293
    %p295 = scmp.ne.s32.totalorder %s286, %s287
    %p296 = scmp.eq.s32.totalorder %s26, 0
    %p297 = por %p295, %p296
    %p298 = scmp.ne.s32.totalorder %s286, %s287
    %p299 = scmp.eq.s32.totalorder %s27, 3
    %p300 = por %p298, %p299
    %p302 = scmp.ne.s32.totalorder %s287, %s301
    %p303 = scmp.eq.s32.totalorder %s27, 0
    %p304 = por %p302, %p303
    %s306 = sadd.s32 %s305, 1
    %p309 = scmp.eq.s32.totalorder %s21, 3
    %p310 = scmp.ne.s32.totalorder %s305, %s307
    %p311 = scmp.eq.s32.totalorder %s21, 0
    %p312 = por %p310, %p311
    %p313 = scmp.ne.s32.totalorder %s305, %s307
    %p314 = scmp.eq.s32.totalorder %s26, 3
    %p315 = por %p313, %p314
    %p316 = scmp.ne.s32.totalorder %s307, %s308
    %p317 = scmp.eq.s32.totalorder %s26, 0
    %p318 = por %p316, %p317
    %p319 = scmp.ne.s32.totalorder %s307, %s308
    %p320 = scmp.eq.s32.totalorder %s27, 3
    %p321 = por %p319, %p320
    %p323 = scmp.ne.s32.totalorder %s308, %s322
    %p324 = scmp.eq.s32.totalorder %s27, 0
    %p325 = por %p323, %p324
    %s327 = sadd.s32 %s326, 1
    %p330 = scmp.eq.s32.totalorder %s21, 3
    %p331 = scmp.ne.s32.totalorder %s326, %s328
    %p332 = scmp.eq.s32.totalorder %s21, 0
    %p333 = por %p331, %p332
    %p334 = scmp.ne.s32.totalorder %s326, %s328
    %p335 = scmp.eq.s32.totalorder %s26, 3
    %p336 = por %p334, %p335
    %p337 = scmp.ne.s32.totalorder %s328, %s329
    %p338 = scmp.eq.s32.totalorder %s26, 0
    %p339 = por %p337, %p338
    %p340 = scmp.ne.s32.totalorder %s328, %s329
    %p341 = scmp.eq.s32.totalorder %s27, 3
    %p342 = por %p340, %p341
    %p344 = scmp.ne.s32.totalorder %s329, %s343
    %p345 = scmp.eq.s32.totalorder %s27, 0
    %p346 = por %p344, %p345
    %s348 = sadd.s32 %s347, 1
    %p351 = scmp.eq.s32.totalorder %s21, 3
    %p352 = scmp.ne.s32.totalorder %s347, %s349
    %p353 = scmp.eq.s32.totalorder %s21, 0
    %p354 = por %p352, %p353
    %p355 = scmp.ne.s32.totalorder %s347, %s349
    %p356 = scmp.eq.s32.totalorder %s26, 3
    %p357 = por %p355, %p356
    %p358 = scmp.ne.s32.totalorder %s349, %s350
    %p359 = scmp.eq.s32.totalorder %s26, 0
    %p360 = por %p358, %p359
    %p361 = scmp.ne.s32.totalorder %s349, %s350
    %p362 = scmp.eq.s32.totalorder %s27, 3
    %p363 = por %p361, %p362
    %p365 = scmp.ne.s32.totalorder %s350, %s364
    %p366 = scmp.eq.s32.totalorder %s27, 0
    %p367 = por %p365, %p366
    %s368 = ssub.s32 %s28, %s40
    %s369 = ssub.s32 %s29, %s36
    %s370 = sor.u32 %s368, %s369
    %p371 = scmp.eq.s32.totalorder %s370, 0
    %s373 = sadd.s32 %s372, 1
    %s374 = scalar_select %p371, %s372, %s373
    %p377 = pneg %p371
    %p378 = scmp.eq.s32.totalorder %s21, 3
    %p379 = por %p377, %p378
    %p380 = scmp.ne.s32.totalorder %s372, %s375
    %p381 = scmp.eq.s32.totalorder %s21, 0
    %p382 = por %p380, %p381
    %p383 = scmp.ne.s32.totalorder %s372, %s375
    %p384 = scmp.eq.s32.totalorder %s26, 3
    %p385 = por %p383, %p384
    %p386 = scmp.ne.s32.totalorder %s375, %s376
    %p387 = scmp.eq.s32.totalorder %s26, 0
    %p388 = por %p386, %p387
    %p389 = scmp.ne.s32.totalorder %s375, %s376
    %p390 = scmp.eq.s32.totalorder %s27, 3
    %p391 = por %p389, %p390
    %p393 = scmp.ne.s32.totalorder %s376, %s392
    %p394 = scmp.eq.s32.totalorder %s27, 0
    %p395 = por %p393, %p394
    %p396 = scmp.le.s32.totalorder 1, %s21
    %p397 = scmp.lt.s32.totalorder %s21, 5
    %p398 = pnand %p396, %p397
    %p399 = pneg %p398
    // Predicated region
    $region9: #{tpu_custom_call.1} parent=5 // pred_check
      _
    $region10: #{tpu_custom_call.1} parent=5 // pred_check_branch
      %401 = sbr.rel (%p398) target = $region12
    $region11: #{tpu_custom_call.1} parent=5 // pred_region
      %s402 = ssub.s32 %s21, 1
      // Predicated region
      $region13: #{tpu_custom_call.1} parent=11 // pred_check
        %p403 = pneg %p108
      $region14: #{tpu_custom_call.1} parent=11 // pred_check_branch
        %405 = sbr.rel (%p403) target = $region16
      $region15: #{tpu_custom_call.1} parent=11 // pred_region
        _
      $region16: #{tpu_custom_call.1} parent=11 // pred_fallthru
        _
      // Predicated region
      $region17: #{tpu_custom_call.1} parent=11 // pred_check
        %p406 = pneg %p129
      $region18: #{tpu_custom_call.1} parent=11 // pred_check_branch
        %408 = sbr.rel (%p406) target = $region20
      $region19: #{tpu_custom_call.1} parent=11 // pred_region
        _
      $region20: #{tpu_custom_call.1} parent=11 // pred_fallthru
        _
      // Predicated region
      $region21: #{tpu_custom_call.1} parent=11 // pred_check
        %p409 = pneg %p150
      $region22: #{tpu_custom_call.1} parent=11 // pred_check_branch
        %411 = sbr.rel (%p409) target = $region24
      $region23: #{tpu_custom_call.1} parent=11 // pred_region
        _
      $region24: #{tpu_custom_call.1} parent=11 // pred_fallthru
        _
      // Predicated region
      $region25: #{tpu_custom_call.1} parent=11 // pred_check
        %p412 = pneg %p171
      $region26: #{tpu_custom_call.1} parent=11 // pred_check_branch
        %414 = sbr.rel (%p412) target = $region28
      $region27: #{tpu_custom_call.1} parent=11 // pred_region
        _
      $region28: #{tpu_custom_call.1} parent=11 // pred_fallthru
        _
      // Predicated region
      $region29: #{tpu_custom_call.1} parent=11 // pred_check
        %p415 = pneg %p192
      $region30: #{tpu_custom_call.1} parent=11 // pred_check_branch
        %417 = sbr.rel (%p415) target = $region32
      $region31: #{tpu_custom_call.1} parent=11 // pred_region
        _
      $region32: #{tpu_custom_call.1} parent=11 // pred_fallthru
        _
      // Predicated region
      $region33: #{tpu_custom_call.1} parent=11 // pred_check
        %p418 = pneg %p213
      $region34: #{tpu_custom_call.1} parent=11 // pred_check_branch
        %420 = sbr.rel (%p418) target = $region36
      $region35: #{tpu_custom_call.1} parent=11 // pred_region
        _
      $region36: #{tpu_custom_call.1} parent=11 // pred_fallthru
        _
      // Predicated region
      $region37: #{tpu_custom_call.1} parent=11 // pred_check
        %p421 = pneg %p234
      $region38: #{tpu_custom_call.1} parent=11 // pred_check_branch
        %423 = sbr.rel (%p421) target = $region40
      $region39: #{tpu_custom_call.1} parent=11 // pred_region
        _
      $region40: #{tpu_custom_call.1} parent=11 // pred_fallthru
        _
      // Predicated region
      $region41: #{tpu_custom_call.1} parent=11 // pred_check
        %p424 = pneg %p255
      $region42: #{tpu_custom_call.1} parent=11 // pred_check_branch
        %426 = sbr.rel (%p424) target = $region44
      $region43: #{tpu_custom_call.1} parent=11 // pred_region
        _
      $region44: #{tpu_custom_call.1} parent=11 // pred_fallthru
        _
      // Predicated region
      $region45: #{tpu_custom_call.1} parent=11 // pred_check
        %p427 = pneg %p276
      $region46: #{tpu_custom_call.1} parent=11 // pred_check_branch
        %429 = sbr.rel (%p427) target = $region48
      $region47: #{tpu_custom_call.1} parent=11 // pred_region
        _
      $region48: #{tpu_custom_call.1} parent=11 // pred_fallthru
        _
      // Predicated region
      $region49: #{tpu_custom_call.1} parent=11 // pred_check
        %p430 = pneg %p297
      $region50: #{tpu_custom_call.1} parent=11 // pred_check_branch
        %432 = sbr.rel (%p430) target = $region52
      $region51: #{tpu_custom_call.1} parent=11 // pred_region
        _
      $region52: #{tpu_custom_call.1} parent=11 // pred_fallthru
        _
      // Predicated region
      $region53: #{tpu_custom_call.1} parent=11 // pred_check
        %p433 = pneg %p318
      $region54: #{tpu_custom_call.1} parent=11 // pred_check_branch
        %435 = sbr.rel (%p433) target = $region56
      $region55: #{tpu_custom_call.1} parent=11 // pred_region
        _
      $region56: #{tpu_custom_call.1} parent=11 // pred_fallthru
        _
      // Predicated region
      $region57: #{tpu_custom_call.1} parent=11 // pred_check
        %p436 = pneg %p339
      $region58: #{tpu_custom_call.1} parent=11 // pred_check_branch
        %438 = sbr.rel (%p436) target = $region60
      $region59: #{tpu_custom_call.1} parent=11 // pred_region
        _
      $region60: #{tpu_custom_call.1} parent=11 // pred_fallthru
        _
      // Predicated region
      $region61: #{tpu_custom_call.1} parent=11 // pred_check
        %p439 = pneg %p360
      $region62: #{tpu_custom_call.1} parent=11 // pred_check_branch
        %441 = sbr.rel (%p439) target = $region64
      $region63: #{tpu_custom_call.1} parent=11 // pred_region
        _
      $region64: #{tpu_custom_call.1} parent=11 // pred_fallthru
        _
    $region12: #{tpu_custom_call.1} parent=5 // pred_fallthru
      _
    %p442 = scmp.lt.s32.totalorder %s21, 4
    // Predicated region
    $region65: #{tpu_custom_call.1} parent=5 // pred_check
      %p443 = pneg %p442
    $region66: #{tpu_custom_call.1} parent=5 // pred_check_branch
      %445 = sbr.rel (%p443) target = $region68
    $region67: #{tpu_custom_call.1} parent=5 // pred_region
      // Predicated region
      $region69: #{tpu_custom_call.1} parent=67 // pred_check
        %p446 = pneg %p55
      $region70: #{tpu_custom_call.1} parent=67 // pred_check_branch
        %448 = sbr.rel (%p446) target = $region72
      $region71: #{tpu_custom_call.1} parent=67 // pred_region
        %s449 = smul.u32 16, %s29
        %p450 = scmp.lt.s32.totalorder %s28, 1
        %s451 = scalar_select %p450, %s28, 1
        %p452 = scmp.lt.s32.totalorder %s449, 31
        %s453 = scalar_select %p452, %s449, 31
        %s454 = smul.addr %s451, 32
        %s455 = sadd.s32 %s453, %s454
        %s456 = smul.addr %s455, 8
        %s457 = scalar_lea.vmem %s0, %s456
        %s458 = smul.u32 16, %s29
      $region72: #{tpu_custom_call.1} parent=67 // pred_fallthru
        _
      // Predicated region
      $region73: #{tpu_custom_call.1} parent=67 // pred_check
        %p459 = pneg %p81
      $region74: #{tpu_custom_call.1} parent=67 // pred_check_branch
        %461 = sbr.rel (%p459) target = $region76
      $region75: #{tpu_custom_call.1} parent=67 // pred_region
        %s462 = smul.u32 16, %s29
        %p463 = scmp.lt.s32.totalorder %s462, 31
        %s464 = scalar_select %p463, %s462, 31
        %s465 = smul.addr %s464, 8
        %s466 = scalar_lea.vmem %s1, %s465
        %s467 = smul.u32 16, %s29
      $region76: #{tpu_custom_call.1} parent=67 // pred_fallthru
        _
    $region68: #{tpu_custom_call.1} parent=5 // pred_fallthru
      _
    %p468 = scmp.le.s32.totalorder 1, %s21
    %p469 = scmp.lt.s32.totalorder %s21, 5
    %p470 = pnand %p468, %p469
    %p471 = pneg %p470
    // Predicated region
    $region77: #{tpu_custom_call.1} parent=5 // pred_check
      _
    $region78: #{tpu_custom_call.1} parent=5 // pred_check_branch
      %473 = sbr.rel (%p470) target = $region80
    $region79: #{tpu_custom_call.1} parent=5 // pred_region
      %s474 = ssub.s32 %s21, 1
      %s475 = smul.u32 16, %s31
      %p476 = scmp.lt.s32.totalorder %s30, 1
      %s477 = scalar_select %p476, %s30, 1
      %p478 = scmp.lt.s32.totalorder %s475, 31
      %s479 = scalar_select %p478, %s475, 31
      %s480 = smul.addr %s477, 32
      %s481 = sadd.s32 %s479, %s480
      %s482 = smul.addr %s481, 8
      %s483 = scalar_lea.vmem %s0, %s482
      %p484 = pneg %p61
      %p485 = pneg %p58
      %s486 = smul.u32 16, %s31
      %p487 = scmp.lt.s32.totalorder %s486, 31
      %s488 = scalar_select %p487, %s486, 31
      %s489 = smul.addr %s488, 8
      %s490 = scalar_lea.vmem %s1, %s489
      %p491 = pneg %p87
      %p492 = pneg %p84
      %p493 = pneg %p108
      %p494 = pneg %p105
      %p495 = pneg %p129
      %p496 = pneg %p126
      %p497 = pneg %p150
      %p498 = pneg %p147
      %p499 = pneg %p171
      %p500 = pneg %p168
      %p501 = pneg %p192
      %p502 = pneg %p189
      %p503 = pneg %p213
      %p504 = pneg %p210
      %p505 = pneg %p234
      %p506 = pneg %p231
      %p507 = pneg %p255
      %p508 = pneg %p252
      %p509 = pneg %p276
      %p510 = pneg %p273
      %p511 = pneg %p297
      %p512 = pneg %p294
      %p513 = pneg %p318
      %p514 = pneg %p315
      %p515 = pneg %p339
      %p516 = pneg %p336
      %p517 = pneg %p360
      %p518 = pneg %p357
      %p519 = pneg %p388
      %p520 = pneg %p385
      %s521 = smul.u32 16, %s31
      %p522 = scmp.lt.s32.totalorder %s30, 1
      %s523 = scalar_select %p522, %s30, 1
      %p524 = scmp.lt.s32.totalorder %s521, 31
      %s525 = scalar_select %p524, %s521, 31
      %s526 = smul.addr %s523, 32
      %s527 = sadd.s32 %s525, %s526
      %s528 = smul.addr %s527, 8
      %s529 = scalar_lea.vmem %s15, %s528
      %s530 = smul.u32 16, %s31
      %p531 = scmp.lt.s32.totalorder %s30, 1
      %s532 = scalar_select %p531, %s30, 1
      %p533 = scmp.lt.s32.totalorder %s530, 31
      %s534 = scalar_select %p533, %s530, 31
      %s535 = smul.addr %s532, 32
      %s536 = sadd.s32 %s534, %s535
      %s537 = smul.addr %s536, 8
      %s538 = scalar_lea.vmem %s0, %s537
      %s539 = smul.u32 16, %s31
      %s540 = smul.u32 16, %s31
      %p541 = scmp.lt.s32.totalorder %s540, 31
      %s542 = scalar_select %p541, %s540, 31
      %s543 = smul.addr %s542, 8
      %s544 = scalar_lea.vmem %s1, %s543
      %s545 = smul.u32 16, %s31
      %s546 = smul.u32 16, %s31
      %p547 = scmp.lt.s32.totalorder %s30, 1
      %s548 = scalar_select %p547, %s30, 1
      %p549 = scmp.lt.s32.totalorder %s546, 31
      %s550 = scalar_select %p549, %s546, 31
      %s551 = smul.addr %s548, 32
      %s552 = sadd.s32 %s550, %s551
      %s553 = smul.addr %s552, 8
      %s554 = scalar_lea.vmem %s15, %s553
      %s555 = smul.u32 16, %s31
      %v556 = vld [vmem:[%s538] sm:$0xff]
      %v557 = vld [vmem:[%s538 + $0x8] sm:$0xff]
      %v558 = vld [vmem:[%s538 + $0x10] sm:$0xff]
      %v559 = vld [vmem:[%s538 + $0x18] sm:$0xff]
      %v560 = vld [vmem:[%s538 + $0x20] sm:$0xff]
      %v561 = vld [vmem:[%s538 + $0x28] sm:$0xff]
      %v562 = vld [vmem:[%s538 + $0x30] sm:$0xff]
      %v563 = vld [vmem:[%s538 + $0x38] sm:$0xff]
      %v564 = vld [vmem:[%s538 + $0x40] sm:$0xff]
      %v565 = vld [vmem:[%s538 + $0x48] sm:$0xff]
      %v566 = vld [vmem:[%s538 + $0x50] sm:$0xff]
      %v567 = vld [vmem:[%s538 + $0x58] sm:$0xff]
      %v568 = vld [vmem:[%s538 + $0x60] sm:$0xff]
      %v569 = vld [vmem:[%s538 + $0x68] sm:$0xff]
      %v570 = vld [vmem:[%s538 + $0x70] sm:$0xff]
      %v571 = vld [vmem:[%s538 + $0x78] sm:$0xff]
      %v572 = vld [vmem:[%s544] sm:$0xff]
      %v573 = vld [vmem:[%s544 + $0x8] sm:$0xff]
      %v574 = vld [vmem:[%s544 + $0x10] sm:$0xff]
      %v575 = vld [vmem:[%s544 + $0x18] sm:$0xff]
      %v576 = vld [vmem:[%s544 + $0x20] sm:$0xff]
      %v577 = vld [vmem:[%s544 + $0x28] sm:$0xff]
      %v578 = vld [vmem:[%s544 + $0x30] sm:$0xff]
      %v579 = vld [vmem:[%s544 + $0x38] sm:$0xff]
      %v580 = vld [vmem:[%s544 + $0x40] sm:$0xff]
      %v581 = vld [vmem:[%s544 + $0x48] sm:$0xff]
      %v582 = vld [vmem:[%s544 + $0x50] sm:$0xff]
      %v583 = vld [vmem:[%s544 + $0x58] sm:$0xff]
      %v584 = vld [vmem:[%s544 + $0x60] sm:$0xff]
      %v585 = vld [vmem:[%s544 + $0x68] sm:$0xff]
      %v586 = vld [vmem:[%s544 + $0x70] sm:$0xff]
      %v587 = vld [vmem:[%s544 + $0x78] sm:$0xff]
      %v588 = vadd.f32 %v556, %v572
      %v589 = vadd.f32 %v557, %v573
      %v590 = vadd.f32 %v558, %v574
      %v591 = vadd.f32 %v559, %v575
      %v592 = vadd.f32 %v560, %v576
      %v593 = vadd.f32 %v561, %v577
      %v594 = vadd.f32 %v562, %v578
      %v595 = vadd.f32 %v563, %v579
      %v596 = vadd.f32 %v564, %v580
      %v597 = vadd.f32 %v565, %v581
      %v598 = vadd.f32 %v566, %v582
      %v599 = vadd.f32 %v567, %v583
      %v600 = vadd.f32 %v568, %v584
      %v601 = vadd.f32 %v569, %v585
      %v602 = vadd.f32 %v570, %v586
      %v603 = vadd.f32 %v571, %v587
      %v604 = vld [vmem:[%s2] sm:$0xff]
      %v605 = vld [vmem:[%s2 + $0x8] sm:$0xff]
      %v606 = vld [vmem:[%s2 + $0x10] sm:$0xff]
      %v607 = vld [vmem:[%s2 + $0x18] sm:$0xff]
      %v608 = vld [vmem:[%s2 + $0x20] sm:$0xff]
      %v609 = vld [vmem:[%s2 + $0x28] sm:$0xff]
      %v610 = vld [vmem:[%s2 + $0x30] sm:$0xff]
      %v611 = vld [vmem:[%s2 + $0x38] sm:$0xff]
      %v612 = vld [vmem:[%s2 + $0x40] sm:$0xff]
      %v613 = vld [vmem:[%s2 + $0x48] sm:$0xff]
      %v614 = vld [vmem:[%s2 + $0x50] sm:$0xff]
      %v615 = vld [vmem:[%s2 + $0x58] sm:$0xff]
      %v616 = vld [vmem:[%s2 + $0x60] sm:$0xff]
      %v617 = vld [vmem:[%s2 + $0x68] sm:$0xff]
      %v618 = vld [vmem:[%s2 + $0x70] sm:$0xff]
      %v619 = vld [vmem:[%s2 + $0x78] sm:$0xff]
      %v620 = vld [vmem:[%s3] sm:$0x1]
      %v621 = vld [vmem:[%s4] sm:$0x1]
      %vm622 = vcmask 523264
      %v623 = vsel %vm622, %v588, 0.0
      %624 = vadd.xlane.f32.xlu0 %v623
      %v625 = vpop.xlane.xlu0 %624
      %v626 = vsel %vm622, %v589, 0.0
      %627 = vadd.xlane.f32.xlu0 %v626
      %v628 = vpop.xlane.xlu0 %627
      %v629 = vsel %vm622, %v590, 0.0
      %630 = vadd.xlane.f32.xlu0 %v629
      %v631 = vpop.xlane.xlu0 %630
      %v632 = vsel %vm622, %v591, 0.0
      %633 = vadd.xlane.f32.xlu0 %v632
      %v634 = vpop.xlane.xlu0 %633
      %v635 = vsel %vm622, %v592, 0.0
      %636 = vadd.xlane.f32.xlu0 %v635
      %v637 = vpop.xlane.xlu0 %636
      %v638 = vsel %vm622, %v593, 0.0
      %639 = vadd.xlane.f32.xlu0 %v638
      %v640 = vpop.xlane.xlu0 %639
      %v641 = vsel %vm622, %v594, 0.0
      %642 = vadd.xlane.f32.xlu0 %v641
      %v643 = vpop.xlane.xlu0 %642
      %v644 = vsel %vm622, %v595, 0.0
      %645 = vadd.xlane.f32.xlu0 %v644
      %v646 = vpop.xlane.xlu0 %645
      %v647 = vsel %vm622, %v596, 0.0
      %648 = vadd.xlane.f32.xlu0 %v647
      %v649 = vpop.xlane.xlu0 %648
      %v650 = vsel %vm622, %v597, 0.0
      %651 = vadd.xlane.f32.xlu0 %v650
      %v652 = vpop.xlane.xlu0 %651
      %v653 = vsel %vm622, %v598, 0.0
      %654 = vadd.xlane.f32.xlu0 %v653
      %v655 = vpop.xlane.xlu0 %654
      %v656 = vsel %vm622, %v599, 0.0
      %657 = vadd.xlane.f32.xlu0 %v656
      %v658 = vpop.xlane.xlu0 %657
      %v659 = vsel %vm622, %v600, 0.0
      %660 = vadd.xlane.f32.xlu0 %v659
      %v661 = vpop.xlane.xlu0 %660
      %v662 = vsel %vm622, %v601, 0.0
      %663 = vadd.xlane.f32.xlu0 %v662
      %v664 = vpop.xlane.xlu0 %663
      %v665 = vsel %vm622, %v602, 0.0
      %666 = vadd.xlane.f32.xlu0 %v665
      %v667 = vpop.xlane.xlu0 %666
      %v668 = vsel %vm622, %v603, 0.0
      %669 = vadd.xlane.f32.xlu0 %v668
      %v670 = vpop.xlane.xlu0 %669
      %v671 = vrcp.pop 64.0
      %v672 = vmul.f32 %v625, %v671
      %v673 = vmul.f32 %v628, %v671
      %v674 = vmul.f32 %v631, %v671
      %v675 = vmul.f32 %v634, %v671
      %v676 = vmul.f32 %v637, %v671
      %v677 = vmul.f32 %v640, %v671
      %v678 = vmul.f32 %v643, %v671
      %v679 = vmul.f32 %v646, %v671
      %v680 = vmul.f32 %v649, %v671
      %v681 = vmul.f32 %v652, %v671
      %v682 = vmul.f32 %v655, %v671
      %v683 = vmul.f32 %v658, %v671
      %v684 = vmul.f32 %v661, %v671
      %v685 = vmul.f32 %v664, %v671
      %v686 = vmul.f32 %v667, %v671
      %v687 = vmul.f32 %v670, %v671
      %v688 = vsub.f32 %v588, %v672
      %v689 = vsub.f32 %v589, %v673
      %v690 = vsub.f32 %v590, %v674
      %v691 = vsub.f32 %v591, %v675
      %v692 = vsub.f32 %v592, %v676
      %v693 = vsub.f32 %v593, %v677
      %v694 = vsub.f32 %v594, %v678
      %v695 = vsub.f32 %v595, %v679
      %v696 = vsub.f32 %v596, %v680
      %v697 = vsub.f32 %v597, %v681
      %v698 = vsub.f32 %v598, %v682
      %v699 = vsub.f32 %v599, %v683
      %v700 = vsub.f32 %v600, %v684
      %v701 = vsub.f32 %v601, %v685
      %v702 = vsub.f32 %v602, %v686
      %v703 = vsub.f32 %v603, %v687
      %v704 = vmul.f32 %v688, %v688
      %v705 = vmul.f32 %v689, %v689
      %v706 = vmul.f32 %v690, %v690
      %v707 = vmul.f32 %v691, %v691
      %v708 = vmul.f32 %v692, %v692
      %v709 = vmul.f32 %v693, %v693
      %v710 = vmul.f32 %v694, %v694
      %v711 = vmul.f32 %v695, %v695
      %v712 = vmul.f32 %v696, %v696
      %v713 = vmul.f32 %v697, %v697
      %v714 = vmul.f32 %v698, %v698
      %v715 = vmul.f32 %v699, %v699
      %v716 = vmul.f32 %v700, %v700
      %v717 = vmul.f32 %v701, %v701
      %v718 = vmul.f32 %v702, %v702
      %v719 = vmul.f32 %v703, %v703
      %v720 = vsel %vm622, %v704, 0.0
      %721 = vadd.xlane.f32.xlu0 %v720
      %v722 = vpop.xlane.xlu0 %721
      %v723 = vsel %vm622, %v705, 0.0
      %724 = vadd.xlane.f32.xlu0 %v723
      %v725 = vpop.xlane.xlu0 %724
      %v726 = vsel %vm622, %v706, 0.0
      %727 = vadd.xlane.f32.xlu0 %v726
      %v728 = vpop.xlane.xlu0 %727
      %v729 = vsel %vm622, %v707, 0.0
      %730 = vadd.xlane.f32.xlu0 %v729
      %v731 = vpop.xlane.xlu0 %730
      %v732 = vsel %vm622, %v708, 0.0
      %733 = vadd.xlane.f32.xlu0 %v732
      %v734 = vpop.xlane.xlu0 %733
      %v735 = vsel %vm622, %v709, 0.0
      %736 = vadd.xlane.f32.xlu0 %v735
      %v737 = vpop.xlane.xlu0 %736
      %v738 = vsel %vm622, %v710, 0.0
      %739 = vadd.xlane.f32.xlu0 %v738
      %v740 = vpop.xlane.xlu0 %739
      %v741 = vsel %vm622, %v711, 0.0
      %742 = vadd.xlane.f32.xlu0 %v741
      %v743 = vpop.xlane.xlu0 %742
      %v744 = vsel %vm622, %v712, 0.0
      %745 = vadd.xlane.f32.xlu0 %v744
      %v746 = vpop.xlane.xlu0 %745
      %v747 = vsel %vm622, %v713, 0.0
      %748 = vadd.xlane.f32.xlu0 %v747
      %v749 = vpop.xlane.xlu0 %748
      %v750 = vsel %vm622, %v714, 0.0
      %751 = vadd.xlane.f32.xlu0 %v750
      %v752 = vpop.xlane.xlu0 %751
      %v753 = vsel %vm622, %v715, 0.0
      %754 = vadd.xlane.f32.xlu0 %v753
      %v755 = vpop.xlane.xlu0 %754
      %v756 = vsel %vm622, %v716, 0.0
      %757 = vadd.xlane.f32.xlu0 %v756
      %v758 = vpop.xlane.xlu0 %757
      %v759 = vsel %vm622, %v717, 0.0
      %760 = vadd.xlane.f32.xlu0 %v759
      %v761 = vpop.xlane.xlu0 %760
      %v762 = vsel %vm622, %v718, 0.0
      %763 = vadd.xlane.f32.xlu0 %v762
      %v764 = vpop.xlane.xlu0 %763
      %v765 = vsel %vm622, %v719, 0.0
      %766 = vadd.xlane.f32.xlu0 %v765
      %v767 = vpop.xlane.xlu0 %766
      %v768 = vmul.f32 %v722, %v671
      %v769 = vmul.f32 %v725, %v671
      %v770 = vmul.f32 %v728, %v671
      %v771 = vmul.f32 %v731, %v671
      %v772 = vmul.f32 %v734, %v671
      %v773 = vmul.f32 %v737, %v671
      %v774 = vmul.f32 %v740, %v671
      %v775 = vmul.f32 %v743, %v671
      %v776 = vmul.f32 %v746, %v671
      %v777 = vmul.f32 %v749, %v671
      %v778 = vmul.f32 %v752, %v671
      %v779 = vmul.f32 %v755, %v671
      %v780 = vmul.f32 %v758, %v671
      %v781 = vmul.f32 %v761, %v671
      %v782 = vmul.f32 %v764, %v671
      %v783 = vmul.f32 %v767, %v671
      %v784 = vadd.f32 %v768, 1e-06
      %v785 = vadd.f32 %v769, 1e-06
      %v786 = vadd.f32 %v770, 1e-06
      %v787 = vadd.f32 %v771, 1e-06
      %v788 = vadd.f32 %v772, 1e-06
      %v789 = vadd.f32 %v773, 1e-06
      %v790 = vadd.f32 %v774, 1e-06
      %v791 = vadd.f32 %v775, 1e-06
      %v792 = vadd.f32 %v776, 1e-06
      %v793 = vadd.f32 %v777, 1e-06
      %v794 = vadd.f32 %v778, 1e-06
      %v795 = vadd.f32 %v779, 1e-06
      %v796 = vadd.f32 %v780, 1e-06
      %v797 = vadd.f32 %v781, 1e-06
      %v798 = vadd.f32 %v782, 1e-06
      %v799 = vadd.f32 %v783, 1e-06
      %v800 = vrsqrt.pop %v784
      %v801 = vrsqrt.pop %v785
      %v802 = vrsqrt.pop %v786
      %v803 = vrsqrt.pop %v787
      %v804 = vrsqrt.pop %v788
      %v805 = vrsqrt.pop %v789
      %v806 = vrsqrt.pop %v790
      %v807 = vrsqrt.pop %v791
      %v808 = vrsqrt.pop %v792
      %v809 = vrsqrt.pop %v793
      %v810 = vrsqrt.pop %v794
      %v811 = vrsqrt.pop %v795
      %v812 = vrsqrt.pop %v796
      %v813 = vrsqrt.pop %v797
      %v814 = vrsqrt.pop %v798
      %v815 = vrsqrt.pop %v799
      %v816 = vmul.f32 %v688, %v800
      %v817 = vmul.f32 %v689, %v801
      %v818 = vmul.f32 %v690, %v802
      %v819 = vmul.f32 %v691, %v803
      %v820 = vmul.f32 %v692, %v804
      %v821 = vmul.f32 %v693, %v805
      %v822 = vmul.f32 %v694, %v806
      %v823 = vmul.f32 %v695, %v807
      %v824 = vmul.f32 %v696, %v808
      %v825 = vmul.f32 %v697, %v809
      %v826 = vmul.f32 %v698, %v810
      %v827 = vmul.f32 %v699, %v811
      %v828 = vmul.f32 %v700, %v812
      %v829 = vmul.f32 %v701, %v813
      %v830 = vmul.f32 %v702, %v814
      %v831 = vmul.f32 %v703, %v815
      %v833 = vlaneseq
      %v834 = vshrl.u32 %v833, 7
      %v835 = vsub.s32 0, %v834
      %v836 = vrot.slane %v620, %v835
      %v838 = vmul.f32 %v816, %v836
      %v839 = vmul.f32 %v817, %v836
      %v840 = vmul.f32 %v818, %v836
      %v841 = vmul.f32 %v819, %v836
      %v842 = vmul.f32 %v820, %v836
      %v843 = vmul.f32 %v821, %v836
      %v844 = vmul.f32 %v822, %v836
      %v845 = vmul.f32 %v823, %v836
      %v846 = vmul.f32 %v824, %v836
      %v847 = vmul.f32 %v825, %v836
      %v848 = vmul.f32 %v826, %v836
      %v849 = vmul.f32 %v827, %v836
      %v850 = vmul.f32 %v828, %v836
      %v851 = vmul.f32 %v829, %v836
      %v852 = vmul.f32 %v830, %v836
      %v853 = vmul.f32 %v831, %v836
      %v855 = vlaneseq
      %v856 = vshrl.u32 %v855, 7
      %v857 = vsub.s32 0, %v856
      %v858 = vrot.slane %v621, %v857
      %v860 = vadd.f32 %v838, %v858
      %v861 = vadd.f32 %v839, %v858
      %v862 = vadd.f32 %v840, %v858
      %v863 = vadd.f32 %v841, %v858
      %v864 = vadd.f32 %v842, %v858
      %v865 = vadd.f32 %v843, %v858
      %v866 = vadd.f32 %v844, %v858
      %v867 = vadd.f32 %v845, %v858
      %v868 = vadd.f32 %v846, %v858
      %v869 = vadd.f32 %v847, %v858
      %v870 = vadd.f32 %v848, %v858
      %v871 = vadd.f32 %v849, %v858
      %v872 = vadd.f32 %v850, %v858
      %v873 = vadd.f32 %v851, %v858
      %v874 = vadd.f32 %v852, %v858
      %v875 = vadd.f32 %v853, %v858
      %v876 = vld [vmem:[%s5] sm:$0xff]
      %v877 = vld [vmem:[%s5 + $0x8] sm:$0xff]
      %v878 = vld [vmem:[%s5 + $0x10] sm:$0xff]
      %v879 = vld [vmem:[%s5 + $0x18] sm:$0xff]
      %v880 = vld [vmem:[%s5 + $0x20] sm:$0xff]
      %v881 = vld [vmem:[%s5 + $0x28] sm:$0xff]
      %v882 = vld [vmem:[%s5 + $0x30] sm:$0xff]
      %v883 = vld [vmem:[%s5 + $0x38] sm:$0xff]
      %v884 = vld [vmem:[%s5 + $0x40] sm:$0xff]
      %v885 = vld [vmem:[%s5 + $0x48] sm:$0xff]
      %v886 = vld [vmem:[%s5 + $0x50] sm:$0xff]
      %v887 = vld [vmem:[%s5 + $0x58] sm:$0xff]
      %v888 = vld [vmem:[%s5 + $0x60] sm:$0xff]
      %v889 = vld [vmem:[%s5 + $0x68] sm:$0xff]
      %v890 = vld [vmem:[%s5 + $0x70] sm:$0xff]
      %v891 = vld [vmem:[%s5 + $0x78] sm:$0xff]
      %v892 = vld [vmem:[%s6] sm:$0x3]
      %v894 = vlaneseq
      %v895 = vshrl.u32 %v894, 7
      %v896 = vsub.s32 0, %v895
      %v897 = vrot.slane %v892, %v896
      %v898 = vlaneseq
      %v899 = vshrl.u32 %v898, 7
      %v900 = vsub.s32 1, %v899
      %v901 = vrot.slane %v892, %v900
      %v905 = vsel %vm622, %v860, 0
      %v908 = vsel %vm622, %v861, 0
      %v911 = vsel %vm622, %v862, 0
      %v914 = vsel %vm622, %v863, 0
      %v917 = vsel %vm622, %v864, 0
      %v920 = vsel %vm622, %v865, 0
      %v923 = vsel %vm622, %v866, 0
      %v926 = vsel %vm622, %v867, 0
      %v929 = vsel %vm622, %v868, 0
      %v932 = vsel %vm622, %v869, 0
      %v935 = vsel %vm622, %v870, 0
      %v938 = vsel %vm622, %v871, 0
      %v941 = vsel %vm622, %v872, 0
      %v944 = vsel %vm622, %v873, 0
      %v947 = vsel %vm622, %v874, 0
      %v950 = vsel %vm622, %v875, 0
      %952 = vmatprep.subr.mxu0 %v877
      %953 = vmatpush1.msra.mxu0 %v876
      %954 = vmatprep.subr.mxu0 %v879
      %955 = vmatpush1.msra.mxu0 %v878
      %956 = vmatprep.subr.mxu0 %v881
      %957 = vmatpush1.msra.mxu0 %v880
      %958 = vmatprep.subr.mxu0 %v883
      %959 = vmatpush1.msra.mxu0 %v882
      %960 = vmatprep.subr.mxu0 %v885
      %961 = vmatpush1.msra.mxu0 %v884
      %962 = vmatprep.subr.mxu0 %v887
      %963 = vmatpush1.msra.mxu0 %v886
      %964 = vmatprep.subr.mxu0 %v889
      %965 = vmatpush1.msra.mxu0 %v888
      %966 = vmatprep.subr.mxu0 %v891
      %967 = vmatpush1.msra.mxu0 %v890
      %968 = vmatprep.subr.mxu0 0.0
      %969 = vmatpush1.msra.mxu0 0.0
      %970 = vmatprep.subr.mxu0 0.0
      %971 = vmatpush1.msra.mxu0 0.0
      %972 = vmatprep.subr.mxu0 0.0
      %973 = vmatpush1.msra.mxu0 0.0
      %974 = vmatprep.subr.mxu0 0.0
      %975 = vmatpush1.msra.mxu0 0.0
      %976 = vmatprep.subr.mxu0 0.0
      %977 = vmatpush1.msra.mxu0 0.0
      %978 = vmatprep.subr.mxu0 0.0
      %979 = vmatpush1.msra.mxu0 0.0
      %980 = vmatprep.subr.mxu0 0.0
      %981 = vmatpush1.msra.mxu0 0.0
      %982 = vmatprep.subr.mxu0 0.0
      %983 = vmatpush1.msra.mxu0 0.0
      %984 = vmatprep.subr.mxu0 0.0
      %985 = vmatpush1.msra.mxu0 0.0
      %986 = vmatprep.subr.mxu0 0.0
      %987 = vmatpush1.msra.mxu0 0.0
      %988 = vmatprep.subr.mxu0 0.0
      %989 = vmatpush1.msra.mxu0 0.0
      %990 = vmatprep.subr.mxu0 0.0
      %991 = vmatpush1.msra.mxu0 0.0
      %992 = vmatprep.subr.mxu0 0.0
      %993 = vmatpush1.msra.mxu0 0.0
      %994 = vmatprep.subr.mxu0 0.0
      %995 = vmatpush1.msra.mxu0 0.0
      %996 = vmatprep.subr.mxu0 0.0
      %997 = vmatpush1.msra.mxu0 0.0
      %998 = vmatprep.subr.mxu0 0.0
      %999 = vmatpush1.msra.mxu0 0.0
      %1000 = vmatprep.subr.mxu0 0.0
      %1001 = vmatpush1.msra.mxu0 0.0
      %1002 = vmatprep.subr.mxu0 0.0
      %1003 = vmatpush1.msra.mxu0 0.0
      %1004 = vmatprep.subr.mxu0 0.0
      %1005 = vmatpush1.msra.mxu0 0.0
      %1006 = vmatprep.subr.mxu0 0.0
      %1007 = vmatpush1.msra.mxu0 0.0
      %1008 = vmatprep.subr.mxu0 0.0
      %1009 = vmatpush1.msra.mxu0 0.0
      %1010 = vmatprep.subr.mxu0 0.0
      %1011 = vmatpush1.msra.mxu0 0.0
      %1012 = vmatprep.subr.mxu0 0.0
      %1013 = vmatpush1.msra.mxu0 0.0
      %1014 = vmatprep.subr.mxu0 0.0
      %1015 = vmatpush1.msra.mxu0 0.0
      %1016 = vmatprep.mubr.f32.mxu0 0.0
      %1017 = vmatmul.mubr.f32.gmra.mrb[0].mxu0 %v905
      %v1018 = vpop.f32.mrb[0].mxu0
      %v1019 = vadd.f32 %v897, %v1018
      %v1020 = vpop.f32.mrb[0].mxu0
      %v1021 = vadd.f32 %v901, %v1020
      %1022 = vmatprep.mubr.f32.mxu0 0.0
      %1023 = vmatmul.mubr.f32.gmra.mrb[0].mxu0 %v908
      %v1024 = vpop.f32.mrb[0].mxu0
      %v1025 = vadd.f32 %v897, %v1024
      %v1026 = vpop.f32.mrb[0].mxu0
      %v1027 = vadd.f32 %v901, %v1026
      %1028 = vmatprep.mubr.f32.mxu0 0.0
      %1029 = vmatmul.mubr.f32.gmra.mrb[0].mxu0 %v911
      %v1030 = vpop.f32.mrb[0].mxu0
      %v1031 = vadd.f32 %v897, %v1030
      %v1032 = vpop.f32.mrb[0].mxu0
      %v1033 = vadd.f32 %v901, %v1032
      %1034 = vmatprep.mubr.f32.mxu0 0.0
      %1035 = vmatmul.mubr.f32.gmra.mrb[0].mxu0 %v914
      %v1036 = vpop.f32.mrb[0].mxu0
      %v1037 = vadd.f32 %v897, %v1036
      %v1038 = vpop.f32.mrb[0].mxu0
      %v1039 = vadd.f32 %v901, %v1038
      %1040 = vmatprep.mubr.f32.mxu0 0.0
      %1041 = vmatmul.mubr.f32.gmra.mrb[0].mxu0 %v917
      %v1042 = vpop.f32.mrb[0].mxu0
      %v1043 = vadd.f32 %v897, %v1042
      %v1044 = vpop.f32.mrb[0].mxu0
      %v1045 = vadd.f32 %v901, %v1044
      %1046 = vmatprep.mubr.f32.mxu0 0.0
      %1047 = vmatmul.mubr.f32.gmra.mrb[0].mxu0 %v920
      %v1048 = vpop.f32.mrb[0].mxu0
      %v1049 = vadd.f32 %v897, %v1048
      %v1050 = vpop.f32.mrb[0].mxu0
      %v1051 = vadd.f32 %v901, %v1050
      %1052 = vmatprep.mubr.f32.mxu0 0.0
      %1053 = vmatmul.mubr.f32.gmra.mrb[0].mxu0 %v923
      %v1054 = vpop.f32.mrb[0].mxu0
      %v1055 = vadd.f32 %v897, %v1054
      %v1056 = vpop.f32.mrb[0].mxu0
      %v1057 = vadd.f32 %v901, %v1056
      %1058 = vmatprep.mubr.f32.mxu0 0.0
      %1059 = vmatmul.mubr.f32.gmra.mrb[0].mxu0 %v926
      %v1060 = vpop.f32.mrb[0].mxu0
      %v1061 = vadd.f32 %v897, %v1060
      %v1062 = vpop.f32.mrb[0].mxu0
      %v1063 = vadd.f32 %v901, %v1062
      %1064 = vmatprep.mubr.f32.mxu0 0.0
      %1065 = vmatmul.mubr.f32.gmra.mrb[0].mxu0 %v929
      %v1066 = vpop.f32.mrb[0].mxu0
      %v1067 = vadd.f32 %v897, %v1066
      %v1068 = vpop.f32.mrb[0].mxu0
      %v1069 = vadd.f32 %v901, %v1068
      %1070 = vmatprep.mubr.f32.mxu0 0.0
      %1071 = vmatmul.mubr.f32.gmra.mrb[0].mxu0 %v932
      %v1072 = vpop.f32.mrb[0].mxu0
      %v1073 = vadd.f32 %v897, %v1072
      %v1074 = vpop.f32.mrb[0].mxu0
      %v1075 = vadd.f32 %v901, %v1074
      %1076 = vmatprep.mubr.f32.mxu0 0.0
      %1077 = vmatmul.mubr.f32.gmra.mrb[0].mxu0 %v935
      %v1078 = vpop.f32.mrb[0].mxu0
      %v1079 = vadd.f32 %v897, %v1078
      %v1080 = vpop.f32.mrb[0].mxu0
      %v1081 = vadd.f32 %v901, %v1080
      %1082 = vmatprep.mubr.f32.mxu0 0.0
      %1083 = vmatmul.mubr.f32.gmra.mrb[0].mxu0 %v938
      %v1084 = vpop.f32.mrb[0].mxu0
      %v1085 = vadd.f32 %v897, %v1084
      %v1086 = vpop.f32.mrb[0].mxu0
      %v1087 = vadd.f32 %v901, %v1086
      %1088 = vmatprep.mubr.f32.mxu0 0.0
      %1089 = vmatmul.mubr.f32.gmra.mrb[0].mxu0 %v941
      %v1090 = vpop.f32.mrb[0].mxu0
      %v1091 = vadd.f32 %v897, %v1090
      %v1092 = vpop.f32.mrb[0].mxu0
      %v1093 = vadd.f32 %v901, %v1092
      %1094 = vmatprep.mubr.f32.mxu0 0.0
      %1095 = vmatmul.mubr.f32.gmra.mrb[0].mxu0 %v944
      %v1096 = vpop.f32.mrb[0].mxu0
      %v1097 = vadd.f32 %v897, %v1096
      %v1098 = vpop.f32.mrb[0].mxu0
      %v1099 = vadd.f32 %v901, %v1098
      %1100 = vmatprep.mubr.f32.mxu0 0.0
      %1101 = vmatmul.mubr.f32.gmra.mrb[0].mxu0 %v947
      %v1102 = vpop.f32.mrb[0].mxu0
      %v1103 = vadd.f32 %v897, %v1102
      %v1104 = vpop.f32.mrb[0].mxu0
      %v1105 = vadd.f32 %v901, %v1104
      %1106 = vmatprep.mubr.f32.mxu0 0.0
      %1107 = vmatmul.mubr.f32.gmra.mrb[0].mxu0 %v950
      %v1108 = vpop.f32.mrb[0].mxu0
      %v1109 = vadd.f32 %v897, %v1108
      %v1110 = vpop.f32.mrb[0].mxu0
      %v1111 = vadd.f32 %v901, %v1110
      %1112 = vdwg.mxu0
      %v1113 = vmul.f32 %v1019, 0.25
      %v1114 = vmul.f32 %v1025, 0.25
      %v1115 = vmul.f32 %v1031, 0.25
      %v1116 = vmul.f32 %v1037, 0.25
      %v1117 = vmul.f32 %v1043, 0.25
      %v1118 = vmul.f32 %v1049, 0.25
      %v1119 = vmul.f32 %v1055, 0.25
      %v1120 = vmul.f32 %v1061, 0.25
      %v1121 = vmul.f32 %v1067, 0.25
      %v1122 = vmul.f32 %v1073, 0.25
      %v1123 = vmul.f32 %v1079, 0.25
      %v1124 = vmul.f32 %v1085, 0.25
      %v1125 = vmul.f32 %v1091, 0.25
      %v1126 = vmul.f32 %v1097, 0.25
      %v1127 = vmul.f32 %v1103, 0.25
      %v1128 = vmul.f32 %v1109, 0.25
      %1145 = vrot.lane.b32.xlu0 %v1019, 64
      %v1146 = vpop.permute.xlu0 %1145
      %1147 = vrot.lane.b32.xlu0 %v1025, 64
      %v1148 = vpop.permute.xlu0 %1147
      %1149 = vrot.lane.b32.xlu0 %v1031, 64
      %v1150 = vpop.permute.xlu0 %1149
      %1151 = vrot.lane.b32.xlu0 %v1037, 64
      %v1152 = vpop.permute.xlu0 %1151
      %1153 = vrot.lane.b32.xlu0 %v1043, 64
      %v1154 = vpop.permute.xlu0 %1153
      %1155 = vrot.lane.b32.xlu0 %v1049, 64
      %v1156 = vpop.permute.xlu0 %1155
      %1157 = vrot.lane.b32.xlu0 %v1055, 64
      %v1158 = vpop.permute.xlu0 %1157
      %1159 = vrot.lane.b32.xlu0 %v1061, 64
      %v1160 = vpop.permute.xlu0 %1159
      %1161 = vrot.lane.b32.xlu0 %v1067, 64
      %v1162 = vpop.permute.xlu0 %1161
      %1163 = vrot.lane.b32.xlu0 %v1073, 64
      %v1164 = vpop.permute.xlu0 %1163
      %1165 = vrot.lane.b32.xlu0 %v1079, 64
      %v1166 = vpop.permute.xlu0 %1165
      %1167 = vrot.lane.b32.xlu0 %v1085, 64
      %v1168 = vpop.permute.xlu0 %1167
      %1169 = vrot.lane.b32.xlu0 %v1091, 64
      %v1170 = vpop.permute.xlu0 %1169
      %1171 = vrot.lane.b32.xlu0 %v1097, 64
      %v1172 = vpop.permute.xlu0 %1171
      %1173 = vrot.lane.b32.xlu0 %v1103, 64
      %v1174 = vpop.permute.xlu0 %1173
      %1175 = vrot.lane.b32.xlu0 %v1109, 64
      %v1176 = vpop.permute.xlu0 %1175
      %vm1177 = vcmask 130048
      %v1179 = vsel %vm1177, %v1113, 0
      %v1182 = vsel %vm1177, %v1114, 0
      %v1185 = vsel %vm1177, %v1115, 0
      %v1188 = vsel %vm1177, %v1116, 0
      %v1191 = vsel %vm1177, %v1117, 0
      %v1194 = vsel %vm1177, %v1118, 0
      %v1197 = vsel %vm1177, %v1119, 0
      %v1200 = vsel %vm1177, %v1120, 0
      %v1203 = vsel %vm1177, %v1121, 0
      %v1206 = vsel %vm1177, %v1122, 0
      %v1209 = vsel %vm1177, %v1123, 0
      %v1212 = vsel %vm1177, %v1124, 0
      %v1215 = vsel %vm1177, %v1125, 0
      %v1218 = vsel %vm1177, %v1126, 0
      %v1221 = vsel %vm1177, %v1127, 0
      %v1224 = vsel %vm1177, %v1128, 0
      %v1226 = vsel %vm1177, %v1146, 0
      %v1228 = vsel %vm1177, %v1148, 0
      %v1230 = vsel %vm1177, %v1150, 0
      %v1232 = vsel %vm1177, %v1152, 0
      %v1234 = vsel %vm1177, %v1154, 0
      %v1236 = vsel %vm1177, %v1156, 0
      %v1238 = vsel %vm1177, %v1158, 0
      %v1240 = vsel %vm1177, %v1160, 0
      %v1242 = vsel %vm1177, %v1162, 0
      %v1244 = vsel %vm1177, %v1164, 0
      %v1246 = vsel %vm1177, %v1166, 0
      %v1248 = vsel %vm1177, %v1168, 0
      %v1250 = vsel %vm1177, %v1170, 0
      %v1252 = vsel %vm1177, %v1172, 0
      %v1254 = vsel %vm1177, %v1174, 0
      %v1256 = vsel %vm1177, %v1176, 0
      %1258 = vmatprep.subr.mxu0 0.0
      %1259 = vmatpush1.xpose.msra.mxu0 %v1226
      %1260 = vmatprep.subr.mxu0 0.0
      %1261 = vmatpush1.xpose.msra.mxu0 %v1228
      %1262 = vmatprep.subr.mxu0 0.0
      %1263 = vmatpush1.xpose.msra.mxu0 %v1230
      %1264 = vmatprep.subr.mxu0 0.0
      %1265 = vmatpush1.xpose.msra.mxu0 %v1232
      %1266 = vmatprep.subr.mxu0 0.0
      %1267 = vmatpush1.xpose.msra.mxu0 %v1234
      %1268 = vmatprep.subr.mxu0 0.0
      %1269 = vmatpush1.xpose.msra.mxu0 %v1236
      %1270 = vmatprep.subr.mxu0 0.0
      %1271 = vmatpush1.xpose.msra.mxu0 %v1238
      %1272 = vmatprep.subr.mxu0 0.0
      %1273 = vmatpush1.xpose.msra.mxu0 %v1240
      %1274 = vmatprep.subr.mxu0 0.0
      %1275 = vmatpush1.xpose.msra.mxu0 %v1242
      %1276 = vmatprep.subr.mxu0 0.0
      %1277 = vmatpush1.xpose.msra.mxu0 %v1244
      %1278 = vmatprep.subr.mxu0 0.0
      %1279 = vmatpush1.xpose.msra.mxu0 %v1246
      %1280 = vmatprep.subr.mxu0 0.0
      %1281 = vmatpush1.xpose.msra.mxu0 %v1248
      %1282 = vmatprep.subr.mxu0 0.0
      %1283 = vmatpush1.xpose.msra.mxu0 %v1250
      %1284 = vmatprep.subr.mxu0 0.0
      %1285 = vmatpush1.xpose.msra.mxu0 %v1252
      %1286 = vmatprep.subr.mxu0 0.0
      %1287 = vmatpush1.xpose.msra.mxu0 %v1254
      %1288 = vmatprep.subr.mxu0 0.0
      %1289 = vmatpush1.xpose.msra.mxu0 %v1256
      %1290 = vmatprep.subr.mxu0 0.0
      %1291 = vmatpush1.xpose.msra.mxu0 0.0
      %1292 = vmatprep.subr.mxu0 0.0
      %1293 = vmatpush1.xpose.msra.mxu0 0.0
      %1294 = vmatprep.subr.mxu0 0.0
      %1295 = vmatpush1.xpose.msra.mxu0 0.0
      %1296 = vmatprep.subr.mxu0 0.0
      %1297 = vmatpush1.xpose.msra.mxu0 0.0
      %1298 = vmatprep.subr.mxu0 0.0
      %1299 = vmatpush1.xpose.msra.mxu0 0.0
      %1300 = vmatprep.subr.mxu0 0.0
      %1301 = vmatpush1.xpose.msra.mxu0 0.0
      %1302 = vmatprep.subr.mxu0 0.0
      %1303 = vmatpush1.xpose.msra.mxu0 0.0
      %1304 = vmatprep.subr.mxu0 0.0
      %1305 = vmatpush1.xpose.msra.mxu0 0.0
      %1306 = vmatprep.subr.mxu0 0.0
      %1307 = vmatpush1.xpose.msra.mxu0 0.0
      %1308 = vmatprep.subr.mxu0 0.0
      %1309 = vmatpush1.xpose.msra.mxu0 0.0
      %1310 = vmatprep.subr.mxu0 0.0
      %1311 = vmatpush1.xpose.msra.mxu0 0.0
      %1312 = vmatprep.subr.mxu0 0.0
      %1313 = vmatpush1.xpose.msra.mxu0 0.0
      %1314 = vmatprep.subr.mxu0 0.0
      %1315 = vmatpush1.xpose.msra.mxu0 0.0
      %1316 = vmatprep.subr.mxu0 0.0
      %1317 = vmatpush1.xpose.msra.mxu0 0.0
      %1318 = vmatprep.subr.mxu0 0.0
      %1319 = vmatpush1.xpose.msra.mxu0 0.0
      %1320 = vmatprep.subr.mxu0 0.0
      %1321 = vmatpush1.xpose.msra.mxu0 0.0
      %1322 = vmatprep.mubr.f32.mxu0 0.0
      %1323 = vmatmul.mubr.f32.gmra.mrb[0].mxu0 %v1179
      %v1324 = vpop.f32.mrb[0].mxu0
      %v1325 = vadd.f32 %v604, %v1324
      %v1326 = vpop.f32.mrb[0].mxu0
      %1327 = vmatprep.mubr.f32.mxu0 0.0
      %1328 = vmatmul.mubr.f32.gmra.mrb[0].mxu0 %v1182
      %v1329 = vpop.f32.mrb[0].mxu0
      %v1330 = vadd.f32 %v605, %v1329
      %v1331 = vpop.f32.mrb[0].mxu0
      %1332 = vmatprep.mubr.f32.mxu0 0.0
      %1333 = vmatmul.mubr.f32.gmra.mrb[0].mxu0 %v1185
      %v1334 = vpop.f32.mrb[0].mxu0
      %v1335 = vadd.f32 %v606, %v1334
      %v1336 = vpop.f32.mrb[0].mxu0
      %1337 = vmatprep.mubr.f32.mxu0 0.0
      %1338 = vmatmul.mubr.f32.gmra.mrb[0].mxu0 %v1188
      %v1339 = vpop.f32.mrb[0].mxu0
      %v1340 = vadd.f32 %v607, %v1339
      %v1341 = vpop.f32.mrb[0].mxu0
      %1342 = vmatprep.mubr.f32.mxu0 0.0
      %1343 = vmatmul.mubr.f32.gmra.mrb[0].mxu0 %v1191
      %v1344 = vpop.f32.mrb[0].mxu0
      %v1345 = vadd.f32 %v608, %v1344
      %v1346 = vpop.f32.mrb[0].mxu0
      %1347 = vmatprep.mubr.f32.mxu0 0.0
      %1348 = vmatmul.mubr.f32.gmra.mrb[0].mxu0 %v1194
      %v1349 = vpop.f32.mrb[0].mxu0
      %v1350 = vadd.f32 %v609, %v1349
      %v1351 = vpop.f32.mrb[0].mxu0
      %1352 = vmatprep.mubr.f32.mxu0 0.0
      %1353 = vmatmul.mubr.f32.gmra.mrb[0].mxu0 %v1197
      %v1354 = vpop.f32.mrb[0].mxu0
      %v1355 = vadd.f32 %v610, %v1354
      %v1356 = vpop.f32.mrb[0].mxu0
      %1357 = vmatprep.mubr.f32.mxu0 0.0
      %1358 = vmatmul.mubr.f32.gmra.mrb[0].mxu0 %v1200
      %v1359 = vpop.f32.mrb[0].mxu0
      %v1360 = vadd.f32 %v611, %v1359
      %v1361 = vpop.f32.mrb[0].mxu0
      %1362 = vmatprep.mubr.f32.mxu0 0.0
      %1363 = vmatmul.mubr.f32.gmra.mrb[0].mxu0 %v1203
      %v1364 = vpop.f32.mrb[0].mxu0
      %v1365 = vadd.f32 %v612, %v1364
      %v1366 = vpop.f32.mrb[0].mxu0
      %1367 = vmatprep.mubr.f32.mxu0 0.0
      %1368 = vmatmul.mubr.f32.gmra.mrb[0].mxu0 %v1206
      %v1369 = vpop.f32.mrb[0].mxu0
      %v1370 = vadd.f32 %v613, %v1369
      %v1371 = vpop.f32.mrb[0].mxu0
      %1372 = vmatprep.mubr.f32.mxu0 0.0
      %1373 = vmatmul.mubr.f32.gmra.mrb[0].mxu0 %v1209
      %v1374 = vpop.f32.mrb[0].mxu0
      %v1375 = vadd.f32 %v614, %v1374
      %v1376 = vpop.f32.mrb[0].mxu0
      %1377 = vmatprep.mubr.f32.mxu0 0.0
      %1378 = vmatmul.mubr.f32.gmra.mrb[0].mxu0 %v1212
      %v1379 = vpop.f32.mrb[0].mxu0
      %v1380 = vadd.f32 %v615, %v1379
      %v1381 = vpop.f32.mrb[0].mxu0
      %1382 = vmatprep.mubr.f32.mxu0 0.0
      %1383 = vmatmul.mubr.f32.gmra.mrb[0].mxu0 %v1215
      %v1384 = vpop.f32.mrb[0].mxu0
      %v1385 = vadd.f32 %v616, %v1384
      %v1386 = vpop.f32.mrb[0].mxu0
      %1387 = vmatprep.mubr.f32.mxu0 0.0
      %1388 = vmatmul.mubr.f32.gmra.mrb[0].mxu0 %v1218
      %v1389 = vpop.f32.mrb[0].mxu0
      %v1390 = vadd.f32 %v617, %v1389
      %v1391 = vpop.f32.mrb[0].mxu0
      %1392 = vmatprep.mubr.f32.mxu0 0.0
      %1393 = vmatmul.mubr.f32.gmra.mrb[0].mxu0 %v1221
      %v1394 = vpop.f32.mrb[0].mxu0
      %v1395 = vadd.f32 %v618, %v1394
      %v1396 = vpop.f32.mrb[0].mxu0
      %1397 = vmatprep.mubr.f32.mxu0 0.0
      %1398 = vmatmul.mubr.f32.gmra.mrb[0].mxu0 %v1224
      %v1399 = vpop.f32.mrb[0].mxu0
      %v1400 = vadd.f32 %v619, %v1399
      %v1401 = vpop.f32.mrb[0].mxu0
      %1402 = vdwg.mxu0
      %1403 = vmax.xlane.f32.xlu0 %v1325
      %v1404 = vpop.xlane.xlu0 %1403
      %1405 = vmax.xlane.f32.xlu0 %v1330
      %v1406 = vpop.xlane.xlu0 %1405
      %1407 = vmax.xlane.f32.xlu0 %v1335
      %v1408 = vpop.xlane.xlu0 %1407
      %1409 = vmax.xlane.f32.xlu0 %v1340
      %v1410 = vpop.xlane.xlu0 %1409
      %1411 = vmax.xlane.f32.xlu0 %v1345
      %v1412 = vpop.xlane.xlu0 %1411
      %1413 = vmax.xlane.f32.xlu0 %v1350
      %v1414 = vpop.xlane.xlu0 %1413
      %1415 = vmax.xlane.f32.xlu0 %v1355
      %v1416 = vpop.xlane.xlu0 %1415
      %1417 = vmax.xlane.f32.xlu0 %v1360
      %v1418 = vpop.xlane.xlu0 %1417
      %1419 = vmax.xlane.f32.xlu0 %v1365
      %v1420 = vpop.xlane.xlu0 %1419
      %1421 = vmax.xlane.f32.xlu0 %v1370
      %v1422 = vpop.xlane.xlu0 %1421
      %1423 = vmax.xlane.f32.xlu0 %v1375
      %v1424 = vpop.xlane.xlu0 %1423
      %1425 = vmax.xlane.f32.xlu0 %v1380
      %v1426 = vpop.xlane.xlu0 %1425
      %1427 = vmax.xlane.f32.xlu0 %v1385
      %v1428 = vpop.xlane.xlu0 %1427
      %1429 = vmax.xlane.f32.xlu0 %v1390
      %v1430 = vpop.xlane.xlu0 %1429
      %1431 = vmax.xlane.f32.xlu0 %v1395
      %v1432 = vpop.xlane.xlu0 %1431
      %1433 = vmax.xlane.f32.xlu0 %v1400
      %v1434 = vpop.xlane.xlu0 %1433
      %v1435 = vsub.f32 %v1325, %v1404
      %v1436 = vsub.f32 %v1330, %v1406
      %v1437 = vsub.f32 %v1335, %v1408
      %v1438 = vsub.f32 %v1340, %v1410
      %v1439 = vsub.f32 %v1345, %v1412
      %v1440 = vsub.f32 %v1350, %v1414
      %v1441 = vsub.f32 %v1355, %v1416
      %v1442 = vsub.f32 %v1360, %v1418
      %v1443 = vsub.f32 %v1365, %v1420
      %v1444 = vsub.f32 %v1370, %v1422
      %v1445 = vsub.f32 %v1375, %v1424
      %v1446 = vsub.f32 %v1380, %v1426
      %v1447 = vsub.f32 %v1385, %v1428
      %v1448 = vsub.f32 %v1390, %v1430
      %v1449 = vsub.f32 %v1395, %v1432
      %v1450 = vsub.f32 %v1400, %v1434
      %v1451 = vmul.f32 %v1435, 1.442695
      %v1452 = vpow.pop %v1451
      %v1453 = vmul.f32 %v1436, 1.442695
      %v1454 = vpow.pop %v1453
      %v1455 = vmul.f32 %v1437, 1.442695
      %v1456 = vpow.pop %v1455
      %v1457 = vmul.f32 %v1438, 1.442695
      %v1458 = vpow.pop %v1457
      %v1459 = vmul.f32 %v1439, 1.442695
      %v1460 = vpow.pop %v1459
      %v1461 = vmul.f32 %v1440, 1.442695
      %v1462 = vpow.pop %v1461
      %v1463 = vmul.f32 %v1441, 1.442695
      %v1464 = vpow.pop %v1463
      %v1465 = vmul.f32 %v1442, 1.442695
      %v1466 = vpow.pop %v1465
      %v1467 = vmul.f32 %v1443, 1.442695
      %v1468 = vpow.pop %v1467
      %v1469 = vmul.f32 %v1444, 1.442695
      %v1470 = vpow.pop %v1469
      %v1471 = vmul.f32 %v1445, 1.442695
      %v1472 = vpow.pop %v1471
      %v1473 = vmul.f32 %v1446, 1.442695
      %v1474 = vpow.pop %v1473
      %v1475 = vmul.f32 %v1447, 1.442695
      %v1476 = vpow.pop %v1475
      %v1477 = vmul.f32 %v1448, 1.442695
      %v1478 = vpow.pop %v1477
      %v1479 = vmul.f32 %v1449, 1.442695
      %v1480 = vpow.pop %v1479
      %v1481 = vmul.f32 %v1450, 1.442695
      %v1482 = vpow.pop %v1481
      %1483 = vadd.xlane.f32.xlu0 %v1452
      %v1484 = vpop.xlane.xlu0 %1483
      %1485 = vadd.xlane.f32.xlu0 %v1454
      %v1486 = vpop.xlane.xlu0 %1485
      %1487 = vadd.xlane.f32.xlu0 %v1456
      %v1488 = vpop.xlane.xlu0 %1487
      %1489 = vadd.xlane.f32.xlu0 %v1458
      %v1490 = vpop.xlane.xlu0 %1489
      %1491 = vadd.xlane.f32.xlu0 %v1460
      %v1492 = vpop.xlane.xlu0 %1491
      %1493 = vadd.xlane.f32.xlu0 %v1462
      %v1494 = vpop.xlane.xlu0 %1493
      %1495 = vadd.xlane.f32.xlu0 %v1464
      %v1496 = vpop.xlane.xlu0 %1495
      %1497 = vadd.xlane.f32.xlu0 %v1466
      %v1498 = vpop.xlane.xlu0 %1497
      %1499 = vadd.xlane.f32.xlu0 %v1468
      %v1500 = vpop.xlane.xlu0 %1499
      %1501 = vadd.xlane.f32.xlu0 %v1470
      %v1502 = vpop.xlane.xlu0 %1501
      %1503 = vadd.xlane.f32.xlu0 %v1472
      %v1504 = vpop.xlane.xlu0 %1503
      %1505 = vadd.xlane.f32.xlu0 %v1474
      %v1506 = vpop.xlane.xlu0 %1505
      %1507 = vadd.xlane.f32.xlu0 %v1476
      %v1508 = vpop.xlane.xlu0 %1507
      %1509 = vadd.xlane.f32.xlu0 %v1478
      %v1510 = vpop.xlane.xlu0 %1509
      %1511 = vadd.xlane.f32.xlu0 %v1480
      %v1512 = vpop.xlane.xlu0 %1511
      %1513 = vadd.xlane.f32.xlu0 %v1482
      %v1514 = vpop.xlane.xlu0 %1513
      %v1515 = vrcp.pop %v1484
      %v1516 = vmul.f32 %v1452, %v1515
      %v1517 = vrcp.pop %v1486
      %v1518 = vmul.f32 %v1454, %v1517
      %v1519 = vrcp.pop %v1488
      %v1520 = vmul.f32 %v1456, %v1519
      %v1521 = vrcp.pop %v1490
      %v1522 = vmul.f32 %v1458, %v1521
      %v1523 = vrcp.pop %v1492
      %v1524 = vmul.f32 %v1460, %v1523
      %v1525 = vrcp.pop %v1494
      %v1526 = vmul.f32 %v1462, %v1525
      %v1527 = vrcp.pop %v1496
      %v1528 = vmul.f32 %v1464, %v1527
      %v1529 = vrcp.pop %v1498
      %v1530 = vmul.f32 %v1466, %v1529
      %v1531 = vrcp.pop %v1500
      %v1532 = vmul.f32 %v1468, %v1531
      %v1533 = vrcp.pop %v1502
      %v1534 = vmul.f32 %v1470, %v1533
      %v1535 = vrcp.pop %v1504
      %v1536 = vmul.f32 %v1472, %v1535
      %v1537 = vrcp.pop %v1506
      %v1538 = vmul.f32 %v1474, %v1537
      %v1539 = vrcp.pop %v1508
      %v1540 = vmul.f32 %v1476, %v1539
      %v1541 = vrcp.pop %v1510
      %v1542 = vmul.f32 %v1478, %v1541
      %v1543 = vrcp.pop %v1512
      %v1544 = vmul.f32 %v1480, %v1543
      %v1545 = vrcp.pop %v1514
      %v1546 = vmul.f32 %v1482, %v1545
      %1547 = vmatprep.subr.mxu0 0.0
      %1548 = vmatpush1.msra.mxu0 %v1021
      %1549 = vmatprep.subr.mxu0 0.0
      %1550 = vmatpush1.msra.mxu0 %v1027
      %1551 = vmatprep.subr.mxu0 0.0
      %1552 = vmatpush1.msra.mxu0 %v1033
      %1553 = vmatprep.subr.mxu0 0.0
      %1554 = vmatpush1.msra.mxu0 %v1039
      %1555 = vmatprep.subr.mxu0 0.0
      %1556 = vmatpush1.msra.mxu0 %v1045
      %1557 = vmatprep.subr.mxu0 0.0
      %1558 = vmatpush1.msra.mxu0 %v1051
      %1559 = vmatprep.subr.mxu0 0.0
      %1560 = vmatpush1.msra.mxu0 %v1057
      %1561 = vmatprep.subr.mxu0 0.0
      %1562 = vmatpush1.msra.mxu0 %v1063
      %1563 = vmatprep.subr.mxu0 0.0
      %1564 = vmatpush1.msra.mxu0 %v1069
      %1565 = vmatprep.subr.mxu0 0.0
      %1566 = vmatpush1.msra.mxu0 %v1075
      %1567 = vmatprep.subr.mxu0 0.0
      %1568 = vmatpush1.msra.mxu0 %v1081
      %1569 = vmatprep.subr.mxu0 0.0
      %1570 = vmatpush1.msra.mxu0 %v1087
      %1571 = vmatprep.subr.mxu0 0.0
      %1572 = vmatpush1.msra.mxu0 %v1093
      %1573 = vmatprep.subr.mxu0 0.0
      %1574 = vmatpush1.msra.mxu0 %v1099
      %1575 = vmatprep.subr.mxu0 0.0
      %1576 = vmatpush1.msra.mxu0 %v1105
      %1577 = vmatprep.subr.mxu0 0.0
      %1578 = vmatpush1.msra.mxu0 %v1111
      %1579 = vmatprep.subr.mxu0 0.0
      %1580 = vmatpush1.msra.mxu0 0.0
      %1581 = vmatprep.subr.mxu0 0.0
      %1582 = vmatpush1.msra.mxu0 0.0
      %1583 = vmatprep.subr.mxu0 0.0
      %1584 = vmatpush1.msra.mxu0 0.0
      %1585 = vmatprep.subr.mxu0 0.0
      %1586 = vmatpush1.msra.mxu0 0.0
      %1587 = vmatprep.subr.mxu0 0.0
      %1588 = vmatpush1.msra.mxu0 0.0
      %1589 = vmatprep.subr.mxu0 0.0
      %1590 = vmatpush1.msra.mxu0 0.0
      %1591 = vmatprep.subr.mxu0 0.0
      %1592 = vmatpush1.msra.mxu0 0.0
      %1593 = vmatprep.subr.mxu0 0.0
      %1594 = vmatpush1.msra.mxu0 0.0
      %1595 = vmatprep.subr.mxu0 0.0
      %1596 = vmatpush1.msra.mxu0 0.0
      %1597 = vmatprep.subr.mxu0 0.0
      %1598 = vmatpush1.msra.mxu0 0.0
      %1599 = vmatprep.subr.mxu0 0.0
      %1600 = vmatpush1.msra.mxu0 0.0
      %1601 = vmatprep.subr.mxu0 0.0
      %1602 = vmatpush1.msra.mxu0 0.0
      %1603 = vmatprep.subr.mxu0 0.0
      %1604 = vmatpush1.msra.mxu0 0.0
      %1605 = vmatprep.subr.mxu0 0.0
      %1606 = vmatpush1.msra.mxu0 0.0
      %1607 = vmatprep.subr.mxu0 0.0
      %1608 = vmatpush1.msra.mxu0 0.0
      %1609 = vmatprep.subr.mxu0 0.0
      %1610 = vmatpush1.msra.mxu0 0.0
      %1611 = vmatprep.mubr.f32.mxu0 0.0
      %1612 = vmatmul.mubr.f32.gmra.mrb[0].mxu0 %v1516
      %v1613 = vpop.f32.mrb[0].mxu0
      %v1614 = vadd.f32 0.0, %v1613
      %v1615 = vpop.f32.mrb[0].mxu0
      %1616 = vmatprep.mubr.f32.mxu0 0.0
      %1617 = vmatmul.mubr.f32.gmra.mrb[0].mxu0 %v1518
      %v1618 = vpop.f32.mrb[0].mxu0
      %v1619 = vadd.f32 0.0, %v1618
      %v1620 = vpop.f32.mrb[0].mxu0
      %1621 = vmatprep.mubr.f32.mxu0 0.0
      %1622 = vmatmul.mubr.f32.gmra.mrb[0].mxu0 %v1520
      %v1623 = vpop.f32.mrb[0].mxu0
      %v1624 = vadd.f32 0.0, %v1623
      %v1625 = vpop.f32.mrb[0].mxu0
      %1626 = vmatprep.mubr.f32.mxu0 0.0
      %1627 = vmatmul.mubr.f32.gmra.mrb[0].mxu0 %v1522
      %v1628 = vpop.f32.mrb[0].mxu0
      %v1629 = vadd.f32 0.0, %v1628
      %v1630 = vpop.f32.mrb[0].mxu0
      %1631 = vmatprep.mubr.f32.mxu0 0.0
      %1632 = vmatmul.mubr.f32.gmra.mrb[0].mxu0 %v1524
      %v1633 = vpop.f32.mrb[0].mxu0
      %v1634 = vadd.f32 0.0, %v1633
      %v1635 = vpop.f32.mrb[0].mxu0
      %1636 = vmatprep.mubr.f32.mxu0 0.0
      %1637 = vmatmul.mubr.f32.gmra.mrb[0].mxu0 %v1526
      %v1638 = vpop.f32.mrb[0].mxu0
      %v1639 = vadd.f32 0.0, %v1638
      %v1640 = vpop.f32.mrb[0].mxu0
      %1641 = vmatprep.mubr.f32.mxu0 0.0
      %1642 = vmatmul.mubr.f32.gmra.mrb[0].mxu0 %v1528
      %v1643 = vpop.f32.mrb[0].mxu0
      %v1644 = vadd.f32 0.0, %v1643
      %v1645 = vpop.f32.mrb[0].mxu0
      %1646 = vmatprep.mubr.f32.mxu0 0.0
      %1647 = vmatmul.mubr.f32.gmra.mrb[0].mxu0 %v1530
      %v1648 = vpop.f32.mrb[0].mxu0
      %v1649 = vadd.f32 0.0, %v1648
      %v1650 = vpop.f32.mrb[0].mxu0
      %1651 = vmatprep.mubr.f32.mxu0 0.0
      %1652 = vmatmul.mubr.f32.gmra.mrb[0].mxu0 %v1532
      %v1653 = vpop.f32.mrb[0].mxu0
      %v1654 = vadd.f32 0.0, %v1653
      %v1655 = vpop.f32.mrb[0].mxu0
      %1656 = vmatprep.mubr.f32.mxu0 0.0
      %1657 = vmatmul.mubr.f32.gmra.mrb[0].mxu0 %v1534
      %v1658 = vpop.f32.mrb[0].mxu0
      %v1659 = vadd.f32 0.0, %v1658
      %v1660 = vpop.f32.mrb[0].mxu0
      %1661 = vmatprep.mubr.f32.mxu0 0.0
      %1662 = vmatmul.mubr.f32.gmra.mrb[0].mxu0 %v1536
      %v1663 = vpop.f32.mrb[0].mxu0
      %v1664 = vadd.f32 0.0, %v1663
      %v1665 = vpop.f32.mrb[0].mxu0
      %1666 = vmatprep.mubr.f32.mxu0 0.0
      %1667 = vmatmul.mubr.f32.gmra.mrb[0].mxu0 %v1538
      %v1668 = vpop.f32.mrb[0].mxu0
      %v1669 = vadd.f32 0.0, %v1668
      %v1670 = vpop.f32.mrb[0].mxu0
      %1671 = vmatprep.mubr.f32.mxu0 0.0
      %1672 = vmatmul.mubr.f32.gmra.mrb[0].mxu0 %v1540
      %v1673 = vpop.f32.mrb[0].mxu0
      %v1674 = vadd.f32 0.0, %v1673
      %v1675 = vpop.f32.mrb[0].mxu0
      %1676 = vmatprep.mubr.f32.mxu0 0.0
      %1677 = vmatmul.mubr.f32.gmra.mrb[0].mxu0 %v1542
      %v1678 = vpop.f32.mrb[0].mxu0
      %v1679 = vadd.f32 0.0, %v1678
      %v1680 = vpop.f32.mrb[0].mxu0
      %1681 = vmatprep.mubr.f32.mxu0 0.0
      %1682 = vmatmul.mubr.f32.gmra.mrb[0].mxu0 %v1544
      %v1683 = vpop.f32.mrb[0].mxu0
      %v1684 = vadd.f32 0.0, %v1683
      %v1685 = vpop.f32.mrb[0].mxu0
      %1686 = vmatprep.mubr.f32.mxu0 0.0
      %1687 = vmatmul.mubr.f32.gmra.mrb[0].mxu0 %v1546
      %v1688 = vpop.f32.mrb[0].mxu0
      %v1689 = vadd.f32 0.0, %v1688
      %v1690 = vpop.f32.mrb[0].mxu0
      %1691 = vdwg.mxu0
      %1692 = vrot.lane.b32.xlu0 %v1113, 112
      %v1693 = vpop.permute.xlu0 %1692
      %1694 = vrot.lane.b32.xlu0 %v1114, 112
      %v1695 = vpop.permute.xlu0 %1694
      %1696 = vrot.lane.b32.xlu0 %v1115, 112
      %v1697 = vpop.permute.xlu0 %1696
      %1698 = vrot.lane.b32.xlu0 %v1116, 112
      %v1699 = vpop.permute.xlu0 %1698
      %1700 = vrot.lane.b32.xlu0 %v1117, 112
      %v1701 = vpop.permute.xlu0 %1700
      %1702 = vrot.lane.b32.xlu0 %v1118, 112
      %v1703 = vpop.permute.xlu0 %1702
      %1704 = vrot.lane.b32.xlu0 %v1119, 112
      %v1705 = vpop.permute.xlu0 %1704
      %1706 = vrot.lane.b32.xlu0 %v1120, 112
      %v1707 = vpop.permute.xlu0 %1706
      %1708 = vrot.lane.b32.xlu0 %v1121, 112
      %v1709 = vpop.permute.xlu0 %1708
      %1710 = vrot.lane.b32.xlu0 %v1122, 112
      %v1711 = vpop.permute.xlu0 %1710
      %1712 = vrot.lane.b32.xlu0 %v1123, 112
      %v1713 = vpop.permute.xlu0 %1712
      %1714 = vrot.lane.b32.xlu0 %v1124, 112
      %v1715 = vpop.permute.xlu0 %1714
      %1716 = vrot.lane.b32.xlu0 %v1125, 112
      %v1717 = vpop.permute.xlu0 %1716
      %1718 = vrot.lane.b32.xlu0 %v1126, 112
      %v1719 = vpop.permute.xlu0 %1718
      %1720 = vrot.lane.b32.xlu0 %v1127, 112
      %v1721 = vpop.permute.xlu0 %1720
      %1722 = vrot.lane.b32.xlu0 %v1128, 112
      %v1723 = vpop.permute.xlu0 %1722
      %1724 = vrot.lane.b32.xlu0 %v1019, 48
      %v1725 = vpop.permute.xlu0 %1724
      %1726 = vrot.lane.b32.xlu0 %v1025, 48
      %v1727 = vpop.permute.xlu0 %1726
      %1728 = vrot.lane.b32.xlu0 %v1031, 48
      %v1729 = vpop.permute.xlu0 %1728
      %1730 = vrot.lane.b32.xlu0 %v1037, 48
      %v1731 = vpop.permute.xlu0 %1730
      %1732 = vrot.lane.b32.xlu0 %v1043, 48
      %v1733 = vpop.permute.xlu0 %1732
      %1734 = vrot.lane.b32.xlu0 %v1049, 48
      %v1735 = vpop.permute.xlu0 %1734
      %1736 = vrot.lane.b32.xlu0 %v1055, 48
      %v1737 = vpop.permute.xlu0 %1736
      %1738 = vrot.lane.b32.xlu0 %v1061, 48
      %v1739 = vpop.permute.xlu0 %1738
      %1740 = vrot.lane.b32.xlu0 %v1067, 48
      %v1741 = vpop.permute.xlu0 %1740
      %1742 = vrot.lane.b32.xlu0 %v1073, 48
      %v1743 = vpop.permute.xlu0 %1742
      %1744 = vrot.lane.b32.xlu0 %v1079, 48
      %v1745 = vpop.permute.xlu0 %1744
      %1746 = vrot.lane.b32.xlu0 %v1085, 48
      %v1747 = vpop.permute.xlu0 %1746
      %1748 = vrot.lane.b32.xlu0 %v1091, 48
      %v1749 = vpop.permute.xlu0 %1748
      %1750 = vrot.lane.b32.xlu0 %v1097, 48
      %v1751 = vpop.permute.xlu0 %1750
      %1752 = vrot.lane.b32.xlu0 %v1103, 48
      %v1753 = vpop.permute.xlu0 %1752
      %1754 = vrot.lane.b32.xlu0 %v1109, 48
      %v1755 = vpop.permute.xlu0 %1754
      %v1756 = vsel %vm1177, %v1693, 0
      %v1758 = vsel %vm1177, %v1695, 0
      %v1760 = vsel %vm1177, %v1697, 0
      %v1762 = vsel %vm1177, %v1699, 0
      %v1764 = vsel %vm1177, %v1701, 0
      %v1766 = vsel %vm1177, %v1703, 0
      %v1768 = vsel %vm1177, %v1705, 0
      %v1770 = vsel %vm1177, %v1707, 0
      %v1772 = vsel %vm1177, %v1709, 0
      %v1774 = vsel %vm1177, %v1711, 0
      %v1776 = vsel %vm1177, %v1713, 0
      %v1778 = vsel %vm1177, %v1715, 0
      %v1780 = vsel %vm1177, %v1717, 0
      %v1782 = vsel %vm1177, %v1719, 0
      %v1784 = vsel %vm1177, %v1721, 0
      %v1786 = vsel %vm1177, %v1723, 0
      %v1788 = vsel %vm1177, %v1725, 0
      %v1790 = vsel %vm1177, %v1727, 0
      %v1792 = vsel %vm1177, %v1729, 0
      %v1794 = vsel %vm1177, %v1731, 0
      %v1796 = vsel %vm1177, %v1733, 0
      %v1798 = vsel %vm1177, %v1735, 0
      %v1800 = vsel %vm1177, %v1737, 0
      %v1802 = vsel %vm1177, %v1739, 0
      %v1804 = vsel %vm1177, %v1741, 0
      %v1806 = vsel %vm1177, %v1743, 0
      %v1808 = vsel %vm1177, %v1745, 0
      %v1810 = vsel %vm1177, %v1747, 0
      %v1812 = vsel %vm1177, %v1749, 0
      %v1814 = vsel %vm1177, %v1751, 0
      %v1816 = vsel %vm1177, %v1753, 0
      %v1818 = vsel %vm1177, %v1755, 0
      %1820 = vmatprep.subr.mxu0 0.0
      %1821 = vmatpush1.xpose.msra.mxu0 %v1788
      %1822 = vmatprep.subr.mxu0 0.0
      %1823 = vmatpush1.xpose.msra.mxu0 %v1790
      %1824 = vmatprep.subr.mxu0 0.0
      %1825 = vmatpush1.xpose.msra.mxu0 %v1792
      %1826 = vmatprep.subr.mxu0 0.0
      %1827 = vmatpush1.xpose.msra.mxu0 %v1794
      %1828 = vmatprep.subr.mxu0 0.0
      %1829 = vmatpush1.xpose.msra.mxu0 %v1796
      %1830 = vmatprep.subr.mxu0 0.0
      %1831 = vmatpush1.xpose.msra.mxu0 %v1798
      %1832 = vmatprep.subr.mxu0 0.0
      %1833 = vmatpush1.xpose.msra.mxu0 %v1800
      %1834 = vmatprep.subr.mxu0 0.0
      %1835 = vmatpush1.xpose.msra.mxu0 %v1802
      %1836 = vmatprep.subr.mxu0 0.0
      %1837 = vmatpush1.xpose.msra.mxu0 %v1804
      %1838 = vmatprep.subr.mxu0 0.0
      %1839 = vmatpush1.xpose.msra.mxu0 %v1806
      %1840 = vmatprep.subr.mxu0 0.0
      %1841 = vmatpush1.xpose.msra.mxu0 %v1808
      %1842 = vmatprep.subr.mxu0 0.0
      %1843 = vmatpush1.xpose.msra.mxu0 %v1810
      %1844 = vmatprep.subr.mxu0 0.0
      %1845 = vmatpush1.xpose.msra.mxu0 %v1812
      %1846 = vmatprep.subr.mxu0 0.0
      %1847 = vmatpush1.xpose.msra.mxu0 %v1814
      %1848 = vmatprep.subr.mxu0 0.0
      %1849 = vmatpush1.xpose.msra.mxu0 %v1816
      %1850 = vmatprep.subr.mxu0 0.0
      %1851 = vmatpush1.xpose.msra.mxu0 %v1818
      %1852 = vmatprep.subr.mxu0 0.0
      %1853 = vmatpush1.xpose.msra.mxu0 0.0
      %1854 = vmatprep.subr.mxu0 0.0
      %1855 = vmatpush1.xpose.msra.mxu0 0.0
      %1856 = vmatprep.subr.mxu0 0.0
      %1857 = vmatpush1.xpose.msra.mxu0 0.0
      %1858 = vmatprep.subr.mxu0 0.0
      %1859 = vmatpush1.xpose.msra.mxu0 0.0
      %1860 = vmatprep.subr.mxu0 0.0
      %1861 = vmatpush1.xpose.msra.mxu0 0.0
      %1862 = vmatprep.subr.mxu0 0.0
      %1863 = vmatpush1.xpose.msra.mxu0 0.0
      %1864 = vmatprep.subr.mxu0 0.0
      %1865 = vmatpush1.xpose.msra.mxu0 0.0
      %1866 = vmatprep.subr.mxu0 0.0
      %1867 = vmatpush1.xpose.msra.mxu0 0.0
      %1868 = vmatprep.subr.mxu0 0.0
      %1869 = vmatpush1.xpose.msra.mxu0 0.0
      %1870 = vmatprep.subr.mxu0 0.0
      %1871 = vmatpush1.xpose.msra.mxu0 0.0
      %1872 = vmatprep.subr.mxu0 0.0
      %1873 = vmatpush1.xpose.msra.mxu0 0.0
      %1874 = vmatprep.subr.mxu0 0.0
      %1875 = vmatpush1.xpose.msra.mxu0 0.0
      %1876 = vmatprep.subr.mxu0 0.0
      %1877 = vmatpush1.xpose.msra.mxu0 0.0
      %1878 = vmatprep.subr.mxu0 0.0
      %1879 = vmatpush1.xpose.msra.mxu0 0.0
      %1880 = vmatprep.subr.mxu0 0.0
      %1881 = vmatpush1.xpose.msra.mxu0 0.0
      %1882 = vmatprep.subr.mxu0 0.0
      %1883 = vmatpush1.xpose.msra.mxu0 0.0
      %1884 = vmatprep.mubr.f32.mxu0 0.0
      %1885 = vmatmul.mubr.f32.gmra.mrb[0].mxu0 %v1756
      %v1886 = vpop.f32.mrb[0].mxu0
      %v1887 = vadd.f32 %v604, %v1886
      %v1888 = vpop.f32.mrb[0].mxu0
      %1889 = vmatprep.mubr.f32.mxu0 0.0
      %1890 = vmatmul.mubr.f32.gmra.mrb[0].mxu0 %v1758
      %v1891 = vpop.f32.mrb[0].mxu0
      %v1892 = vadd.f32 %v605, %v1891
      %v1893 = vpop.f32.mrb[0].mxu0
      %1894 = vmatprep.mubr.f32.mxu0 0.0
      %1895 = vmatmul.mubr.f32.gmra.mrb[0].mxu0 %v1760
      %v1896 = vpop.f32.mrb[0].mxu0
      %v1897 = vadd.f32 %v606, %v1896
      %v1898 = vpop.f32.mrb[0].mxu0
      %1899 = vmatprep.mubr.f32.mxu0 0.0
      %1900 = vmatmul.mubr.f32.gmra.mrb[0].mxu0 %v1762
      %v1901 = vpop.f32.mrb[0].mxu0
      %v1902 = vadd.f32 %v607, %v1901
      %v1903 = vpop.f32.mrb[0].mxu0
      %1904 = vmatprep.mubr.f32.mxu0 0.0
      %1905 = vmatmul.mubr.f32.gmra.mrb[0].mxu0 %v1764
      %v1906 = vpop.f32.mrb[0].mxu0
      %v1907 = vadd.f32 %v608, %v1906
      %v1908 = vpop.f32.mrb[0].mxu0
      %1909 = vmatprep.mubr.f32.mxu0 0.0
      %1910 = vmatmul.mubr.f32.gmra.mrb[0].mxu0 %v1766
      %v1911 = vpop.f32.mrb[0].mxu0
      %v1912 = vadd.f32 %v609, %v1911
      %v1913 = vpop.f32.mrb[0].mxu0
      %1914 = vmatprep.mubr.f32.mxu0 0.0
      %1915 = vmatmul.mubr.f32.gmra.mrb[0].mxu0 %v1768
      %v1916 = vpop.f32.mrb[0].mxu0
      %v1917 = vadd.f32 %v610, %v1916
      %v1918 = vpop.f32.mrb[0].mxu0
      %1919 = vmatprep.mubr.f32.mxu0 0.0
      %1920 = vmatmul.mubr.f32.gmra.mrb[0].mxu0 %v1770
      %v1921 = vpop.f32.mrb[0].mxu0
      %v1922 = vadd.f32 %v611, %v1921
      %v1923 = vpop.f32.mrb[0].mxu0
      %1924 = vmatprep.mubr.f32.mxu0 0.0
      %1925 = vmatmul.mubr.f32.gmra.mrb[0].mxu0 %v1772
      %v1926 = vpop.f32.mrb[0].mxu0
      %v1927 = vadd.f32 %v612, %v1926
      %v1928 = vpop.f32.mrb[0].mxu0
      %1929 = vmatprep.mubr.f32.mxu0 0.0
      %1930 = vmatmul.mubr.f32.gmra.mrb[0].mxu0 %v1774
      %v1931 = vpop.f32.mrb[0].mxu0
      %v1932 = vadd.f32 %v613, %v1931
      %v1933 = vpop.f32.mrb[0].mxu0
      %1934 = vmatprep.mubr.f32.mxu0 0.0
      %1935 = vmatmul.mubr.f32.gmra.mrb[0].mxu0 %v1776
      %v1936 = vpop.f32.mrb[0].mxu0
      %v1937 = vadd.f32 %v614, %v1936
      %v1938 = vpop.f32.mrb[0].mxu0
      %1939 = vmatprep.mubr.f32.mxu0 0.0
      %1940 = vmatmul.mubr.f32.gmra.mrb[0].mxu0 %v1778
      %v1941 = vpop.f32.mrb[0].mxu0
      %v1942 = vadd.f32 %v615, %v1941
      %v1943 = vpop.f32.mrb[0].mxu0
      %1944 = vmatprep.mubr.f32.mxu0 0.0
      %1945 = vmatmul.mubr.f32.gmra.mrb[0].mxu0 %v1780
      %v1946 = vpop.f32.mrb[0].mxu0
      %v1947 = vadd.f32 %v616, %v1946
      %v1948 = vpop.f32.mrb[0].mxu0
      %1949 = vmatprep.mubr.f32.mxu0 0.0
      %1950 = vmatmul.mubr.f32.gmra.mrb[0].mxu0 %v1782
      %v1951 = vpop.f32.mrb[0].mxu0
      %v1952 = vadd.f32 %v617, %v1951
      %v1953 = vpop.f32.mrb[0].mxu0
      %1954 = vmatprep.mubr.f32.mxu0 0.0
      %1955 = vmatmul.mubr.f32.gmra.mrb[0].mxu0 %v1784
      %v1956 = vpop.f32.mrb[0].mxu0
      %v1957 = vadd.f32 %v618, %v1956
      %v1958 = vpop.f32.mrb[0].mxu0
      %1959 = vmatprep.mubr.f32.mxu0 0.0
      %1960 = vmatmul.mubr.f32.gmra.mrb[0].mxu0 %v1786
      %v1961 = vpop.f32.mrb[0].mxu0
      %v1962 = vadd.f32 %v619, %v1961
      %v1963 = vpop.f32.mrb[0].mxu0
      %1964 = vdwg.mxu0
      %1965 = vmax.xlane.f32.xlu0 %v1887
      %v1966 = vpop.xlane.xlu0 %1965
      %1967 = vmax.xlane.f32.xlu0 %v1892
      %v1968 = vpop.xlane.xlu0 %1967
      %1969 = vmax.xlane.f32.xlu0 %v1897
      %v1970 = vpop.xlane.xlu0 %1969
      %1971 = vmax.xlane.f32.xlu0 %v1902
      %v1972 = vpop.xlane.xlu0 %1971
      %1973 = vmax.xlane.f32.xlu0 %v1907
      %v1974 = vpop.xlane.xlu0 %1973
      %1975 = vmax.xlane.f32.xlu0 %v1912
      %v1976 = vpop.xlane.xlu0 %1975
      %1977 = vmax.xlane.f32.xlu0 %v1917
      %v1978 = vpop.xlane.xlu0 %1977
      %1979 = vmax.xlane.f32.xlu0 %v1922
      %v1980 = vpop.xlane.xlu0 %1979
      %1981 = vmax.xlane.f32.xlu0 %v1927
      %v1982 = vpop.xlane.xlu0 %1981
      %1983 = vmax.xlane.f32.xlu0 %v1932
      %v1984 = vpop.xlane.xlu0 %1983
      %1985 = vmax.xlane.f32.xlu0 %v1937
      %v1986 = vpop.xlane.xlu0 %1985
      %1987 = vmax.xlane.f32.xlu0 %v1942
      %v1988 = vpop.xlane.xlu0 %1987
      %1989 = vmax.xlane.f32.xlu0 %v1947
      %v1990 = vpop.xlane.xlu0 %1989
      %1991 = vmax.xlane.f32.xlu0 %v1952
      %v1992 = vpop.xlane.xlu0 %1991
      %1993 = vmax.xlane.f32.xlu0 %v1957
      %v1994 = vpop.xlane.xlu0 %1993
      %1995 = vmax.xlane.f32.xlu0 %v1962
      %v1996 = vpop.xlane.xlu0 %1995
      %v1997 = vsub.f32 %v1887, %v1966
      %v1998 = vsub.f32 %v1892, %v1968
      %v1999 = vsub.f32 %v1897, %v1970
      %v2000 = vsub.f32 %v1902, %v1972
      %v2001 = vsub.f32 %v1907, %v1974
      %v2002 = vsub.f32 %v1912, %v1976
      %v2003 = vsub.f32 %v1917, %v1978
      %v2004 = vsub.f32 %v1922, %v1980
      %v2005 = vsub.f32 %v1927, %v1982
      %v2006 = vsub.f32 %v1932, %v1984
      %v2007 = vsub.f32 %v1937, %v1986
      %v2008 = vsub.f32 %v1942, %v1988
      %v2009 = vsub.f32 %v1947, %v1990
      %v2010 = vsub.f32 %v1952, %v1992
      %v2011 = vsub.f32 %v1957, %v1994
      %v2012 = vsub.f32 %v1962, %v1996
      %v2013 = vmul.f32 %v1997, 1.442695
      %v2014 = vpow.pop %v2013
      %v2015 = vmul.f32 %v1998, 1.442695
      %v2016 = vpow.pop %v2015
      %v2017 = vmul.f32 %v1999, 1.442695
      %v2018 = vpow.pop %v2017
      %v2019 = vmul.f32 %v2000, 1.442695
      %v2020 = vpow.pop %v2019
      %v2021 = vmul.f32 %v2001, 1.442695
      %v2022 = vpow.pop %v2021
      %v2023 = vmul.f32 %v2002, 1.442695
      %v2024 = vpow.pop %v2023
      %v2025 = vmul.f32 %v2003, 1.442695
      %v2026 = vpow.pop %v2025
      %v2027 = vmul.f32 %v2004, 1.442695
      %v2028 = vpow.pop %v2027
      %v2029 = vmul.f32 %v2005, 1.442695
      %v2030 = vpow.pop %v2029
      %v2031 = vmul.f32 %v2006, 1.442695
      %v2032 = vpow.pop %v2031
      %v2033 = vmul.f32 %v2007, 1.442695
      %v2034 = vpow.pop %v2033
      %v2035 = vmul.f32 %v2008, 1.442695
      %v2036 = vpow.pop %v2035
      %v2037 = vmul.f32 %v2009, 1.442695
      %v2038 = vpow.pop %v2037
      %v2039 = vmul.f32 %v2010, 1.442695
      %v2040 = vpow.pop %v2039
      %v2041 = vmul.f32 %v2011, 1.442695
      %v2042 = vpow.pop %v2041
      %v2043 = vmul.f32 %v2012, 1.442695
      %v2044 = vpow.pop %v2043
      %2045 = vadd.xlane.f32.xlu0 %v2014
      %v2046 = vpop.xlane.xlu0 %2045
      %2047 = vadd.xlane.f32.xlu0 %v2016
      %v2048 = vpop.xlane.xlu0 %2047
      %2049 = vadd.xlane.f32.xlu0 %v2018
      %v2050 = vpop.xlane.xlu0 %2049
      %2051 = vadd.xlane.f32.xlu0 %v2020
      %v2052 = vpop.xlane.xlu0 %2051
      %2053 = vadd.xlane.f32.xlu0 %v2022
      %v2054 = vpop.xlane.xlu0 %2053
      %2055 = vadd.xlane.f32.xlu0 %v2024
      %v2056 = vpop.xlane.xlu0 %2055
      %2057 = vadd.xlane.f32.xlu0 %v2026
      %v2058 = vpop.xlane.xlu0 %2057
      %2059 = vadd.xlane.f32.xlu0 %v2028
      %v2060 = vpop.xlane.xlu0 %2059
      %2061 = vadd.xlane.f32.xlu0 %v2030
      %v2062 = vpop.xlane.xlu0 %2061
      %2063 = vadd.xlane.f32.xlu0 %v2032
      %v2064 = vpop.xlane.xlu0 %2063
      %2065 = vadd.xlane.f32.xlu0 %v2034
      %v2066 = vpop.xlane.xlu0 %2065
      %2067 = vadd.xlane.f32.xlu0 %v2036
      %v2068 = vpop.xlane.xlu0 %2067
      %2069 = vadd.xlane.f32.xlu0 %v2038
      %v2070 = vpop.xlane.xlu0 %2069
      %2071 = vadd.xlane.f32.xlu0 %v2040
      %v2072 = vpop.xlane.xlu0 %2071
      %2073 = vadd.xlane.f32.xlu0 %v2042
      %v2074 = vpop.xlane.xlu0 %2073
      %2075 = vadd.xlane.f32.xlu0 %v2044
      %v2076 = vpop.xlane.xlu0 %2075
      %v2077 = vrcp.pop %v2046
      %v2078 = vmul.f32 %v2014, %v2077
      %v2079 = vrcp.pop %v2048
      %v2080 = vmul.f32 %v2016, %v2079
      %v2081 = vrcp.pop %v2050
      %v2082 = vmul.f32 %v2018, %v2081
      %v2083 = vrcp.pop %v2052
      %v2084 = vmul.f32 %v2020, %v2083
      %v2085 = vrcp.pop %v2054
      %v2086 = vmul.f32 %v2022, %v2085
      %v2087 = vrcp.pop %v2056
      %v2088 = vmul.f32 %v2024, %v2087
      %v2089 = vrcp.pop %v2058
      %v2090 = vmul.f32 %v2026, %v2089
      %v2091 = vrcp.pop %v2060
      %v2092 = vmul.f32 %v2028, %v2091
      %v2093 = vrcp.pop %v2062
      %v2094 = vmul.f32 %v2030, %v2093
      %v2095 = vrcp.pop %v2064
      %v2096 = vmul.f32 %v2032, %v2095
      %v2097 = vrcp.pop %v2066
      %v2098 = vmul.f32 %v2034, %v2097
      %v2099 = vrcp.pop %v2068
      %v2100 = vmul.f32 %v2036, %v2099
      %v2101 = vrcp.pop %v2070
      %v2102 = vmul.f32 %v2038, %v2101
      %v2103 = vrcp.pop %v2072
      %v2104 = vmul.f32 %v2040, %v2103
      %v2105 = vrcp.pop %v2074
      %v2106 = vmul.f32 %v2042, %v2105
      %v2107 = vrcp.pop %v2076
      %v2108 = vmul.f32 %v2044, %v2107
      %2125 = vrot.lane.b32.xlu0 %v1021, 112
      %v2126 = vpop.permute.xlu0 %2125
      %2127 = vrot.lane.b32.xlu0 %v1027, 112
      %v2128 = vpop.permute.xlu0 %2127
      %2129 = vrot.lane.b32.xlu0 %v1033, 112
      %v2130 = vpop.permute.xlu0 %2129
      %2131 = vrot.lane.b32.xlu0 %v1039, 112
      %v2132 = vpop.permute.xlu0 %2131
      %2133 = vrot.lane.b32.xlu0 %v1045, 112
      %v2134 = vpop.permute.xlu0 %2133
      %2135 = vrot.lane.b32.xlu0 %v1051, 112
      %v2136 = vpop.permute.xlu0 %2135
      %2137 = vrot.lane.b32.xlu0 %v1057, 112
      %v2138 = vpop.permute.xlu0 %2137
      %2139 = vrot.lane.b32.xlu0 %v1063, 112
      %v2140 = vpop.permute.xlu0 %2139
      %2141 = vrot.lane.b32.xlu0 %v1069, 112
      %v2142 = vpop.permute.xlu0 %2141
      %2143 = vrot.lane.b32.xlu0 %v1075, 112
      %v2144 = vpop.permute.xlu0 %2143
      %2145 = vrot.lane.b32.xlu0 %v1081, 112
      %v2146 = vpop.permute.xlu0 %2145
      %2147 = vrot.lane.b32.xlu0 %v1087, 112
      %v2148 = vpop.permute.xlu0 %2147
      %2149 = vrot.lane.b32.xlu0 %v1093, 112
      %v2150 = vpop.permute.xlu0 %2149
      %2151 = vrot.lane.b32.xlu0 %v1099, 112
      %v2152 = vpop.permute.xlu0 %2151
      %2153 = vrot.lane.b32.xlu0 %v1105, 112
      %v2154 = vpop.permute.xlu0 %2153
      %2155 = vrot.lane.b32.xlu0 %v1111, 112
      %v2156 = vpop.permute.xlu0 %2155
      %2173 = vmatprep.subr.mxu0 0.0
      %2174 = vmatpush1.msra.mxu0 %v2126
      %2175 = vmatprep.subr.mxu0 0.0
      %2176 = vmatpush1.msra.mxu0 %v2128
      %2177 = vmatprep.subr.mxu0 0.0
      %2178 = vmatpush1.msra.mxu0 %v2130
      %2179 = vmatprep.subr.mxu0 0.0
      %2180 = vmatpush1.msra.mxu0 %v2132
      %2181 = vmatprep.subr.mxu0 0.0
      %2182 = vmatpush1.msra.mxu0 %v2134
      %2183 = vmatprep.subr.mxu0 0.0
      %2184 = vmatpush1.msra.mxu0 %v2136
      %2185 = vmatprep.subr.mxu0 0.0
      %2186 = vmatpush1.msra.mxu0 %v2138
      %2187 = vmatprep.subr.mxu0 0.0
      %2188 = vmatpush1.msra.mxu0 %v2140
      %2189 = vmatprep.subr.mxu0 0.0
      %2190 = vmatpush1.msra.mxu0 %v2142
      %2191 = vmatprep.subr.mxu0 0.0
      %2192 = vmatpush1.msra.mxu0 %v2144
      %2193 = vmatprep.subr.mxu0 0.0
      %2194 = vmatpush1.msra.mxu0 %v2146
      %2195 = vmatprep.subr.mxu0 0.0
      %2196 = vmatpush1.msra.mxu0 %v2148
      %2197 = vmatprep.subr.mxu0 0.0
      %2198 = vmatpush1.msra.mxu0 %v2150
      %2199 = vmatprep.subr.mxu0 0.0
      %2200 = vmatpush1.msra.mxu0 %v2152
      %2201 = vmatprep.subr.mxu0 0.0
      %2202 = vmatpush1.msra.mxu0 %v2154
      %2203 = vmatprep.subr.mxu0 0.0
      %2204 = vmatpush1.msra.mxu0 %v2156
      %2205 = vmatprep.subr.mxu0 0.0
      %2206 = vmatpush1.msra.mxu0 0.0
      %2207 = vmatprep.subr.mxu0 0.0
      %2208 = vmatpush1.msra.mxu0 0.0
      %2209 = vmatprep.subr.mxu0 0.0
      %2210 = vmatpush1.msra.mxu0 0.0
      %2211 = vmatprep.subr.mxu0 0.0
      %2212 = vmatpush1.msra.mxu0 0.0
      %2213 = vmatprep.subr.mxu0 0.0
      %2214 = vmatpush1.msra.mxu0 0.0
      %2215 = vmatprep.subr.mxu0 0.0
      %2216 = vmatpush1.msra.mxu0 0.0
      %2217 = vmatprep.subr.mxu0 0.0
      %2218 = vmatpush1.msra.mxu0 0.0
      %2219 = vmatprep.subr.mxu0 0.0
      %2220 = vmatpush1.msra.mxu0 0.0
      %2221 = vmatprep.subr.mxu0 0.0
      %2222 = vmatpush1.msra.mxu0 0.0
      %2223 = vmatprep.subr.mxu0 0.0
      %2224 = vmatpush1.msra.mxu0 0.0
      %2225 = vmatprep.subr.mxu0 0.0
      %2226 = vmatpush1.msra.mxu0 0.0
      %2227 = vmatprep.subr.mxu0 0.0
      %2228 = vmatpush1.msra.mxu0 0.0
      %2229 = vmatprep.subr.mxu0 0.0
      %2230 = vmatpush1.msra.mxu0 0.0
      %2231 = vmatprep.subr.mxu0 0.0
      %2232 = vmatpush1.msra.mxu0 0.0
      %2233 = vmatprep.subr.mxu0 0.0
      %2234 = vmatpush1.msra.mxu0 0.0
      %2235 = vmatprep.subr.mxu0 0.0
      %2236 = vmatpush1.msra.mxu0 0.0
      %2237 = vmatprep.mubr.f32.mxu0 0.0
      %2238 = vmatmul.mubr.f32.gmra.mrb[0].mxu0 %v2078
      %v2239 = vpop.f32.mrb[0].mxu0
      %v2240 = vadd.f32 0.0, %v2239
      %v2241 = vpop.f32.mrb[0].mxu0
      %2242 = vmatprep.mubr.f32.mxu0 0.0
      %2243 = vmatmul.mubr.f32.gmra.mrb[0].mxu0 %v2080
      %v2244 = vpop.f32.mrb[0].mxu0
      %v2245 = vadd.f32 0.0, %v2244
      %v2246 = vpop.f32.mrb[0].mxu0
      %2247 = vmatprep.mubr.f32.mxu0 0.0
      %2248 = vmatmul.mubr.f32.gmra.mrb[0].mxu0 %v2082
      %v2249 = vpop.f32.mrb[0].mxu0
      %v2250 = vadd.f32 0.0, %v2249
      %v2251 = vpop.f32.mrb[0].mxu0
      %2252 = vmatprep.mubr.f32.mxu0 0.0
      %2253 = vmatmul.mubr.f32.gmra.mrb[0].mxu0 %v2084
      %v2254 = vpop.f32.mrb[0].mxu0
      %v2255 = vadd.f32 0.0, %v2254
      %v2256 = vpop.f32.mrb[0].mxu0
      %2257 = vmatprep.mubr.f32.mxu0 0.0
      %2258 = vmatmul.mubr.f32.gmra.mrb[0].mxu0 %v2086
      %v2259 = vpop.f32.mrb[0].mxu0
      %v2260 = vadd.f32 0.0, %v2259
      %v2261 = vpop.f32.mrb[0].mxu0
      %2262 = vmatprep.mubr.f32.mxu0 0.0
      %2263 = vmatmul.mubr.f32.gmra.mrb[0].mxu0 %v2088
      %v2264 = vpop.f32.mrb[0].mxu0
      %v2265 = vadd.f32 0.0, %v2264
      %v2266 = vpop.f32.mrb[0].mxu0
      %2267 = vmatprep.mubr.f32.mxu0 0.0
      %2268 = vmatmul.mubr.f32.gmra.mrb[0].mxu0 %v2090
      %v2269 = vpop.f32.mrb[0].mxu0
      %v2270 = vadd.f32 0.0, %v2269
      %v2271 = vpop.f32.mrb[0].mxu0
      %2272 = vmatprep.mubr.f32.mxu0 0.0
      %2273 = vmatmul.mubr.f32.gmra.mrb[0].mxu0 %v2092
      %v2274 = vpop.f32.mrb[0].mxu0
      %v2275 = vadd.f32 0.0, %v2274
      %v2276 = vpop.f32.mrb[0].mxu0
      %2277 = vmatprep.mubr.f32.mxu0 0.0
      %2278 = vmatmul.mubr.f32.gmra.mrb[0].mxu0 %v2094
      %v2279 = vpop.f32.mrb[0].mxu0
      %v2280 = vadd.f32 0.0, %v2279
      %v2281 = vpop.f32.mrb[0].mxu0
      %2282 = vmatprep.mubr.f32.mxu0 0.0
      %2283 = vmatmul.mubr.f32.gmra.mrb[0].mxu0 %v2096
      %v2284 = vpop.f32.mrb[0].mxu0
      %v2285 = vadd.f32 0.0, %v2284
      %v2286 = vpop.f32.mrb[0].mxu0
      %2287 = vmatprep.mubr.f32.mxu0 0.0
      %2288 = vmatmul.mubr.f32.gmra.mrb[0].mxu0 %v2098
      %v2289 = vpop.f32.mrb[0].mxu0
      %v2290 = vadd.f32 0.0, %v2289
      %v2291 = vpop.f32.mrb[0].mxu0
      %2292 = vmatprep.mubr.f32.mxu0 0.0
      %2293 = vmatmul.mubr.f32.gmra.mrb[0].mxu0 %v2100
      %v2294 = vpop.f32.mrb[0].mxu0
      %v2295 = vadd.f32 0.0, %v2294
      %v2296 = vpop.f32.mrb[0].mxu0
      %2297 = vmatprep.mubr.f32.mxu0 0.0
      %2298 = vmatmul.mubr.f32.gmra.mrb[0].mxu0 %v2102
      %v2299 = vpop.f32.mrb[0].mxu0
      %v2300 = vadd.f32 0.0, %v2299
      %v2301 = vpop.f32.mrb[0].mxu0
      %2302 = vmatprep.mubr.f32.mxu0 0.0
      %2303 = vmatmul.mubr.f32.gmra.mrb[0].mxu0 %v2104
      %v2304 = vpop.f32.mrb[0].mxu0
      %v2305 = vadd.f32 0.0, %v2304
      %v2306 = vpop.f32.mrb[0].mxu0
      %2307 = vmatprep.mubr.f32.mxu0 0.0
      %2308 = vmatmul.mubr.f32.gmra.mrb[0].mxu0 %v2106
      %v2309 = vpop.f32.mrb[0].mxu0
      %v2310 = vadd.f32 0.0, %v2309
      %v2311 = vpop.f32.mrb[0].mxu0
      %2312 = vmatprep.mubr.f32.mxu0 0.0
      %2313 = vmatmul.mubr.f32.gmra.mrb[0].mxu0 %v2108
      %v2314 = vpop.f32.mrb[0].mxu0
      %v2315 = vadd.f32 0.0, %v2314
      %v2316 = vpop.f32.mrb[0].mxu0
      %2317 = vdwg.mxu0
      %2318 = vrot.lane.b32.xlu0 %v1113, 96
      %v2319 = vpop.permute.xlu0 %2318
      %2320 = vrot.lane.b32.xlu0 %v1114, 96
      %v2321 = vpop.permute.xlu0 %2320
      %2322 = vrot.lane.b32.xlu0 %v1115, 96
      %v2323 = vpop.permute.xlu0 %2322
      %2324 = vrot.lane.b32.xlu0 %v1116, 96
      %v2325 = vpop.permute.xlu0 %2324
      %2326 = vrot.lane.b32.xlu0 %v1117, 96
      %v2327 = vpop.permute.xlu0 %2326
      %2328 = vrot.lane.b32.xlu0 %v1118, 96
      %v2329 = vpop.permute.xlu0 %2328
      %2330 = vrot.lane.b32.xlu0 %v1119, 96
      %v2331 = vpop.permute.xlu0 %2330
      %2332 = vrot.lane.b32.xlu0 %v1120, 96
      %v2333 = vpop.permute.xlu0 %2332
      %2334 = vrot.lane.b32.xlu0 %v1121, 96
      %v2335 = vpop.permute.xlu0 %2334
      %2336 = vrot.lane.b32.xlu0 %v1122, 96
      %v2337 = vpop.permute.xlu0 %2336
      %2338 = vrot.lane.b32.xlu0 %v1123, 96
      %v2339 = vpop.permute.xlu0 %2338
      %2340 = vrot.lane.b32.xlu0 %v1124, 96
      %v2341 = vpop.permute.xlu0 %2340
      %2342 = vrot.lane.b32.xlu0 %v1125, 96
      %v2343 = vpop.permute.xlu0 %2342
      %2344 = vrot.lane.b32.xlu0 %v1126, 96
      %v2345 = vpop.permute.xlu0 %2344
      %2346 = vrot.lane.b32.xlu0 %v1127, 96
      %v2347 = vpop.permute.xlu0 %2346
      %2348 = vrot.lane.b32.xlu0 %v1128, 96
      %v2349 = vpop.permute.xlu0 %2348
      %2350 = vrot.lane.b32.xlu0 %v1019, 32
      %v2351 = vpop.permute.xlu0 %2350
      %2352 = vrot.lane.b32.xlu0 %v1025, 32
      %v2353 = vpop.permute.xlu0 %2352
      %2354 = vrot.lane.b32.xlu0 %v1031, 32
      %v2355 = vpop.permute.xlu0 %2354
      %2356 = vrot.lane.b32.xlu0 %v1037, 32
      %v2357 = vpop.permute.xlu0 %2356
      %2358 = vrot.lane.b32.xlu0 %v1043, 32
      %v2359 = vpop.permute.xlu0 %2358
      %2360 = vrot.lane.b32.xlu0 %v1049, 32
      %v2361 = vpop.permute.xlu0 %2360
      %2362 = vrot.lane.b32.xlu0 %v1055, 32
      %v2363 = vpop.permute.xlu0 %2362
      %2364 = vrot.lane.b32.xlu0 %v1061, 32
      %v2365 = vpop.permute.xlu0 %2364
      %2366 = vrot.lane.b32.xlu0 %v1067, 32
      %v2367 = vpop.permute.xlu0 %2366
      %2368 = vrot.lane.b32.xlu0 %v1073, 32
      %v2369 = vpop.permute.xlu0 %2368
      %2370 = vrot.lane.b32.xlu0 %v1079, 32
      %v2371 = vpop.permute.xlu0 %2370
      %2372 = vrot.lane.b32.xlu0 %v1085, 32
      %v2373 = vpop.permute.xlu0 %2372
      %2374 = vrot.lane.b32.xlu0 %v1091, 32
      %v2375 = vpop.permute.xlu0 %2374
      %2376 = vrot.lane.b32.xlu0 %v1097, 32
      %v2377 = vpop.permute.xlu0 %2376
      %2378 = vrot.lane.b32.xlu0 %v1103, 32
      %v2379 = vpop.permute.xlu0 %2378
      %2380 = vrot.lane.b32.xlu0 %v1109, 32
      %v2381 = vpop.permute.xlu0 %2380
      %v2382 = vsel %vm1177, %v2319, 0
      %v2384 = vsel %vm1177, %v2321, 0
      %v2386 = vsel %vm1177, %v2323, 0
      %v2388 = vsel %vm1177, %v2325, 0
      %v2390 = vsel %vm1177, %v2327, 0
      %v2392 = vsel %vm1177, %v2329, 0
      %v2394 = vsel %vm1177, %v2331, 0
      %v2396 = vsel %vm1177, %v2333, 0
      %v2398 = vsel %vm1177, %v2335, 0
      %v2400 = vsel %vm1177, %v2337, 0
      %v2402 = vsel %vm1177, %v2339, 0
      %v2404 = vsel %vm1177, %v2341, 0
      %v2406 = vsel %vm1177, %v2343, 0
      %v2408 = vsel %vm1177, %v2345, 0
      %v2410 = vsel %vm1177, %v2347, 0
      %v2412 = vsel %vm1177, %v2349, 0
      %v2414 = vsel %vm1177, %v2351, 0
      %v2416 = vsel %vm1177, %v2353, 0
      %v2418 = vsel %vm1177, %v2355, 0
      %v2420 = vsel %vm1177, %v2357, 0
      %v2422 = vsel %vm1177, %v2359, 0
      %v2424 = vsel %vm1177, %v2361, 0
      %v2426 = vsel %vm1177, %v2363, 0
      %v2428 = vsel %vm1177, %v2365, 0
      %v2430 = vsel %vm1177, %v2367, 0
      %v2432 = vsel %vm1177, %v2369, 0
      %v2434 = vsel %vm1177, %v2371, 0
      %v2436 = vsel %vm1177, %v2373, 0
      %v2438 = vsel %vm1177, %v2375, 0
      %v2440 = vsel %vm1177, %v2377, 0
      %v2442 = vsel %vm1177, %v2379, 0
      %v2444 = vsel %vm1177, %v2381, 0
      %2446 = vmatprep.subr.mxu0 0.0
      %2447 = vmatpush1.xpose.msra.mxu0 %v2414
      %2448 = vmatprep.subr.mxu0 0.0
      %2449 = vmatpush1.xpose.msra.mxu0 %v2416
      %2450 = vmatprep.subr.mxu0 0.0
      %2451 = vmatpush1.xpose.msra.mxu0 %v2418
      %2452 = vmatprep.subr.mxu0 0.0
      %2453 = vmatpush1.xpose.msra.mxu0 %v2420
      %2454 = vmatprep.subr.mxu0 0.0
      %2455 = vmatpush1.xpose.msra.mxu0 %v2422
      %2456 = vmatprep.subr.mxu0 0.0
      %2457 = vmatpush1.xpose.msra.mxu0 %v2424
      %2458 = vmatprep.subr.mxu0 0.0
      %2459 = vmatpush1.xpose.msra.mxu0 %v2426
      %2460 = vmatprep.subr.mxu0 0.0
      %2461 = vmatpush1.xpose.msra.mxu0 %v2428
      %2462 = vmatprep.subr.mxu0 0.0
      %2463 = vmatpush1.xpose.msra.mxu0 %v2430
      %2464 = vmatprep.subr.mxu0 0.0
      %2465 = vmatpush1.xpose.msra.mxu0 %v2432
      %2466 = vmatprep.subr.mxu0 0.0
      %2467 = vmatpush1.xpose.msra.mxu0 %v2434
      %2468 = vmatprep.subr.mxu0 0.0
      %2469 = vmatpush1.xpose.msra.mxu0 %v2436
      %2470 = vmatprep.subr.mxu0 0.0
      %2471 = vmatpush1.xpose.msra.mxu0 %v2438
      %2472 = vmatprep.subr.mxu0 0.0
      %2473 = vmatpush1.xpose.msra.mxu0 %v2440
      %2474 = vmatprep.subr.mxu0 0.0
      %2475 = vmatpush1.xpose.msra.mxu0 %v2442
      %2476 = vmatprep.subr.mxu0 0.0
      %2477 = vmatpush1.xpose.msra.mxu0 %v2444
      %2478 = vmatprep.subr.mxu0 0.0
      %2479 = vmatpush1.xpose.msra.mxu0 0.0
      %2480 = vmatprep.subr.mxu0 0.0
      %2481 = vmatpush1.xpose.msra.mxu0 0.0
      %2482 = vmatprep.subr.mxu0 0.0
      %2483 = vmatpush1.xpose.msra.mxu0 0.0
      %2484 = vmatprep.subr.mxu0 0.0
      %2485 = vmatpush1.xpose.msra.mxu0 0.0
      %2486 = vmatprep.subr.mxu0 0.0
      %2487 = vmatpush1.xpose.msra.mxu0 0.0
      %2488 = vmatprep.subr.mxu0 0.0
      %2489 = vmatpush1.xpose.msra.mxu0 0.0
      %2490 = vmatprep.subr.mxu0 0.0
      %2491 = vmatpush1.xpose.msra.mxu0 0.0
      %2492 = vmatprep.subr.mxu0 0.0
      %2493 = vmatpush1.xpose.msra.mxu0 0.0
      %2494 = vmatprep.subr.mxu0 0.0
      %2495 = vmatpush1.xpose.msra.mxu0 0.0
      %2496 = vmatprep.subr.mxu0 0.0
      %2497 = vmatpush1.xpose.msra.mxu0 0.0
      %2498 = vmatprep.subr.mxu0 0.0
      %2499 = vmatpush1.xpose.msra.mxu0 0.0
      %2500 = vmatprep.subr.mxu0 0.0
      %2501 = vmatpush1.xpose.msra.mxu0 0.0
      %2502 = vmatprep.subr.mxu0 0.0
      %2503 = vmatpush1.xpose.msra.mxu0 0.0
      %2504 = vmatprep.subr.mxu0 0.0
      %2505 = vmatpush1.xpose.msra.mxu0 0.0
      %2506 = vmatprep.subr.mxu0 0.0
      %2507 = vmatpush1.xpose.msra.mxu0 0.0
      %2508 = vmatprep.subr.mxu0 0.0
      %2509 = vmatpush1.xpose.msra.mxu0 0.0
      %2510 = vmatprep.mubr.f32.mxu0 0.0
      %2511 = vmatmul.mubr.f32.gmra.mrb[0].mxu0 %v2382
      %v2512 = vpop.f32.mrb[0].mxu0
      %v2513 = vadd.f32 %v604, %v2512
      %v2514 = vpop.f32.mrb[0].mxu0
      %2515 = vmatprep.mubr.f32.mxu0 0.0
      %2516 = vmatmul.mubr.f32.gmra.mrb[0].mxu0 %v2384
      %v2517 = vpop.f32.mrb[0].mxu0
      %v2518 = vadd.f32 %v605, %v2517
      %v2519 = vpop.f32.mrb[0].mxu0
      %2520 = vmatprep.mubr.f32.mxu0 0.0
      %2521 = vmatmul.mubr.f32.gmra.mrb[0].mxu0 %v2386
      %v2522 = vpop.f32.mrb[0].mxu0
      %v2523 = vadd.f32 %v606, %v2522
      %v2524 = vpop.f32.mrb[0].mxu0
      %2525 = vmatprep.mubr.f32.mxu0 0.0
      %2526 = vmatmul.mubr.f32.gmra.mrb[0].mxu0 %v2388
      %v2527 = vpop.f32.mrb[0].mxu0
      %v2528 = vadd.f32 %v607, %v2527
      %v2529 = vpop.f32.mrb[0].mxu0
      %2530 = vmatprep.mubr.f32.mxu0 0.0
      %2531 = vmatmul.mubr.f32.gmra.mrb[0].mxu0 %v2390
      %v2532 = vpop.f32.mrb[0].mxu0
      %v2533 = vadd.f32 %v608, %v2532
      %v2534 = vpop.f32.mrb[0].mxu0
      %2535 = vmatprep.mubr.f32.mxu0 0.0
      %2536 = vmatmul.mubr.f32.gmra.mrb[0].mxu0 %v2392
      %v2537 = vpop.f32.mrb[0].mxu0
      %v2538 = vadd.f32 %v609, %v2537
      %v2539 = vpop.f32.mrb[0].mxu0
      %2540 = vmatprep.mubr.f32.mxu0 0.0
      %2541 = vmatmul.mubr.f32.gmra.mrb[0].mxu0 %v2394
      %v2542 = vpop.f32.mrb[0].mxu0
      %v2543 = vadd.f32 %v610, %v2542
      %v2544 = vpop.f32.mrb[0].mxu0
      %2545 = vmatprep.mubr.f32.mxu0 0.0
      %2546 = vmatmul.mubr.f32.gmra.mrb[0].mxu0 %v2396
      %v2547 = vpop.f32.mrb[0].mxu0
      %v2548 = vadd.f32 %v611, %v2547
      %v2549 = vpop.f32.mrb[0].mxu0
      %2550 = vmatprep.mubr.f32.mxu0 0.0
      %2551 = vmatmul.mubr.f32.gmra.mrb[0].mxu0 %v2398
      %v2552 = vpop.f32.mrb[0].mxu0
      %v2553 = vadd.f32 %v612, %v2552
      %v2554 = vpop.f32.mrb[0].mxu0
      %2555 = vmatprep.mubr.f32.mxu0 0.0
      %2556 = vmatmul.mubr.f32.gmra.mrb[0].mxu0 %v2400
      %v2557 = vpop.f32.mrb[0].mxu0
      %v2558 = vadd.f32 %v613, %v2557
      %v2559 = vpop.f32.mrb[0].mxu0
      %2560 = vmatprep.mubr.f32.mxu0 0.0
      %2561 = vmatmul.mubr.f32.gmra.mrb[0].mxu0 %v2402
      %v2562 = vpop.f32.mrb[0].mxu0
      %v2563 = vadd.f32 %v614, %v2562
      %v2564 = vpop.f32.mrb[0].mxu0
      %2565 = vmatprep.mubr.f32.mxu0 0.0
      %2566 = vmatmul.mubr.f32.gmra.mrb[0].mxu0 %v2404
      %v2567 = vpop.f32.mrb[0].mxu0
      %v2568 = vadd.f32 %v615, %v2567
      %v2569 = vpop.f32.mrb[0].mxu0
      %2570 = vmatprep.mubr.f32.mxu0 0.0
      %2571 = vmatmul.mubr.f32.gmra.mrb[0].mxu0 %v2406
      %v2572 = vpop.f32.mrb[0].mxu0
      %v2573 = vadd.f32 %v616, %v2572
      %v2574 = vpop.f32.mrb[0].mxu0
      %2575 = vmatprep.mubr.f32.mxu0 0.0
      %2576 = vmatmul.mubr.f32.gmra.mrb[0].mxu0 %v2408
      %v2577 = vpop.f32.mrb[0].mxu0
      %v2578 = vadd.f32 %v617, %v2577
      %v2579 = vpop.f32.mrb[0].mxu0
      %2580 = vmatprep.mubr.f32.mxu0 0.0
      %2581 = vmatmul.mubr.f32.gmra.mrb[0].mxu0 %v2410
      %v2582 = vpop.f32.mrb[0].mxu0
      %v2583 = vadd.f32 %v618, %v2582
      %v2584 = vpop.f32.mrb[0].mxu0
      %2585 = vmatprep.mubr.f32.mxu0 0.0
      %2586 = vmatmul.mubr.f32.gmra.mrb[0].mxu0 %v2412
      %v2587 = vpop.f32.mrb[0].mxu0
      %v2588 = vadd.f32 %v619, %v2587
      %v2589 = vpop.f32.mrb[0].mxu0
      %2590 = vdwg.mxu0
      %2591 = vmax.xlane.f32.xlu0 %v2513
      %v2592 = vpop.xlane.xlu0 %2591
      %2593 = vmax.xlane.f32.xlu0 %v2518
      %v2594 = vpop.xlane.xlu0 %2593
      %2595 = vmax.xlane.f32.xlu0 %v2523
      %v2596 = vpop.xlane.xlu0 %2595
      %2597 = vmax.xlane.f32.xlu0 %v2528
      %v2598 = vpop.xlane.xlu0 %2597
      %2599 = vmax.xlane.f32.xlu0 %v2533
      %v2600 = vpop.xlane.xlu0 %2599
      %2601 = vmax.xlane.f32.xlu0 %v2538
      %v2602 = vpop.xlane.xlu0 %2601
      %2603 = vmax.xlane.f32.xlu0 %v2543
      %v2604 = vpop.xlane.xlu0 %2603
      %2605 = vmax.xlane.f32.xlu0 %v2548
      %v2606 = vpop.xlane.xlu0 %2605
      %2607 = vmax.xlane.f32.xlu0 %v2553
      %v2608 = vpop.xlane.xlu0 %2607
      %2609 = vmax.xlane.f32.xlu0 %v2558
      %v2610 = vpop.xlane.xlu0 %2609
      %2611 = vmax.xlane.f32.xlu0 %v2563
      %v2612 = vpop.xlane.xlu0 %2611
      %2613 = vmax.xlane.f32.xlu0 %v2568
      %v2614 = vpop.xlane.xlu0 %2613
      %2615 = vmax.xlane.f32.xlu0 %v2573
      %v2616 = vpop.xlane.xlu0 %2615
      %2617 = vmax.xlane.f32.xlu0 %v2578
      %v2618 = vpop.xlane.xlu0 %2617
      %2619 = vmax.xlane.f32.xlu0 %v2583
      %v2620 = vpop.xlane.xlu0 %2619
      %2621 = vmax.xlane.f32.xlu0 %v2588
      %v2622 = vpop.xlane.xlu0 %2621
      %v2623 = vsub.f32 %v2513, %v2592
      %v2624 = vsub.f32 %v2518, %v2594
      %v2625 = vsub.f32 %v2523, %v2596
      %v2626 = vsub.f32 %v2528, %v2598
      %v2627 = vsub.f32 %v2533, %v2600
      %v2628 = vsub.f32 %v2538, %v2602
      %v2629 = vsub.f32 %v2543, %v2604
      %v2630 = vsub.f32 %v2548, %v2606
      %v2631 = vsub.f32 %v2553, %v2608
      %v2632 = vsub.f32 %v2558, %v2610
      %v2633 = vsub.f32 %v2563, %v2612
      %v2634 = vsub.f32 %v2568, %v2614
      %v2635 = vsub.f32 %v2573, %v2616
      %v2636 = vsub.f32 %v2578, %v2618
      %v2637 = vsub.f32 %v2583, %v2620
      %v2638 = vsub.f32 %v2588, %v2622
      %v2639 = vmul.f32 %v2623, 1.442695
      %v2640 = vpow.pop %v2639
      %v2641 = vmul.f32 %v2624, 1.442695
      %v2642 = vpow.pop %v2641
      %v2643 = vmul.f32 %v2625, 1.442695
      %v2644 = vpow.pop %v2643
      %v2645 = vmul.f32 %v2626, 1.442695
      %v2646 = vpow.pop %v2645
      %v2647 = vmul.f32 %v2627, 1.442695
      %v2648 = vpow.pop %v2647
      %v2649 = vmul.f32 %v2628, 1.442695
      %v2650 = vpow.pop %v2649
      %v2651 = vmul.f32 %v2629, 1.442695
      %v2652 = vpow.pop %v2651
      %v2653 = vmul.f32 %v2630, 1.442695
      %v2654 = vpow.pop %v2653
      %v2655 = vmul.f32 %v2631, 1.442695
      %v2656 = vpow.pop %v2655
      %v2657 = vmul.f32 %v2632, 1.442695
      %v2658 = vpow.pop %v2657
      %v2659 = vmul.f32 %v2633, 1.442695
      %v2660 = vpow.pop %v2659
      %v2661 = vmul.f32 %v2634, 1.442695
      %v2662 = vpow.pop %v2661
      %v2663 = vmul.f32 %v2635, 1.442695
      %v2664 = vpow.pop %v2663
      %v2665 = vmul.f32 %v2636, 1.442695
      %v2666 = vpow.pop %v2665
      %v2667 = vmul.f32 %v2637, 1.442695
      %v2668 = vpow.pop %v2667
      %v2669 = vmul.f32 %v2638, 1.442695
      %v2670 = vpow.pop %v2669
      %2671 = vadd.xlane.f32.xlu0 %v2640
      %v2672 = vpop.xlane.xlu0 %2671
      %2673 = vadd.xlane.f32.xlu0 %v2642
      %v2674 = vpop.xlane.xlu0 %2673
      %2675 = vadd.xlane.f32.xlu0 %v2644
      %v2676 = vpop.xlane.xlu0 %2675
      %2677 = vadd.xlane.f32.xlu0 %v2646
      %v2678 = vpop.xlane.xlu0 %2677
      %2679 = vadd.xlane.f32.xlu0 %v2648
      %v2680 = vpop.xlane.xlu0 %2679
      %2681 = vadd.xlane.f32.xlu0 %v2650
      %v2682 = vpop.xlane.xlu0 %2681
      %2683 = vadd.xlane.f32.xlu0 %v2652
      %v2684 = vpop.xlane.xlu0 %2683
      %2685 = vadd.xlane.f32.xlu0 %v2654
      %v2686 = vpop.xlane.xlu0 %2685
      %2687 = vadd.xlane.f32.xlu0 %v2656
      %v2688 = vpop.xlane.xlu0 %2687
      %2689 = vadd.xlane.f32.xlu0 %v2658
      %v2690 = vpop.xlane.xlu0 %2689
      %2691 = vadd.xlane.f32.xlu0 %v2660
      %v2692 = vpop.xlane.xlu0 %2691
      %2693 = vadd.xlane.f32.xlu0 %v2662
      %v2694 = vpop.xlane.xlu0 %2693
      %2695 = vadd.xlane.f32.xlu0 %v2664
      %v2696 = vpop.xlane.xlu0 %2695
      %2697 = vadd.xlane.f32.xlu0 %v2666
      %v2698 = vpop.xlane.xlu0 %2697
      %2699 = vadd.xlane.f32.xlu0 %v2668
      %v2700 = vpop.xlane.xlu0 %2699
      %2701 = vadd.xlane.f32.xlu0 %v2670
      %v2702 = vpop.xlane.xlu0 %2701
      %v2703 = vrcp.pop %v2672
      %v2704 = vmul.f32 %v2640, %v2703
      %v2705 = vrcp.pop %v2674
      %v2706 = vmul.f32 %v2642, %v2705
      %v2707 = vrcp.pop %v2676
      %v2708 = vmul.f32 %v2644, %v2707
      %v2709 = vrcp.pop %v2678
      %v2710 = vmul.f32 %v2646, %v2709
      %v2711 = vrcp.pop %v2680
      %v2712 = vmul.f32 %v2648, %v2711
      %v2713 = vrcp.pop %v2682
      %v2714 = vmul.f32 %v2650, %v2713
      %v2715 = vrcp.pop %v2684
      %v2716 = vmul.f32 %v2652, %v2715
      %v2717 = vrcp.pop %v2686
      %v2718 = vmul.f32 %v2654, %v2717
      %v2719 = vrcp.pop %v2688
      %v2720 = vmul.f32 %v2656, %v2719
      %v2721 = vrcp.pop %v2690
      %v2722 = vmul.f32 %v2658, %v2721
      %v2723 = vrcp.pop %v2692
      %v2724 = vmul.f32 %v2660, %v2723
      %v2725 = vrcp.pop %v2694
      %v2726 = vmul.f32 %v2662, %v2725
      %v2727 = vrcp.pop %v2696
      %v2728 = vmul.f32 %v2664, %v2727
      %v2729 = vrcp.pop %v2698
      %v2730 = vmul.f32 %v2666, %v2729
      %v2731 = vrcp.pop %v2700
      %v2732 = vmul.f32 %v2668, %v2731
      %v2733 = vrcp.pop %v2702
      %v2734 = vmul.f32 %v2670, %v2733
      %2735 = vrot.lane.b32.xlu0 %v1021, 96
      %v2736 = vpop.permute.xlu0 %2735
      %2737 = vrot.lane.b32.xlu0 %v1027, 96
      %v2738 = vpop.permute.xlu0 %2737
      %2739 = vrot.lane.b32.xlu0 %v1033, 96
      %v2740 = vpop.permute.xlu0 %2739
      %2741 = vrot.lane.b32.xlu0 %v1039, 96
      %v2742 = vpop.permute.xlu0 %2741
      %2743 = vrot.lane.b32.xlu0 %v1045, 96
      %v2744 = vpop.permute.xlu0 %2743
      %2745 = vrot.lane.b32.xlu0 %v1051, 96
      %v2746 = vpop.permute.xlu0 %2745
      %2747 = vrot.lane.b32.xlu0 %v1057, 96
      %v2748 = vpop.permute.xlu0 %2747
      %2749 = vrot.lane.b32.xlu0 %v1063, 96
      %v2750 = vpop.permute.xlu0 %2749
      %2751 = vrot.lane.b32.xlu0 %v1069, 96
      %v2752 = vpop.permute.xlu0 %2751
      %2753 = vrot.lane.b32.xlu0 %v1075, 96
      %v2754 = vpop.permute.xlu0 %2753
      %2755 = vrot.lane.b32.xlu0 %v1081, 96
      %v2756 = vpop.permute.xlu0 %2755
      %2757 = vrot.lane.b32.xlu0 %v1087, 96
      %v2758 = vpop.permute.xlu0 %2757
      %2759 = vrot.lane.b32.xlu0 %v1093, 96
      %v2760 = vpop.permute.xlu0 %2759
      %2761 = vrot.lane.b32.xlu0 %v1099, 96
      %v2762 = vpop.permute.xlu0 %2761
      %2763 = vrot.lane.b32.xlu0 %v1105, 96
      %v2764 = vpop.permute.xlu0 %2763
      %2765 = vrot.lane.b32.xlu0 %v1111, 96
      %v2766 = vpop.permute.xlu0 %2765
      %2783 = vmatprep.subr.mxu0 0.0
      %2784 = vmatpush1.msra.mxu0 %v2736
      %2785 = vmatprep.subr.mxu0 0.0
      %2786 = vmatpush1.msra.mxu0 %v2738
      %2787 = vmatprep.subr.mxu0 0.0
      %2788 = vmatpush1.msra.mxu0 %v2740
      %2789 = vmatprep.subr.mxu0 0.0
      %2790 = vmatpush1.msra.mxu0 %v2742
      %2791 = vmatprep.subr.mxu0 0.0
      %2792 = vmatpush1.msra.mxu0 %v2744
      %2793 = vmatprep.subr.mxu0 0.0
      %2794 = vmatpush1.msra.mxu0 %v2746
      %2795 = vmatprep.subr.mxu0 0.0
      %2796 = vmatpush1.msra.mxu0 %v2748
      %2797 = vmatprep.subr.mxu0 0.0
      %2798 = vmatpush1.msra.mxu0 %v2750
      %2799 = vmatprep.subr.mxu0 0.0
      %2800 = vmatpush1.msra.mxu0 %v2752
      %2801 = vmatprep.subr.mxu0 0.0
      %2802 = vmatpush1.msra.mxu0 %v2754
      %2803 = vmatprep.subr.mxu0 0.0
      %2804 = vmatpush1.msra.mxu0 %v2756
      %2805 = vmatprep.subr.mxu0 0.0
      %2806 = vmatpush1.msra.mxu0 %v2758
      %2807 = vmatprep.subr.mxu0 0.0
      %2808 = vmatpush1.msra.mxu0 %v2760
      %2809 = vmatprep.subr.mxu0 0.0
      %2810 = vmatpush1.msra.mxu0 %v2762
      %2811 = vmatprep.subr.mxu0 0.0
      %2812 = vmatpush1.msra.mxu0 %v2764
      %2813 = vmatprep.subr.mxu0 0.0
      %2814 = vmatpush1.msra.mxu0 %v2766
      %2815 = vmatprep.subr.mxu0 0.0
      %2816 = vmatpush1.msra.mxu0 0.0
      %2817 = vmatprep.subr.mxu0 0.0
      %2818 = vmatpush1.msra.mxu0 0.0
      %2819 = vmatprep.subr.mxu0 0.0
      %2820 = vmatpush1.msra.mxu0 0.0
      %2821 = vmatprep.subr.mxu0 0.0
      %2822 = vmatpush1.msra.mxu0 0.0
      %2823 = vmatprep.subr.mxu0 0.0
      %2824 = vmatpush1.msra.mxu0 0.0
      %2825 = vmatprep.subr.mxu0 0.0
      %2826 = vmatpush1.msra.mxu0 0.0
      %2827 = vmatprep.subr.mxu0 0.0
      %2828 = vmatpush1.msra.mxu0 0.0
      %2829 = vmatprep.subr.mxu0 0.0
      %2830 = vmatpush1.msra.mxu0 0.0
      %2831 = vmatprep.subr.mxu0 0.0
      %2832 = vmatpush1.msra.mxu0 0.0
      %2833 = vmatprep.subr.mxu0 0.0
      %2834 = vmatpush1.msra.mxu0 0.0
      %2835 = vmatprep.subr.mxu0 0.0
      %2836 = vmatpush1.msra.mxu0 0.0
      %2837 = vmatprep.subr.mxu0 0.0
      %2838 = vmatpush1.msra.mxu0 0.0
      %2839 = vmatprep.subr.mxu0 0.0
      %2840 = vmatpush1.msra.mxu0 0.0
      %2841 = vmatprep.subr.mxu0 0.0
      %2842 = vmatpush1.msra.mxu0 0.0
      %2843 = vmatprep.subr.mxu0 0.0
      %2844 = vmatpush1.msra.mxu0 0.0
      %2845 = vmatprep.subr.mxu0 0.0
      %2846 = vmatpush1.msra.mxu0 0.0
      %2847 = vmatprep.mubr.f32.mxu0 0.0
      %2848 = vmatmul.mubr.f32.gmra.mrb[0].mxu0 %v2704
      %v2849 = vpop.f32.mrb[0].mxu0
      %v2850 = vadd.f32 0.0, %v2849
      %v2851 = vpop.f32.mrb[0].mxu0
      %2852 = vmatprep.mubr.f32.mxu0 0.0
      %2853 = vmatmul.mubr.f32.gmra.mrb[0].mxu0 %v2706
      %v2854 = vpop.f32.mrb[0].mxu0
      %v2855 = vadd.f32 0.0, %v2854
      %v2856 = vpop.f32.mrb[0].mxu0
      %2857 = vmatprep.mubr.f32.mxu0 0.0
      %2858 = vmatmul.mubr.f32.gmra.mrb[0].mxu0 %v2708
      %v2859 = vpop.f32.mrb[0].mxu0
      %v2860 = vadd.f32 0.0, %v2859
      %v2861 = vpop.f32.mrb[0].mxu0
      %2862 = vmatprep.mubr.f32.mxu0 0.0
      %2863 = vmatmul.mubr.f32.gmra.mrb[0].mxu0 %v2710
      %v2864 = vpop.f32.mrb[0].mxu0
      %v2865 = vadd.f32 0.0, %v2864
      %v2866 = vpop.f32.mrb[0].mxu0
      %2867 = vmatprep.mubr.f32.mxu0 0.0
      %2868 = vmatmul.mubr.f32.gmra.mrb[0].mxu0 %v2712
      %v2869 = vpop.f32.mrb[0].mxu0
      %v2870 = vadd.f32 0.0, %v2869
      %v2871 = vpop.f32.mrb[0].mxu0
      %2872 = vmatprep.mubr.f32.mxu0 0.0
      %2873 = vmatmul.mubr.f32.gmra.mrb[0].mxu0 %v2714
      %v2874 = vpop.f32.mrb[0].mxu0
      %v2875 = vadd.f32 0.0, %v2874
      %v2876 = vpop.f32.mrb[0].mxu0
      %2877 = vmatprep.mubr.f32.mxu0 0.0
      %2878 = vmatmul.mubr.f32.gmra.mrb[0].mxu0 %v2716
      %v2879 = vpop.f32.mrb[0].mxu0
      %v2880 = vadd.f32 0.0, %v2879
      %v2881 = vpop.f32.mrb[0].mxu0
      %2882 = vmatprep.mubr.f32.mxu0 0.0
      %2883 = vmatmul.mubr.f32.gmra.mrb[0].mxu0 %v2718
      %v2884 = vpop.f32.mrb[0].mxu0
      %v2885 = vadd.f32 0.0, %v2884
      %v2886 = vpop.f32.mrb[0].mxu0
      %2887 = vmatprep.mubr.f32.mxu0 0.0
      %2888 = vmatmul.mubr.f32.gmra.mrb[0].mxu0 %v2720
      %v2889 = vpop.f32.mrb[0].mxu0
      %v2890 = vadd.f32 0.0, %v2889
      %v2891 = vpop.f32.mrb[0].mxu0
      %2892 = vmatprep.mubr.f32.mxu0 0.0
      %2893 = vmatmul.mubr.f32.gmra.mrb[0].mxu0 %v2722
      %v2894 = vpop.f32.mrb[0].mxu0
      %v2895 = vadd.f32 0.0, %v2894
      %v2896 = vpop.f32.mrb[0].mxu0
      %2897 = vmatprep.mubr.f32.mxu0 0.0
      %2898 = vmatmul.mubr.f32.gmra.mrb[0].mxu0 %v2724
      %v2899 = vpop.f32.mrb[0].mxu0
      %v2900 = vadd.f32 0.0, %v2899
      %v2901 = vpop.f32.mrb[0].mxu0
      %2902 = vmatprep.mubr.f32.mxu0 0.0
      %2903 = vmatmul.mubr.f32.gmra.mrb[0].mxu0 %v2726
      %v2904 = vpop.f32.mrb[0].mxu0
      %v2905 = vadd.f32 0.0, %v2904
      %v2906 = vpop.f32.mrb[0].mxu0
      %2907 = vmatprep.mubr.f32.mxu0 0.0
      %2908 = vmatmul.mubr.f32.gmra.mrb[0].mxu0 %v2728
      %v2909 = vpop.f32.mrb[0].mxu0
      %v2910 = vadd.f32 0.0, %v2909
      %v2911 = vpop.f32.mrb[0].mxu0
      %2912 = vmatprep.mubr.f32.mxu0 0.0
      %2913 = vmatmul.mubr.f32.gmra.mrb[0].mxu0 %v2730
      %v2914 = vpop.f32.mrb[0].mxu0
      %v2915 = vadd.f32 0.0, %v2914
      %v2916 = vpop.f32.mrb[0].mxu0
      %2917 = vmatprep.mubr.f32.mxu0 0.0
      %2918 = vmatmul.mubr.f32.gmra.mrb[0].mxu0 %v2732
      %v2919 = vpop.f32.mrb[0].mxu0
      %v2920 = vadd.f32 0.0, %v2919
      %v2921 = vpop.f32.mrb[0].mxu0
      %2922 = vmatprep.mubr.f32.mxu0 0.0
      %2923 = vmatmul.mubr.f32.gmra.mrb[0].mxu0 %v2734
      %v2924 = vpop.f32.mrb[0].mxu0
      %v2925 = vadd.f32 0.0, %v2924
      %v2926 = vpop.f32.mrb[0].mxu0
      %2927 = vdwg.mxu0
      %2928 = vrot.lane.b32.xlu0 %v1113, 80
      %v2929 = vpop.permute.xlu0 %2928
      %2930 = vrot.lane.b32.xlu0 %v1114, 80
      %v2931 = vpop.permute.xlu0 %2930
      %2932 = vrot.lane.b32.xlu0 %v1115, 80
      %v2933 = vpop.permute.xlu0 %2932
      %2934 = vrot.lane.b32.xlu0 %v1116, 80
      %v2935 = vpop.permute.xlu0 %2934
      %2936 = vrot.lane.b32.xlu0 %v1117, 80
      %v2937 = vpop.permute.xlu0 %2936
      %2938 = vrot.lane.b32.xlu0 %v1118, 80
      %v2939 = vpop.permute.xlu0 %2938
      %2940 = vrot.lane.b32.xlu0 %v1119, 80
      %v2941 = vpop.permute.xlu0 %2940
      %2942 = vrot.lane.b32.xlu0 %v1120, 80
      %v2943 = vpop.permute.xlu0 %2942
      %2944 = vrot.lane.b32.xlu0 %v1121, 80
      %v2945 = vpop.permute.xlu0 %2944
      %2946 = vrot.lane.b32.xlu0 %v1122, 80
      %v2947 = vpop.permute.xlu0 %2946
      %2948 = vrot.lane.b32.xlu0 %v1123, 80
      %v2949 = vpop.permute.xlu0 %2948
      %2950 = vrot.lane.b32.xlu0 %v1124, 80
      %v2951 = vpop.permute.xlu0 %2950
      %2952 = vrot.lane.b32.xlu0 %v1125, 80
      %v2953 = vpop.permute.xlu0 %2952
      %2954 = vrot.lane.b32.xlu0 %v1126, 80
      %v2955 = vpop.permute.xlu0 %2954
      %2956 = vrot.lane.b32.xlu0 %v1127, 80
      %v2957 = vpop.permute.xlu0 %2956
      %2958 = vrot.lane.b32.xlu0 %v1128, 80
      %v2959 = vpop.permute.xlu0 %2958
      %2960 = vrot.lane.b32.xlu0 %v1019, 16
      %v2961 = vpop.permute.xlu0 %2960
      %2962 = vrot.lane.b32.xlu0 %v1025, 16
      %v2963 = vpop.permute.xlu0 %2962
      %2964 = vrot.lane.b32.xlu0 %v1031, 16
      %v2965 = vpop.permute.xlu0 %2964
      %2966 = vrot.lane.b32.xlu0 %v1037, 16
      %v2967 = vpop.permute.xlu0 %2966
      %2968 = vrot.lane.b32.xlu0 %v1043, 16
      %v2969 = vpop.permute.xlu0 %2968
      %2970 = vrot.lane.b32.xlu0 %v1049, 16
      %v2971 = vpop.permute.xlu0 %2970
      %2972 = vrot.lane.b32.xlu0 %v1055, 16
      %v2973 = vpop.permute.xlu0 %2972
      %2974 = vrot.lane.b32.xlu0 %v1061, 16
      %v2975 = vpop.permute.xlu0 %2974
      %2976 = vrot.lane.b32.xlu0 %v1067, 16
      %v2977 = vpop.permute.xlu0 %2976
      %2978 = vrot.lane.b32.xlu0 %v1073, 16
      %v2979 = vpop.permute.xlu0 %2978
      %2980 = vrot.lane.b32.xlu0 %v1079, 16
      %v2981 = vpop.permute.xlu0 %2980
      %2982 = vrot.lane.b32.xlu0 %v1085, 16
      %v2983 = vpop.permute.xlu0 %2982
      %2984 = vrot.lane.b32.xlu0 %v1091, 16
      %v2985 = vpop.permute.xlu0 %2984
      %2986 = vrot.lane.b32.xlu0 %v1097, 16
      %v2987 = vpop.permute.xlu0 %2986
      %2988 = vrot.lane.b32.xlu0 %v1103, 16
      %v2989 = vpop.permute.xlu0 %2988
      %2990 = vrot.lane.b32.xlu0 %v1109, 16
      %v2991 = vpop.permute.xlu0 %2990
      %v2992 = vsel %vm1177, %v2929, 0
      %v2994 = vsel %vm1177, %v2931, 0
      %v2996 = vsel %vm1177, %v2933, 0
      %v2998 = vsel %vm1177, %v2935, 0
      %v3000 = vsel %vm1177, %v2937, 0
      %v3002 = vsel %vm1177, %v2939, 0
      %v3004 = vsel %vm1177, %v2941, 0
      %v3006 = vsel %vm1177, %v2943, 0
      %v3008 = vsel %vm1177, %v2945, 0
      %v3010 = vsel %vm1177, %v2947, 0
      %v3012 = vsel %vm1177, %v2949, 0
      %v3014 = vsel %vm1177, %v2951, 0
      %v3016 = vsel %vm1177, %v2953, 0
      %v3018 = vsel %vm1177, %v2955, 0
      %v3020 = vsel %vm1177, %v2957, 0
      %v3022 = vsel %vm1177, %v2959, 0
      %v3024 = vsel %vm1177, %v2961, 0
      %v3026 = vsel %vm1177, %v2963, 0
      %v3028 = vsel %vm1177, %v2965, 0
      %v3030 = vsel %vm1177, %v2967, 0
      %v3032 = vsel %vm1177, %v2969, 0
      %v3034 = vsel %vm1177, %v2971, 0
      %v3036 = vsel %vm1177, %v2973, 0
      %v3038 = vsel %vm1177, %v2975, 0
      %v3040 = vsel %vm1177, %v2977, 0
      %v3042 = vsel %vm1177, %v2979, 0
      %v3044 = vsel %vm1177, %v2981, 0
      %v3046 = vsel %vm1177, %v2983, 0
      %v3048 = vsel %vm1177, %v2985, 0
      %v3050 = vsel %vm1177, %v2987, 0
      %v3052 = vsel %vm1177, %v2989, 0
      %v3054 = vsel %vm1177, %v2991, 0
      %3056 = vmatprep.subr.mxu0 0.0
      %3057 = vmatpush1.xpose.msra.mxu0 %v3024
      %3058 = vmatprep.subr.mxu0 0.0
      %3059 = vmatpush1.xpose.msra.mxu0 %v3026
      %3060 = vmatprep.subr.mxu0 0.0
      %3061 = vmatpush1.xpose.msra.mxu0 %v3028
      %3062 = vmatprep.subr.mxu0 0.0
      %3063 = vmatpush1.xpose.msra.mxu0 %v3030
      %3064 = vmatprep.subr.mxu0 0.0
      %3065 = vmatpush1.xpose.msra.mxu0 %v3032
      %3066 = vmatprep.subr.mxu0 0.0
      %3067 = vmatpush1.xpose.msra.mxu0 %v3034
      %3068 = vmatprep.subr.mxu0 0.0
      %3069 = vmatpush1.xpose.msra.mxu0 %v3036
      %3070 = vmatprep.subr.mxu0 0.0
      %3071 = vmatpush1.xpose.msra.mxu0 %v3038
      %3072 = vmatprep.subr.mxu0 0.0
      %3073 = vmatpush1.xpose.msra.mxu0 %v3040
      %3074 = vmatprep.subr.mxu0 0.0
      %3075 = vmatpush1.xpose.msra.mxu0 %v3042
      %3076 = vmatprep.subr.mxu0 0.0
      %3077 = vmatpush1.xpose.msra.mxu0 %v3044
      %3078 = vmatprep.subr.mxu0 0.0
      %3079 = vmatpush1.xpose.msra.mxu0 %v3046
      %3080 = vmatprep.subr.mxu0 0.0
      %3081 = vmatpush1.xpose.msra.mxu0 %v3048
      %3082 = vmatprep.subr.mxu0 0.0
      %3083 = vmatpush1.xpose.msra.mxu0 %v3050
      %3084 = vmatprep.subr.mxu0 0.0
      %3085 = vmatpush1.xpose.msra.mxu0 %v3052
      %3086 = vmatprep.subr.mxu0 0.0
      %3087 = vmatpush1.xpose.msra.mxu0 %v3054
      %3088 = vmatprep.subr.mxu0 0.0
      %3089 = vmatpush1.xpose.msra.mxu0 0.0
      %3090 = vmatprep.subr.mxu0 0.0
      %3091 = vmatpush1.xpose.msra.mxu0 0.0
      %3092 = vmatprep.subr.mxu0 0.0
      %3093 = vmatpush1.xpose.msra.mxu0 0.0
      %3094 = vmatprep.subr.mxu0 0.0
      %3095 = vmatpush1.xpose.msra.mxu0 0.0
      %3096 = vmatprep.subr.mxu0 0.0
      %3097 = vmatpush1.xpose.msra.mxu0 0.0
      %3098 = vmatprep.subr.mxu0 0.0
      %3099 = vmatpush1.xpose.msra.mxu0 0.0
      %3100 = vmatprep.subr.mxu0 0.0
      %3101 = vmatpush1.xpose.msra.mxu0 0.0
      %3102 = vmatprep.subr.mxu0 0.0
      %3103 = vmatpush1.xpose.msra.mxu0 0.0
      %3104 = vmatprep.subr.mxu0 0.0
      %3105 = vmatpush1.xpose.msra.mxu0 0.0
      %3106 = vmatprep.subr.mxu0 0.0
      %3107 = vmatpush1.xpose.msra.mxu0 0.0
      %3108 = vmatprep.subr.mxu0 0.0
      %3109 = vmatpush1.xpose.msra.mxu0 0.0
      %3110 = vmatprep.subr.mxu0 0.0
      %3111 = vmatpush1.xpose.msra.mxu0 0.0
      %3112 = vmatprep.subr.mxu0 0.0
      %3113 = vmatpush1.xpose.msra.mxu0 0.0
      %3114 = vmatprep.subr.mxu0 0.0
      %3115 = vmatpush1.xpose.msra.mxu0 0.0
      %3116 = vmatprep.subr.mxu0 0.0
      %3117 = vmatpush1.xpose.msra.mxu0 0.0
      %3118 = vmatprep.subr.mxu0 0.0
      %3119 = vmatpush1.xpose.msra.mxu0 0.0
      %3120 = vmatprep.mubr.f32.mxu0 0.0
      %3121 = vmatmul.mubr.f32.gmra.mrb[0].mxu0 %v2992
      %v3122 = vpop.f32.mrb[0].mxu0
      %v3123 = vadd.f32 %v604, %v3122
      %v3124 = vpop.f32.mrb[0].mxu0
      %3125 = vmatprep.mubr.f32.mxu0 0.0
      %3126 = vmatmul.mubr.f32.gmra.mrb[0].mxu0 %v2994
      %v3127 = vpop.f32.mrb[0].mxu0
      %v3128 = vadd.f32 %v605, %v3127
      %v3129 = vpop.f32.mrb[0].mxu0
      %3130 = vmatprep.mubr.f32.mxu0 0.0
      %3131 = vmatmul.mubr.f32.gmra.mrb[0].mxu0 %v2996
      %v3132 = vpop.f32.mrb[0].mxu0
      %v3133 = vadd.f32 %v606, %v3132
      %v3134 = vpop.f32.mrb[0].mxu0
      %3135 = vmatprep.mubr.f32.mxu0 0.0
      %3136 = vmatmul.mubr.f32.gmra.mrb[0].mxu0 %v2998
      %v3137 = vpop.f32.mrb[0].mxu0
      %v3138 = vadd.f32 %v607, %v3137
      %v3139 = vpop.f32.mrb[0].mxu0
      %3140 = vmatprep.mubr.f32.mxu0 0.0
      %3141 = vmatmul.mubr.f32.gmra.mrb[0].mxu0 %v3000
      %v3142 = vpop.f32.mrb[0].mxu0
      %v3143 = vadd.f32 %v608, %v3142
      %v3144 = vpop.f32.mrb[0].mxu0
      %3145 = vmatprep.mubr.f32.mxu0 0.0
      %3146 = vmatmul.mubr.f32.gmra.mrb[0].mxu0 %v3002
      %v3147 = vpop.f32.mrb[0].mxu0
      %v3148 = vadd.f32 %v609, %v3147
      %v3149 = vpop.f32.mrb[0].mxu0
      %3150 = vmatprep.mubr.f32.mxu0 0.0
      %3151 = vmatmul.mubr.f32.gmra.mrb[0].mxu0 %v3004
      %v3152 = vpop.f32.mrb[0].mxu0
      %v3153 = vadd.f32 %v610, %v3152
      %v3154 = vpop.f32.mrb[0].mxu0
      %3155 = vmatprep.mubr.f32.mxu0 0.0
      %3156 = vmatmul.mubr.f32.gmra.mrb[0].mxu0 %v3006
      %v3157 = vpop.f32.mrb[0].mxu0
      %v3158 = vadd.f32 %v611, %v3157
      %v3159 = vpop.f32.mrb[0].mxu0
      %3160 = vmatprep.mubr.f32.mxu0 0.0
      %3161 = vmatmul.mubr.f32.gmra.mrb[0].mxu0 %v3008
      %v3162 = vpop.f32.mrb[0].mxu0
      %v3163 = vadd.f32 %v612, %v3162
      %v3164 = vpop.f32.mrb[0].mxu0
      %3165 = vmatprep.mubr.f32.mxu0 0.0
      %3166 = vmatmul.mubr.f32.gmra.mrb[0].mxu0 %v3010
      %v3167 = vpop.f32.mrb[0].mxu0
      %v3168 = vadd.f32 %v613, %v3167
      %v3169 = vpop.f32.mrb[0].mxu0
      %3170 = vmatprep.mubr.f32.mxu0 0.0
      %3171 = vmatmul.mubr.f32.gmra.mrb[0].mxu0 %v3012
      %v3172 = vpop.f32.mrb[0].mxu0
      %v3173 = vadd.f32 %v614, %v3172
      %v3174 = vpop.f32.mrb[0].mxu0
      %3175 = vmatprep.mubr.f32.mxu0 0.0
      %3176 = vmatmul.mubr.f32.gmra.mrb[0].mxu0 %v3014
      %v3177 = vpop.f32.mrb[0].mxu0
      %v3178 = vadd.f32 %v615, %v3177
      %v3179 = vpop.f32.mrb[0].mxu0
      %3180 = vmatprep.mubr.f32.mxu0 0.0
      %3181 = vmatmul.mubr.f32.gmra.mrb[0].mxu0 %v3016
      %v3182 = vpop.f32.mrb[0].mxu0
      %v3183 = vadd.f32 %v616, %v3182
      %v3184 = vpop.f32.mrb[0].mxu0
      %3185 = vmatprep.mubr.f32.mxu0 0.0
      %3186 = vmatmul.mubr.f32.gmra.mrb[0].mxu0 %v3018
      %v3187 = vpop.f32.mrb[0].mxu0
      %v3188 = vadd.f32 %v617, %v3187
      %v3189 = vpop.f32.mrb[0].mxu0
      %3190 = vmatprep.mubr.f32.mxu0 0.0
      %3191 = vmatmul.mubr.f32.gmra.mrb[0].mxu0 %v3020
      %v3192 = vpop.f32.mrb[0].mxu0
      %v3193 = vadd.f32 %v618, %v3192
      %v3194 = vpop.f32.mrb[0].mxu0
      %3195 = vmatprep.mubr.f32.mxu0 0.0
      %3196 = vmatmul.mubr.f32.gmra.mrb[0].mxu0 %v3022
      %v3197 = vpop.f32.mrb[0].mxu0
      %v3198 = vadd.f32 %v619, %v3197
      %v3199 = vpop.f32.mrb[0].mxu0
      %3200 = vdwg.mxu0
      %3201 = vmax.xlane.f32.xlu0 %v3123
      %v3202 = vpop.xlane.xlu0 %3201
      %3203 = vmax.xlane.f32.xlu0 %v3128
      %v3204 = vpop.xlane.xlu0 %3203
      %3205 = vmax.xlane.f32.xlu0 %v3133
      %v3206 = vpop.xlane.xlu0 %3205
      %3207 = vmax.xlane.f32.xlu0 %v3138
      %v3208 = vpop.xlane.xlu0 %3207
      %3209 = vmax.xlane.f32.xlu0 %v3143
      %v3210 = vpop.xlane.xlu0 %3209
      %3211 = vmax.xlane.f32.xlu0 %v3148
      %v3212 = vpop.xlane.xlu0 %3211
      %3213 = vmax.xlane.f32.xlu0 %v3153
      %v3214 = vpop.xlane.xlu0 %3213
      %3215 = vmax.xlane.f32.xlu0 %v3158
      %v3216 = vpop.xlane.xlu0 %3215
      %3217 = vmax.xlane.f32.xlu0 %v3163
      %v3218 = vpop.xlane.xlu0 %3217
      %3219 = vmax.xlane.f32.xlu0 %v3168
      %v3220 = vpop.xlane.xlu0 %3219
      %3221 = vmax.xlane.f32.xlu0 %v3173
      %v3222 = vpop.xlane.xlu0 %3221
      %3223 = vmax.xlane.f32.xlu0 %v3178
      %v3224 = vpop.xlane.xlu0 %3223
      %3225 = vmax.xlane.f32.xlu0 %v3183
      %v3226 = vpop.xlane.xlu0 %3225
      %3227 = vmax.xlane.f32.xlu0 %v3188
      %v3228 = vpop.xlane.xlu0 %3227
      %3229 = vmax.xlane.f32.xlu0 %v3193
      %v3230 = vpop.xlane.xlu0 %3229
      %3231 = vmax.xlane.f32.xlu0 %v3198
      %v3232 = vpop.xlane.xlu0 %3231
      %v3233 = vsub.f32 %v3123, %v3202
      %v3234 = vsub.f32 %v3128, %v3204
      %v3235 = vsub.f32 %v3133, %v3206
      %v3236 = vsub.f32 %v3138, %v3208
      %v3237 = vsub.f32 %v3143, %v3210
      %v3238 = vsub.f32 %v3148, %v3212
      %v3239 = vsub.f32 %v3153, %v3214
      %v3240 = vsub.f32 %v3158, %v3216
      %v3241 = vsub.f32 %v3163, %v3218
      %v3242 = vsub.f32 %v3168, %v3220
      %v3243 = vsub.f32 %v3173, %v3222
      %v3244 = vsub.f32 %v3178, %v3224
      %v3245 = vsub.f32 %v3183, %v3226
      %v3246 = vsub.f32 %v3188, %v3228
      %v3247 = vsub.f32 %v3193, %v3230
      %v3248 = vsub.f32 %v3198, %v3232
      %v3249 = vmul.f32 %v3233, 1.442695
      %v3250 = vpow.pop %v3249
      %v3251 = vmul.f32 %v3234, 1.442695
      %v3252 = vpow.pop %v3251
      %v3253 = vmul.f32 %v3235, 1.442695
      %v3254 = vpow.pop %v3253
      %v3255 = vmul.f32 %v3236, 1.442695
      %v3256 = vpow.pop %v3255
      %v3257 = vmul.f32 %v3237, 1.442695
      %v3258 = vpow.pop %v3257
      %v3259 = vmul.f32 %v3238, 1.442695
      %v3260 = vpow.pop %v3259
      %v3261 = vmul.f32 %v3239, 1.442695
      %v3262 = vpow.pop %v3261
      %v3263 = vmul.f32 %v3240, 1.442695
      %v3264 = vpow.pop %v3263
      %v3265 = vmul.f32 %v3241, 1.442695
      %v3266 = vpow.pop %v3265
      %v3267 = vmul.f32 %v3242, 1.442695
      %v3268 = vpow.pop %v3267
      %v3269 = vmul.f32 %v3243, 1.442695
      %v3270 = vpow.pop %v3269
      %v3271 = vmul.f32 %v3244, 1.442695
      %v3272 = vpow.pop %v3271
      %v3273 = vmul.f32 %v3245, 1.442695
      %v3274 = vpow.pop %v3273
      %v3275 = vmul.f32 %v3246, 1.442695
      %v3276 = vpow.pop %v3275
      %v3277 = vmul.f32 %v3247, 1.442695
      %v3278 = vpow.pop %v3277
      %v3279 = vmul.f32 %v3248, 1.442695
      %v3280 = vpow.pop %v3279
      %3281 = vadd.xlane.f32.xlu0 %v3250
      %v3282 = vpop.xlane.xlu0 %3281
      %3283 = vadd.xlane.f32.xlu0 %v3252
      %v3284 = vpop.xlane.xlu0 %3283
      %3285 = vadd.xlane.f32.xlu0 %v3254
      %v3286 = vpop.xlane.xlu0 %3285
      %3287 = vadd.xlane.f32.xlu0 %v3256
      %v3288 = vpop.xlane.xlu0 %3287
      %3289 = vadd.xlane.f32.xlu0 %v3258
      %v3290 = vpop.xlane.xlu0 %3289
      %3291 = vadd.xlane.f32.xlu0 %v3260
      %v3292 = vpop.xlane.xlu0 %3291
      %3293 = vadd.xlane.f32.xlu0 %v3262
      %v3294 = vpop.xlane.xlu0 %3293
      %3295 = vadd.xlane.f32.xlu0 %v3264
      %v3296 = vpop.xlane.xlu0 %3295
      %3297 = vadd.xlane.f32.xlu0 %v3266
      %v3298 = vpop.xlane.xlu0 %3297
      %3299 = vadd.xlane.f32.xlu0 %v3268
      %v3300 = vpop.xlane.xlu0 %3299
      %3301 = vadd.xlane.f32.xlu0 %v3270
      %v3302 = vpop.xlane.xlu0 %3301
      %3303 = vadd.xlane.f32.xlu0 %v3272
      %v3304 = vpop.xlane.xlu0 %3303
      %3305 = vadd.xlane.f32.xlu0 %v3274
      %v3306 = vpop.xlane.xlu0 %3305
      %3307 = vadd.xlane.f32.xlu0 %v3276
      %v3308 = vpop.xlane.xlu0 %3307
      %3309 = vadd.xlane.f32.xlu0 %v3278
      %v3310 = vpop.xlane.xlu0 %3309
      %3311 = vadd.xlane.f32.xlu0 %v3280
      %v3312 = vpop.xlane.xlu0 %3311
      %v3313 = vrcp.pop %v3282
      %v3314 = vmul.f32 %v3250, %v3313
      %v3315 = vrcp.pop %v3284
      %v3316 = vmul.f32 %v3252, %v3315
      %v3317 = vrcp.pop %v3286
      %v3318 = vmul.f32 %v3254, %v3317
      %v3319 = vrcp.pop %v3288
      %v3320 = vmul.f32 %v3256, %v3319
      %v3321 = vrcp.pop %v3290
      %v3322 = vmul.f32 %v3258, %v3321
      %v3323 = vrcp.pop %v3292
      %v3324 = vmul.f32 %v3260, %v3323
      %v3325 = vrcp.pop %v3294
      %v3326 = vmul.f32 %v3262, %v3325
      %v3327 = vrcp.pop %v3296
      %v3328 = vmul.f32 %v3264, %v3327
      %v3329 = vrcp.pop %v3298
      %v3330 = vmul.f32 %v3266, %v3329
      %v3331 = vrcp.pop %v3300
      %v3332 = vmul.f32 %v3268, %v3331
      %v3333 = vrcp.pop %v3302
      %v3334 = vmul.f32 %v3270, %v3333
      %v3335 = vrcp.pop %v3304
      %v3336 = vmul.f32 %v3272, %v3335
      %v3337 = vrcp.pop %v3306
      %v3338 = vmul.f32 %v3274, %v3337
      %v3339 = vrcp.pop %v3308
      %v3340 = vmul.f32 %v3276, %v3339
      %v3341 = vrcp.pop %v3310
      %v3342 = vmul.f32 %v3278, %v3341
      %v3343 = vrcp.pop %v3312
      %v3344 = vmul.f32 %v3280, %v3343
      %3345 = vrot.lane.b32.xlu0 %v1021, 80
      %v3346 = vpop.permute.xlu0 %3345
      %3347 = vrot.lane.b32.xlu0 %v1027, 80
      %v3348 = vpop.permute.xlu0 %3347
      %3349 = vrot.lane.b32.xlu0 %v1033, 80
      %v3350 = vpop.permute.xlu0 %3349
      %3351 = vrot.lane.b32.xlu0 %v1039, 80
      %v3352 = vpop.permute.xlu0 %3351
      %3353 = vrot.lane.b32.xlu0 %v1045, 80
      %v3354 = vpop.permute.xlu0 %3353
      %3355 = vrot.lane.b32.xlu0 %v1051, 80
      %v3356 = vpop.permute.xlu0 %3355
      %3357 = vrot.lane.b32.xlu0 %v1057, 80
      %v3358 = vpop.permute.xlu0 %3357
      %3359 = vrot.lane.b32.xlu0 %v1063, 80
      %v3360 = vpop.permute.xlu0 %3359
      %3361 = vrot.lane.b32.xlu0 %v1069, 80
      %v3362 = vpop.permute.xlu0 %3361
      %3363 = vrot.lane.b32.xlu0 %v1075, 80
      %v3364 = vpop.permute.xlu0 %3363
      %3365 = vrot.lane.b32.xlu0 %v1081, 80
      %v3366 = vpop.permute.xlu0 %3365
      %3367 = vrot.lane.b32.xlu0 %v1087, 80
      %v3368 = vpop.permute.xlu0 %3367
      %3369 = vrot.lane.b32.xlu0 %v1093, 80
      %v3370 = vpop.permute.xlu0 %3369
      %3371 = vrot.lane.b32.xlu0 %v1099, 80
      %v3372 = vpop.permute.xlu0 %3371
      %3373 = vrot.lane.b32.xlu0 %v1105, 80
      %v3374 = vpop.permute.xlu0 %3373
      %3375 = vrot.lane.b32.xlu0 %v1111, 80
      %v3376 = vpop.permute.xlu0 %3375
      %3393 = vmatprep.subr.mxu0 0.0
      %3394 = vmatpush1.msra.mxu0 %v3346
      %3395 = vmatprep.subr.mxu0 0.0
      %3396 = vmatpush1.msra.mxu0 %v3348
      %3397 = vmatprep.subr.mxu0 0.0
      %3398 = vmatpush1.msra.mxu0 %v3350
      %3399 = vmatprep.subr.mxu0 0.0
      %3400 = vmatpush1.msra.mxu0 %v3352
      %3401 = vmatprep.subr.mxu0 0.0
      %3402 = vmatpush1.msra.mxu0 %v3354
      %3403 = vmatprep.subr.mxu0 0.0
      %3404 = vmatpush1.msra.mxu0 %v3356
      %3405 = vmatprep.subr.mxu0 0.0
      %3406 = vmatpush1.msra.mxu0 %v3358
      %3407 = vmatprep.subr.mxu0 0.0
      %3408 = vmatpush1.msra.mxu0 %v3360
      %3409 = vmatprep.subr.mxu0 0.0
      %3410 = vmatpush1.msra.mxu0 %v3362
      %3411 = vmatprep.subr.mxu0 0.0
      %3412 = vmatpush1.msra.mxu0 %v3364
      %3413 = vmatprep.subr.mxu0 0.0
      %3414 = vmatpush1.msra.mxu0 %v3366
      %3415 = vmatprep.subr.mxu0 0.0
      %3416 = vmatpush1.msra.mxu0 %v3368
      %3417 = vmatprep.subr.mxu0 0.0
      %3418 = vmatpush1.msra.mxu0 %v3370
      %3419 = vmatprep.subr.mxu0 0.0
      %3420 = vmatpush1.msra.mxu0 %v3372
      %3421 = vmatprep.subr.mxu0 0.0
      %3422 = vmatpush1.msra.mxu0 %v3374
      %3423 = vmatprep.subr.mxu0 0.0
      %3424 = vmatpush1.msra.mxu0 %v3376
      %3425 = vmatprep.subr.mxu0 0.0
      %3426 = vmatpush1.msra.mxu0 0.0
      %3427 = vmatprep.subr.mxu0 0.0
      %3428 = vmatpush1.msra.mxu0 0.0
      %3429 = vmatprep.subr.mxu0 0.0
      %3430 = vmatpush1.msra.mxu0 0.0
      %3431 = vmatprep.subr.mxu0 0.0
      %3432 = vmatpush1.msra.mxu0 0.0
      %3433 = vmatprep.subr.mxu0 0.0
      %3434 = vmatpush1.msra.mxu0 0.0
      %3435 = vmatprep.subr.mxu0 0.0
      %3436 = vmatpush1.msra.mxu0 0.0
      %3437 = vmatprep.subr.mxu0 0.0
      %3438 = vmatpush1.msra.mxu0 0.0
      %3439 = vmatprep.subr.mxu0 0.0
      %3440 = vmatpush1.msra.mxu0 0.0
      %3441 = vmatprep.subr.mxu0 0.0
      %3442 = vmatpush1.msra.mxu0 0.0
      %3443 = vmatprep.subr.mxu0 0.0
      %3444 = vmatpush1.msra.mxu0 0.0
      %3445 = vmatprep.subr.mxu0 0.0
      %3446 = vmatpush1.msra.mxu0 0.0
      %3447 = vmatprep.subr.mxu0 0.0
      %3448 = vmatpush1.msra.mxu0 0.0
      %3449 = vmatprep.subr.mxu0 0.0
      %3450 = vmatpush1.msra.mxu0 0.0
      %3451 = vmatprep.subr.mxu0 0.0
      %3452 = vmatpush1.msra.mxu0 0.0
      %3453 = vmatprep.subr.mxu0 0.0
      %3454 = vmatpush1.msra.mxu0 0.0
      %3455 = vmatprep.subr.mxu0 0.0
      %3456 = vmatpush1.msra.mxu0 0.0
      %3457 = vmatprep.mubr.f32.mxu0 0.0
      %3458 = vmatmul.mubr.f32.gmra.mrb[0].mxu0 %v3314
      %v3459 = vpop.f32.mrb[0].mxu0
      %v3460 = vadd.f32 0.0, %v3459
      %v3461 = vpop.f32.mrb[0].mxu0
      %3462 = vmatprep.mubr.f32.mxu0 0.0
      %3463 = vmatmul.mubr.f32.gmra.mrb[0].mxu0 %v3316
      %v3464 = vpop.f32.mrb[0].mxu0
      %v3465 = vadd.f32 0.0, %v3464
      %v3466 = vpop.f32.mrb[0].mxu0
      %3467 = vmatprep.mubr.f32.mxu0 0.0
      %3468 = vmatmul.mubr.f32.gmra.mrb[0].mxu0 %v3318
      %v3469 = vpop.f32.mrb[0].mxu0
      %v3470 = vadd.f32 0.0, %v3469
      %v3471 = vpop.f32.mrb[0].mxu0
      %3472 = vmatprep.mubr.f32.mxu0 0.0
      %3473 = vmatmul.mubr.f32.gmra.mrb[0].mxu0 %v3320
      %v3474 = vpop.f32.mrb[0].mxu0
      %v3475 = vadd.f32 0.0, %v3474
      %v3476 = vpop.f32.mrb[0].mxu0
      %3477 = vmatprep.mubr.f32.mxu0 0.0
      %3478 = vmatmul.mubr.f32.gmra.mrb[0].mxu0 %v3322
      %v3479 = vpop.f32.mrb[0].mxu0
      %v3480 = vadd.f32 0.0, %v3479
      %v3481 = vpop.f32.mrb[0].mxu0
      %3482 = vmatprep.mubr.f32.mxu0 0.0
      %3483 = vmatmul.mubr.f32.gmra.mrb[0].mxu0 %v3324
      %v3484 = vpop.f32.mrb[0].mxu0
      %v3485 = vadd.f32 0.0, %v3484
      %v3486 = vpop.f32.mrb[0].mxu0
      %3487 = vmatprep.mubr.f32.mxu0 0.0
      %3488 = vmatmul.mubr.f32.gmra.mrb[0].mxu0 %v3326
      %v3489 = vpop.f32.mrb[0].mxu0
      %v3490 = vadd.f32 0.0, %v3489
      %v3491 = vpop.f32.mrb[0].mxu0
      %3492 = vmatprep.mubr.f32.mxu0 0.0
      %3493 = vmatmul.mubr.f32.gmra.mrb[0].mxu0 %v3328
      %v3494 = vpop.f32.mrb[0].mxu0
      %v3495 = vadd.f32 0.0, %v3494
      %v3496 = vpop.f32.mrb[0].mxu0
      %3497 = vmatprep.mubr.f32.mxu0 0.0
      %3498 = vmatmul.mubr.f32.gmra.mrb[0].mxu0 %v3330
      %v3499 = vpop.f32.mrb[0].mxu0
      %v3500 = vadd.f32 0.0, %v3499
      %v3501 = vpop.f32.mrb[0].mxu0
      %3502 = vmatprep.mubr.f32.mxu0 0.0
      %3503 = vmatmul.mubr.f32.gmra.mrb[0].mxu0 %v3332
      %v3504 = vpop.f32.mrb[0].mxu0
      %v3505 = vadd.f32 0.0, %v3504
      %v3506 = vpop.f32.mrb[0].mxu0
      %3507 = vmatprep.mubr.f32.mxu0 0.0
      %3508 = vmatmul.mubr.f32.gmra.mrb[0].mxu0 %v3334
      %v3509 = vpop.f32.mrb[0].mxu0
      %v3510 = vadd.f32 0.0, %v3509
      %v3511 = vpop.f32.mrb[0].mxu0
      %3512 = vmatprep.mubr.f32.mxu0 0.0
      %3513 = vmatmul.mubr.f32.gmra.mrb[0].mxu0 %v3336
      %v3514 = vpop.f32.mrb[0].mxu0
      %v3515 = vadd.f32 0.0, %v3514
      %v3516 = vpop.f32.mrb[0].mxu0
      %3517 = vmatprep.mubr.f32.mxu0 0.0
      %3518 = vmatmul.mubr.f32.gmra.mrb[0].mxu0 %v3338
      %v3519 = vpop.f32.mrb[0].mxu0
      %v3520 = vadd.f32 0.0, %v3519
      %v3521 = vpop.f32.mrb[0].mxu0
      %3522 = vmatprep.mubr.f32.mxu0 0.0
      %3523 = vmatmul.mubr.f32.gmra.mrb[0].mxu0 %v3340
      %v3524 = vpop.f32.mrb[0].mxu0
      %v3525 = vadd.f32 0.0, %v3524
      %v3526 = vpop.f32.mrb[0].mxu0
      %3527 = vmatprep.mubr.f32.mxu0 0.0
      %3528 = vmatmul.mubr.f32.gmra.mrb[0].mxu0 %v3342
      %v3529 = vpop.f32.mrb[0].mxu0
      %v3530 = vadd.f32 0.0, %v3529
      %v3531 = vpop.f32.mrb[0].mxu0
      %3532 = vmatprep.mubr.f32.mxu0 0.0
      %3533 = vmatmul.mubr.f32.gmra.mrb[0].mxu0 %v3344
      %v3534 = vpop.f32.mrb[0].mxu0
      %v3535 = vadd.f32 0.0, %v3534
      %v3536 = vpop.f32.mrb[0].mxu0
      %3537 = vdwg.mxu0
      %3554 = vrot.lane.b32.xlu0 %v2240, 16
      %v3555 = vpop.permute.xlu0 %3554
      %3556 = vrot.lane.b32.xlu0 %v2245, 16
      %v3557 = vpop.permute.xlu0 %3556
      %3558 = vrot.lane.b32.xlu0 %v2250, 16
      %v3559 = vpop.permute.xlu0 %3558
      %3560 = vrot.lane.b32.xlu0 %v2255, 16
      %v3561 = vpop.permute.xlu0 %3560
      %3562 = vrot.lane.b32.xlu0 %v2260, 16
      %v3563 = vpop.permute.xlu0 %3562
      %3564 = vrot.lane.b32.xlu0 %v2265, 16
      %v3565 = vpop.permute.xlu0 %3564
      %3566 = vrot.lane.b32.xlu0 %v2270, 16
      %v3567 = vpop.permute.xlu0 %3566
      %3568 = vrot.lane.b32.xlu0 %v2275, 16
      %v3569 = vpop.permute.xlu0 %3568
      %3570 = vrot.lane.b32.xlu0 %v2280, 16
      %v3571 = vpop.permute.xlu0 %3570
      %3572 = vrot.lane.b32.xlu0 %v2285, 16
      %v3573 = vpop.permute.xlu0 %3572
      %3574 = vrot.lane.b32.xlu0 %v2290, 16
      %v3575 = vpop.permute.xlu0 %3574
      %3576 = vrot.lane.b32.xlu0 %v2295, 16
      %v3577 = vpop.permute.xlu0 %3576
      %3578 = vrot.lane.b32.xlu0 %v2300, 16
      %v3579 = vpop.permute.xlu0 %3578
      %3580 = vrot.lane.b32.xlu0 %v2305, 16
      %v3581 = vpop.permute.xlu0 %3580
      %3582 = vrot.lane.b32.xlu0 %v2310, 16
      %v3583 = vpop.permute.xlu0 %3582
      %3584 = vrot.lane.b32.xlu0 %v2315, 16
      %v3585 = vpop.permute.xlu0 %3584
      %3618 = vrot.lane.b32.xlu0 %v2850, 32
      %v3619 = vpop.permute.xlu0 %3618
      %3620 = vrot.lane.b32.xlu0 %v2855, 32
      %v3621 = vpop.permute.xlu0 %3620
      %3622 = vrot.lane.b32.xlu0 %v2860, 32
      %v3623 = vpop.permute.xlu0 %3622
      %3624 = vrot.lane.b32.xlu0 %v2865, 32
      %v3625 = vpop.permute.xlu0 %3624
      %3626 = vrot.lane.b32.xlu0 %v2870, 32
      %v3627 = vpop.permute.xlu0 %3626
      %3628 = vrot.lane.b32.xlu0 %v2875, 32
      %v3629 = vpop.permute.xlu0 %3628
      %3630 = vrot.lane.b32.xlu0 %v2880, 32
      %v3631 = vpop.permute.xlu0 %3630
      %3632 = vrot.lane.b32.xlu0 %v2885, 32
      %v3633 = vpop.permute.xlu0 %3632
      %3634 = vrot.lane.b32.xlu0 %v2890, 32
      %v3635 = vpop.permute.xlu0 %3634
      %3636 = vrot.lane.b32.xlu0 %v2895, 32
      %v3637 = vpop.permute.xlu0 %3636
      %3638 = vrot.lane.b32.xlu0 %v2900, 32
      %v3639 = vpop.permute.xlu0 %3638
      %3640 = vrot.lane.b32.xlu0 %v2905, 32
      %v3641 = vpop.permute.xlu0 %3640
      %3642 = vrot.lane.b32.xlu0 %v2910, 32
      %v3643 = vpop.permute.xlu0 %3642
      %3644 = vrot.lane.b32.xlu0 %v2915, 32
      %v3645 = vpop.permute.xlu0 %3644
      %3646 = vrot.lane.b32.xlu0 %v2920, 32
      %v3647 = vpop.permute.xlu0 %3646
      %3648 = vrot.lane.b32.xlu0 %v2925, 32
      %v3649 = vpop.permute.xlu0 %3648
      %3682 = vrot.lane.b32.xlu0 %v3460, 48
      %v3683 = vpop.permute.xlu0 %3682
      %3684 = vrot.lane.b32.xlu0 %v3465, 48
      %v3685 = vpop.permute.xlu0 %3684
      %3686 = vrot.lane.b32.xlu0 %v3470, 48
      %v3687 = vpop.permute.xlu0 %3686
      %3688 = vrot.lane.b32.xlu0 %v3475, 48
      %v3689 = vpop.permute.xlu0 %3688
      %3690 = vrot.lane.b32.xlu0 %v3480, 48
      %v3691 = vpop.permute.xlu0 %3690
      %3692 = vrot.lane.b32.xlu0 %v3485, 48
      %v3693 = vpop.permute.xlu0 %3692
      %3694 = vrot.lane.b32.xlu0 %v3490, 48
      %v3695 = vpop.permute.xlu0 %3694
      %3696 = vrot.lane.b32.xlu0 %v3495, 48
      %v3697 = vpop.permute.xlu0 %3696
      %3698 = vrot.lane.b32.xlu0 %v3500, 48
      %v3699 = vpop.permute.xlu0 %3698
      %3700 = vrot.lane.b32.xlu0 %v3505, 48
      %v3701 = vpop.permute.xlu0 %3700
      %3702 = vrot.lane.b32.xlu0 %v3510, 48
      %v3703 = vpop.permute.xlu0 %3702
      %3704 = vrot.lane.b32.xlu0 %v3515, 48
      %v3705 = vpop.permute.xlu0 %3704
      %3706 = vrot.lane.b32.xlu0 %v3520, 48
      %v3707 = vpop.permute.xlu0 %3706
      %3708 = vrot.lane.b32.xlu0 %v3525, 48
      %v3709 = vpop.permute.xlu0 %3708
      %3710 = vrot.lane.b32.xlu0 %v3530, 48
      %v3711 = vpop.permute.xlu0 %3710
      %3712 = vrot.lane.b32.xlu0 %v3535, 48
      %v3713 = vpop.permute.xlu0 %3712
      %v3730 = vsel %vm1177, %v1614, %v3555
      %v3731 = vsel %vm1177, %v1619, %v3557
      %v3732 = vsel %vm1177, %v1624, %v3559
      %v3733 = vsel %vm1177, %v1629, %v3561
      %v3734 = vsel %vm1177, %v1634, %v3563
      %v3735 = vsel %vm1177, %v1639, %v3565
      %v3736 = vsel %vm1177, %v1644, %v3567
      %v3737 = vsel %vm1177, %v1649, %v3569
      %v3738 = vsel %vm1177, %v1654, %v3571
      %v3739 = vsel %vm1177, %v1659, %v3573
      %v3740 = vsel %vm1177, %v1664, %v3575
      %v3741 = vsel %vm1177, %v1669, %v3577
      %v3742 = vsel %vm1177, %v1674, %v3579
      %v3743 = vsel %vm1177, %v1679, %v3581
      %v3744 = vsel %vm1177, %v1684, %v3583
      %v3745 = vsel %vm1177, %v1689, %v3585
      %vm3746 = vcmask 261120
      %v3747 = vsel %vm3746, %v3730, %v3619
      %v3748 = vsel %vm3746, %v3731, %v3621
      %v3749 = vsel %vm3746, %v3732, %v3623
      %v3750 = vsel %vm3746, %v3733, %v3625
      %v3751 = vsel %vm3746, %v3734, %v3627
      %v3752 = vsel %vm3746, %v3735, %v3629
      %v3753 = vsel %vm3746, %v3736, %v3631
      %v3754 = vsel %vm3746, %v3737, %v3633
      %v3755 = vsel %vm3746, %v3738, %v3635
      %v3756 = vsel %vm3746, %v3739, %v3637
      %v3757 = vsel %vm3746, %v3740, %v3639
      %v3758 = vsel %vm3746, %v3741, %v3641
      %v3759 = vsel %vm3746, %v3742, %v3643
      %v3760 = vsel %vm3746, %v3743, %v3645
      %v3761 = vsel %vm3746, %v3744, %v3647
      %v3762 = vsel %vm3746, %v3745, %v3649
      %vm3763 = vcmask 392192
      %v3764 = vsel %vm3763, %v3747, %v3683
      %v3765 = vsel %vm3763, %v3748, %v3685
      %v3766 = vsel %vm3763, %v3749, %v3687
      %v3767 = vsel %vm3763, %v3750, %v3689
      %v3768 = vsel %vm3763, %v3751, %v3691
      %v3769 = vsel %vm3763, %v3752, %v3693
      %v3770 = vsel %vm3763, %v3753, %v3695
      %v3771 = vsel %vm3763, %v3754, %v3697
      %v3772 = vsel %vm3763, %v3755, %v3699
      %v3773 = vsel %vm3763, %v3756, %v3701
      %v3774 = vsel %vm3763, %v3757, %v3703
      %v3775 = vsel %vm3763, %v3758, %v3705
      %v3776 = vsel %vm3763, %v3759, %v3707
      %v3777 = vsel %vm3763, %v3760, %v3709
      %v3778 = vsel %vm3763, %v3761, %v3711
      %v3779 = vsel %vm3763, %v3762, %v3713
      %v3780 = vld [vmem:[%s7] sm:$0xff]
      %v3781 = vld [vmem:[%s7 + $0x8] sm:$0xff]
      %v3782 = vld [vmem:[%s7 + $0x10] sm:$0xff]
      %v3783 = vld [vmem:[%s7 + $0x18] sm:$0xff]
      %v3784 = vld [vmem:[%s7 + $0x20] sm:$0xff]
      %v3785 = vld [vmem:[%s7 + $0x28] sm:$0xff]
      %v3786 = vld [vmem:[%s7 + $0x30] sm:$0xff]
      %v3787 = vld [vmem:[%s7 + $0x38] sm:$0xff]
      %v3788 = vld [vmem:[%s8] sm:$0x1]
      %v3790 = vlaneseq
      %v3791 = vshrl.u32 %v3790, 7
      %v3792 = vsub.s32 0, %v3791
      %v3793 = vrot.slane %v3788, %v3792
      %v3796 = vsel %vm622, %v3764, 0
      %v3799 = vsel %vm622, %v3765, 0
      %v3802 = vsel %vm622, %v3766, 0
      %v3805 = vsel %vm622, %v3767, 0
      %v3808 = vsel %vm622, %v3768, 0
      %v3811 = vsel %vm622, %v3769, 0
      %v3814 = vsel %vm622, %v3770, 0
      %v3817 = vsel %vm622, %v3771, 0
      %v3820 = vsel %vm622, %v3772, 0
      %v3823 = vsel %vm622, %v3773, 0
      %v3826 = vsel %vm622, %v3774, 0
      %v3829 = vsel %vm622, %v3775, 0
      %v3832 = vsel %vm622, %v3776, 0
      %v3835 = vsel %vm622, %v3777, 0
      %v3838 = vsel %vm622, %v3778, 0
      %v3841 = vsel %vm622, %v3779, 0
      %3843 = vmatprep.subr.mxu0 0.0
      %3844 = vmatpush1.msra.mxu0 %v3780
      %3845 = vmatprep.subr.mxu0 0.0
      %3846 = vmatpush1.msra.mxu0 %v3781
      %3847 = vmatprep.subr.mxu0 0.0
      %3848 = vmatpush1.msra.mxu0 %v3782
      %3849 = vmatprep.subr.mxu0 0.0
      %3850 = vmatpush1.msra.mxu0 %v3783
      %3851 = vmatprep.subr.mxu0 0.0
      %3852 = vmatpush1.msra.mxu0 %v3784
      %3853 = vmatprep.subr.mxu0 0.0
      %3854 = vmatpush1.msra.mxu0 %v3785
      %3855 = vmatprep.subr.mxu0 0.0
      %3856 = vmatpush1.msra.mxu0 %v3786
      %3857 = vmatprep.subr.mxu0 0.0
      %3858 = vmatpush1.msra.mxu0 %v3787
      %3859 = vmatprep.subr.mxu0 0.0
      %3860 = vmatpush1.msra.mxu0 0.0
      %3861 = vmatprep.subr.mxu0 0.0
      %3862 = vmatpush1.msra.mxu0 0.0
      %3863 = vmatprep.subr.mxu0 0.0
      %3864 = vmatpush1.msra.mxu0 0.0
      %3865 = vmatprep.subr.mxu0 0.0
      %3866 = vmatpush1.msra.mxu0 0.0
      %3867 = vmatprep.subr.mxu0 0.0
      %3868 = vmatpush1.msra.mxu0 0.0
      %3869 = vmatprep.subr.mxu0 0.0
      %3870 = vmatpush1.msra.mxu0 0.0
      %3871 = vmatprep.subr.mxu0 0.0
      %3872 = vmatpush1.msra.mxu0 0.0
      %3873 = vmatprep.subr.mxu0 0.0
      %3874 = vmatpush1.msra.mxu0 0.0
      %3875 = vmatprep.subr.mxu0 0.0
      %3876 = vmatpush1.msra.mxu0 0.0
      %3877 = vmatprep.subr.mxu0 0.0
      %3878 = vmatpush1.msra.mxu0 0.0
      %3879 = vmatprep.subr.mxu0 0.0
      %3880 = vmatpush1.msra.mxu0 0.0
      %3881 = vmatprep.subr.mxu0 0.0
      %3882 = vmatpush1.msra.mxu0 0.0
      %3883 = vmatprep.subr.mxu0 0.0
      %3884 = vmatpush1.msra.mxu0 0.0
      %3885 = vmatprep.subr.mxu0 0.0
      %3886 = vmatpush1.msra.mxu0 0.0
      %3887 = vmatprep.subr.mxu0 0.0
      %3888 = vmatpush1.msra.mxu0 0.0
      %3889 = vmatprep.subr.mxu0 0.0
      %3890 = vmatpush1.msra.mxu0 0.0
      %3891 = vmatprep.subr.mxu0 0.0
      %3892 = vmatpush1.msra.mxu0 0.0
      %3893 = vmatprep.subr.mxu0 0.0
      %3894 = vmatpush1.msra.mxu0 0.0
      %3895 = vmatprep.subr.mxu0 0.0
      %3896 = vmatpush1.msra.mxu0 0.0
      %3897 = vmatprep.subr.mxu0 0.0
      %3898 = vmatpush1.msra.mxu0 0.0
      %3899 = vmatprep.subr.mxu0 0.0
      %3900 = vmatpush1.msra.mxu0 0.0
      %3901 = vmatprep.subr.mxu0 0.0
      %3902 = vmatpush1.msra.mxu0 0.0
      %3903 = vmatprep.subr.mxu0 0.0
      %3904 = vmatpush1.msra.mxu0 0.0
      %3905 = vmatprep.subr.mxu0 0.0
      %3906 = vmatpush1.msra.mxu0 0.0
      %3907 = vmatprep.mubr.f32.mxu0 0.0
      %3908 = vmatmul.mubr.f32.gmra.mrb[0].mxu0 %v3796
      %v3909 = vpop.f32.mrb[0].mxu0
      %v3910 = vadd.f32 %v3793, %v3909
      %v3911 = vpop.f32.mrb[0].mxu0
      %3912 = vmatprep.mubr.f32.mxu0 0.0
      %3913 = vmatmul.mubr.f32.gmra.mrb[0].mxu0 %v3799
      %v3914 = vpop.f32.mrb[0].mxu0
      %v3915 = vadd.f32 %v3793, %v3914
      %v3916 = vpop.f32.mrb[0].mxu0
      %3917 = vmatprep.mubr.f32.mxu0 0.0
      %3918 = vmatmul.mubr.f32.gmra.mrb[0].mxu0 %v3802
      %v3919 = vpop.f32.mrb[0].mxu0
      %v3920 = vadd.f32 %v3793, %v3919
      %v3921 = vpop.f32.mrb[0].mxu0
      %3922 = vmatprep.mubr.f32.mxu0 0.0
      %3923 = vmatmul.mubr.f32.gmra.mrb[0].mxu0 %v3805
      %v3924 = vpop.f32.mrb[0].mxu0
      %v3925 = vadd.f32 %v3793, %v3924
      %v3926 = vpop.f32.mrb[0].mxu0
      %3927 = vmatprep.mubr.f32.mxu0 0.0
      %3928 = vmatmul.mubr.f32.gmra.mrb[0].mxu0 %v3808
      %v3929 = vpop.f32.mrb[0].mxu0
      %v3930 = vadd.f32 %v3793, %v3929
      %v3931 = vpop.f32.mrb[0].mxu0
      %3932 = vmatprep.mubr.f32.mxu0 0.0
      %3933 = vmatmul.mubr.f32.gmra.mrb[0].mxu0 %v3811
      %v3934 = vpop.f32.mrb[0].mxu0
      %v3935 = vadd.f32 %v3793, %v3934
      %v3936 = vpop.f32.mrb[0].mxu0
      %3937 = vmatprep.mubr.f32.mxu0 0.0
      %3938 = vmatmul.mubr.f32.gmra.mrb[0].mxu0 %v3814
      %v3939 = vpop.f32.mrb[0].mxu0
      %v3940 = vadd.f32 %v3793, %v3939
      %v3941 = vpop.f32.mrb[0].mxu0
      %3942 = vmatprep.mubr.f32.mxu0 0.0
      %3943 = vmatmul.mubr.f32.gmra.mrb[0].mxu0 %v3817
      %v3944 = vpop.f32.mrb[0].mxu0
      %v3945 = vadd.f32 %v3793, %v3944
      %v3946 = vpop.f32.mrb[0].mxu0
      %3947 = vmatprep.mubr.f32.mxu0 0.0
      %3948 = vmatmul.mubr.f32.gmra.mrb[0].mxu0 %v3820
      %v3949 = vpop.f32.mrb[0].mxu0
      %v3950 = vadd.f32 %v3793, %v3949
      %v3951 = vpop.f32.mrb[0].mxu0
      %3952 = vmatprep.mubr.f32.mxu0 0.0
      %3953 = vmatmul.mubr.f32.gmra.mrb[0].mxu0 %v3823
      %v3954 = vpop.f32.mrb[0].mxu0
      %v3955 = vadd.f32 %v3793, %v3954
      %v3956 = vpop.f32.mrb[0].mxu0
      %3957 = vmatprep.mubr.f32.mxu0 0.0
      %3958 = vmatmul.mubr.f32.gmra.mrb[0].mxu0 %v3826
      %v3959 = vpop.f32.mrb[0].mxu0
      %v3960 = vadd.f32 %v3793, %v3959
      %v3961 = vpop.f32.mrb[0].mxu0
      %3962 = vmatprep.mubr.f32.mxu0 0.0
      %3963 = vmatmul.mubr.f32.gmra.mrb[0].mxu0 %v3829
      %v3964 = vpop.f32.mrb[0].mxu0
      %v3965 = vadd.f32 %v3793, %v3964
      %v3966 = vpop.f32.mrb[0].mxu0
      %3967 = vmatprep.mubr.f32.mxu0 0.0
      %3968 = vmatmul.mubr.f32.gmra.mrb[0].mxu0 %v3832
      %v3969 = vpop.f32.mrb[0].mxu0
      %v3970 = vadd.f32 %v3793, %v3969
      %v3971 = vpop.f32.mrb[0].mxu0
      %3972 = vmatprep.mubr.f32.mxu0 0.0
      %3973 = vmatmul.mubr.f32.gmra.mrb[0].mxu0 %v3835
      %v3974 = vpop.f32.mrb[0].mxu0
      %v3975 = vadd.f32 %v3793, %v3974
      %v3976 = vpop.f32.mrb[0].mxu0
      %3977 = vmatprep.mubr.f32.mxu0 0.0
      %3978 = vmatmul.mubr.f32.gmra.mrb[0].mxu0 %v3838
      %v3979 = vpop.f32.mrb[0].mxu0
      %v3980 = vadd.f32 %v3793, %v3979
      %v3981 = vpop.f32.mrb[0].mxu0
      %3982 = vmatprep.mubr.f32.mxu0 0.0
      %3983 = vmatmul.mubr.f32.gmra.mrb[0].mxu0 %v3841
      %v3984 = vpop.f32.mrb[0].mxu0
      %v3985 = vadd.f32 %v3793, %v3984
      %v3986 = vpop.f32.mrb[0].mxu0
      %3987 = vdwg.mxu0
      %v3988 = vadd.f32 %v588, %v3910
      %v3989 = vadd.f32 %v589, %v3915
      %v3990 = vadd.f32 %v590, %v3920
      %v3991 = vadd.f32 %v591, %v3925
      %v3992 = vadd.f32 %v592, %v3930
      %v3993 = vadd.f32 %v593, %v3935
      %v3994 = vadd.f32 %v594, %v3940
      %v3995 = vadd.f32 %v595, %v3945
      %v3996 = vadd.f32 %v596, %v3950
      %v3997 = vadd.f32 %v597, %v3955
      %v3998 = vadd.f32 %v598, %v3960
      %v3999 = vadd.f32 %v599, %v3965
      %v4000 = vadd.f32 %v600, %v3970
      %v4001 = vadd.f32 %v601, %v3975
      %v4002 = vadd.f32 %v602, %v3980
      %v4003 = vadd.f32 %v603, %v3985
      %v4004 = vld [vmem:[%s9] sm:$0x1]
      %v4005 = vld [vmem:[%s10] sm:$0x1]
      %v4006 = vsel %vm622, %v3988, 0.0
      %4007 = vadd.xlane.f32.xlu0 %v4006
      %v4008 = vpop.xlane.xlu0 %4007
      %v4009 = vsel %vm622, %v3989, 0.0
      %4010 = vadd.xlane.f32.xlu0 %v4009
      %v4011 = vpop.xlane.xlu0 %4010
      %v4012 = vsel %vm622, %v3990, 0.0
      %4013 = vadd.xlane.f32.xlu0 %v4012
      %v4014 = vpop.xlane.xlu0 %4013
      %v4015 = vsel %vm622, %v3991, 0.0
      %4016 = vadd.xlane.f32.xlu0 %v4015
      %v4017 = vpop.xlane.xlu0 %4016
      %v4018 = vsel %vm622, %v3992, 0.0
      %4019 = vadd.xlane.f32.xlu0 %v4018
      %v4020 = vpop.xlane.xlu0 %4019
      %v4021 = vsel %vm622, %v3993, 0.0
      %4022 = vadd.xlane.f32.xlu0 %v4021
      %v4023 = vpop.xlane.xlu0 %4022
      %v4024 = vsel %vm622, %v3994, 0.0
      %4025 = vadd.xlane.f32.xlu0 %v4024
      %v4026 = vpop.xlane.xlu0 %4025
      %v4027 = vsel %vm622, %v3995, 0.0
      %4028 = vadd.xlane.f32.xlu0 %v4027
      %v4029 = vpop.xlane.xlu0 %4028
      %v4030 = vsel %vm622, %v3996, 0.0
      %4031 = vadd.xlane.f32.xlu0 %v4030
      %v4032 = vpop.xlane.xlu0 %4031
      %v4033 = vsel %vm622, %v3997, 0.0
      %4034 = vadd.xlane.f32.xlu0 %v4033
      %v4035 = vpop.xlane.xlu0 %4034
      %v4036 = vsel %vm622, %v3998, 0.0
      %4037 = vadd.xlane.f32.xlu0 %v4036
      %v4038 = vpop.xlane.xlu0 %4037
      %v4039 = vsel %vm622, %v3999, 0.0
      %4040 = vadd.xlane.f32.xlu0 %v4039
      %v4041 = vpop.xlane.xlu0 %4040
      %v4042 = vsel %vm622, %v4000, 0.0
      %4043 = vadd.xlane.f32.xlu0 %v4042
      %v4044 = vpop.xlane.xlu0 %4043
      %v4045 = vsel %vm622, %v4001, 0.0
      %4046 = vadd.xlane.f32.xlu0 %v4045
      %v4047 = vpop.xlane.xlu0 %4046
      %v4048 = vsel %vm622, %v4002, 0.0
      %4049 = vadd.xlane.f32.xlu0 %v4048
      %v4050 = vpop.xlane.xlu0 %4049
      %v4051 = vsel %vm622, %v4003, 0.0
      %4052 = vadd.xlane.f32.xlu0 %v4051
      %v4053 = vpop.xlane.xlu0 %4052
      %v4054 = vmul.f32 %v4008, %v671
      %v4055 = vmul.f32 %v4011, %v671
      %v4056 = vmul.f32 %v4014, %v671
      %v4057 = vmul.f32 %v4017, %v671
      %v4058 = vmul.f32 %v4020, %v671
      %v4059 = vmul.f32 %v4023, %v671
      %v4060 = vmul.f32 %v4026, %v671
      %v4061 = vmul.f32 %v4029, %v671
      %v4062 = vmul.f32 %v4032, %v671
      %v4063 = vmul.f32 %v4035, %v671
      %v4064 = vmul.f32 %v4038, %v671
      %v4065 = vmul.f32 %v4041, %v671
      %v4066 = vmul.f32 %v4044, %v671
      %v4067 = vmul.f32 %v4047, %v671
      %v4068 = vmul.f32 %v4050, %v671
      %v4069 = vmul.f32 %v4053, %v671
      %v4070 = vsub.f32 %v3988, %v4054
      %v4071 = vsub.f32 %v3989, %v4055
      %v4072 = vsub.f32 %v3990, %v4056
      %v4073 = vsub.f32 %v3991, %v4057
      %v4074 = vsub.f32 %v3992, %v4058
      %v4075 = vsub.f32 %v3993, %v4059
      %v4076 = vsub.f32 %v3994, %v4060
      %v4077 = vsub.f32 %v3995, %v4061
      %v4078 = vsub.f32 %v3996, %v4062
      %v4079 = vsub.f32 %v3997, %v4063
      %v4080 = vsub.f32 %v3998, %v4064
      %v4081 = vsub.f32 %v3999, %v4065
      %v4082 = vsub.f32 %v4000, %v4066
      %v4083 = vsub.f32 %v4001, %v4067
      %v4084 = vsub.f32 %v4002, %v4068
      %v4085 = vsub.f32 %v4003, %v4069
      %v4086 = vmul.f32 %v4070, %v4070
      %v4087 = vmul.f32 %v4071, %v4071
      %v4088 = vmul.f32 %v4072, %v4072
      %v4089 = vmul.f32 %v4073, %v4073
      %v4090 = vmul.f32 %v4074, %v4074
      %v4091 = vmul.f32 %v4075, %v4075
      %v4092 = vmul.f32 %v4076, %v4076
      %v4093 = vmul.f32 %v4077, %v4077
      %v4094 = vmul.f32 %v4078, %v4078
      %v4095 = vmul.f32 %v4079, %v4079
      %v4096 = vmul.f32 %v4080, %v4080
      %v4097 = vmul.f32 %v4081, %v4081
      %v4098 = vmul.f32 %v4082, %v4082
      %v4099 = vmul.f32 %v4083, %v4083
      %v4100 = vmul.f32 %v4084, %v4084
      %v4101 = vmul.f32 %v4085, %v4085
      %v4102 = vsel %vm622, %v4086, 0.0
      %4103 = vadd.xlane.f32.xlu0 %v4102
      %v4104 = vpop.xlane.xlu0 %4103
      %v4105 = vsel %vm622, %v4087, 0.0
      %4106 = vadd.xlane.f32.xlu0 %v4105
      %v4107 = vpop.xlane.xlu0 %4106
      %v4108 = vsel %vm622, %v4088, 0.0
      %4109 = vadd.xlane.f32.xlu0 %v4108
      %v4110 = vpop.xlane.xlu0 %4109
      %v4111 = vsel %vm622, %v4089, 0.0
      %4112 = vadd.xlane.f32.xlu0 %v4111
      %v4113 = vpop.xlane.xlu0 %4112
      %v4114 = vsel %vm622, %v4090, 0.0
      %4115 = vadd.xlane.f32.xlu0 %v4114
      %v4116 = vpop.xlane.xlu0 %4115
      %v4117 = vsel %vm622, %v4091, 0.0
      %4118 = vadd.xlane.f32.xlu0 %v4117
      %v4119 = vpop.xlane.xlu0 %4118
      %v4120 = vsel %vm622, %v4092, 0.0
      %4121 = vadd.xlane.f32.xlu0 %v4120
      %v4122 = vpop.xlane.xlu0 %4121
      %v4123 = vsel %vm622, %v4093, 0.0
      %4124 = vadd.xlane.f32.xlu0 %v4123
      %v4125 = vpop.xlane.xlu0 %4124
      %v4126 = vsel %vm622, %v4094, 0.0
      %4127 = vadd.xlane.f32.xlu0 %v4126
      %v4128 = vpop.xlane.xlu0 %4127
      %v4129 = vsel %vm622, %v4095, 0.0
      %4130 = vadd.xlane.f32.xlu0 %v4129
      %v4131 = vpop.xlane.xlu0 %4130
      %v4132 = vsel %vm622, %v4096, 0.0
      %4133 = vadd.xlane.f32.xlu0 %v4132
      %v4134 = vpop.xlane.xlu0 %4133
      %v4135 = vsel %vm622, %v4097, 0.0
      %4136 = vadd.xlane.f32.xlu0 %v4135
      %v4137 = vpop.xlane.xlu0 %4136
      %v4138 = vsel %vm622, %v4098, 0.0
      %4139 = vadd.xlane.f32.xlu0 %v4138
      %v4140 = vpop.xlane.xlu0 %4139
      %v4141 = vsel %vm622, %v4099, 0.0
      %4142 = vadd.xlane.f32.xlu0 %v4141
      %v4143 = vpop.xlane.xlu0 %4142
      %v4144 = vsel %vm622, %v4100, 0.0
      %4145 = vadd.xlane.f32.xlu0 %v4144
      %v4146 = vpop.xlane.xlu0 %4145
      %v4147 = vsel %vm622, %v4101, 0.0
      %4148 = vadd.xlane.f32.xlu0 %v4147
      %v4149 = vpop.xlane.xlu0 %4148
      %v4150 = vmul.f32 %v4104, %v671
      %v4151 = vmul.f32 %v4107, %v671
      %v4152 = vmul.f32 %v4110, %v671
      %v4153 = vmul.f32 %v4113, %v671
      %v4154 = vmul.f32 %v4116, %v671
      %v4155 = vmul.f32 %v4119, %v671
      %v4156 = vmul.f32 %v4122, %v671
      %v4157 = vmul.f32 %v4125, %v671
      %v4158 = vmul.f32 %v4128, %v671
      %v4159 = vmul.f32 %v4131, %v671
      %v4160 = vmul.f32 %v4134, %v671
      %v4161 = vmul.f32 %v4137, %v671
      %v4162 = vmul.f32 %v4140, %v671
      %v4163 = vmul.f32 %v4143, %v671
      %v4164 = vmul.f32 %v4146, %v671
      %v4165 = vmul.f32 %v4149, %v671
      %v4166 = vadd.f32 %v4150, 1e-06
      %v4167 = vadd.f32 %v4151, 1e-06
      %v4168 = vadd.f32 %v4152, 1e-06
      %v4169 = vadd.f32 %v4153, 1e-06
      %v4170 = vadd.f32 %v4154, 1e-06
      %v4171 = vadd.f32 %v4155, 1e-06
      %v4172 = vadd.f32 %v4156, 1e-06
      %v4173 = vadd.f32 %v4157, 1e-06
      %v4174 = vadd.f32 %v4158, 1e-06
      %v4175 = vadd.f32 %v4159, 1e-06
      %v4176 = vadd.f32 %v4160, 1e-06
      %v4177 = vadd.f32 %v4161, 1e-06
      %v4178 = vadd.f32 %v4162, 1e-06
      %v4179 = vadd.f32 %v4163, 1e-06
      %v4180 = vadd.f32 %v4164, 1e-06
      %v4181 = vadd.f32 %v4165, 1e-06
      %v4182 = vrsqrt.pop %v4166
      %v4183 = vrsqrt.pop %v4167
      %v4184 = vrsqrt.pop %v4168
      %v4185 = vrsqrt.pop %v4169
      %v4186 = vrsqrt.pop %v4170
      %v4187 = vrsqrt.pop %v4171
      %v4188 = vrsqrt.pop %v4172
      %v4189 = vrsqrt.pop %v4173
      %v4190 = vrsqrt.pop %v4174
      %v4191 = vrsqrt.pop %v4175
      %v4192 = vrsqrt.pop %v4176
      %v4193 = vrsqrt.pop %v4177
      %v4194 = vrsqrt.pop %v4178
      %v4195 = vrsqrt.pop %v4179
      %v4196 = vrsqrt.pop %v4180
      %v4197 = vrsqrt.pop %v4181
      %v4198 = vmul.f32 %v4070, %v4182
      %v4199 = vmul.f32 %v4071, %v4183
      %v4200 = vmul.f32 %v4072, %v4184
      %v4201 = vmul.f32 %v4073, %v4185
      %v4202 = vmul.f32 %v4074, %v4186
      %v4203 = vmul.f32 %v4075, %v4187
      %v4204 = vmul.f32 %v4076, %v4188
      %v4205 = vmul.f32 %v4077, %v4189
      %v4206 = vmul.f32 %v4078, %v4190
      %v4207 = vmul.f32 %v4079, %v4191
      %v4208 = vmul.f32 %v4080, %v4192
      %v4209 = vmul.f32 %v4081, %v4193
      %v4210 = vmul.f32 %v4082, %v4194
      %v4211 = vmul.f32 %v4083, %v4195
      %v4212 = vmul.f32 %v4084, %v4196
      %v4213 = vmul.f32 %v4085, %v4197
      %v4215 = vlaneseq
      %v4216 = vshrl.u32 %v4215, 7
      %v4217 = vsub.s32 0, %v4216
      %v4218 = vrot.slane %v4004, %v4217
      %v4220 = vmul.f32 %v4198, %v4218
      %v4221 = vmul.f32 %v4199, %v4218
      %v4222 = vmul.f32 %v4200, %v4218
      %v4223 = vmul.f32 %v4201, %v4218
      %v4224 = vmul.f32 %v4202, %v4218
      %v4225 = vmul.f32 %v4203, %v4218
      %v4226 = vmul.f32 %v4204, %v4218
      %v4227 = vmul.f32 %v4205, %v4218
      %v4228 = vmul.f32 %v4206, %v4218
      %v4229 = vmul.f32 %v4207, %v4218
      %v4230 = vmul.f32 %v4208, %v4218
      %v4231 = vmul.f32 %v4209, %v4218
      %v4232 = vmul.f32 %v4210, %v4218
      %v4233 = vmul.f32 %v4211, %v4218
      %v4234 = vmul.f32 %v4212, %v4218
      %v4235 = vmul.f32 %v4213, %v4218
      %v4237 = vlaneseq
      %v4238 = vshrl.u32 %v4237, 7
      %v4239 = vsub.s32 0, %v4238
      %v4240 = vrot.slane %v4005, %v4239
      %v4242 = vadd.f32 %v4220, %v4240
      %v4243 = vadd.f32 %v4221, %v4240
      %v4244 = vadd.f32 %v4222, %v4240
      %v4245 = vadd.f32 %v4223, %v4240
      %v4246 = vadd.f32 %v4224, %v4240
      %v4247 = vadd.f32 %v4225, %v4240
      %v4248 = vadd.f32 %v4226, %v4240
      %v4249 = vadd.f32 %v4227, %v4240
      %v4250 = vadd.f32 %v4228, %v4240
      %v4251 = vadd.f32 %v4229, %v4240
      %v4252 = vadd.f32 %v4230, %v4240
      %v4253 = vadd.f32 %v4231, %v4240
      %v4254 = vadd.f32 %v4232, %v4240
      %v4255 = vadd.f32 %v4233, %v4240
      %v4256 = vadd.f32 %v4234, %v4240
      %v4257 = vadd.f32 %v4235, %v4240
      %v4258 = vld [vmem:[%s11] sm:$0xff]
      %v4259 = vld [vmem:[%s11 + $0x8] sm:$0xff]
      %v4260 = vld [vmem:[%s11 + $0x10] sm:$0xff]
      %v4261 = vld [vmem:[%s11 + $0x18] sm:$0xff]
      %v4262 = vld [vmem:[%s11 + $0x20] sm:$0xff]
      %v4263 = vld [vmem:[%s11 + $0x28] sm:$0xff]
      %v4264 = vld [vmem:[%s11 + $0x30] sm:$0xff]
      %v4265 = vld [vmem:[%s11 + $0x38] sm:$0xff]
      %v4266 = vld [vmem:[%s11 + $0x40] sm:$0xff]
      %v4267 = vld [vmem:[%s11 + $0x48] sm:$0xff]
      %v4268 = vld [vmem:[%s11 + $0x50] sm:$0xff]
      %v4269 = vld [vmem:[%s11 + $0x58] sm:$0xff]
      %v4270 = vld [vmem:[%s11 + $0x60] sm:$0xff]
      %v4271 = vld [vmem:[%s11 + $0x68] sm:$0xff]
      %v4272 = vld [vmem:[%s11 + $0x70] sm:$0xff]
      %v4273 = vld [vmem:[%s11 + $0x78] sm:$0xff]
      %v4274 = vld [vmem:[%s12] sm:$0x3]
      %v4276 = vlaneseq
      %v4277 = vshrl.u32 %v4276, 7
      %v4278 = vsub.s32 0, %v4277
      %v4279 = vrot.slane %v4274, %v4278
      %v4280 = vlaneseq
      %v4281 = vshrl.u32 %v4280, 7
      %v4282 = vsub.s32 1, %v4281
      %v4283 = vrot.slane %v4274, %v4282
      %v4287 = vsel %vm622, %v4242, 0
      %v4290 = vsel %vm622, %v4243, 0
      %v4293 = vsel %vm622, %v4244, 0
      %v4296 = vsel %vm622, %v4245, 0
      %v4299 = vsel %vm622, %v4246, 0
      %v4302 = vsel %vm622, %v4247, 0
      %v4305 = vsel %vm622, %v4248, 0
      %v4308 = vsel %vm622, %v4249, 0
      %v4311 = vsel %vm622, %v4250, 0
      %v4314 = vsel %vm622, %v4251, 0
      %v4317 = vsel %vm622, %v4252, 0
      %v4320 = vsel %vm622, %v4253, 0
      %v4323 = vsel %vm622, %v4254, 0
      %v4326 = vsel %vm622, %v4255, 0
      %v4329 = vsel %vm622, %v4256, 0
      %v4332 = vsel %vm622, %v4257, 0
      %4334 = vmatprep.subr.mxu0 %v4259
      %4335 = vmatpush1.msra.mxu0 %v4258
      %4336 = vmatprep.subr.mxu0 %v4261
      %4337 = vmatpush1.msra.mxu0 %v4260
      %4338 = vmatprep.subr.mxu0 %v4263
      %4339 = vmatpush1.msra.mxu0 %v4262
      %4340 = vmatprep.subr.mxu0 %v4265
      %4341 = vmatpush1.msra.mxu0 %v4264
      %4342 = vmatprep.subr.mxu0 %v4267
      %4343 = vmatpush1.msra.mxu0 %v4266
      %4344 = vmatprep.subr.mxu0 %v4269
      %4345 = vmatpush1.msra.mxu0 %v4268
      %4346 = vmatprep.subr.mxu0 %v4271
      %4347 = vmatpush1.msra.mxu0 %v4270
      %4348 = vmatprep.subr.mxu0 %v4273
      %4349 = vmatpush1.msra.mxu0 %v4272
      %4350 = vmatprep.subr.mxu0 0.0
      %4351 = vmatpush1.msra.mxu0 0.0
      %4352 = vmatprep.subr.mxu0 0.0
      %4353 = vmatpush1.msra.mxu0 0.0
      %4354 = vmatprep.subr.mxu0 0.0
      %4355 = vmatpush1.msra.mxu0 0.0
      %4356 = vmatprep.subr.mxu0 0.0
      %4357 = vmatpush1.msra.mxu0 0.0
      %4358 = vmatprep.subr.mxu0 0.0
      %4359 = vmatpush1.msra.mxu0 0.0
      %4360 = vmatprep.subr.mxu0 0.0
      %4361 = vmatpush1.msra.mxu0 0.0
      %4362 = vmatprep.subr.mxu0 0.0
      %4363 = vmatpush1.msra.mxu0 0.0
      %4364 = vmatprep.subr.mxu0 0.0
      %4365 = vmatpush1.msra.mxu0 0.0
      %4366 = vmatprep.subr.mxu0 0.0
      %4367 = vmatpush1.msra.mxu0 0.0
      %4368 = vmatprep.subr.mxu0 0.0
      %4369 = vmatpush1.msra.mxu0 0.0
      %4370 = vmatprep.subr.mxu0 0.0
      %4371 = vmatpush1.msra.mxu0 0.0
      %4372 = vmatprep.subr.mxu0 0.0
      %4373 = vmatpush1.msra.mxu0 0.0
      %4374 = vmatprep.subr.mxu0 0.0
      %4375 = vmatpush1.msra.mxu0 0.0
      %4376 = vmatprep.subr.mxu0 0.0
      %4377 = vmatpush1.msra.mxu0 0.0
      %4378 = vmatprep.subr.mxu0 0.0
      %4379 = vmatpush1.msra.mxu0 0.0
      %4380 = vmatprep.subr.mxu0 0.0
      %4381 = vmatpush1.msra.mxu0 0.0
      %4382 = vmatprep.subr.mxu0 0.0
      %4383 = vmatpush1.msra.mxu0 0.0
      %4384 = vmatprep.subr.mxu0 0.0
      %4385 = vmatpush1.msra.mxu0 0.0
      %4386 = vmatprep.subr.mxu0 0.0
      %4387 = vmatpush1.msra.mxu0 0.0
      %4388 = vmatprep.subr.mxu0 0.0
      %4389 = vmatpush1.msra.mxu0 0.0
      %4390 = vmatprep.subr.mxu0 0.0
      %4391 = vmatpush1.msra.mxu0 0.0
      %4392 = vmatprep.subr.mxu0 0.0
      %4393 = vmatpush1.msra.mxu0 0.0
      %4394 = vmatprep.subr.mxu0 0.0
      %4395 = vmatpush1.msra.mxu0 0.0
      %4396 = vmatprep.subr.mxu0 0.0
      %4397 = vmatpush1.msra.mxu0 0.0
      %4398 = vmatprep.mubr.f32.mxu0 0.0
      %4399 = vmatmul.mubr.f32.gmra.mrb[0].mxu0 %v4287
      %v4400 = vpop.f32.mrb[0].mxu0
      %v4401 = vadd.f32 %v4279, %v4400
      %v4402 = vpop.f32.mrb[0].mxu0
      %v4403 = vadd.f32 %v4283, %v4402
      %4404 = vmatprep.mubr.f32.mxu0 0.0
      %4405 = vmatmul.mubr.f32.gmra.mrb[0].mxu0 %v4290
      %v4406 = vpop.f32.mrb[0].mxu0
      %v4407 = vadd.f32 %v4279, %v4406
      %v4408 = vpop.f32.mrb[0].mxu0
      %v4409 = vadd.f32 %v4283, %v4408
      %4410 = vmatprep.mubr.f32.mxu0 0.0
      %4411 = vmatmul.mubr.f32.gmra.mrb[0].mxu0 %v4293
      %v4412 = vpop.f32.mrb[0].mxu0
      %v4413 = vadd.f32 %v4279, %v4412
      %v4414 = vpop.f32.mrb[0].mxu0
      %v4415 = vadd.f32 %v4283, %v4414
      %4416 = vmatprep.mubr.f32.mxu0 0.0
      %4417 = vmatmul.mubr.f32.gmra.mrb[0].mxu0 %v4296
      %v4418 = vpop.f32.mrb[0].mxu0
      %v4419 = vadd.f32 %v4279, %v4418
      %v4420 = vpop.f32.mrb[0].mxu0
      %v4421 = vadd.f32 %v4283, %v4420
      %4422 = vmatprep.mubr.f32.mxu0 0.0
      %4423 = vmatmul.mubr.f32.gmra.mrb[0].mxu0 %v4299
      %v4424 = vpop.f32.mrb[0].mxu0
      %v4425 = vadd.f32 %v4279, %v4424
      %v4426 = vpop.f32.mrb[0].mxu0
      %v4427 = vadd.f32 %v4283, %v4426
      %4428 = vmatprep.mubr.f32.mxu0 0.0
      %4429 = vmatmul.mubr.f32.gmra.mrb[0].mxu0 %v4302
      %v4430 = vpop.f32.mrb[0].mxu0
      %v4431 = vadd.f32 %v4279, %v4430
      %v4432 = vpop.f32.mrb[0].mxu0
      %v4433 = vadd.f32 %v4283, %v4432
      %4434 = vmatprep.mubr.f32.mxu0 0.0
      %4435 = vmatmul.mubr.f32.gmra.mrb[0].mxu0 %v4305
      %v4436 = vpop.f32.mrb[0].mxu0
      %v4437 = vadd.f32 %v4279, %v4436
      %v4438 = vpop.f32.mrb[0].mxu0
      %v4439 = vadd.f32 %v4283, %v4438
      %4440 = vmatprep.mubr.f32.mxu0 0.0
      %4441 = vmatmul.mubr.f32.gmra.mrb[0].mxu0 %v4308
      %v4442 = vpop.f32.mrb[0].mxu0
      %v4443 = vadd.f32 %v4279, %v4442
      %v4444 = vpop.f32.mrb[0].mxu0
      %v4445 = vadd.f32 %v4283, %v4444
      %4446 = vmatprep.mubr.f32.mxu0 0.0
      %4447 = vmatmul.mubr.f32.gmra.mrb[0].mxu0 %v4311
      %v4448 = vpop.f32.mrb[0].mxu0
      %v4449 = vadd.f32 %v4279, %v4448
      %v4450 = vpop.f32.mrb[0].mxu0
      %v4451 = vadd.f32 %v4283, %v4450
      %4452 = vmatprep.mubr.f32.mxu0 0.0
      %4453 = vmatmul.mubr.f32.gmra.mrb[0].mxu0 %v4314
      %v4454 = vpop.f32.mrb[0].mxu0
      %v4455 = vadd.f32 %v4279, %v4454
      %v4456 = vpop.f32.mrb[0].mxu0
      %v4457 = vadd.f32 %v4283, %v4456
      %4458 = vmatprep.mubr.f32.mxu0 0.0
      %4459 = vmatmul.mubr.f32.gmra.mrb[0].mxu0 %v4317
      %v4460 = vpop.f32.mrb[0].mxu0
      %v4461 = vadd.f32 %v4279, %v4460
      %v4462 = vpop.f32.mrb[0].mxu0
      %v4463 = vadd.f32 %v4283, %v4462
      %4464 = vmatprep.mubr.f32.mxu0 0.0
      %4465 = vmatmul.mubr.f32.gmra.mrb[0].mxu0 %v4320
      %v4466 = vpop.f32.mrb[0].mxu0
      %v4467 = vadd.f32 %v4279, %v4466
      %v4468 = vpop.f32.mrb[0].mxu0
      %v4469 = vadd.f32 %v4283, %v4468
      %4470 = vmatprep.mubr.f32.mxu0 0.0
      %4471 = vmatmul.mubr.f32.gmra.mrb[0].mxu0 %v4323
      %v4472 = vpop.f32.mrb[0].mxu0
      %v4473 = vadd.f32 %v4279, %v4472
      %v4474 = vpop.f32.mrb[0].mxu0
      %v4475 = vadd.f32 %v4283, %v4474
      %4476 = vmatprep.mubr.f32.mxu0 0.0
      %4477 = vmatmul.mubr.f32.gmra.mrb[0].mxu0 %v4326
      %v4478 = vpop.f32.mrb[0].mxu0
      %v4479 = vadd.f32 %v4279, %v4478
      %v4480 = vpop.f32.mrb[0].mxu0
      %v4481 = vadd.f32 %v4283, %v4480
      %4482 = vmatprep.mubr.f32.mxu0 0.0
      %4483 = vmatmul.mubr.f32.gmra.mrb[0].mxu0 %v4329
      %v4484 = vpop.f32.mrb[0].mxu0
      %v4485 = vadd.f32 %v4279, %v4484
      %v4486 = vpop.f32.mrb[0].mxu0
      %v4487 = vadd.f32 %v4283, %v4486
      %4488 = vmatprep.mubr.f32.mxu0 0.0
      %4489 = vmatmul.mubr.f32.gmra.mrb[0].mxu0 %v4332
      %v4490 = vpop.f32.mrb[0].mxu0
      %v4491 = vadd.f32 %v4279, %v4490
      %v4492 = vpop.f32.mrb[0].mxu0
      %v4493 = vadd.f32 %v4283, %v4492
      %4494 = vdwg.mxu0
      %v4495 = vmul.f32 %v4401, 0.5
      %v4496 = vmul.f32 %v4403, 0.5
      %v4497 = vmul.f32 %v4407, 0.5
      %v4498 = vmul.f32 %v4409, 0.5
      %v4499 = vmul.f32 %v4413, 0.5
      %v4500 = vmul.f32 %v4415, 0.5
      %v4501 = vmul.f32 %v4419, 0.5
      %v4502 = vmul.f32 %v4421, 0.5
      %v4503 = vmul.f32 %v4425, 0.5
      %v4504 = vmul.f32 %v4427, 0.5
      %v4505 = vmul.f32 %v4431, 0.5
      %v4506 = vmul.f32 %v4433, 0.5
      %v4507 = vmul.f32 %v4437, 0.5
      %v4508 = vmul.f32 %v4439, 0.5
      %v4509 = vmul.f32 %v4443, 0.5
      %v4510 = vmul.f32 %v4445, 0.5
      %v4511 = vmul.f32 %v4449, 0.5
      %v4512 = vmul.f32 %v4451, 0.5
      %v4513 = vmul.f32 %v4455, 0.5
      %v4514 = vmul.f32 %v4457, 0.5
      %v4515 = vmul.f32 %v4461, 0.5
      %v4516 = vmul.f32 %v4463, 0.5
      %v4517 = vmul.f32 %v4467, 0.5
      %v4518 = vmul.f32 %v4469, 0.5
      %v4519 = vmul.f32 %v4473, 0.5
      %v4520 = vmul.f32 %v4475, 0.5
      %v4521 = vmul.f32 %v4479, 0.5
      %v4522 = vmul.f32 %v4481, 0.5
      %v4523 = vmul.f32 %v4485, 0.5
      %v4524 = vmul.f32 %v4487, 0.5
      %v4525 = vmul.f32 %v4491, 0.5
      %v4526 = vmul.f32 %v4493, 0.5
      %v4527 = vmul.f32 %v4401, 0.70710677
      %v4528 = vmul.f32 %v4403, 0.70710677
      %v4529 = vmul.f32 %v4407, 0.70710677
      %v4530 = vmul.f32 %v4409, 0.70710677
      %v4531 = vmul.f32 %v4413, 0.70710677
      %v4532 = vmul.f32 %v4415, 0.70710677
      %v4533 = vmul.f32 %v4419, 0.70710677
      %v4534 = vmul.f32 %v4421, 0.70710677
      %v4535 = vmul.f32 %v4425, 0.70710677
      %v4536 = vmul.f32 %v4427, 0.70710677
      %v4537 = vmul.f32 %v4431, 0.70710677
      %v4538 = vmul.f32 %v4433, 0.70710677
      %v4539 = vmul.f32 %v4437, 0.70710677
      %v4540 = vmul.f32 %v4439, 0.70710677
      %v4541 = vmul.f32 %v4443, 0.70710677
      %v4542 = vmul.f32 %v4445, 0.70710677
      %v4543 = vmul.f32 %v4449, 0.70710677
      %v4544 = vmul.f32 %v4451, 0.70710677
      %v4545 = vmul.f32 %v4455, 0.70710677
      %v4546 = vmul.f32 %v4457, 0.70710677
      %v4547 = vmul.f32 %v4461, 0.70710677
      %v4548 = vmul.f32 %v4463, 0.70710677
      %v4549 = vmul.f32 %v4467, 0.70710677
      %v4550 = vmul.f32 %v4469, 0.70710677
      %v4551 = vmul.f32 %v4473, 0.70710677
      %v4552 = vmul.f32 %v4475, 0.70710677
      %v4553 = vmul.f32 %v4479, 0.70710677
      %v4554 = vmul.f32 %v4481, 0.70710677
      %v4555 = vmul.f32 %v4485, 0.70710677
      %v4556 = vmul.f32 %v4487, 0.70710677
      %v4557 = vmul.f32 %v4491, 0.70710677
      %v4558 = vmul.f32 %v4493, 0.70710677
      %vm4559 = vcmp.ge.f32.partialorder %v4527, 0.0
      %vm4560 = vcmp.ge.f32.partialorder %v4528, 0.0
      %vm4561 = vcmp.ge.f32.partialorder %v4529, 0.0
      %vm4562 = vcmp.ge.f32.partialorder %v4530, 0.0
      %vm4563 = vcmp.ge.f32.partialorder %v4531, 0.0
      %vm4564 = vcmp.ge.f32.partialorder %v4532, 0.0
      %vm4565 = vcmp.ge.f32.partialorder %v4533, 0.0
      %vm4566 = vcmp.ge.f32.partialorder %v4534, 0.0
      %vm4567 = vcmp.ge.f32.partialorder %v4535, 0.0
      %vm4568 = vcmp.ge.f32.partialorder %v4536, 0.0
      %vm4569 = vcmp.ge.f32.partialorder %v4537, 0.0
      %vm4570 = vcmp.ge.f32.partialorder %v4538, 0.0
      %vm4571 = vcmp.ge.f32.partialorder %v4539, 0.0
      %vm4572 = vcmp.ge.f32.partialorder %v4540, 0.0
      %vm4573 = vcmp.ge.f32.partialorder %v4541, 0.0
      %vm4574 = vcmp.ge.f32.partialorder %v4542, 0.0
      %vm4575 = vcmp.ge.f32.partialorder %v4543, 0.0
      %vm4576 = vcmp.ge.f32.partialorder %v4544, 0.0
      %vm4577 = vcmp.ge.f32.partialorder %v4545, 0.0
      %vm4578 = vcmp.ge.f32.partialorder %v4546, 0.0
      %vm4579 = vcmp.ge.f32.partialorder %v4547, 0.0
      %vm4580 = vcmp.ge.f32.partialorder %v4548, 0.0
      %vm4581 = vcmp.ge.f32.partialorder %v4549, 0.0
      %vm4582 = vcmp.ge.f32.partialorder %v4550, 0.0
      %vm4583 = vcmp.ge.f32.partialorder %v4551, 0.0
      %vm4584 = vcmp.ge.f32.partialorder %v4552, 0.0
      %vm4585 = vcmp.ge.f32.partialorder %v4553, 0.0
      %vm4586 = vcmp.ge.f32.partialorder %v4554, 0.0
      %vm4587 = vcmp.ge.f32.partialorder %v4555, 0.0
      %vm4588 = vcmp.ge.f32.partialorder %v4556, 0.0
      %vm4589 = vcmp.ge.f32.partialorder %v4557, 0.0
      %vm4590 = vcmp.ge.f32.partialorder %v4558, 0.0
      %v4591 = vsel %vm4559, 1.0, -1.0
      %v4592 = vsel %vm4560, 1.0, -1.0
      %v4593 = vsel %vm4561, 1.0, -1.0
      %v4594 = vsel %vm4562, 1.0, -1.0
      %v4595 = vsel %vm4563, 1.0, -1.0
      %v4596 = vsel %vm4564, 1.0, -1.0
      %v4597 = vsel %vm4565, 1.0, -1.0
      %v4598 = vsel %vm4566, 1.0, -1.0
      %v4599 = vsel %vm4567, 1.0, -1.0
      %v4600 = vsel %vm4568, 1.0, -1.0
      %v4601 = vsel %vm4569, 1.0, -1.0
      %v4602 = vsel %vm4570, 1.0, -1.0
      %v4603 = vsel %vm4571, 1.0, -1.0
      %v4604 = vsel %vm4572, 1.0, -1.0
      %v4605 = vsel %vm4573, 1.0, -1.0
      %v4606 = vsel %vm4574, 1.0, -1.0
      %v4607 = vsel %vm4575, 1.0, -1.0
      %v4608 = vsel %vm4576, 1.0, -1.0
      %v4609 = vsel %vm4577, 1.0, -1.0
      %v4610 = vsel %vm4578, 1.0, -1.0
      %v4611 = vsel %vm4579, 1.0, -1.0
      %v4612 = vsel %vm4580, 1.0, -1.0
      %v4613 = vsel %vm4581, 1.0, -1.0
      %v4614 = vsel %vm4582, 1.0, -1.0
      %v4615 = vsel %vm4583, 1.0, -1.0
      %v4616 = vsel %vm4584, 1.0, -1.0
      %v4617 = vsel %vm4585, 1.0, -1.0
      %v4618 = vsel %vm4586, 1.0, -1.0
      %v4619 = vsel %vm4587, 1.0, -1.0
      %v4620 = vsel %vm4588, 1.0, -1.0
      %v4621 = vsel %vm4589, 1.0, -1.0
      %v4622 = vsel %vm4590, 1.0, -1.0
      %v4623 = vand.u32 2147483647, %v4527
      %v4624 = vand.u32 2147483647, %v4528
      %v4625 = vand.u32 2147483647, %v4529
      %v4626 = vand.u32 2147483647, %v4530
      %v4627 = vand.u32 2147483647, %v4531
      %v4628 = vand.u32 2147483647, %v4532
      %v4629 = vand.u32 2147483647, %v4533
      %v4630 = vand.u32 2147483647, %v4534
      %v4631 = vand.u32 2147483647, %v4535
      %v4632 = vand.u32 2147483647, %v4536
      %v4633 = vand.u32 2147483647, %v4537
      %v4634 = vand.u32 2147483647, %v4538
      %v4635 = vand.u32 2147483647, %v4539
      %v4636 = vand.u32 2147483647, %v4540
      %v4637 = vand.u32 2147483647, %v4541
      %v4638 = vand.u32 2147483647, %v4542
      %v4639 = vand.u32 2147483647, %v4543
      %v4640 = vand.u32 2147483647, %v4544
      %v4641 = vand.u32 2147483647, %v4545
      %v4642 = vand.u32 2147483647, %v4546
      %v4643 = vand.u32 2147483647, %v4547
      %v4644 = vand.u32 2147483647, %v4548
      %v4645 = vand.u32 2147483647, %v4549
      %v4646 = vand.u32 2147483647, %v4550
      %v4647 = vand.u32 2147483647, %v4551
      %v4648 = vand.u32 2147483647, %v4552
      %v4649 = vand.u32 2147483647, %v4553
      %v4650 = vand.u32 2147483647, %v4554
      %v4651 = vand.u32 2147483647, %v4555
      %v4652 = vand.u32 2147483647, %v4556
      %v4653 = vand.u32 2147483647, %v4557
      %v4654 = vand.u32 2147483647, %v4558
      %v4655 = vmul.f32 %v4623, 0.3275911
      %v4656 = vmul.f32 %v4624, 0.3275911
      %v4657 = vmul.f32 %v4625, 0.3275911
      %v4658 = vmul.f32 %v4626, 0.3275911
      %v4659 = vmul.f32 %v4627, 0.3275911
      %v4660 = vmul.f32 %v4628, 0.3275911
      %v4661 = vmul.f32 %v4629, 0.3275911
      %v4662 = vmul.f32 %v4630, 0.3275911
      %v4663 = vmul.f32 %v4631, 0.3275911
      %v4664 = vmul.f32 %v4632, 0.3275911
      %v4665 = vmul.f32 %v4633, 0.3275911
      %v4666 = vmul.f32 %v4634, 0.3275911
      %v4667 = vmul.f32 %v4635, 0.3275911
      %v4668 = vmul.f32 %v4636, 0.3275911
      %v4669 = vmul.f32 %v4637, 0.3275911
      %v4670 = vmul.f32 %v4638, 0.3275911
      %v4671 = vmul.f32 %v4639, 0.3275911
      %v4672 = vmul.f32 %v4640, 0.3275911
      %v4673 = vmul.f32 %v4641, 0.3275911
      %v4674 = vmul.f32 %v4642, 0.3275911
      %v4675 = vmul.f32 %v4643, 0.3275911
      %v4676 = vmul.f32 %v4644, 0.3275911
      %v4677 = vmul.f32 %v4645, 0.3275911
      %v4678 = vmul.f32 %v4646, 0.3275911
      %v4679 = vmul.f32 %v4647, 0.3275911
      %v4680 = vmul.f32 %v4648, 0.3275911
      %v4681 = vmul.f32 %v4649, 0.3275911
      %v4682 = vmul.f32 %v4650, 0.3275911
      %v4683 = vmul.f32 %v4651, 0.3275911
      %v4684 = vmul.f32 %v4652, 0.3275911
      %v4685 = vmul.f32 %v4653, 0.3275911
      %v4686 = vmul.f32 %v4654, 0.3275911
      %v4687 = vadd.f32 %v4655, 1.0
      %v4688 = vadd.f32 %v4656, 1.0
      %v4689 = vadd.f32 %v4657, 1.0
      %v4690 = vadd.f32 %v4658, 1.0
      %v4691 = vadd.f32 %v4659, 1.0
      %v4692 = vadd.f32 %v4660, 1.0
      %v4693 = vadd.f32 %v4661, 1.0
      %v4694 = vadd.f32 %v4662, 1.0
      %v4695 = vadd.f32 %v4663, 1.0
      %v4696 = vadd.f32 %v4664, 1.0
      %v4697 = vadd.f32 %v4665, 1.0
      %v4698 = vadd.f32 %v4666, 1.0
      %v4699 = vadd.f32 %v4667, 1.0
      %v4700 = vadd.f32 %v4668, 1.0
      %v4701 = vadd.f32 %v4669, 1.0
      %v4702 = vadd.f32 %v4670, 1.0
      %v4703 = vadd.f32 %v4671, 1.0
      %v4704 = vadd.f32 %v4672, 1.0
      %v4705 = vadd.f32 %v4673, 1.0
      %v4706 = vadd.f32 %v4674, 1.0
      %v4707 = vadd.f32 %v4675, 1.0
      %v4708 = vadd.f32 %v4676, 1.0
      %v4709 = vadd.f32 %v4677, 1.0
      %v4710 = vadd.f32 %v4678, 1.0
      %v4711 = vadd.f32 %v4679, 1.0
      %v4712 = vadd.f32 %v4680, 1.0
      %v4713 = vadd.f32 %v4681, 1.0
      %v4714 = vadd.f32 %v4682, 1.0
      %v4715 = vadd.f32 %v4683, 1.0
      %v4716 = vadd.f32 %v4684, 1.0
      %v4717 = vadd.f32 %v4685, 1.0
      %v4718 = vadd.f32 %v4686, 1.0
      %v4719 = vrcp.pop %v4687
      %v4720 = vmul.f32 1.0, %v4719
      %v4721 = vrcp.pop %v4688
      %v4722 = vmul.f32 1.0, %v4721
      %v4723 = vrcp.pop %v4689
      %v4724 = vmul.f32 1.0, %v4723
      %v4725 = vrcp.pop %v4690
      %v4726 = vmul.f32 1.0, %v4725
      %v4727 = vrcp.pop %v4691
      %v4728 = vmul.f32 1.0, %v4727
      %v4729 = vrcp.pop %v4692
      %v4730 = vmul.f32 1.0, %v4729
      %v4731 = vrcp.pop %v4693
      %v4732 = vmul.f32 1.0, %v4731
      %v4733 = vrcp.pop %v4694
      %v4734 = vmul.f32 1.0, %v4733
      %v4735 = vrcp.pop %v4695
      %v4736 = vmul.f32 1.0, %v4735
      %v4737 = vrcp.pop %v4696
      %v4738 = vmul.f32 1.0, %v4737
      %v4739 = vrcp.pop %v4697
      %v4740 = vmul.f32 1.0, %v4739
      %v4741 = vrcp.pop %v4698
      %v4742 = vmul.f32 1.0, %v4741
      %v4743 = vrcp.pop %v4699
      %v4744 = vmul.f32 1.0, %v4743
      %v4745 = vrcp.pop %v4700
      %v4746 = vmul.f32 1.0, %v4745
      %v4747 = vrcp.pop %v4701
      %v4748 = vmul.f32 1.0, %v4747
      %v4749 = vrcp.pop %v4702
      %v4750 = vmul.f32 1.0, %v4749
      %v4751 = vrcp.pop %v4703
      %v4752 = vmul.f32 1.0, %v4751
      %v4753 = vrcp.pop %v4704
      %v4754 = vmul.f32 1.0, %v4753
      %v4755 = vrcp.pop %v4705
      %v4756 = vmul.f32 1.0, %v4755
      %v4757 = vrcp.pop %v4706
      %v4758 = vmul.f32 1.0, %v4757
      %v4759 = vrcp.pop %v4707
      %v4760 = vmul.f32 1.0, %v4759
      %v4761 = vrcp.pop %v4708
      %v4762 = vmul.f32 1.0, %v4761
      %v4763 = vrcp.pop %v4709
      %v4764 = vmul.f32 1.0, %v4763
      %v4765 = vrcp.pop %v4710
      %v4766 = vmul.f32 1.0, %v4765
      %v4767 = vrcp.pop %v4711
      %v4768 = vmul.f32 1.0, %v4767
      %v4769 = vrcp.pop %v4712
      %v4770 = vmul.f32 1.0, %v4769
      %v4771 = vrcp.pop %v4713
      %v4772 = vmul.f32 1.0, %v4771
      %v4773 = vrcp.pop %v4714
      %v4774 = vmul.f32 1.0, %v4773
      %v4775 = vrcp.pop %v4715
      %v4776 = vmul.f32 1.0, %v4775
      %v4777 = vrcp.pop %v4716
      %v4778 = vmul.f32 1.0, %v4777
      %v4779 = vrcp.pop %v4717
      %v4780 = vmul.f32 1.0, %v4779
      %v4781 = vrcp.pop %v4718
      %v4782 = vmul.f32 1.0, %v4781
      %v4783 = vmul.f32 %v4720, 1.0614054
      %v4784 = vmul.f32 %v4722, 1.0614054
      %v4785 = vmul.f32 %v4724, 1.0614054
      %v4786 = vmul.f32 %v4726, 1.0614054
      %v4787 = vmul.f32 %v4728, 1.0614054
      %v4788 = vmul.f32 %v4730, 1.0614054
      %v4789 = vmul.f32 %v4732, 1.0614054
      %v4790 = vmul.f32 %v4734, 1.0614054
      %v4791 = vmul.f32 %v4736, 1.0614054
      %v4792 = vmul.f32 %v4738, 1.0614054
      %v4793 = vmul.f32 %v4740, 1.0614054
      %v4794 = vmul.f32 %v4742, 1.0614054
      %v4795 = vmul.f32 %v4744, 1.0614054
      %v4796 = vmul.f32 %v4746, 1.0614054
      %v4797 = vmul.f32 %v4748, 1.0614054
      %v4798 = vmul.f32 %v4750, 1.0614054
      %v4799 = vmul.f32 %v4752, 1.0614054
      %v4800 = vmul.f32 %v4754, 1.0614054
      %v4801 = vmul.f32 %v4756, 1.0614054
      %v4802 = vmul.f32 %v4758, 1.0614054
      %v4803 = vmul.f32 %v4760, 1.0614054
      %v4804 = vmul.f32 %v4762, 1.0614054
      %v4805 = vmul.f32 %v4764, 1.0614054
      %v4806 = vmul.f32 %v4766, 1.0614054
      %v4807 = vmul.f32 %v4768, 1.0614054
      %v4808 = vmul.f32 %v4770, 1.0614054
      %v4809 = vmul.f32 %v4772, 1.0614054
      %v4810 = vmul.f32 %v4774, 1.0614054
      %v4811 = vmul.f32 %v4776, 1.0614054
      %v4812 = vmul.f32 %v4778, 1.0614054
      %v4813 = vmul.f32 %v4780, 1.0614054
      %v4814 = vmul.f32 %v4782, 1.0614054
      %v4815 = vadd.f32 %v4783, -1.4531521
      %v4816 = vadd.f32 %v4784, -1.4531521
      %v4817 = vadd.f32 %v4785, -1.4531521
      %v4818 = vadd.f32 %v4786, -1.4531521
      %v4819 = vadd.f32 %v4787, -1.4531521
      %v4820 = vadd.f32 %v4788, -1.4531521
      %v4821 = vadd.f32 %v4789, -1.4531521
      %v4822 = vadd.f32 %v4790, -1.4531521
      %v4823 = vadd.f32 %v4791, -1.4531521
      %v4824 = vadd.f32 %v4792, -1.4531521
      %v4825 = vadd.f32 %v4793, -1.4531521
      %v4826 = vadd.f32 %v4794, -1.4531521
      %v4827 = vadd.f32 %v4795, -1.4531521
      %v4828 = vadd.f32 %v4796, -1.4531521
      %v4829 = vadd.f32 %v4797, -1.4531521
      %v4830 = vadd.f32 %v4798, -1.4531521
      %v4831 = vadd.f32 %v4799, -1.4531521
      %v4832 = vadd.f32 %v4800, -1.4531521
      %v4833 = vadd.f32 %v4801, -1.4531521
      %v4834 = vadd.f32 %v4802, -1.4531521
      %v4835 = vadd.f32 %v4803, -1.4531521
      %v4836 = vadd.f32 %v4804, -1.4531521
      %v4837 = vadd.f32 %v4805, -1.4531521
      %v4838 = vadd.f32 %v4806, -1.4531521
      %v4839 = vadd.f32 %v4807, -1.4531521
      %v4840 = vadd.f32 %v4808, -1.4531521
      %v4841 = vadd.f32 %v4809, -1.4531521
      %v4842 = vadd.f32 %v4810, -1.4531521
      %v4843 = vadd.f32 %v4811, -1.4531521
      %v4844 = vadd.f32 %v4812, -1.4531521
      %v4845 = vadd.f32 %v4813, -1.4531521
      %v4846 = vadd.f32 %v4814, -1.4531521
      %v4847 = vmul.f32 %v4815, %v4720
      %v4848 = vmul.f32 %v4816, %v4722
      %v4849 = vmul.f32 %v4817, %v4724
      %v4850 = vmul.f32 %v4818, %v4726
      %v4851 = vmul.f32 %v4819, %v4728
      %v4852 = vmul.f32 %v4820, %v4730
      %v4853 = vmul.f32 %v4821, %v4732
      %v4854 = vmul.f32 %v4822, %v4734
      %v4855 = vmul.f32 %v4823, %v4736
      %v4856 = vmul.f32 %v4824, %v4738
      %v4857 = vmul.f32 %v4825, %v4740
      %v4858 = vmul.f32 %v4826, %v4742
      %v4859 = vmul.f32 %v4827, %v4744
      %v4860 = vmul.f32 %v4828, %v4746
      %v4861 = vmul.f32 %v4829, %v4748
      %v4862 = vmul.f32 %v4830, %v4750
      %v4863 = vmul.f32 %v4831, %v4752
      %v4864 = vmul.f32 %v4832, %v4754
      %v4865 = vmul.f32 %v4833, %v4756
      %v4866 = vmul.f32 %v4834, %v4758
      %v4867 = vmul.f32 %v4835, %v4760
      %v4868 = vmul.f32 %v4836, %v4762
      %v4869 = vmul.f32 %v4837, %v4764
      %v4870 = vmul.f32 %v4838, %v4766
      %v4871 = vmul.f32 %v4839, %v4768
      %v4872 = vmul.f32 %v4840, %v4770
      %v4873 = vmul.f32 %v4841, %v4772
      %v4874 = vmul.f32 %v4842, %v4774
      %v4875 = vmul.f32 %v4843, %v4776
      %v4876 = vmul.f32 %v4844, %v4778
      %v4877 = vmul.f32 %v4845, %v4780
      %v4878 = vmul.f32 %v4846, %v4782
      %v4879 = vadd.f32 %v4847, 1.4214138
      %v4880 = vadd.f32 %v4848, 1.4214138
      %v4881 = vadd.f32 %v4849, 1.4214138
      %v4882 = vadd.f32 %v4850, 1.4214138
      %v4883 = vadd.f32 %v4851, 1.4214138
      %v4884 = vadd.f32 %v4852, 1.4214138
      %v4885 = vadd.f32 %v4853, 1.4214138
      %v4886 = vadd.f32 %v4854, 1.4214138
      %v4887 = vadd.f32 %v4855, 1.4214138
      %v4888 = vadd.f32 %v4856, 1.4214138
      %v4889 = vadd.f32 %v4857, 1.4214138
      %v4890 = vadd.f32 %v4858, 1.4214138
      %v4891 = vadd.f32 %v4859, 1.4214138
      %v4892 = vadd.f32 %v4860, 1.4214138
      %v4893 = vadd.f32 %v4861, 1.4214138
      %v4894 = vadd.f32 %v4862, 1.4214138
      %v4895 = vadd.f32 %v4863, 1.4214138
      %v4896 = vadd.f32 %v4864, 1.4214138
      %v4897 = vadd.f32 %v4865, 1.4214138
      %v4898 = vadd.f32 %v4866, 1.4214138
      %v4899 = vadd.f32 %v4867, 1.4214138
      %v4900 = vadd.f32 %v4868, 1.4214138
      %v4901 = vadd.f32 %v4869, 1.4214138
      %v4902 = vadd.f32 %v4870, 1.4214138
      %v4903 = vadd.f32 %v4871, 1.4214138
      %v4904 = vadd.f32 %v4872, 1.4214138
      %v4905 = vadd.f32 %v4873, 1.4214138
      %v4906 = vadd.f32 %v4874, 1.4214138
      %v4907 = vadd.f32 %v4875, 1.4214138
      %v4908 = vadd.f32 %v4876, 1.4214138
      %v4909 = vadd.f32 %v4877, 1.4214138
      %v4910 = vadd.f32 %v4878, 1.4214138
      %v4911 = vmul.f32 %v4879, %v4720
      %v4912 = vmul.f32 %v4880, %v4722
      %v4913 = vmul.f32 %v4881, %v4724
      %v4914 = vmul.f32 %v4882, %v4726
      %v4915 = vmul.f32 %v4883, %v4728
      %v4916 = vmul.f32 %v4884, %v4730
      %v4917 = vmul.f32 %v4885, %v4732
      %v4918 = vmul.f32 %v4886, %v4734
      %v4919 = vmul.f32 %v4887, %v4736
      %v4920 = vmul.f32 %v4888, %v4738
      %v4921 = vmul.f32 %v4889, %v4740
      %v4922 = vmul.f32 %v4890, %v4742
      %v4923 = vmul.f32 %v4891, %v4744
      %v4924 = vmul.f32 %v4892, %v4746
      %v4925 = vmul.f32 %v4893, %v4748
      %v4926 = vmul.f32 %v4894, %v4750
      %v4927 = vmul.f32 %v4895, %v4752
      %v4928 = vmul.f32 %v4896, %v4754
      %v4929 = vmul.f32 %v4897, %v4756
      %v4930 = vmul.f32 %v4898, %v4758
      %v4931 = vmul.f32 %v4899, %v4760
      %v4932 = vmul.f32 %v4900, %v4762
      %v4933 = vmul.f32 %v4901, %v4764
      %v4934 = vmul.f32 %v4902, %v4766
      %v4935 = vmul.f32 %v4903, %v4768
      %v4936 = vmul.f32 %v4904, %v4770
      %v4937 = vmul.f32 %v4905, %v4772
      %v4938 = vmul.f32 %v4906, %v4774
      %v4939 = vmul.f32 %v4907, %v4776
      %v4940 = vmul.f32 %v4908, %v4778
      %v4941 = vmul.f32 %v4909, %v4780
      %v4942 = vmul.f32 %v4910, %v4782
      %v4943 = vadd.f32 %v4911, -0.28449672
      %v4944 = vadd.f32 %v4912, -0.28449672
      %v4945 = vadd.f32 %v4913, -0.28449672
      %v4946 = vadd.f32 %v4914, -0.28449672
      %v4947 = vadd.f32 %v4915, -0.28449672
      %v4948 = vadd.f32 %v4916, -0.28449672
      %v4949 = vadd.f32 %v4917, -0.28449672
      %v4950 = vadd.f32 %v4918, -0.28449672
      %v4951 = vadd.f32 %v4919, -0.28449672
      %v4952 = vadd.f32 %v4920, -0.28449672
      %v4953 = vadd.f32 %v4921, -0.28449672
      %v4954 = vadd.f32 %v4922, -0.28449672
      %v4955 = vadd.f32 %v4923, -0.28449672
      %v4956 = vadd.f32 %v4924, -0.28449672
      %v4957 = vadd.f32 %v4925, -0.28449672
      %v4958 = vadd.f32 %v4926, -0.28449672
      %v4959 = vadd.f32 %v4927, -0.28449672
      %v4960 = vadd.f32 %v4928, -0.28449672
      %v4961 = vadd.f32 %v4929, -0.28449672
      %v4962 = vadd.f32 %v4930, -0.28449672
      %v4963 = vadd.f32 %v4931, -0.28449672
      %v4964 = vadd.f32 %v4932, -0.28449672
      %v4965 = vadd.f32 %v4933, -0.28449672
      %v4966 = vadd.f32 %v4934, -0.28449672
      %v4967 = vadd.f32 %v4935, -0.28449672
      %v4968 = vadd.f32 %v4936, -0.28449672
      %v4969 = vadd.f32 %v4937, -0.28449672
      %v4970 = vadd.f32 %v4938, -0.28449672
      %v4971 = vadd.f32 %v4939, -0.28449672
      %v4972 = vadd.f32 %v4940, -0.28449672
      %v4973 = vadd.f32 %v4941, -0.28449672
      %v4974 = vadd.f32 %v4942, -0.28449672
      %v4975 = vmul.f32 %v4943, %v4720
      %v4976 = vmul.f32 %v4944, %v4722
      %v4977 = vmul.f32 %v4945, %v4724
      %v4978 = vmul.f32 %v4946, %v4726
      %v4979 = vmul.f32 %v4947, %v4728
      %v4980 = vmul.f32 %v4948, %v4730
      %v4981 = vmul.f32 %v4949, %v4732
      %v4982 = vmul.f32 %v4950, %v4734
      %v4983 = vmul.f32 %v4951, %v4736
      %v4984 = vmul.f32 %v4952, %v4738
      %v4985 = vmul.f32 %v4953, %v4740
      %v4986 = vmul.f32 %v4954, %v4742
      %v4987 = vmul.f32 %v4955, %v4744
      %v4988 = vmul.f32 %v4956, %v4746
      %v4989 = vmul.f32 %v4957, %v4748
      %v4990 = vmul.f32 %v4958, %v4750
      %v4991 = vmul.f32 %v4959, %v4752
      %v4992 = vmul.f32 %v4960, %v4754
      %v4993 = vmul.f32 %v4961, %v4756
      %v4994 = vmul.f32 %v4962, %v4758
      %v4995 = vmul.f32 %v4963, %v4760
      %v4996 = vmul.f32 %v4964, %v4762
      %v4997 = vmul.f32 %v4965, %v4764
      %v4998 = vmul.f32 %v4966, %v4766
      %v4999 = vmul.f32 %v4967, %v4768
      %v5000 = vmul.f32 %v4968, %v4770
      %v5001 = vmul.f32 %v4969, %v4772
      %v5002 = vmul.f32 %v4970, %v4774
      %v5003 = vmul.f32 %v4971, %v4776
      %v5004 = vmul.f32 %v4972, %v4778
      %v5005 = vmul.f32 %v4973, %v4780
      %v5006 = vmul.f32 %v4974, %v4782
      %v5007 = vadd.f32 %v4975, 0.2548296
      %v5008 = vadd.f32 %v4976, 0.2548296
      %v5009 = vadd.f32 %v4977, 0.2548296
      %v5010 = vadd.f32 %v4978, 0.2548296
      %v5011 = vadd.f32 %v4979, 0.2548296
      %v5012 = vadd.f32 %v4980, 0.2548296
      %v5013 = vadd.f32 %v4981, 0.2548296
      %v5014 = vadd.f32 %v4982, 0.2548296
      %v5015 = vadd.f32 %v4983, 0.2548296
      %v5016 = vadd.f32 %v4984, 0.2548296
      %v5017 = vadd.f32 %v4985, 0.2548296
      %v5018 = vadd.f32 %v4986, 0.2548296
      %v5019 = vadd.f32 %v4987, 0.2548296
      %v5020 = vadd.f32 %v4988, 0.2548296
      %v5021 = vadd.f32 %v4989, 0.2548296
      %v5022 = vadd.f32 %v4990, 0.2548296
      %v5023 = vadd.f32 %v4991, 0.2548296
      %v5024 = vadd.f32 %v4992, 0.2548296
      %v5025 = vadd.f32 %v4993, 0.2548296
      %v5026 = vadd.f32 %v4994, 0.2548296
      %v5027 = vadd.f32 %v4995, 0.2548296
      %v5028 = vadd.f32 %v4996, 0.2548296
      %v5029 = vadd.f32 %v4997, 0.2548296
      %v5030 = vadd.f32 %v4998, 0.2548296
      %v5031 = vadd.f32 %v4999, 0.2548296
      %v5032 = vadd.f32 %v5000, 0.2548296
      %v5033 = vadd.f32 %v5001, 0.2548296
      %v5034 = vadd.f32 %v5002, 0.2548296
      %v5035 = vadd.f32 %v5003, 0.2548296
      %v5036 = vadd.f32 %v5004, 0.2548296
      %v5037 = vadd.f32 %v5005, 0.2548296
      %v5038 = vadd.f32 %v5006, 0.2548296
      %v5039 = vmul.f32 %v5007, %v4720
      %v5040 = vmul.f32 %v5008, %v4722
      %v5041 = vmul.f32 %v5009, %v4724
      %v5042 = vmul.f32 %v5010, %v4726
      %v5043 = vmul.f32 %v5011, %v4728
      %v5044 = vmul.f32 %v5012, %v4730
      %v5045 = vmul.f32 %v5013, %v4732
      %v5046 = vmul.f32 %v5014, %v4734
      %v5047 = vmul.f32 %v5015, %v4736
      %v5048 = vmul.f32 %v5016, %v4738
      %v5049 = vmul.f32 %v5017, %v4740
      %v5050 = vmul.f32 %v5018, %v4742
      %v5051 = vmul.f32 %v5019, %v4744
      %v5052 = vmul.f32 %v5020, %v4746
      %v5053 = vmul.f32 %v5021, %v4748
      %v5054 = vmul.f32 %v5022, %v4750
      %v5055 = vmul.f32 %v5023, %v4752
      %v5056 = vmul.f32 %v5024, %v4754
      %v5057 = vmul.f32 %v5025, %v4756
      %v5058 = vmul.f32 %v5026, %v4758
      %v5059 = vmul.f32 %v5027, %v4760
      %v5060 = vmul.f32 %v5028, %v4762
      %v5061 = vmul.f32 %v5029, %v4764
      %v5062 = vmul.f32 %v5030, %v4766
      %v5063 = vmul.f32 %v5031, %v4768
      %v5064 = vmul.f32 %v5032, %v4770
      %v5065 = vmul.f32 %v5033, %v4772
      %v5066 = vmul.f32 %v5034, %v4774
      %v5067 = vmul.f32 %v5035, %v4776
      %v5068 = vmul.f32 %v5036, %v4778
      %v5069 = vmul.f32 %v5037, %v4780
      %v5070 = vmul.f32 %v5038, %v4782
      %v5071 = vsub.f32 0.0, %v4623
      %v5072 = vsub.f32 0.0, %v4624
      %v5073 = vsub.f32 0.0, %v4625
      %v5074 = vsub.f32 0.0, %v4626
      %v5075 = vsub.f32 0.0, %v4627
      %v5076 = vsub.f32 0.0, %v4628
      %v5077 = vsub.f32 0.0, %v4629
      %v5078 = vsub.f32 0.0, %v4630
      %v5079 = vsub.f32 0.0, %v4631
      %v5080 = vsub.f32 0.0, %v4632
      %v5081 = vsub.f32 0.0, %v4633
      %v5082 = vsub.f32 0.0, %v4634
      %v5083 = vsub.f32 0.0, %v4635
      %v5084 = vsub.f32 0.0, %v4636
      %v5085 = vsub.f32 0.0, %v4637
      %v5086 = vsub.f32 0.0, %v4638
      %v5087 = vsub.f32 0.0, %v4639
      %v5088 = vsub.f32 0.0, %v4640
      %v5089 = vsub.f32 0.0, %v4641
      %v5090 = vsub.f32 0.0, %v4642
      %v5091 = vsub.f32 0.0, %v4643
      %v5092 = vsub.f32 0.0, %v4644
      %v5093 = vsub.f32 0.0, %v4645
      %v5094 = vsub.f32 0.0, %v4646
      %v5095 = vsub.f32 0.0, %v4647
      %v5096 = vsub.f32 0.0, %v4648
      %v5097 = vsub.f32 0.0, %v4649
      %v5098 = vsub.f32 0.0, %v4650
      %v5099 = vsub.f32 0.0, %v4651
      %v5100 = vsub.f32 0.0, %v4652
      %v5101 = vsub.f32 0.0, %v4653
      %v5102 = vsub.f32 0.0, %v4654
      %v5103 = vmul.f32 %v5071, %v4623
      %v5104 = vmul.f32 %v5072, %v4624
      %v5105 = vmul.f32 %v5073, %v4625
      %v5106 = vmul.f32 %v5074, %v4626
      %v5107 = vmul.f32 %v5075, %v4627
      %v5108 = vmul.f32 %v5076, %v4628
      %v5109 = vmul.f32 %v5077, %v4629
      %v5110 = vmul.f32 %v5078, %v4630
      %v5111 = vmul.f32 %v5079, %v4631
      %v5112 = vmul.f32 %v5080, %v4632
      %v5113 = vmul.f32 %v5081, %v4633
      %v5114 = vmul.f32 %v5082, %v4634
      %v5115 = vmul.f32 %v5083, %v4635
      %v5116 = vmul.f32 %v5084, %v4636
      %v5117 = vmul.f32 %v5085, %v4637
      %v5118 = vmul.f32 %v5086, %v4638
      %v5119 = vmul.f32 %v5087, %v4639
      %v5120 = vmul.f32 %v5088, %v4640
      %v5121 = vmul.f32 %v5089, %v4641
      %v5122 = vmul.f32 %v5090, %v4642
      %v5123 = vmul.f32 %v5091, %v4643
      %v5124 = vmul.f32 %v5092, %v4644
      %v5125 = vmul.f32 %v5093, %v4645
      %v5126 = vmul.f32 %v5094, %v4646
      %v5127 = vmul.f32 %v5095, %v4647
      %v5128 = vmul.f32 %v5096, %v4648
      %v5129 = vmul.f32 %v5097, %v4649
      %v5130 = vmul.f32 %v5098, %v4650
      %v5131 = vmul.f32 %v5099, %v4651
      %v5132 = vmul.f32 %v5100, %v4652
      %v5133 = vmul.f32 %v5101, %v4653
      %v5134 = vmul.f32 %v5102, %v4654
      %v5135 = vmul.f32 %v5103, 1.442695
      %v5136 = vpow.pop %v5135
      %v5137 = vmul.f32 %v5104, 1.442695
      %v5138 = vpow.pop %v5137
      %v5139 = vmul.f32 %v5105, 1.442695
      %v5140 = vpow.pop %v5139
      %v5141 = vmul.f32 %v5106, 1.442695
      %v5142 = vpow.pop %v5141
      %v5143 = vmul.f32 %v5107, 1.442695
      %v5144 = vpow.pop %v5143
      %v5145 = vmul.f32 %v5108, 1.442695
      %v5146 = vpow.pop %v5145
      %v5147 = vmul.f32 %v5109, 1.442695
      %v5148 = vpow.pop %v5147
      %v5149 = vmul.f32 %v5110, 1.442695
      %v5150 = vpow.pop %v5149
      %v5151 = vmul.f32 %v5111, 1.442695
      %v5152 = vpow.pop %v5151
      %v5153 = vmul.f32 %v5112, 1.442695
      %v5154 = vpow.pop %v5153
      %v5155 = vmul.f32 %v5113, 1.442695
      %v5156 = vpow.pop %v5155
      %v5157 = vmul.f32 %v5114, 1.442695
      %v5158 = vpow.pop %v5157
      %v5159 = vmul.f32 %v5115, 1.442695
      %v5160 = vpow.pop %v5159
      %v5161 = vmul.f32 %v5116, 1.442695
      %v5162 = vpow.pop %v5161
      %v5163 = vmul.f32 %v5117, 1.442695
      %v5164 = vpow.pop %v5163
      %v5165 = vmul.f32 %v5118, 1.442695
      %v5166 = vpow.pop %v5165
      %v5167 = vmul.f32 %v5119, 1.442695
      %v5168 = vpow.pop %v5167
      %v5169 = vmul.f32 %v5120, 1.442695
      %v5170 = vpow.pop %v5169
      %v5171 = vmul.f32 %v5121, 1.442695
      %v5172 = vpow.pop %v5171
      %v5173 = vmul.f32 %v5122, 1.442695
      %v5174 = vpow.pop %v5173
      %v5175 = vmul.f32 %v5123, 1.442695
      %v5176 = vpow.pop %v5175
      %v5177 = vmul.f32 %v5124, 1.442695
      %v5178 = vpow.pop %v5177
      %v5179 = vmul.f32 %v5125, 1.442695
      %v5180 = vpow.pop %v5179
      %v5181 = vmul.f32 %v5126, 1.442695
      %v5182 = vpow.pop %v5181
      %v5183 = vmul.f32 %v5127, 1.442695
      %v5184 = vpow.pop %v5183
      %v5185 = vmul.f32 %v5128, 1.442695
      %v5186 = vpow.pop %v5185
      %v5187 = vmul.f32 %v5129, 1.442695
      %v5188 = vpow.pop %v5187
      %v5189 = vmul.f32 %v5130, 1.442695
      %v5190 = vpow.pop %v5189
      %v5191 = vmul.f32 %v5131, 1.442695
      %v5192 = vpow.pop %v5191
      %v5193 = vmul.f32 %v5132, 1.442695
      %v5194 = vpow.pop %v5193
      %v5195 = vmul.f32 %v5133, 1.442695
      %v5196 = vpow.pop %v5195
      %v5197 = vmul.f32 %v5134, 1.442695
      %v5198 = vpow.pop %v5197
      %v5199 = vmul.f32 %v5039, %v5136
      %v5200 = vmul.f32 %v5040, %v5138
      %v5201 = vmul.f32 %v5041, %v5140
      %v5202 = vmul.f32 %v5042, %v5142
      %v5203 = vmul.f32 %v5043, %v5144
      %v5204 = vmul.f32 %v5044, %v5146
      %v5205 = vmul.f32 %v5045, %v5148
      %v5206 = vmul.f32 %v5046, %v5150
      %v5207 = vmul.f32 %v5047, %v5152
      %v5208 = vmul.f32 %v5048, %v5154
      %v5209 = vmul.f32 %v5049, %v5156
      %v5210 = vmul.f32 %v5050, %v5158
      %v5211 = vmul.f32 %v5051, %v5160
      %v5212 = vmul.f32 %v5052, %v5162
      %v5213 = vmul.f32 %v5053, %v5164
      %v5214 = vmul.f32 %v5054, %v5166
      %v5215 = vmul.f32 %v5055, %v5168
      %v5216 = vmul.f32 %v5056, %v5170
      %v5217 = vmul.f32 %v5057, %v5172
      %v5218 = vmul.f32 %v5058, %v5174
      %v5219 = vmul.f32 %v5059, %v5176
      %v5220 = vmul.f32 %v5060, %v5178
      %v5221 = vmul.f32 %v5061, %v5180
      %v5222 = vmul.f32 %v5062, %v5182
      %v5223 = vmul.f32 %v5063, %v5184
      %v5224 = vmul.f32 %v5064, %v5186
      %v5225 = vmul.f32 %v5065, %v5188
      %v5226 = vmul.f32 %v5066, %v5190
      %v5227 = vmul.f32 %v5067, %v5192
      %v5228 = vmul.f32 %v5068, %v5194
      %v5229 = vmul.f32 %v5069, %v5196
      %v5230 = vmul.f32 %v5070, %v5198
      %v5231 = vsub.f32 1.0, %v5199
      %v5232 = vsub.f32 1.0, %v5200
      %v5233 = vsub.f32 1.0, %v5201
      %v5234 = vsub.f32 1.0, %v5202
      %v5235 = vsub.f32 1.0, %v5203
      %v5236 = vsub.f32 1.0, %v5204
      %v5237 = vsub.f32 1.0, %v5205
      %v5238 = vsub.f32 1.0, %v5206
      %v5239 = vsub.f32 1.0, %v5207
      %v5240 = vsub.f32 1.0, %v5208
      %v5241 = vsub.f32 1.0, %v5209
      %v5242 = vsub.f32 1.0, %v5210
      %v5243 = vsub.f32 1.0, %v5211
      %v5244 = vsub.f32 1.0, %v5212
      %v5245 = vsub.f32 1.0, %v5213
      %v5246 = vsub.f32 1.0, %v5214
      %v5247 = vsub.f32 1.0, %v5215
      %v5248 = vsub.f32 1.0, %v5216
      %v5249 = vsub.f32 1.0, %v5217
      %v5250 = vsub.f32 1.0, %v5218
      %v5251 = vsub.f32 1.0, %v5219
      %v5252 = vsub.f32 1.0, %v5220
      %v5253 = vsub.f32 1.0, %v5221
      %v5254 = vsub.f32 1.0, %v5222
      %v5255 = vsub.f32 1.0, %v5223
      %v5256 = vsub.f32 1.0, %v5224
      %v5257 = vsub.f32 1.0, %v5225
      %v5258 = vsub.f32 1.0, %v5226
      %v5259 = vsub.f32 1.0, %v5227
      %v5260 = vsub.f32 1.0, %v5228
      %v5261 = vsub.f32 1.0, %v5229
      %v5262 = vsub.f32 1.0, %v5230
      %v5263 = vmul.f32 %v4591, %v5231
      %v5264 = vmul.f32 %v4592, %v5232
      %v5265 = vmul.f32 %v4593, %v5233
      %v5266 = vmul.f32 %v4594, %v5234
      %v5267 = vmul.f32 %v4595, %v5235
      %v5268 = vmul.f32 %v4596, %v5236
      %v5269 = vmul.f32 %v4597, %v5237
      %v5270 = vmul.f32 %v4598, %v5238
      %v5271 = vmul.f32 %v4599, %v5239
      %v5272 = vmul.f32 %v4600, %v5240
      %v5273 = vmul.f32 %v4601, %v5241
      %v5274 = vmul.f32 %v4602, %v5242
      %v5275 = vmul.f32 %v4603, %v5243
      %v5276 = vmul.f32 %v4604, %v5244
      %v5277 = vmul.f32 %v4605, %v5245
      %v5278 = vmul.f32 %v4606, %v5246
      %v5279 = vmul.f32 %v4607, %v5247
      %v5280 = vmul.f32 %v4608, %v5248
      %v5281 = vmul.f32 %v4609, %v5249
      %v5282 = vmul.f32 %v4610, %v5250
      %v5283 = vmul.f32 %v4611, %v5251
      %v5284 = vmul.f32 %v4612, %v5252
      %v5285 = vmul.f32 %v4613, %v5253
      %v5286 = vmul.f32 %v4614, %v5254
      %v5287 = vmul.f32 %v4615, %v5255
      %v5288 = vmul.f32 %v4616, %v5256
      %v5289 = vmul.f32 %v4617, %v5257
      %v5290 = vmul.f32 %v4618, %v5258
      %v5291 = vmul.f32 %v4619, %v5259
      %v5292 = vmul.f32 %v4620, %v5260
      %v5293 = vmul.f32 %v4621, %v5261
      %v5294 = vmul.f32 %v4622, %v5262
      %v5295 = vadd.f32 %v5263, 1.0
      %v5296 = vadd.f32 %v5264, 1.0
      %v5297 = vadd.f32 %v5265, 1.0
      %v5298 = vadd.f32 %v5266, 1.0
      %v5299 = vadd.f32 %v5267, 1.0
      %v5300 = vadd.f32 %v5268, 1.0
      %v5301 = vadd.f32 %v5269, 1.0
      %v5302 = vadd.f32 %v5270, 1.0
      %v5303 = vadd.f32 %v5271, 1.0
      %v5304 = vadd.f32 %v5272, 1.0
      %v5305 = vadd.f32 %v5273, 1.0
      %v5306 = vadd.f32 %v5274, 1.0
      %v5307 = vadd.f32 %v5275, 1.0
      %v5308 = vadd.f32 %v5276, 1.0
      %v5309 = vadd.f32 %v5277, 1.0
      %v5310 = vadd.f32 %v5278, 1.0
      %v5311 = vadd.f32 %v5279, 1.0
      %v5312 = vadd.f32 %v5280, 1.0
      %v5313 = vadd.f32 %v5281, 1.0
      %v5314 = vadd.f32 %v5282, 1.0
      %v5315 = vadd.f32 %v5283, 1.0
      %v5316 = vadd.f32 %v5284, 1.0
      %v5317 = vadd.f32 %v5285, 1.0
      %v5318 = vadd.f32 %v5286, 1.0
      %v5319 = vadd.f32 %v5287, 1.0
      %v5320 = vadd.f32 %v5288, 1.0
      %v5321 = vadd.f32 %v5289, 1.0
      %v5322 = vadd.f32 %v5290, 1.0
      %v5323 = vadd.f32 %v5291, 1.0
      %v5324 = vadd.f32 %v5292, 1.0
      %v5325 = vadd.f32 %v5293, 1.0
      %v5326 = vadd.f32 %v5294, 1.0
      %v5327 = vmul.f32 %v4495, %v5295
      %v5328 = vmul.f32 %v4496, %v5296
      %v5329 = vmul.f32 %v4497, %v5297
      %v5330 = vmul.f32 %v4498, %v5298
      %v5331 = vmul.f32 %v4499, %v5299
      %v5332 = vmul.f32 %v4500, %v5300
      %v5333 = vmul.f32 %v4501, %v5301
      %v5334 = vmul.f32 %v4502, %v5302
      %v5335 = vmul.f32 %v4503, %v5303
      %v5336 = vmul.f32 %v4504, %v5304
      %v5337 = vmul.f32 %v4505, %v5305
      %v5338 = vmul.f32 %v4506, %v5306
      %v5339 = vmul.f32 %v4507, %v5307
      %v5340 = vmul.f32 %v4508, %v5308
      %v5341 = vmul.f32 %v4509, %v5309
      %v5342 = vmul.f32 %v4510, %v5310
      %v5343 = vmul.f32 %v4511, %v5311
      %v5344 = vmul.f32 %v4512, %v5312
      %v5345 = vmul.f32 %v4513, %v5313
      %v5346 = vmul.f32 %v4514, %v5314
      %v5347 = vmul.f32 %v4515, %v5315
      %v5348 = vmul.f32 %v4516, %v5316
      %v5349 = vmul.f32 %v4517, %v5317
      %v5350 = vmul.f32 %v4518, %v5318
      %v5351 = vmul.f32 %v4519, %v5319
      %v5352 = vmul.f32 %v4520, %v5320
      %v5353 = vmul.f32 %v4521, %v5321
      %v5354 = vmul.f32 %v4522, %v5322
      %v5355 = vmul.f32 %v4523, %v5323
      %v5356 = vmul.f32 %v4524, %v5324
      %v5357 = vmul.f32 %v4525, %v5325
      %v5358 = vmul.f32 %v4526, %v5326
      %v5359 = vld [vmem:[%s13] sm:$0xff]
      %v5360 = vld [vmem:[%s13 + $0x8] sm:$0xff]
      %v5361 = vld [vmem:[%s13 + $0x10] sm:$0xff]
      %v5362 = vld [vmem:[%s13 + $0x18] sm:$0xff]
      %v5363 = vld [vmem:[%s13 + $0x20] sm:$0xff]
      %v5364 = vld [vmem:[%s13 + $0x28] sm:$0xff]
      %v5365 = vld [vmem:[%s13 + $0x30] sm:$0xff]
      %v5366 = vld [vmem:[%s13 + $0x38] sm:$0xff]
      %v5367 = vld [vmem:[%s13 + $0x40] sm:$0xff]
      %v5368 = vld [vmem:[%s13 + $0x48] sm:$0xff]
      %v5369 = vld [vmem:[%s13 + $0x50] sm:$0xff]
      %v5370 = vld [vmem:[%s13 + $0x58] sm:$0xff]
      %v5371 = vld [vmem:[%s13 + $0x60] sm:$0xff]
      %v5372 = vld [vmem:[%s13 + $0x68] sm:$0xff]
      %v5373 = vld [vmem:[%s13 + $0x70] sm:$0xff]
      %v5374 = vld [vmem:[%s13 + $0x78] sm:$0xff]
      %v5375 = vld [vmem:[%s13 + $0x80] sm:$0xff]
      %v5376 = vld [vmem:[%s13 + $0x88] sm:$0xff]
      %v5377 = vld [vmem:[%s13 + $0x90] sm:$0xff]
      %v5378 = vld [vmem:[%s13 + $0x98] sm:$0xff]
      %v5379 = vld [vmem:[%s13 + $0xa0] sm:$0xff]
      %v5380 = vld [vmem:[%s13 + $0xa8] sm:$0xff]
      %v5381 = vld [vmem:[%s13 + $0xb0] sm:$0xff]
      %v5382 = vld [vmem:[%s13 + $0xb8] sm:$0xff]
      %v5383 = vld [vmem:[%s13 + $0xc0] sm:$0xff]
      %v5384 = vld [vmem:[%s13 + $0xc8] sm:$0xff]
      %v5385 = vld [vmem:[%s13 + $0xd0] sm:$0xff]
      %v5386 = vld [vmem:[%s13 + $0xd8] sm:$0xff]
      %v5387 = vld [vmem:[%s13 + $0xe0] sm:$0xff]
      %v5388 = vld [vmem:[%s13 + $0xe8] sm:$0xff]
      %v5389 = vld [vmem:[%s13 + $0xf0] sm:$0xff]
      %v5390 = vld [vmem:[%s13 + $0xf8] sm:$0xff]
      %5391 = vmatprep.subr.mxu0 0.0
      %5392 = vmatpush1.msra.mxu0 %v5359
      %5393 = vmatprep.subr.mxu0 0.0
      %5394 = vmatpush1.msra.mxu0 %v5360
      %5395 = vmatprep.subr.mxu0 0.0
      %5396 = vmatpush1.msra.mxu0 %v5361
      %5397 = vmatprep.subr.mxu0 0.0
      %5398 = vmatpush1.msra.mxu0 %v5362
      %5399 = vmatprep.subr.mxu0 0.0
      %5400 = vmatpush1.msra.mxu0 %v5363
      %5401 = vmatprep.subr.mxu0 0.0
      %5402 = vmatpush1.msra.mxu0 %v5364
      %5403 = vmatprep.subr.mxu0 0.0
      %5404 = vmatpush1.msra.mxu0 %v5365
      %5405 = vmatprep.subr.mxu0 0.0
      %5406 = vmatpush1.msra.mxu0 %v5366
      %5407 = vmatprep.subr.mxu0 0.0
      %5408 = vmatpush1.msra.mxu0 %v5367
      %5409 = vmatprep.subr.mxu0 0.0
      %5410 = vmatpush1.msra.mxu0 %v5368
      %5411 = vmatprep.subr.mxu0 0.0
      %5412 = vmatpush1.msra.mxu0 %v5369
      %5413 = vmatprep.subr.mxu0 0.0
      %5414 = vmatpush1.msra.mxu0 %v5370
      %5415 = vmatprep.subr.mxu0 0.0
      %5416 = vmatpush1.msra.mxu0 %v5371
      %5417 = vmatprep.subr.mxu0 0.0
      %5418 = vmatpush1.msra.mxu0 %v5372
      %5419 = vmatprep.subr.mxu0 0.0
      %5420 = vmatpush1.msra.mxu0 %v5373
      %5421 = vmatprep.subr.mxu0 0.0
      %5422 = vmatpush1.msra.mxu0 %v5374
      %5423 = vmatprep.subr.mxu0 0.0
      %5424 = vmatpush1.msra.mxu0 %v5375
      %5425 = vmatprep.subr.mxu0 0.0
      %5426 = vmatpush1.msra.mxu0 %v5376
      %5427 = vmatprep.subr.mxu0 0.0
      %5428 = vmatpush1.msra.mxu0 %v5377
      %5429 = vmatprep.subr.mxu0 0.0
      %5430 = vmatpush1.msra.mxu0 %v5378
      %5431 = vmatprep.subr.mxu0 0.0
      %5432 = vmatpush1.msra.mxu0 %v5379
      %5433 = vmatprep.subr.mxu0 0.0
      %5434 = vmatpush1.msra.mxu0 %v5380
      %5435 = vmatprep.subr.mxu0 0.0
      %5436 = vmatpush1.msra.mxu0 %v5381
      %5437 = vmatprep.subr.mxu0 0.0
      %5438 = vmatpush1.msra.mxu0 %v5382
      %5439 = vmatprep.subr.mxu0 0.0
      %5440 = vmatpush1.msra.mxu0 %v5383
      %5441 = vmatprep.subr.mxu0 0.0
      %5442 = vmatpush1.msra.mxu0 %v5384
      %5443 = vmatprep.subr.mxu0 0.0
      %5444 = vmatpush1.msra.mxu0 %v5385
      %5445 = vmatprep.subr.mxu0 0.0
      %5446 = vmatpush1.msra.mxu0 %v5386
      %5447 = vmatprep.subr.mxu0 0.0
      %5448 = vmatpush1.msra.mxu0 %v5387
      %5449 = vmatprep.subr.mxu0 0.0
      %5450 = vmatpush1.msra.mxu0 %v5388
      %5451 = vmatprep.subr.mxu0 0.0
      %5452 = vmatpush1.msra.mxu0 %v5389
      %5453 = vmatprep.subr.mxu0 0.0
      %5454 = vmatpush1.msra.mxu0 %v5390
      %5455 = vmatprep.mubr.f32.mxu0 %v5328
      %5456 = vmatmul.mubr.f32.gmra.mrb[0].mxu0 %v5327
      %v5457 = vpop.f32.mrb[0].mxu0
      %v5458 = vadd.f32 0.0, %v5457
      %v5459 = vpop.f32.mrb[0].mxu0
      %5460 = vmatprep.mubr.f32.mxu0 %v5330
      %5461 = vmatmul.mubr.f32.gmra.mrb[0].mxu0 %v5329
      %v5462 = vpop.f32.mrb[0].mxu0
      %v5463 = vadd.f32 0.0, %v5462
      %v5464 = vpop.f32.mrb[0].mxu0
      %5465 = vmatprep.mubr.f32.mxu0 %v5332
      %5466 = vmatmul.mubr.f32.gmra.mrb[0].mxu0 %v5331
      %v5467 = vpop.f32.mrb[0].mxu0
      %v5468 = vadd.f32 0.0, %v5467
      %v5469 = vpop.f32.mrb[0].mxu0
      %5470 = vmatprep.mubr.f32.mxu0 %v5334
      %5471 = vmatmul.mubr.f32.gmra.mrb[0].mxu0 %v5333
      %v5472 = vpop.f32.mrb[0].mxu0
      %v5473 = vadd.f32 0.0, %v5472
      %v5474 = vpop.f32.mrb[0].mxu0
      %5475 = vmatprep.mubr.f32.mxu0 %v5336
      %5476 = vmatmul.mubr.f32.gmra.mrb[0].mxu0 %v5335
      %v5477 = vpop.f32.mrb[0].mxu0
      %v5478 = vadd.f32 0.0, %v5477
      %v5479 = vpop.f32.mrb[0].mxu0
      %5480 = vmatprep.mubr.f32.mxu0 %v5338
      %5481 = vmatmul.mubr.f32.gmra.mrb[0].mxu0 %v5337
      %v5482 = vpop.f32.mrb[0].mxu0
      %v5483 = vadd.f32 0.0, %v5482
      %v5484 = vpop.f32.mrb[0].mxu0
      %5485 = vmatprep.mubr.f32.mxu0 %v5340
      %5486 = vmatmul.mubr.f32.gmra.mrb[0].mxu0 %v5339
      %v5487 = vpop.f32.mrb[0].mxu0
      %v5488 = vadd.f32 0.0, %v5487
      %v5489 = vpop.f32.mrb[0].mxu0
      %5490 = vmatprep.mubr.f32.mxu0 %v5342
      %5491 = vmatmul.mubr.f32.gmra.mrb[0].mxu0 %v5341
      %v5492 = vpop.f32.mrb[0].mxu0
      %v5493 = vadd.f32 0.0, %v5492
      %v5494 = vpop.f32.mrb[0].mxu0
      %5495 = vmatprep.mubr.f32.mxu0 %v5344
      %5496 = vmatmul.mubr.f32.gmra.mrb[0].mxu0 %v5343
      %v5497 = vpop.f32.mrb[0].mxu0
      %v5498 = vadd.f32 0.0, %v5497
      %v5499 = vpop.f32.mrb[0].mxu0
      %5500 = vmatprep.mubr.f32.mxu0 %v5346
      %5501 = vmatmul.mubr.f32.gmra.mrb[0].mxu0 %v5345
      %v5502 = vpop.f32.mrb[0].mxu0
      %v5503 = vadd.f32 0.0, %v5502
      %v5504 = vpop.f32.mrb[0].mxu0
      %5505 = vmatprep.mubr.f32.mxu0 %v5348
      %5506 = vmatmul.mubr.f32.gmra.mrb[0].mxu0 %v5347
      %v5507 = vpop.f32.mrb[0].mxu0
      %v5508 = vadd.f32 0.0, %v5507
      %v5509 = vpop.f32.mrb[0].mxu0
      %5510 = vmatprep.mubr.f32.mxu0 %v5350
      %5511 = vmatmul.mubr.f32.gmra.mrb[0].mxu0 %v5349
      %v5512 = vpop.f32.mrb[0].mxu0
      %v5513 = vadd.f32 0.0, %v5512
      %v5514 = vpop.f32.mrb[0].mxu0
      %5515 = vmatprep.mubr.f32.mxu0 %v5352
      %5516 = vmatmul.mubr.f32.gmra.mrb[0].mxu0 %v5351
      %v5517 = vpop.f32.mrb[0].mxu0
      %v5518 = vadd.f32 0.0, %v5517
      %v5519 = vpop.f32.mrb[0].mxu0
      %5520 = vmatprep.mubr.f32.mxu0 %v5354
      %5521 = vmatmul.mubr.f32.gmra.mrb[0].mxu0 %v5353
      %v5522 = vpop.f32.mrb[0].mxu0
      %v5523 = vadd.f32 0.0, %v5522
      %v5524 = vpop.f32.mrb[0].mxu0
      %5525 = vmatprep.mubr.f32.mxu0 %v5356
      %5526 = vmatmul.mubr.f32.gmra.mrb[0].mxu0 %v5355
      %v5527 = vpop.f32.mrb[0].mxu0
      %v5528 = vadd.f32 0.0, %v5527
      %v5529 = vpop.f32.mrb[0].mxu0
      %5530 = vmatprep.mubr.f32.mxu0 %v5358
      %5531 = vmatmul.mubr.f32.gmra.mrb[0].mxu0 %v5357
      %v5532 = vpop.f32.mrb[0].mxu0
      %v5533 = vadd.f32 0.0, %v5532
      %v5534 = vpop.f32.mrb[0].mxu0
      %5535 = vdwg.mxu0
      %v5536 = vadd.f32 %v3988, %v5458
      %v5537 = vadd.f32 %v3989, %v5463
      %v5538 = vadd.f32 %v3990, %v5468
      %v5539 = vadd.f32 %v3991, %v5473
      %v5540 = vadd.f32 %v3992, %v5478
      %v5541 = vadd.f32 %v3993, %v5483
      %v5542 = vadd.f32 %v3994, %v5488
      %v5543 = vadd.f32 %v3995, %v5493
      %v5544 = vadd.f32 %v3996, %v5498
      %v5545 = vadd.f32 %v3997, %v5503
      %v5546 = vadd.f32 %v3998, %v5508
      %v5547 = vadd.f32 %v3999, %v5513
      %v5548 = vadd.f32 %v4000, %v5518
      %v5549 = vadd.f32 %v4001, %v5523
      %v5550 = vadd.f32 %v4002, %v5528
      %v5551 = vadd.f32 %v4003, %v5533
      %v5552 = vld [vmem:[%s14] sm:$0x1]
      %v5554 = vlaneseq
      %v5555 = vshrl.u32 %v5554, 7
      %v5556 = vsub.s32 0, %v5555
      %v5557 = vrot.slane %v5552, %v5556
      %v5559 = vadd.f32 %v5536, %v5557
      %v5560 = vadd.f32 %v5537, %v5557
      %v5561 = vadd.f32 %v5538, %v5557
      %v5562 = vadd.f32 %v5539, %v5557
      %v5563 = vadd.f32 %v5540, %v5557
      %v5564 = vadd.f32 %v5541, %v5557
      %v5565 = vadd.f32 %v5542, %v5557
      %v5566 = vadd.f32 %v5543, %v5557
      %v5567 = vadd.f32 %v5544, %v5557
      %v5568 = vadd.f32 %v5545, %v5557
      %v5569 = vadd.f32 %v5546, %v5557
      %v5570 = vadd.f32 %v5547, %v5557
      %v5571 = vadd.f32 %v5548, %v5557
      %v5572 = vadd.f32 %v5549, %v5557
      %v5573 = vadd.f32 %v5550, %v5557
      %v5574 = vadd.f32 %v5551, %v5557
      %s5575 = scalar_lea.vmem %s3, 1
      %v5576 = vld [vmem:[%s5575] sm:$0x1]
      %s5577 = scalar_lea.vmem %s4, 1
      %v5578 = vld [vmem:[%s5577] sm:$0x1]
      %v5579 = vsel %vm622, %v5559, 0.0
      %5580 = vadd.xlane.f32.xlu0 %v5579
      %v5581 = vpop.xlane.xlu0 %5580
      %v5582 = vsel %vm622, %v5560, 0.0
      %5583 = vadd.xlane.f32.xlu0 %v5582
      %v5584 = vpop.xlane.xlu0 %5583
      %v5585 = vsel %vm622, %v5561, 0.0
      %5586 = vadd.xlane.f32.xlu0 %v5585
      %v5587 = vpop.xlane.xlu0 %5586
      %v5588 = vsel %vm622, %v5562, 0.0
      %5589 = vadd.xlane.f32.xlu0 %v5588
      %v5590 = vpop.xlane.xlu0 %5589
      %v5591 = vsel %vm622, %v5563, 0.0
      %5592 = vadd.xlane.f32.xlu0 %v5591
      %v5593 = vpop.xlane.xlu0 %5592
      %v5594 = vsel %vm622, %v5564, 0.0
      %5595 = vadd.xlane.f32.xlu0 %v5594
      %v5596 = vpop.xlane.xlu0 %5595
      %v5597 = vsel %vm622, %v5565, 0.0
      %5598 = vadd.xlane.f32.xlu0 %v5597
      %v5599 = vpop.xlane.xlu0 %5598
      %v5600 = vsel %vm622, %v5566, 0.0
      %5601 = vadd.xlane.f32.xlu0 %v5600
      %v5602 = vpop.xlane.xlu0 %5601
      %v5603 = vsel %vm622, %v5567, 0.0
      %5604 = vadd.xlane.f32.xlu0 %v5603
      %v5605 = vpop.xlane.xlu0 %5604
      %v5606 = vsel %vm622, %v5568, 0.0
      %5607 = vadd.xlane.f32.xlu0 %v5606
      %v5608 = vpop.xlane.xlu0 %5607
      %v5609 = vsel %vm622, %v5569, 0.0
      %5610 = vadd.xlane.f32.xlu0 %v5609
      %v5611 = vpop.xlane.xlu0 %5610
      %v5612 = vsel %vm622, %v5570, 0.0
      %5613 = vadd.xlane.f32.xlu0 %v5612
      %v5614 = vpop.xlane.xlu0 %5613
      %v5615 = vsel %vm622, %v5571, 0.0
      %5616 = vadd.xlane.f32.xlu0 %v5615
      %v5617 = vpop.xlane.xlu0 %5616
      %v5618 = vsel %vm622, %v5572, 0.0
      %5619 = vadd.xlane.f32.xlu0 %v5618
      %v5620 = vpop.xlane.xlu0 %5619
      %v5621 = vsel %vm622, %v5573, 0.0
      %5622 = vadd.xlane.f32.xlu0 %v5621
      %v5623 = vpop.xlane.xlu0 %5622
      %v5624 = vsel %vm622, %v5574, 0.0
      %5625 = vadd.xlane.f32.xlu0 %v5624
      %v5626 = vpop.xlane.xlu0 %5625
      %v5627 = vmul.f32 %v5581, %v671
      %v5628 = vmul.f32 %v5584, %v671
      %v5629 = vmul.f32 %v5587, %v671
      %v5630 = vmul.f32 %v5590, %v671
      %v5631 = vmul.f32 %v5593, %v671
      %v5632 = vmul.f32 %v5596, %v671
      %v5633 = vmul.f32 %v5599, %v671
      %v5634 = vmul.f32 %v5602, %v671
      %v5635 = vmul.f32 %v5605, %v671
      %v5636 = vmul.f32 %v5608, %v671
      %v5637 = vmul.f32 %v5611, %v671
      %v5638 = vmul.f32 %v5614, %v671
      %v5639 = vmul.f32 %v5617, %v671
      %v5640 = vmul.f32 %v5620, %v671
      %v5641 = vmul.f32 %v5623, %v671
      %v5642 = vmul.f32 %v5626, %v671
      %v5643 = vsub.f32 %v5559, %v5627
      %v5644 = vsub.f32 %v5560, %v5628
      %v5645 = vsub.f32 %v5561, %v5629
      %v5646 = vsub.f32 %v5562, %v5630
      %v5647 = vsub.f32 %v5563, %v5631
      %v5648 = vsub.f32 %v5564, %v5632
      %v5649 = vsub.f32 %v5565, %v5633
      %v5650 = vsub.f32 %v5566, %v5634
      %v5651 = vsub.f32 %v5567, %v5635
      %v5652 = vsub.f32 %v5568, %v5636
      %v5653 = vsub.f32 %v5569, %v5637
      %v5654 = vsub.f32 %v5570, %v5638
      %v5655 = vsub.f32 %v5571, %v5639
      %v5656 = vsub.f32 %v5572, %v5640
      %v5657 = vsub.f32 %v5573, %v5641
      %v5658 = vsub.f32 %v5574, %v5642
      %v5659 = vmul.f32 %v5643, %v5643
      %v5660 = vmul.f32 %v5644, %v5644
      %v5661 = vmul.f32 %v5645, %v5645
      %v5662 = vmul.f32 %v5646, %v5646
      %v5663 = vmul.f32 %v5647, %v5647
      %v5664 = vmul.f32 %v5648, %v5648
      %v5665 = vmul.f32 %v5649, %v5649
      %v5666 = vmul.f32 %v5650, %v5650
      %v5667 = vmul.f32 %v5651, %v5651
      %v5668 = vmul.f32 %v5652, %v5652
      %v5669 = vmul.f32 %v5653, %v5653
      %v5670 = vmul.f32 %v5654, %v5654
      %v5671 = vmul.f32 %v5655, %v5655
      %v5672 = vmul.f32 %v5656, %v5656
      %v5673 = vmul.f32 %v5657, %v5657
      %v5674 = vmul.f32 %v5658, %v5658
      %v5675 = vsel %vm622, %v5659, 0.0
      %5676 = vadd.xlane.f32.xlu0 %v5675
      %v5677 = vpop.xlane.xlu0 %5676
      %v5678 = vsel %vm622, %v5660, 0.0
      %5679 = vadd.xlane.f32.xlu0 %v5678
      %v5680 = vpop.xlane.xlu0 %5679
      %v5681 = vsel %vm622, %v5661, 0.0
      %5682 = vadd.xlane.f32.xlu0 %v5681
      %v5683 = vpop.xlane.xlu0 %5682
      %v5684 = vsel %vm622, %v5662, 0.0
      %5685 = vadd.xlane.f32.xlu0 %v5684
      %v5686 = vpop.xlane.xlu0 %5685
      %v5687 = vsel %vm622, %v5663, 0.0
      %5688 = vadd.xlane.f32.xlu0 %v5687
      %v5689 = vpop.xlane.xlu0 %5688
      %v5690 = vsel %vm622, %v5664, 0.0
      %5691 = vadd.xlane.f32.xlu0 %v5690
      %v5692 = vpop.xlane.xlu0 %5691
      %v5693 = vsel %vm622, %v5665, 0.0
      %5694 = vadd.xlane.f32.xlu0 %v5693
      %v5695 = vpop.xlane.xlu0 %5694
      %v5696 = vsel %vm622, %v5666, 0.0
      %5697 = vadd.xlane.f32.xlu0 %v5696
      %v5698 = vpop.xlane.xlu0 %5697
      %v5699 = vsel %vm622, %v5667, 0.0
      %5700 = vadd.xlane.f32.xlu0 %v5699
      %v5701 = vpop.xlane.xlu0 %5700
      %v5702 = vsel %vm622, %v5668, 0.0
      %5703 = vadd.xlane.f32.xlu0 %v5702
      %v5704 = vpop.xlane.xlu0 %5703
      %v5705 = vsel %vm622, %v5669, 0.0
      %5706 = vadd.xlane.f32.xlu0 %v5705
      %v5707 = vpop.xlane.xlu0 %5706
      %v5708 = vsel %vm622, %v5670, 0.0
      %5709 = vadd.xlane.f32.xlu0 %v5708
      %v5710 = vpop.xlane.xlu0 %5709
      %v5711 = vsel %vm622, %v5671, 0.0
      %5712 = vadd.xlane.f32.xlu0 %v5711
      %v5713 = vpop.xlane.xlu0 %5712
      %v5714 = vsel %vm622, %v5672, 0.0
      %5715 = vadd.xlane.f32.xlu0 %v5714
      %v5716 = vpop.xlane.xlu0 %5715
      %v5717 = vsel %vm622, %v5673, 0.0
      %5718 = vadd.xlane.f32.xlu0 %v5717
      %v5719 = vpop.xlane.xlu0 %5718
      %v5720 = vsel %vm622, %v5674, 0.0
      %5721 = vadd.xlane.f32.xlu0 %v5720
      %v5722 = vpop.xlane.xlu0 %5721
      %v5723 = vmul.f32 %v5677, %v671
      %v5724 = vmul.f32 %v5680, %v671
      %v5725 = vmul.f32 %v5683, %v671
      %v5726 = vmul.f32 %v5686, %v671
      %v5727 = vmul.f32 %v5689, %v671
      %v5728 = vmul.f32 %v5692, %v671
      %v5729 = vmul.f32 %v5695, %v671
      %v5730 = vmul.f32 %v5698, %v671
      %v5731 = vmul.f32 %v5701, %v671
      %v5732 = vmul.f32 %v5704, %v671
      %v5733 = vmul.f32 %v5707, %v671
      %v5734 = vmul.f32 %v5710, %v671
      %v5735 = vmul.f32 %v5713, %v671
      %v5736 = vmul.f32 %v5716, %v671
      %v5737 = vmul.f32 %v5719, %v671
      %v5738 = vmul.f32 %v5722, %v671
      %v5739 = vadd.f32 %v5723, 1e-06
      %v5740 = vadd.f32 %v5724, 1e-06
      %v5741 = vadd.f32 %v5725, 1e-06
      %v5742 = vadd.f32 %v5726, 1e-06
      %v5743 = vadd.f32 %v5727, 1e-06
      %v5744 = vadd.f32 %v5728, 1e-06
      %v5745 = vadd.f32 %v5729, 1e-06
      %v5746 = vadd.f32 %v5730, 1e-06
      %v5747 = vadd.f32 %v5731, 1e-06
      %v5748 = vadd.f32 %v5732, 1e-06
      %v5749 = vadd.f32 %v5733, 1e-06
      %v5750 = vadd.f32 %v5734, 1e-06
      %v5751 = vadd.f32 %v5735, 1e-06
      %v5752 = vadd.f32 %v5736, 1e-06
      %v5753 = vadd.f32 %v5737, 1e-06
      %v5754 = vadd.f32 %v5738, 1e-06
      %v5755 = vrsqrt.pop %v5739
      %v5756 = vrsqrt.pop %v5740
      %v5757 = vrsqrt.pop %v5741
      %v5758 = vrsqrt.pop %v5742
      %v5759 = vrsqrt.pop %v5743
      %v5760 = vrsqrt.pop %v5744
      %v5761 = vrsqrt.pop %v5745
      %v5762 = vrsqrt.pop %v5746
      %v5763 = vrsqrt.pop %v5747
      %v5764 = vrsqrt.pop %v5748
      %v5765 = vrsqrt.pop %v5749
      %v5766 = vrsqrt.pop %v5750
      %v5767 = vrsqrt.pop %v5751
      %v5768 = vrsqrt.pop %v5752
      %v5769 = vrsqrt.pop %v5753
      %v5770 = vrsqrt.pop %v5754
      %v5771 = vmul.f32 %v5643, %v5755
      %v5772 = vmul.f32 %v5644, %v5756
      %v5773 = vmul.f32 %v5645, %v5757
      %v5774 = vmul.f32 %v5646, %v5758
      %v5775 = vmul.f32 %v5647, %v5759
      %v5776 = vmul.f32 %v5648, %v5760
      %v5777 = vmul.f32 %v5649, %v5761
      %v5778 = vmul.f32 %v5650, %v5762
      %v5779 = vmul.f32 %v5651, %v5763
      %v5780 = vmul.f32 %v5652, %v5764
      %v5781 = vmul.f32 %v5653, %v5765
      %v5782 = vmul.f32 %v5654, %v5766
      %v5783 = vmul.f32 %v5655, %v5767
      %v5784 = vmul.f32 %v5656, %v5768
      %v5785 = vmul.f32 %v5657, %v5769
      %v5786 = vmul.f32 %v5658, %v5770
      %v5788 = vlaneseq
      %v5789 = vshrl.u32 %v5788, 7
      %v5790 = vsub.s32 0, %v5789
      %v5791 = vrot.slane %v5576, %v5790
      %v5793 = vmul.f32 %v5771, %v5791
      %v5794 = vmul.f32 %v5772, %v5791
      %v5795 = vmul.f32 %v5773, %v5791
      %v5796 = vmul.f32 %v5774, %v5791
      %v5797 = vmul.f32 %v5775, %v5791
      %v5798 = vmul.f32 %v5776, %v5791
      %v5799 = vmul.f32 %v5777, %v5791
      %v5800 = vmul.f32 %v5778, %v5791
      %v5801 = vmul.f32 %v5779, %v5791
      %v5802 = vmul.f32 %v5780, %v5791
      %v5803 = vmul.f32 %v5781, %v5791
      %v5804 = vmul.f32 %v5782, %v5791
      %v5805 = vmul.f32 %v5783, %v5791
      %v5806 = vmul.f32 %v5784, %v5791
      %v5807 = vmul.f32 %v5785, %v5791
      %v5808 = vmul.f32 %v5786, %v5791
      %v5810 = vlaneseq
      %v5811 = vshrl.u32 %v5810, 7
      %v5812 = vsub.s32 0, %v5811
      %v5813 = vrot.slane %v5578, %v5812
      %v5815 = vadd.f32 %v5793, %v5813
      %v5816 = vadd.f32 %v5794, %v5813
      %v5817 = vadd.f32 %v5795, %v5813
      %v5818 = vadd.f32 %v5796, %v5813
      %v5819 = vadd.f32 %v5797, %v5813
      %v5820 = vadd.f32 %v5798, %v5813
      %v5821 = vadd.f32 %v5799, %v5813
      %v5822 = vadd.f32 %v5800, %v5813
      %v5823 = vadd.f32 %v5801, %v5813
      %v5824 = vadd.f32 %v5802, %v5813
      %v5825 = vadd.f32 %v5803, %v5813
      %v5826 = vadd.f32 %v5804, %v5813
      %v5827 = vadd.f32 %v5805, %v5813
      %v5828 = vadd.f32 %v5806, %v5813
      %v5829 = vadd.f32 %v5807, %v5813
      %v5830 = vadd.f32 %v5808, %v5813
      %s5831 = scalar_lea.vmem %s5, 128
      %v5832 = vld [vmem:[%s5831] sm:$0xff]
      %v5833 = vld [vmem:[%s5831 + $0x8] sm:$0xff]
      %v5834 = vld [vmem:[%s5831 + $0x10] sm:$0xff]
      %v5835 = vld [vmem:[%s5831 + $0x18] sm:$0xff]
      %v5836 = vld [vmem:[%s5831 + $0x20] sm:$0xff]
      %v5837 = vld [vmem:[%s5831 + $0x28] sm:$0xff]
      %v5838 = vld [vmem:[%s5831 + $0x30] sm:$0xff]
      %v5839 = vld [vmem:[%s5831 + $0x38] sm:$0xff]
      %v5840 = vld [vmem:[%s5831 + $0x40] sm:$0xff]
      %v5841 = vld [vmem:[%s5831 + $0x48] sm:$0xff]
      %v5842 = vld [vmem:[%s5831 + $0x50] sm:$0xff]
      %v5843 = vld [vmem:[%s5831 + $0x58] sm:$0xff]
      %v5844 = vld [vmem:[%s5831 + $0x60] sm:$0xff]
      %v5845 = vld [vmem:[%s5831 + $0x68] sm:$0xff]
      %v5846 = vld [vmem:[%s5831 + $0x70] sm:$0xff]
      %v5847 = vld [vmem:[%s5831 + $0x78] sm:$0xff]
      %s5848 = scalar_lea.vmem %s6, 2
      %v5849 = vld [vmem:[%s5848] sm:$0x3]
      %v5851 = vlaneseq
      %v5852 = vshrl.u32 %v5851, 7
      %v5853 = vsub.s32 0, %v5852
      %v5854 = vrot.slane %v5849, %v5853
      %v5855 = vlaneseq
      %v5856 = vshrl.u32 %v5855, 7
      %v5857 = vsub.s32 1, %v5856
      %v5858 = vrot.slane %v5849, %v5857
      %v5862 = vsel %vm622, %v5815, 0
      %v5865 = vsel %vm622, %v5816, 0
      %v5868 = vsel %vm622, %v5817, 0
      %v5871 = vsel %vm622, %v5818, 0
      %v5874 = vsel %vm622, %v5819, 0
      %v5877 = vsel %vm622, %v5820, 0
      %v5880 = vsel %vm622, %v5821, 0
      %v5883 = vsel %vm622, %v5822, 0
      %v5886 = vsel %vm622, %v5823, 0
      %v5889 = vsel %vm622, %v5824, 0
      %v5892 = vsel %vm622, %v5825, 0
      %v5895 = vsel %vm622, %v5826, 0
      %v5898 = vsel %vm622, %v5827, 0
      %v5901 = vsel %vm622, %v5828, 0
      %v5904 = vsel %vm622, %v5829, 0
      %v5907 = vsel %vm622, %v5830, 0
      %5909 = vmatprep.subr.mxu0 %v5833
      %5910 = vmatpush1.msra.mxu0 %v5832
      %5911 = vmatprep.subr.mxu0 %v5835
      %5912 = vmatpush1.msra.mxu0 %v5834
      %5913 = vmatprep.subr.mxu0 %v5837
      %5914 = vmatpush1.msra.mxu0 %v5836
      %5915 = vmatprep.subr.mxu0 %v5839
      %5916 = vmatpush1.msra.mxu0 %v5838
      %5917 = vmatprep.subr.mxu0 %v5841
      %5918 = vmatpush1.msra.mxu0 %v5840
      %5919 = vmatprep.subr.mxu0 %v5843
      %5920 = vmatpush1.msra.mxu0 %v5842
      %5921 = vmatprep.subr.mxu0 %v5845
      %5922 = vmatpush1.msra.mxu0 %v5844
      %5923 = vmatprep.subr.mxu0 %v5847
      %5924 = vmatpush1.msra.mxu0 %v5846
      %5925 = vmatprep.subr.mxu0 0.0
      %5926 = vmatpush1.msra.mxu0 0.0
      %5927 = vmatprep.subr.mxu0 0.0
      %5928 = vmatpush1.msra.mxu0 0.0
      %5929 = vmatprep.subr.mxu0 0.0
      %5930 = vmatpush1.msra.mxu0 0.0
      %5931 = vmatprep.subr.mxu0 0.0
      %5932 = vmatpush1.msra.mxu0 0.0
      %5933 = vmatprep.subr.mxu0 0.0
      %5934 = vmatpush1.msra.mxu0 0.0
      %5935 = vmatprep.subr.mxu0 0.0
      %5936 = vmatpush1.msra.mxu0 0.0
      %5937 = vmatprep.subr.mxu0 0.0
      %5938 = vmatpush1.msra.mxu0 0.0
      %5939 = vmatprep.subr.mxu0 0.0
      %5940 = vmatpush1.msra.mxu0 0.0
      %5941 = vmatprep.subr.mxu0 0.0
      %5942 = vmatpush1.msra.mxu0 0.0
      %5943 = vmatprep.subr.mxu0 0.0
      %5944 = vmatpush1.msra.mxu0 0.0
      %5945 = vmatprep.subr.mxu0 0.0
      %5946 = vmatpush1.msra.mxu0 0.0
      %5947 = vmatprep.subr.mxu0 0.0
      %5948 = vmatpush1.msra.mxu0 0.0
      %5949 = vmatprep.subr.mxu0 0.0
      %5950 = vmatpush1.msra.mxu0 0.0
      %5951 = vmatprep.subr.mxu0 0.0
      %5952 = vmatpush1.msra.mxu0 0.0
      %5953 = vmatprep.subr.mxu0 0.0
      %5954 = vmatpush1.msra.mxu0 0.0
      %5955 = vmatprep.subr.mxu0 0.0
      %5956 = vmatpush1.msra.mxu0 0.0
      %5957 = vmatprep.subr.mxu0 0.0
      %5958 = vmatpush1.msra.mxu0 0.0
      %5959 = vmatprep.subr.mxu0 0.0
      %5960 = vmatpush1.msra.mxu0 0.0
      %5961 = vmatprep.subr.mxu0 0.0
      %5962 = vmatpush1.msra.mxu0 0.0
      %5963 = vmatprep.subr.mxu0 0.0
      %5964 = vmatpush1.msra.mxu0 0.0
      %5965 = vmatprep.subr.mxu0 0.0
      %5966 = vmatpush1.msra.mxu0 0.0
      %5967 = vmatprep.subr.mxu0 0.0
      %5968 = vmatpush1.msra.mxu0 0.0
      %5969 = vmatprep.subr.mxu0 0.0
      %5970 = vmatpush1.msra.mxu0 0.0
      %5971 = vmatprep.subr.mxu0 0.0
      %5972 = vmatpush1.msra.mxu0 0.0
      %5973 = vmatprep.mubr.f32.mxu0 0.0
      %5974 = vmatmul.mubr.f32.gmra.mrb[0].mxu0 %v5862
      %v5975 = vpop.f32.mrb[0].mxu0
      %v5976 = vadd.f32 %v5854, %v5975
      %v5977 = vpop.f32.mrb[0].mxu0
      %v5978 = vadd.f32 %v5858, %v5977
      %5979 = vmatprep.mubr.f32.mxu0 0.0
      %5980 = vmatmul.mubr.f32.gmra.mrb[0].mxu0 %v5865
      %v5981 = vpop.f32.mrb[0].mxu0
      %v5982 = vadd.f32 %v5854, %v5981
      %v5983 = vpop.f32.mrb[0].mxu0
      %v5984 = vadd.f32 %v5858, %v5983
      %5985 = vmatprep.mubr.f32.mxu0 0.0
      %5986 = vmatmul.mubr.f32.gmra.mrb[0].mxu0 %v5868
      %v5987 = vpop.f32.mrb[0].mxu0
      %v5988 = vadd.f32 %v5854, %v5987
      %v5989 = vpop.f32.mrb[0].mxu0
      %v5990 = vadd.f32 %v5858, %v5989
      %5991 = vmatprep.mubr.f32.mxu0 0.0
      %5992 = vmatmul.mubr.f32.gmra.mrb[0].mxu0 %v5871
      %v5993 = vpop.f32.mrb[0].mxu0
      %v5994 = vadd.f32 %v5854, %v5993
      %v5995 = vpop.f32.mrb[0].mxu0
      %v5996 = vadd.f32 %v5858, %v5995
      %5997 = vmatprep.mubr.f32.mxu0 0.0
      %5998 = vmatmul.mubr.f32.gmra.mrb[0].mxu0 %v5874
      %v5999 = vpop.f32.mrb[0].mxu0
      %v6000 = vadd.f32 %v5854, %v5999
      %v6001 = vpop.f32.mrb[0].mxu0
      %v6002 = vadd.f32 %v5858, %v6001
      %6003 = vmatprep.mubr.f32.mxu0 0.0
      %6004 = vmatmul.mubr.f32.gmra.mrb[0].mxu0 %v5877
      %v6005 = vpop.f32.mrb[0].mxu0
      %v6006 = vadd.f32 %v5854, %v6005
      %v6007 = vpop.f32.mrb[0].mxu0
      %v6008 = vadd.f32 %v5858, %v6007
      %6009 = vmatprep.mubr.f32.mxu0 0.0
      %6010 = vmatmul.mubr.f32.gmra.mrb[0].mxu0 %v5880
      %v6011 = vpop.f32.mrb[0].mxu0
      %v6012 = vadd.f32 %v5854, %v6011
      %v6013 = vpop.f32.mrb[0].mxu0
      %v6014 = vadd.f32 %v5858, %v6013
      %6015 = vmatprep.mubr.f32.mxu0 0.0
      %6016 = vmatmul.mubr.f32.gmra.mrb[0].mxu0 %v5883
      %v6017 = vpop.f32.mrb[0].mxu0
      %v6018 = vadd.f32 %v5854, %v6017
      %v6019 = vpop.f32.mrb[0].mxu0
      %v6020 = vadd.f32 %v5858, %v6019
      %6021 = vmatprep.mubr.f32.mxu0 0.0
      %6022 = vmatmul.mubr.f32.gmra.mrb[0].mxu0 %v5886
      %v6023 = vpop.f32.mrb[0].mxu0
      %v6024 = vadd.f32 %v5854, %v6023
      %v6025 = vpop.f32.mrb[0].mxu0
      %v6026 = vadd.f32 %v5858, %v6025
      %6027 = vmatprep.mubr.f32.mxu0 0.0
      %6028 = vmatmul.mubr.f32.gmra.mrb[0].mxu0 %v5889
      %v6029 = vpop.f32.mrb[0].mxu0
      %v6030 = vadd.f32 %v5854, %v6029
      %v6031 = vpop.f32.mrb[0].mxu0
      %v6032 = vadd.f32 %v5858, %v6031
      %6033 = vmatprep.mubr.f32.mxu0 0.0
      %6034 = vmatmul.mubr.f32.gmra.mrb[0].mxu0 %v5892
      %v6035 = vpop.f32.mrb[0].mxu0
      %v6036 = vadd.f32 %v5854, %v6035
      %v6037 = vpop.f32.mrb[0].mxu0
      %v6038 = vadd.f32 %v5858, %v6037
      %6039 = vmatprep.mubr.f32.mxu0 0.0
      %6040 = vmatmul.mubr.f32.gmra.mrb[0].mxu0 %v5895
      %v6041 = vpop.f32.mrb[0].mxu0
      %v6042 = vadd.f32 %v5854, %v6041
      %v6043 = vpop.f32.mrb[0].mxu0
      %v6044 = vadd.f32 %v5858, %v6043
      %6045 = vmatprep.mubr.f32.mxu0 0.0
      %6046 = vmatmul.mubr.f32.gmra.mrb[0].mxu0 %v5898
      %v6047 = vpop.f32.mrb[0].mxu0
      %v6048 = vadd.f32 %v5854, %v6047
      %v6049 = vpop.f32.mrb[0].mxu0
      %v6050 = vadd.f32 %v5858, %v6049
      %6051 = vmatprep.mubr.f32.mxu0 0.0
      %6052 = vmatmul.mubr.f32.gmra.mrb[0].mxu0 %v5901
      %v6053 = vpop.f32.mrb[0].mxu0
      %v6054 = vadd.f32 %v5854, %v6053
      %v6055 = vpop.f32.mrb[0].mxu0
      %v6056 = vadd.f32 %v5858, %v6055
      %6057 = vmatprep.mubr.f32.mxu0 0.0
      %6058 = vmatmul.mubr.f32.gmra.mrb[0].mxu0 %v5904
      %v6059 = vpop.f32.mrb[0].mxu0
      %v6060 = vadd.f32 %v5854, %v6059
      %v6061 = vpop.f32.mrb[0].mxu0
      %v6062 = vadd.f32 %v5858, %v6061
      %6063 = vmatprep.mubr.f32.mxu0 0.0
      %6064 = vmatmul.mubr.f32.gmra.mrb[0].mxu0 %v5907
      %v6065 = vpop.f32.mrb[0].mxu0
      %v6066 = vadd.f32 %v5854, %v6065
      %v6067 = vpop.f32.mrb[0].mxu0
      %v6068 = vadd.f32 %v5858, %v6067
      %6069 = vdwg.mxu0
      %v6070 = vmul.f32 %v5976, 0.25
      %v6071 = vmul.f32 %v5982, 0.25
      %v6072 = vmul.f32 %v5988, 0.25
      %v6073 = vmul.f32 %v5994, 0.25
      %v6074 = vmul.f32 %v6000, 0.25
      %v6075 = vmul.f32 %v6006, 0.25
      %v6076 = vmul.f32 %v6012, 0.25
      %v6077 = vmul.f32 %v6018, 0.25
      %v6078 = vmul.f32 %v6024, 0.25
      %v6079 = vmul.f32 %v6030, 0.25
      %v6080 = vmul.f32 %v6036, 0.25
      %v6081 = vmul.f32 %v6042, 0.25
      %v6082 = vmul.f32 %v6048, 0.25
      %v6083 = vmul.f32 %v6054, 0.25
      %v6084 = vmul.f32 %v6060, 0.25
      %v6085 = vmul.f32 %v6066, 0.25
      %6102 = vrot.lane.b32.xlu0 %v5976, 64
      %v6103 = vpop.permute.xlu0 %6102
      %6104 = vrot.lane.b32.xlu0 %v5982, 64
      %v6105 = vpop.permute.xlu0 %6104
      %6106 = vrot.lane.b32.xlu0 %v5988, 64
      %v6107 = vpop.permute.xlu0 %6106
      %6108 = vrot.lane.b32.xlu0 %v5994, 64
      %v6109 = vpop.permute.xlu0 %6108
      %6110 = vrot.lane.b32.xlu0 %v6000, 64
      %v6111 = vpop.permute.xlu0 %6110
      %6112 = vrot.lane.b32.xlu0 %v6006, 64
      %v6113 = vpop.permute.xlu0 %6112
      %6114 = vrot.lane.b32.xlu0 %v6012, 64
      %v6115 = vpop.permute.xlu0 %6114
      %6116 = vrot.lane.b32.xlu0 %v6018, 64
      %v6117 = vpop.permute.xlu0 %6116
      %6118 = vrot.lane.b32.xlu0 %v6024, 64
      %v6119 = vpop.permute.xlu0 %6118
      %6120 = vrot.lane.b32.xlu0 %v6030, 64
      %v6121 = vpop.permute.xlu0 %6120
      %6122 = vrot.lane.b32.xlu0 %v6036, 64
      %v6123 = vpop.permute.xlu0 %6122
      %6124 = vrot.lane.b32.xlu0 %v6042, 64
      %v6125 = vpop.permute.xlu0 %6124
      %6126 = vrot.lane.b32.xlu0 %v6048, 64
      %v6127 = vpop.permute.xlu0 %6126
      %6128 = vrot.lane.b32.xlu0 %v6054, 64
      %v6129 = vpop.permute.xlu0 %6128
      %6130 = vrot.lane.b32.xlu0 %v6060, 64
      %v6131 = vpop.permute.xlu0 %6130
      %6132 = vrot.lane.b32.xlu0 %v6066, 64
      %v6133 = vpop.permute.xlu0 %6132
      %v6135 = vsel %vm1177, %v6070, 0
      %v6138 = vsel %vm1177, %v6071, 0
      %v6141 = vsel %vm1177, %v6072, 0
      %v6144 = vsel %vm1177, %v6073, 0
      %v6147 = vsel %vm1177, %v6074, 0
      %v6150 = vsel %vm1177, %v6075, 0
      %v6153 = vsel %vm1177, %v6076, 0
      %v6156 = vsel %vm1177, %v6077, 0
      %v6159 = vsel %vm1177, %v6078, 0
      %v6162 = vsel %vm1177, %v6079, 0
      %v6165 = vsel %vm1177, %v6080, 0
      %v6168 = vsel %vm1177, %v6081, 0
      %v6171 = vsel %vm1177, %v6082, 0
      %v6174 = vsel %vm1177, %v6083, 0
      %v6177 = vsel %vm1177, %v6084, 0
      %v6180 = vsel %vm1177, %v6085, 0
      %v6182 = vsel %vm1177, %v6103, 0
      %v6184 = vsel %vm1177, %v6105, 0
      %v6186 = vsel %vm1177, %v6107, 0
      %v6188 = vsel %vm1177, %v6109, 0
      %v6190 = vsel %vm1177, %v6111, 0
      %v6192 = vsel %vm1177, %v6113, 0
      %v6194 = vsel %vm1177, %v6115, 0
      %v6196 = vsel %vm1177, %v6117, 0
      %v6198 = vsel %vm1177, %v6119, 0
      %v6200 = vsel %vm1177, %v6121, 0
      %v6202 = vsel %vm1177, %v6123, 0
      %v6204 = vsel %vm1177, %v6125, 0
      %v6206 = vsel %vm1177, %v6127, 0
      %v6208 = vsel %vm1177, %v6129, 0
      %v6210 = vsel %vm1177, %v6131, 0
      %v6212 = vsel %vm1177, %v6133, 0
      %6214 = vmatprep.subr.mxu0 0.0
      %6215 = vmatpush1.xpose.msra.mxu0 %v6182
      %6216 = vmatprep.subr.mxu0 0.0
      %6217 = vmatpush1.xpose.msra.mxu0 %v6184
      %6218 = vmatprep.subr.mxu0 0.0
      %6219 = vmatpush1.xpose.msra.mxu0 %v6186
      %6220 = vmatprep.subr.mxu0 0.0
      %6221 = vmatpush1.xpose.msra.mxu0 %v6188
      %6222 = vmatprep.subr.mxu0 0.0
      %6223 = vmatpush1.xpose.msra.mxu0 %v6190
      %6224 = vmatprep.subr.mxu0 0.0
      %6225 = vmatpush1.xpose.msra.mxu0 %v6192
      %6226 = vmatprep.subr.mxu0 0.0
      %6227 = vmatpush1.xpose.msra.mxu0 %v6194
      %6228 = vmatprep.subr.mxu0 0.0
      %6229 = vmatpush1.xpose.msra.mxu0 %v6196
      %6230 = vmatprep.subr.mxu0 0.0
      %6231 = vmatpush1.xpose.msra.mxu0 %v6198
      %6232 = vmatprep.subr.mxu0 0.0
      %6233 = vmatpush1.xpose.msra.mxu0 %v6200
      %6234 = vmatprep.subr.mxu0 0.0
      %6235 = vmatpush1.xpose.msra.mxu0 %v6202
      %6236 = vmatprep.subr.mxu0 0.0
      %6237 = vmatpush1.xpose.msra.mxu0 %v6204
      %6238 = vmatprep.subr.mxu0 0.0
      %6239 = vmatpush1.xpose.msra.mxu0 %v6206
      %6240 = vmatprep.subr.mxu0 0.0
      %6241 = vmatpush1.xpose.msra.mxu0 %v6208
      %6242 = vmatprep.subr.mxu0 0.0
      %6243 = vmatpush1.xpose.msra.mxu0 %v6210
      %6244 = vmatprep.subr.mxu0 0.0
      %6245 = vmatpush1.xpose.msra.mxu0 %v6212
      %6246 = vmatprep.subr.mxu0 0.0
      %6247 = vmatpush1.xpose.msra.mxu0 0.0
      %6248 = vmatprep.subr.mxu0 0.0
      %6249 = vmatpush1.xpose.msra.mxu0 0.0
      %6250 = vmatprep.subr.mxu0 0.0
      %6251 = vmatpush1.xpose.msra.mxu0 0.0
      %6252 = vmatprep.subr.mxu0 0.0
      %6253 = vmatpush1.xpose.msra.mxu0 0.0
      %6254 = vmatprep.subr.mxu0 0.0
      %6255 = vmatpush1.xpose.msra.mxu0 0.0
      %6256 = vmatprep.subr.mxu0 0.0
      %6257 = vmatpush1.xpose.msra.mxu0 0.0
      %6258 = vmatprep.subr.mxu0 0.0
      %6259 = vmatpush1.xpose.msra.mxu0 0.0
      %6260 = vmatprep.subr.mxu0 0.0
      %6261 = vmatpush1.xpose.msra.mxu0 0.0
      %6262 = vmatprep.subr.mxu0 0.0
      %6263 = vmatpush1.xpose.msra.mxu0 0.0
      %6264 = vmatprep.subr.mxu0 0.0
      %6265 = vmatpush1.xpose.msra.mxu0 0.0
      %6266 = vmatprep.subr.mxu0 0.0
      %6267 = vmatpush1.xpose.msra.mxu0 0.0
      %6268 = vmatprep.subr.mxu0 0.0
      %6269 = vmatpush1.xpose.msra.mxu0 0.0
      %6270 = vmatprep.subr.mxu0 0.0
      %6271 = vmatpush1.xpose.msra.mxu0 0.0
      %6272 = vmatprep.subr.mxu0 0.0
      %6273 = vmatpush1.xpose.msra.mxu0 0.0
      %6274 = vmatprep.subr.mxu0 0.0
      %6275 = vmatpush1.xpose.msra.mxu0 0.0
      %6276 = vmatprep.subr.mxu0 0.0
      %6277 = vmatpush1.xpose.msra.mxu0 0.0
      %6278 = vmatprep.mubr.f32.mxu0 0.0
      %6279 = vmatmul.mubr.f32.gmra.mrb[0].mxu0 %v6135
      %v6280 = vpop.f32.mrb[0].mxu0
      %v6281 = vadd.f32 %v604, %v6280
      %v6282 = vpop.f32.mrb[0].mxu0
      %6283 = vmatprep.mubr.f32.mxu0 0.0
      %6284 = vmatmul.mubr.f32.gmra.mrb[0].mxu0 %v6138
      %v6285 = vpop.f32.mrb[0].mxu0
      %v6286 = vadd.f32 %v605, %v6285
      %v6287 = vpop.f32.mrb[0].mxu0
      %6288 = vmatprep.mubr.f32.mxu0 0.0
      %6289 = vmatmul.mubr.f32.gmra.mrb[0].mxu0 %v6141
      %v6290 = vpop.f32.mrb[0].mxu0
      %v6291 = vadd.f32 %v606, %v6290
      %v6292 = vpop.f32.mrb[0].mxu0
      %6293 = vmatprep.mubr.f32.mxu0 0.0
      %6294 = vmatmul.mubr.f32.gmra.mrb[0].mxu0 %v6144
      %v6295 = vpop.f32.mrb[0].mxu0
      %v6296 = vadd.f32 %v607, %v6295
      %v6297 = vpop.f32.mrb[0].mxu0
      %6298 = vmatprep.mubr.f32.mxu0 0.0
      %6299 = vmatmul.mubr.f32.gmra.mrb[0].mxu0 %v6147
      %v6300 = vpop.f32.mrb[0].mxu0
      %v6301 = vadd.f32 %v608, %v6300
      %v6302 = vpop.f32.mrb[0].mxu0
      %6303 = vmatprep.mubr.f32.mxu0 0.0
      %6304 = vmatmul.mubr.f32.gmra.mrb[0].mxu0 %v6150
      %v6305 = vpop.f32.mrb[0].mxu0
      %v6306 = vadd.f32 %v609, %v6305
      %v6307 = vpop.f32.mrb[0].mxu0
      %6308 = vmatprep.mubr.f32.mxu0 0.0
      %6309 = vmatmul.mubr.f32.gmra.mrb[0].mxu0 %v6153
      %v6310 = vpop.f32.mrb[0].mxu0
      %v6311 = vadd.f32 %v610, %v6310
      %v6312 = vpop.f32.mrb[0].mxu0
      %6313 = vmatprep.mubr.f32.mxu0 0.0
      %6314 = vmatmul.mubr.f32.gmra.mrb[0].mxu0 %v6156
      %v6315 = vpop.f32.mrb[0].mxu0
      %v6316 = vadd.f32 %v611, %v6315
      %v6317 = vpop.f32.mrb[0].mxu0
      %6318 = vmatprep.mubr.f32.mxu0 0.0
      %6319 = vmatmul.mubr.f32.gmra.mrb[0].mxu0 %v6159
      %v6320 = vpop.f32.mrb[0].mxu0
      %v6321 = vadd.f32 %v612, %v6320
      %v6322 = vpop.f32.mrb[0].mxu0
      %6323 = vmatprep.mubr.f32.mxu0 0.0
      %6324 = vmatmul.mubr.f32.gmra.mrb[0].mxu0 %v6162
      %v6325 = vpop.f32.mrb[0].mxu0
      %v6326 = vadd.f32 %v613, %v6325
      %v6327 = vpop.f32.mrb[0].mxu0
      %6328 = vmatprep.mubr.f32.mxu0 0.0
      %6329 = vmatmul.mubr.f32.gmra.mrb[0].mxu0 %v6165
      %v6330 = vpop.f32.mrb[0].mxu0
      %v6331 = vadd.f32 %v614, %v6330
      %v6332 = vpop.f32.mrb[0].mxu0
      %6333 = vmatprep.mubr.f32.mxu0 0.0
      %6334 = vmatmul.mubr.f32.gmra.mrb[0].mxu0 %v6168
      %v6335 = vpop.f32.mrb[0].mxu0
      %v6336 = vadd.f32 %v615, %v6335
      %v6337 = vpop.f32.mrb[0].mxu0
      %6338 = vmatprep.mubr.f32.mxu0 0.0
      %6339 = vmatmul.mubr.f32.gmra.mrb[0].mxu0 %v6171
      %v6340 = vpop.f32.mrb[0].mxu0
      %v6341 = vadd.f32 %v616, %v6340
      %v6342 = vpop.f32.mrb[0].mxu0
      %6343 = vmatprep.mubr.f32.mxu0 0.0
      %6344 = vmatmul.mubr.f32.gmra.mrb[0].mxu0 %v6174
      %v6345 = vpop.f32.mrb[0].mxu0
      %v6346 = vadd.f32 %v617, %v6345
      %v6347 = vpop.f32.mrb[0].mxu0
      %6348 = vmatprep.mubr.f32.mxu0 0.0
      %6349 = vmatmul.mubr.f32.gmra.mrb[0].mxu0 %v6177
      %v6350 = vpop.f32.mrb[0].mxu0
      %v6351 = vadd.f32 %v618, %v6350
      %v6352 = vpop.f32.mrb[0].mxu0
      %6353 = vmatprep.mubr.f32.mxu0 0.0
      %6354 = vmatmul.mubr.f32.gmra.mrb[0].mxu0 %v6180
      %v6355 = vpop.f32.mrb[0].mxu0
      %v6356 = vadd.f32 %v619, %v6355
      %v6357 = vpop.f32.mrb[0].mxu0
      %6358 = vdwg.mxu0
      %6359 = vmax.xlane.f32.xlu0 %v6281
      %v6360 = vpop.xlane.xlu0 %6359
      %6361 = vmax.xlane.f32.xlu0 %v6286
      %v6362 = vpop.xlane.xlu0 %6361
      %6363 = vmax.xlane.f32.xlu0 %v6291
      %v6364 = vpop.xlane.xlu0 %6363
      %6365 = vmax.xlane.f32.xlu0 %v6296
      %v6366 = vpop.xlane.xlu0 %6365
      %6367 = vmax.xlane.f32.xlu0 %v6301
      %v6368 = vpop.xlane.xlu0 %6367
      %6369 = vmax.xlane.f32.xlu0 %v6306
      %v6370 = vpop.xlane.xlu0 %6369
      %6371 = vmax.xlane.f32.xlu0 %v6311
      %v6372 = vpop.xlane.xlu0 %6371
      %6373 = vmax.xlane.f32.xlu0 %v6316
      %v6374 = vpop.xlane.xlu0 %6373
      %6375 = vmax.xlane.f32.xlu0 %v6321
      %v6376 = vpop.xlane.xlu0 %6375
      %6377 = vmax.xlane.f32.xlu0 %v6326
      %v6378 = vpop.xlane.xlu0 %6377
      %6379 = vmax.xlane.f32.xlu0 %v6331
      %v6380 = vpop.xlane.xlu0 %6379
      %6381 = vmax.xlane.f32.xlu0 %v6336
      %v6382 = vpop.xlane.xlu0 %6381
      %6383 = vmax.xlane.f32.xlu0 %v6341
      %v6384 = vpop.xlane.xlu0 %6383
      %6385 = vmax.xlane.f32.xlu0 %v6346
      %v6386 = vpop.xlane.xlu0 %6385
      %6387 = vmax.xlane.f32.xlu0 %v6351
      %v6388 = vpop.xlane.xlu0 %6387
      %6389 = vmax.xlane.f32.xlu0 %v6356
      %v6390 = vpop.xlane.xlu0 %6389
      %v6391 = vsub.f32 %v6281, %v6360
      %v6392 = vsub.f32 %v6286, %v6362
      %v6393 = vsub.f32 %v6291, %v6364
      %v6394 = vsub.f32 %v6296, %v6366
      %v6395 = vsub.f32 %v6301, %v6368
      %v6396 = vsub.f32 %v6306, %v6370
      %v6397 = vsub.f32 %v6311, %v6372
      %v6398 = vsub.f32 %v6316, %v6374
      %v6399 = vsub.f32 %v6321, %v6376
      %v6400 = vsub.f32 %v6326, %v6378
      %v6401 = vsub.f32 %v6331, %v6380
      %v6402 = vsub.f32 %v6336, %v6382
      %v6403 = vsub.f32 %v6341, %v6384
      %v6404 = vsub.f32 %v6346, %v6386
      %v6405 = vsub.f32 %v6351, %v6388
      %v6406 = vsub.f32 %v6356, %v6390
      %v6407 = vmul.f32 %v6391, 1.442695
      %v6408 = vpow.pop %v6407
      %v6409 = vmul.f32 %v6392, 1.442695
      %v6410 = vpow.pop %v6409
      %v6411 = vmul.f32 %v6393, 1.442695
      %v6412 = vpow.pop %v6411
      %v6413 = vmul.f32 %v6394, 1.442695
      %v6414 = vpow.pop %v6413
      %v6415 = vmul.f32 %v6395, 1.442695
      %v6416 = vpow.pop %v6415
      %v6417 = vmul.f32 %v6396, 1.442695
      %v6418 = vpow.pop %v6417
      %v6419 = vmul.f32 %v6397, 1.442695
      %v6420 = vpow.pop %v6419
      %v6421 = vmul.f32 %v6398, 1.442695
      %v6422 = vpow.pop %v6421
      %v6423 = vmul.f32 %v6399, 1.442695
      %v6424 = vpow.pop %v6423
      %v6425 = vmul.f32 %v6400, 1.442695
      %v6426 = vpow.pop %v6425
      %v6427 = vmul.f32 %v6401, 1.442695
      %v6428 = vpow.pop %v6427
      %v6429 = vmul.f32 %v6402, 1.442695
      %v6430 = vpow.pop %v6429
      %v6431 = vmul.f32 %v6403, 1.442695
      %v6432 = vpow.pop %v6431
      %v6433 = vmul.f32 %v6404, 1.442695
      %v6434 = vpow.pop %v6433
      %v6435 = vmul.f32 %v6405, 1.442695
      %v6436 = vpow.pop %v6435
      %v6437 = vmul.f32 %v6406, 1.442695
      %v6438 = vpow.pop %v6437
      %6439 = vadd.xlane.f32.xlu0 %v6408
      %v6440 = vpop.xlane.xlu0 %6439
      %6441 = vadd.xlane.f32.xlu0 %v6410
      %v6442 = vpop.xlane.xlu0 %6441
      %6443 = vadd.xlane.f32.xlu0 %v6412
      %v6444 = vpop.xlane.xlu0 %6443
      %6445 = vadd.xlane.f32.xlu0 %v6414
      %v6446 = vpop.xlane.xlu0 %6445
      %6447 = vadd.xlane.f32.xlu0 %v6416
      %v6448 = vpop.xlane.xlu0 %6447
      %6449 = vadd.xlane.f32.xlu0 %v6418
      %v6450 = vpop.xlane.xlu0 %6449
      %6451 = vadd.xlane.f32.xlu0 %v6420
      %v6452 = vpop.xlane.xlu0 %6451
      %6453 = vadd.xlane.f32.xlu0 %v6422
      %v6454 = vpop.xlane.xlu0 %6453
      %6455 = vadd.xlane.f32.xlu0 %v6424
      %v6456 = vpop.xlane.xlu0 %6455
      %6457 = vadd.xlane.f32.xlu0 %v6426
      %v6458 = vpop.xlane.xlu0 %6457
      %6459 = vadd.xlane.f32.xlu0 %v6428
      %v6460 = vpop.xlane.xlu0 %6459
      %6461 = vadd.xlane.f32.xlu0 %v6430
      %v6462 = vpop.xlane.xlu0 %6461
      %6463 = vadd.xlane.f32.xlu0 %v6432
      %v6464 = vpop.xlane.xlu0 %6463
      %6465 = vadd.xlane.f32.xlu0 %v6434
      %v6466 = vpop.xlane.xlu0 %6465
      %6467 = vadd.xlane.f32.xlu0 %v6436
      %v6468 = vpop.xlane.xlu0 %6467
      %6469 = vadd.xlane.f32.xlu0 %v6438
      %v6470 = vpop.xlane.xlu0 %6469
      %v6471 = vrcp.pop %v6440
      %v6472 = vmul.f32 %v6408, %v6471
      %v6473 = vrcp.pop %v6442
      %v6474 = vmul.f32 %v6410, %v6473
      %v6475 = vrcp.pop %v6444
      %v6476 = vmul.f32 %v6412, %v6475
      %v6477 = vrcp.pop %v6446
      %v6478 = vmul.f32 %v6414, %v6477
      %v6479 = vrcp.pop %v6448
      %v6480 = vmul.f32 %v6416, %v6479
      %v6481 = vrcp.pop %v6450
      %v6482 = vmul.f32 %v6418, %v6481
      %v6483 = vrcp.pop %v6452
      %v6484 = vmul.f32 %v6420, %v6483
      %v6485 = vrcp.pop %v6454
      %v6486 = vmul.f32 %v6422, %v6485
      %v6487 = vrcp.pop %v6456
      %v6488 = vmul.f32 %v6424, %v6487
      %v6489 = vrcp.pop %v6458
      %v6490 = vmul.f32 %v6426, %v6489
      %v6491 = vrcp.pop %v6460
      %v6492 = vmul.f32 %v6428, %v6491
      %v6493 = vrcp.pop %v6462
      %v6494 = vmul.f32 %v6430, %v6493
      %v6495 = vrcp.pop %v6464
      %v6496 = vmul.f32 %v6432, %v6495
      %v6497 = vrcp.pop %v6466
      %v6498 = vmul.f32 %v6434, %v6497
      %v6499 = vrcp.pop %v6468
      %v6500 = vmul.f32 %v6436, %v6499
      %v6501 = vrcp.pop %v6470
      %v6502 = vmul.f32 %v6438, %v6501
      %6503 = vmatprep.subr.mxu0 0.0
      %6504 = vmatpush1.msra.mxu0 %v5978
      %6505 = vmatprep.subr.mxu0 0.0
      %6506 = vmatpush1.msra.mxu0 %v5984
      %6507 = vmatprep.subr.mxu0 0.0
      %6508 = vmatpush1.msra.mxu0 %v5990
      %6509 = vmatprep.subr.mxu0 0.0
      %6510 = vmatpush1.msra.mxu0 %v5996
      %6511 = vmatprep.subr.mxu0 0.0
      %6512 = vmatpush1.msra.mxu0 %v6002
      %6513 = vmatprep.subr.mxu0 0.0
      %6514 = vmatpush1.msra.mxu0 %v6008
      %6515 = vmatprep.subr.mxu0 0.0
      %6516 = vmatpush1.msra.mxu0 %v6014
      %6517 = vmatprep.subr.mxu0 0.0
      %6518 = vmatpush1.msra.mxu0 %v6020
      %6519 = vmatprep.subr.mxu0 0.0
      %6520 = vmatpush1.msra.mxu0 %v6026
      %6521 = vmatprep.subr.mxu0 0.0
      %6522 = vmatpush1.msra.mxu0 %v6032
      %6523 = vmatprep.subr.mxu0 0.0
      %6524 = vmatpush1.msra.mxu0 %v6038
      %6525 = vmatprep.subr.mxu0 0.0
      %6526 = vmatpush1.msra.mxu0 %v6044
      %6527 = vmatprep.subr.mxu0 0.0
      %6528 = vmatpush1.msra.mxu0 %v6050
      %6529 = vmatprep.subr.mxu0 0.0
      %6530 = vmatpush1.msra.mxu0 %v6056
      %6531 = vmatprep.subr.mxu0 0.0
      %6532 = vmatpush1.msra.mxu0 %v6062
      %6533 = vmatprep.subr.mxu0 0.0
      %6534 = vmatpush1.msra.mxu0 %v6068
      %6535 = vmatprep.subr.mxu0 0.0
      %6536 = vmatpush1.msra.mxu0 0.0
      %6537 = vmatprep.subr.mxu0 0.0
      %6538 = vmatpush1.msra.mxu0 0.0
      %6539 = vmatprep.subr.mxu0 0.0
      %6540 = vmatpush1.msra.mxu0 0.0
      %6541 = vmatprep.subr.mxu0 0.0
      %6542 = vmatpush1.msra.mxu0 0.0
      %6543 = vmatprep.subr.mxu0 0.0
      %6544 = vmatpush1.msra.mxu0 0.0
      %6545 = vmatprep.subr.mxu0 0.0
      %6546 = vmatpush1.msra.mxu0 0.0
      %6547 = vmatprep.subr.mxu0 0.0
      %6548 = vmatpush1.msra.mxu0 0.0
      %6549 = vmatprep.subr.mxu0 0.0
      %6550 = vmatpush1.msra.mxu0 0.0
      %6551 = vmatprep.subr.mxu0 0.0
      %6552 = vmatpush1.msra.mxu0 0.0
      %6553 = vmatprep.subr.mxu0 0.0
      %6554 = vmatpush1.msra.mxu0 0.0
      %6555 = vmatprep.subr.mxu0 0.0
      %6556 = vmatpush1.msra.mxu0 0.0
      %6557 = vmatprep.subr.mxu0 0.0
      %6558 = vmatpush1.msra.mxu0 0.0
      %6559 = vmatprep.subr.mxu0 0.0
      %6560 = vmatpush1.msra.mxu0 0.0
      %6561 = vmatprep.subr.mxu0 0.0
      %6562 = vmatpush1.msra.mxu0 0.0
      %6563 = vmatprep.subr.mxu0 0.0
      %6564 = vmatpush1.msra.mxu0 0.0
      %6565 = vmatprep.subr.mxu0 0.0
      %6566 = vmatpush1.msra.mxu0 0.0
      %6567 = vmatprep.mubr.f32.mxu0 0.0
      %6568 = vmatmul.mubr.f32.gmra.mrb[0].mxu0 %v6472
      %v6569 = vpop.f32.mrb[0].mxu0
      %v6570 = vadd.f32 0.0, %v6569
      %v6571 = vpop.f32.mrb[0].mxu0
      %6572 = vmatprep.mubr.f32.mxu0 0.0
      %6573 = vmatmul.mubr.f32.gmra.mrb[0].mxu0 %v6474
      %v6574 = vpop.f32.mrb[0].mxu0
      %v6575 = vadd.f32 0.0, %v6574
      %v6576 = vpop.f32.mrb[0].mxu0
      %6577 = vmatprep.mubr.f32.mxu0 0.0
      %6578 = vmatmul.mubr.f32.gmra.mrb[0].mxu0 %v6476
      %v6579 = vpop.f32.mrb[0].mxu0
      %v6580 = vadd.f32 0.0, %v6579
      %v6581 = vpop.f32.mrb[0].mxu0
      %6582 = vmatprep.mubr.f32.mxu0 0.0
      %6583 = vmatmul.mubr.f32.gmra.mrb[0].mxu0 %v6478
      %v6584 = vpop.f32.mrb[0].mxu0
      %v6585 = vadd.f32 0.0, %v6584
      %v6586 = vpop.f32.mrb[0].mxu0
      %6587 = vmatprep.mubr.f32.mxu0 0.0
      %6588 = vmatmul.mubr.f32.gmra.mrb[0].mxu0 %v6480
      %v6589 = vpop.f32.mrb[0].mxu0
      %v6590 = vadd.f32 0.0, %v6589
      %v6591 = vpop.f32.mrb[0].mxu0
      %6592 = vmatprep.mubr.f32.mxu0 0.0
      %6593 = vmatmul.mubr.f32.gmra.mrb[0].mxu0 %v6482
      %v6594 = vpop.f32.mrb[0].mxu0
      %v6595 = vadd.f32 0.0, %v6594
      %v6596 = vpop.f32.mrb[0].mxu0
      %6597 = vmatprep.mubr.f32.mxu0 0.0
      %6598 = vmatmul.mubr.f32.gmra.mrb[0].mxu0 %v6484
      %v6599 = vpop.f32.mrb[0].mxu0
      %v6600 = vadd.f32 0.0, %v6599
      %v6601 = vpop.f32.mrb[0].mxu0
      %6602 = vmatprep.mubr.f32.mxu0 0.0
      %6603 = vmatmul.mubr.f32.gmra.mrb[0].mxu0 %v6486
      %v6604 = vpop.f32.mrb[0].mxu0
      %v6605 = vadd.f32 0.0, %v6604
      %v6606 = vpop.f32.mrb[0].mxu0
      %6607 = vmatprep.mubr.f32.mxu0 0.0
      %6608 = vmatmul.mubr.f32.gmra.mrb[0].mxu0 %v6488
      %v6609 = vpop.f32.mrb[0].mxu0
      %v6610 = vadd.f32 0.0, %v6609
      %v6611 = vpop.f32.mrb[0].mxu0
      %6612 = vmatprep.mubr.f32.mxu0 0.0
      %6613 = vmatmul.mubr.f32.gmra.mrb[0].mxu0 %v6490
      %v6614 = vpop.f32.mrb[0].mxu0
      %v6615 = vadd.f32 0.0, %v6614
      %v6616 = vpop.f32.mrb[0].mxu0
      %6617 = vmatprep.mubr.f32.mxu0 0.0
      %6618 = vmatmul.mubr.f32.gmra.mrb[0].mxu0 %v6492
      %v6619 = vpop.f32.mrb[0].mxu0
      %v6620 = vadd.f32 0.0, %v6619
      %v6621 = vpop.f32.mrb[0].mxu0
      %6622 = vmatprep.mubr.f32.mxu0 0.0
      %6623 = vmatmul.mubr.f32.gmra.mrb[0].mxu0 %v6494
      %v6624 = vpop.f32.mrb[0].mxu0
      %v6625 = vadd.f32 0.0, %v6624
      %v6626 = vpop.f32.mrb[0].mxu0
      %6627 = vmatprep.mubr.f32.mxu0 0.0
      %6628 = vmatmul.mubr.f32.gmra.mrb[0].mxu0 %v6496
      %v6629 = vpop.f32.mrb[0].mxu0
      %v6630 = vadd.f32 0.0, %v6629
      %v6631 = vpop.f32.mrb[0].mxu0
      %6632 = vmatprep.mubr.f32.mxu0 0.0
      %6633 = vmatmul.mubr.f32.gmra.mrb[0].mxu0 %v6498
      %v6634 = vpop.f32.mrb[0].mxu0
      %v6635 = vadd.f32 0.0, %v6634
      %v6636 = vpop.f32.mrb[0].mxu0
      %6637 = vmatprep.mubr.f32.mxu0 0.0
      %6638 = vmatmul.mubr.f32.gmra.mrb[0].mxu0 %v6500
      %v6639 = vpop.f32.mrb[0].mxu0
      %v6640 = vadd.f32 0.0, %v6639
      %v6641 = vpop.f32.mrb[0].mxu0
      %6642 = vmatprep.mubr.f32.mxu0 0.0
      %6643 = vmatmul.mubr.f32.gmra.mrb[0].mxu0 %v6502
      %v6644 = vpop.f32.mrb[0].mxu0
      %v6645 = vadd.f32 0.0, %v6644
      %v6646 = vpop.f32.mrb[0].mxu0
      %6647 = vdwg.mxu0
      %6648 = vrot.lane.b32.xlu0 %v6070, 112
      %v6649 = vpop.permute.xlu0 %6648
      %6650 = vrot.lane.b32.xlu0 %v6071, 112
      %v6651 = vpop.permute.xlu0 %6650
      %6652 = vrot.lane.b32.xlu0 %v6072, 112
      %v6653 = vpop.permute.xlu0 %6652
      %6654 = vrot.lane.b32.xlu0 %v6073, 112
      %v6655 = vpop.permute.xlu0 %6654
      %6656 = vrot.lane.b32.xlu0 %v6074, 112
      %v6657 = vpop.permute.xlu0 %6656
      %6658 = vrot.lane.b32.xlu0 %v6075, 112
      %v6659 = vpop.permute.xlu0 %6658
      %6660 = vrot.lane.b32.xlu0 %v6076, 112
      %v6661 = vpop.permute.xlu0 %6660
      %6662 = vrot.lane.b32.xlu0 %v6077, 112
      %v6663 = vpop.permute.xlu0 %6662
      %6664 = vrot.lane.b32.xlu0 %v6078, 112
      %v6665 = vpop.permute.xlu0 %6664
      %6666 = vrot.lane.b32.xlu0 %v6079, 112
      %v6667 = vpop.permute.xlu0 %6666
      %6668 = vrot.lane.b32.xlu0 %v6080, 112
      %v6669 = vpop.permute.xlu0 %6668
      %6670 = vrot.lane.b32.xlu0 %v6081, 112
      %v6671 = vpop.permute.xlu0 %6670
      %6672 = vrot.lane.b32.xlu0 %v6082, 112
      %v6673 = vpop.permute.xlu0 %6672
      %6674 = vrot.lane.b32.xlu0 %v6083, 112
      %v6675 = vpop.permute.xlu0 %6674
      %6676 = vrot.lane.b32.xlu0 %v6084, 112
      %v6677 = vpop.permute.xlu0 %6676
      %6678 = vrot.lane.b32.xlu0 %v6085, 112
      %v6679 = vpop.permute.xlu0 %6678
      %6680 = vrot.lane.b32.xlu0 %v5976, 48
      %v6681 = vpop.permute.xlu0 %6680
      %6682 = vrot.lane.b32.xlu0 %v5982, 48
      %v6683 = vpop.permute.xlu0 %6682
      %6684 = vrot.lane.b32.xlu0 %v5988, 48
      %v6685 = vpop.permute.xlu0 %6684
      %6686 = vrot.lane.b32.xlu0 %v5994, 48
      %v6687 = vpop.permute.xlu0 %6686
      %6688 = vrot.lane.b32.xlu0 %v6000, 48
      %v6689 = vpop.permute.xlu0 %6688
      %6690 = vrot.lane.b32.xlu0 %v6006, 48
      %v6691 = vpop.permute.xlu0 %6690
      %6692 = vrot.lane.b32.xlu0 %v6012, 48
      %v6693 = vpop.permute.xlu0 %6692
      %6694 = vrot.lane.b32.xlu0 %v6018, 48
      %v6695 = vpop.permute.xlu0 %6694
      %6696 = vrot.lane.b32.xlu0 %v6024, 48
      %v6697 = vpop.permute.xlu0 %6696
      %6698 = vrot.lane.b32.xlu0 %v6030, 48
      %v6699 = vpop.permute.xlu0 %6698
      %6700 = vrot.lane.b32.xlu0 %v6036, 48
      %v6701 = vpop.permute.xlu0 %6700
      %6702 = vrot.lane.b32.xlu0 %v6042, 48
      %v6703 = vpop.permute.xlu0 %6702
      %6704 = vrot.lane.b32.xlu0 %v6048, 48
      %v6705 = vpop.permute.xlu0 %6704
      %6706 = vrot.lane.b32.xlu0 %v6054, 48
      %v6707 = vpop.permute.xlu0 %6706
      %6708 = vrot.lane.b32.xlu0 %v6060, 48
      %v6709 = vpop.permute.xlu0 %6708
      %6710 = vrot.lane.b32.xlu0 %v6066, 48
      %v6711 = vpop.permute.xlu0 %6710
      %v6712 = vsel %vm1177, %v6649, 0
      %v6714 = vsel %vm1177, %v6651, 0
      %v6716 = vsel %vm1177, %v6653, 0
      %v6718 = vsel %vm1177, %v6655, 0
      %v6720 = vsel %vm1177, %v6657, 0
      %v6722 = vsel %vm1177, %v6659, 0
      %v6724 = vsel %vm1177, %v6661, 0
      %v6726 = vsel %vm1177, %v6663, 0
      %v6728 = vsel %vm1177, %v6665, 0
      %v6730 = vsel %vm1177, %v6667, 0
      %v6732 = vsel %vm1177, %v6669, 0
      %v6734 = vsel %vm1177, %v6671, 0
      %v6736 = vsel %vm1177, %v6673, 0
      %v6738 = vsel %vm1177, %v6675, 0
      %v6740 = vsel %vm1177, %v6677, 0
      %v6742 = vsel %vm1177, %v6679, 0
      %v6744 = vsel %vm1177, %v6681, 0
      %v6746 = vsel %vm1177, %v6683, 0
      %v6748 = vsel %vm1177, %v6685, 0
      %v6750 = vsel %vm1177, %v6687, 0
      %v6752 = vsel %vm1177, %v6689, 0
      %v6754 = vsel %vm1177, %v6691, 0
      %v6756 = vsel %vm1177, %v6693, 0
      %v6758 = vsel %vm1177, %v6695, 0
      %v6760 = vsel %vm1177, %v6697, 0
      %v6762 = vsel %vm1177, %v6699, 0
      %v6764 = vsel %vm1177, %v6701, 0
      %v6766 = vsel %vm1177, %v6703, 0
      %v6768 = vsel %vm1177, %v6705, 0
      %v6770 = vsel %vm1177, %v6707, 0
      %v6772 = vsel %vm1177, %v6709, 0
      %v6774 = vsel %vm1177, %v6711, 0
      %6776 = vmatprep.subr.mxu0 0.0
      %6777 = vmatpush1.xpose.msra.mxu0 %v6744
      %6778 = vmatprep.subr.mxu0 0.0
      %6779 = vmatpush1.xpose.msra.mxu0 %v6746
      %6780 = vmatprep.subr.mxu0 0.0
      %6781 = vmatpush1.xpose.msra.mxu0 %v6748
      %6782 = vmatprep.subr.mxu0 0.0
      %6783 = vmatpush1.xpose.msra.mxu0 %v6750
      %6784 = vmatprep.subr.mxu0 0.0
      %6785 = vmatpush1.xpose.msra.mxu0 %v6752
      %6786 = vmatprep.subr.mxu0 0.0
      %6787 = vmatpush1.xpose.msra.mxu0 %v6754
      %6788 = vmatprep.subr.mxu0 0.0
      %6789 = vmatpush1.xpose.msra.mxu0 %v6756
      %6790 = vmatprep.subr.mxu0 0.0
      %6791 = vmatpush1.xpose.msra.mxu0 %v6758
      %6792 = vmatprep.subr.mxu0 0.0
      %6793 = vmatpush1.xpose.msra.mxu0 %v6760
      %6794 = vmatprep.subr.mxu0 0.0
      %6795 = vmatpush1.xpose.msra.mxu0 %v6762
      %6796 = vmatprep.subr.mxu0 0.0
      %6797 = vmatpush1.xpose.msra.mxu0 %v6764
      %6798 = vmatprep.subr.mxu0 0.0
      %6799 = vmatpush1.xpose.msra.mxu0 %v6766
      %6800 = vmatprep.subr.mxu0 0.0
      %6801 = vmatpush1.xpose.msra.mxu0 %v6768
      %6802 = vmatprep.subr.mxu0 0.0
      %6803 = vmatpush1.xpose.msra.mxu0 %v6770
      %6804 = vmatprep.subr.mxu0 0.0
      %6805 = vmatpush1.xpose.msra.mxu0 %v6772
      %6806 = vmatprep.subr.mxu0 0.0
      %6807 = vmatpush1.xpose.msra.mxu0 %v6774
      %6808 = vmatprep.subr.mxu0 0.0
      %6809 = vmatpush1.xpose.msra.mxu0 0.0
      %6810 = vmatprep.subr.mxu0 0.0
      %6811 = vmatpush1.xpose.msra.mxu0 0.0
      %6812 = vmatprep.subr.mxu0 0.0
      %6813 = vmatpush1.xpose.msra.mxu0 0.0
      %6814 = vmatprep.subr.mxu0 0.0
      %6815 = vmatpush1.xpose.msra.mxu0 0.0
      %6816 = vmatprep.subr.mxu0 0.0
      %6817 = vmatpush1.xpose.msra.mxu0 0.0
      %6818 = vmatprep.subr.mxu0 0.0
      %6819 = vmatpush1.xpose.msra.mxu0 0.0
      %6820 = vmatprep.subr.mxu0 0.0
      %6821 = vmatpush1.xpose.msra.mxu0 0.0
      %6822 = vmatprep.subr.mxu0 0.0
      %6823 = vmatpush1.xpose.msra.mxu0 0.0
      %6824 = vmatprep.subr.mxu0 0.0
      %6825 = vmatpush1.xpose.msra.mxu0 0.0
      %6826 = vmatprep.subr.mxu0 0.0
      %6827 = vmatpush1.xpose.msra.mxu0 0.0
      %6828 = vmatprep.subr.mxu0 0.0
      %6829 = vmatpush1.xpose.msra.mxu0 0.0
      %6830 = vmatprep.subr.mxu0 0.0
      %6831 = vmatpush1.xpose.msra.mxu0 0.0
      %6832 = vmatprep.subr.mxu0 0.0
      %6833 = vmatpush1.xpose.msra.mxu0 0.0
      %6834 = vmatprep.subr.mxu0 0.0
      %6835 = vmatpush1.xpose.msra.mxu0 0.0
      %6836 = vmatprep.subr.mxu0 0.0
      %6837 = vmatpush1.xpose.msra.mxu0 0.0
      %6838 = vmatprep.subr.mxu0 0.0
      %6839 = vmatpush1.xpose.msra.mxu0 0.0
      %6840 = vmatprep.mubr.f32.mxu0 0.0
      %6841 = vmatmul.mubr.f32.gmra.mrb[0].mxu0 %v6712
      %v6842 = vpop.f32.mrb[0].mxu0
      %v6843 = vadd.f32 %v604, %v6842
      %v6844 = vpop.f32.mrb[0].mxu0
      %6845 = vmatprep.mubr.f32.mxu0 0.0
      %6846 = vmatmul.mubr.f32.gmra.mrb[0].mxu0 %v6714
      %v6847 = vpop.f32.mrb[0].mxu0
      %v6848 = vadd.f32 %v605, %v6847
      %v6849 = vpop.f32.mrb[0].mxu0
      %6850 = vmatprep.mubr.f32.mxu0 0.0
      %6851 = vmatmul.mubr.f32.gmra.mrb[0].mxu0 %v6716
      %v6852 = vpop.f32.mrb[0].mxu0
      %v6853 = vadd.f32 %v606, %v6852
      %v6854 = vpop.f32.mrb[0].mxu0
      %6855 = vmatprep.mubr.f32.mxu0 0.0
      %6856 = vmatmul.mubr.f32.gmra.mrb[0].mxu0 %v6718
      %v6857 = vpop.f32.mrb[0].mxu0
      %v6858 = vadd.f32 %v607, %v6857
      %v6859 = vpop.f32.mrb[0].mxu0
      %6860 = vmatprep.mubr.f32.mxu0 0.0
      %6861 = vmatmul.mubr.f32.gmra.mrb[0].mxu0 %v6720
      %v6862 = vpop.f32.mrb[0].mxu0
      %v6863 = vadd.f32 %v608, %v6862
      %v6864 = vpop.f32.mrb[0].mxu0
      %6865 = vmatprep.mubr.f32.mxu0 0.0
      %6866 = vmatmul.mubr.f32.gmra.mrb[0].mxu0 %v6722
      %v6867 = vpop.f32.mrb[0].mxu0
      %v6868 = vadd.f32 %v609, %v6867
      %v6869 = vpop.f32.mrb[0].mxu0
      %6870 = vmatprep.mubr.f32.mxu0 0.0
      %6871 = vmatmul.mubr.f32.gmra.mrb[0].mxu0 %v6724
      %v6872 = vpop.f32.mrb[0].mxu0
      %v6873 = vadd.f32 %v610, %v6872
      %v6874 = vpop.f32.mrb[0].mxu0
      %6875 = vmatprep.mubr.f32.mxu0 0.0
      %6876 = vmatmul.mubr.f32.gmra.mrb[0].mxu0 %v6726
      %v6877 = vpop.f32.mrb[0].mxu0
      %v6878 = vadd.f32 %v611, %v6877
      %v6879 = vpop.f32.mrb[0].mxu0
      %6880 = vmatprep.mubr.f32.mxu0 0.0
      %6881 = vmatmul.mubr.f32.gmra.mrb[0].mxu0 %v6728
      %v6882 = vpop.f32.mrb[0].mxu0
      %v6883 = vadd.f32 %v612, %v6882
      %v6884 = vpop.f32.mrb[0].mxu0
      %6885 = vmatprep.mubr.f32.mxu0 0.0
      %6886 = vmatmul.mubr.f32.gmra.mrb[0].mxu0 %v6730
      %v6887 = vpop.f32.mrb[0].mxu0
      %v6888 = vadd.f32 %v613, %v6887
      %v6889 = vpop.f32.mrb[0].mxu0
      %6890 = vmatprep.mubr.f32.mxu0 0.0
      %6891 = vmatmul.mubr.f32.gmra.mrb[0].mxu0 %v6732
      %v6892 = vpop.f32.mrb[0].mxu0
      %v6893 = vadd.f32 %v614, %v6892
      %v6894 = vpop.f32.mrb[0].mxu0
      %6895 = vmatprep.mubr.f32.mxu0 0.0
      %6896 = vmatmul.mubr.f32.gmra.mrb[0].mxu0 %v6734
      %v6897 = vpop.f32.mrb[0].mxu0
      %v6898 = vadd.f32 %v615, %v6897
      %v6899 = vpop.f32.mrb[0].mxu0
      %6900 = vmatprep.mubr.f32.mxu0 0.0
      %6901 = vmatmul.mubr.f32.gmra.mrb[0].mxu0 %v6736
      %v6902 = vpop.f32.mrb[0].mxu0
      %v6903 = vadd.f32 %v616, %v6902
      %v6904 = vpop.f32.mrb[0].mxu0
      %6905 = vmatprep.mubr.f32.mxu0 0.0
      %6906 = vmatmul.mubr.f32.gmra.mrb[0].mxu0 %v6738
      %v6907 = vpop.f32.mrb[0].mxu0
      %v6908 = vadd.f32 %v617, %v6907
      %v6909 = vpop.f32.mrb[0].mxu0
      %6910 = vmatprep.mubr.f32.mxu0 0.0
      %6911 = vmatmul.mubr.f32.gmra.mrb[0].mxu0 %v6740
      %v6912 = vpop.f32.mrb[0].mxu0
      %v6913 = vadd.f32 %v618, %v6912
      %v6914 = vpop.f32.mrb[0].mxu0
      %6915 = vmatprep.mubr.f32.mxu0 0.0
      %6916 = vmatmul.mubr.f32.gmra.mrb[0].mxu0 %v6742
      %v6917 = vpop.f32.mrb[0].mxu0
      %v6918 = vadd.f32 %v619, %v6917
      %v6919 = vpop.f32.mrb[0].mxu0
      %6920 = vdwg.mxu0
      %6921 = vmax.xlane.f32.xlu0 %v6843
      %v6922 = vpop.xlane.xlu0 %6921
      %6923 = vmax.xlane.f32.xlu0 %v6848
      %v6924 = vpop.xlane.xlu0 %6923
      %6925 = vmax.xlane.f32.xlu0 %v6853
      %v6926 = vpop.xlane.xlu0 %6925
      %6927 = vmax.xlane.f32.xlu0 %v6858
      %v6928 = vpop.xlane.xlu0 %6927
      %6929 = vmax.xlane.f32.xlu0 %v6863
      %v6930 = vpop.xlane.xlu0 %6929
      %6931 = vmax.xlane.f32.xlu0 %v6868
      %v6932 = vpop.xlane.xlu0 %6931
      %6933 = vmax.xlane.f32.xlu0 %v6873
      %v6934 = vpop.xlane.xlu0 %6933
      %6935 = vmax.xlane.f32.xlu0 %v6878
      %v6936 = vpop.xlane.xlu0 %6935
      %6937 = vmax.xlane.f32.xlu0 %v6883
      %v6938 = vpop.xlane.xlu0 %6937
      %6939 = vmax.xlane.f32.xlu0 %v6888
      %v6940 = vpop.xlane.xlu0 %6939
      %6941 = vmax.xlane.f32.xlu0 %v6893
      %v6942 = vpop.xlane.xlu0 %6941
      %6943 = vmax.xlane.f32.xlu0 %v6898
      %v6944 = vpop.xlane.xlu0 %6943
      %6945 = vmax.xlane.f32.xlu0 %v6903
      %v6946 = vpop.xlane.xlu0 %6945
      %6947 = vmax.xlane.f32.xlu0 %v6908
      %v6948 = vpop.xlane.xlu0 %6947
      %6949 = vmax.xlane.f32.xlu0 %v6913
      %v6950 = vpop.xlane.xlu0 %6949
      %6951 = vmax.xlane.f32.xlu0 %v6918
      %v6952 = vpop.xlane.xlu0 %6951
      %v6953 = vsub.f32 %v6843, %v6922
      %v6954 = vsub.f32 %v6848, %v6924
      %v6955 = vsub.f32 %v6853, %v6926
      %v6956 = vsub.f32 %v6858, %v6928
      %v6957 = vsub.f32 %v6863, %v6930
      %v6958 = vsub.f32 %v6868, %v6932
      %v6959 = vsub.f32 %v6873, %v6934
      %v6960 = vsub.f32 %v6878, %v6936
      %v6961 = vsub.f32 %v6883, %v6938
      %v6962 = vsub.f32 %v6888, %v6940
      %v6963 = vsub.f32 %v6893, %v6942
      %v6964 = vsub.f32 %v6898, %v6944
      %v6965 = vsub.f32 %v6903, %v6946
      %v6966 = vsub.f32 %v6908, %v6948
      %v6967 = vsub.f32 %v6913, %v6950
      %v6968 = vsub.f32 %v6918, %v6952
      %v6969 = vmul.f32 %v6953, 1.442695
      %v6970 = vpow.pop %v6969
      %v6971 = vmul.f32 %v6954, 1.442695
      %v6972 = vpow.pop %v6971
      %v6973 = vmul.f32 %v6955, 1.442695
      %v6974 = vpow.pop %v6973
      %v6975 = vmul.f32 %v6956, 1.442695
      %v6976 = vpow.pop %v6975
      %v6977 = vmul.f32 %v6957, 1.442695
      %v6978 = vpow.pop %v6977
      %v6979 = vmul.f32 %v6958, 1.442695
      %v6980 = vpow.pop %v6979
      %v6981 = vmul.f32 %v6959, 1.442695
      %v6982 = vpow.pop %v6981
      %v6983 = vmul.f32 %v6960, 1.442695
      %v6984 = vpow.pop %v6983
      %v6985 = vmul.f32 %v6961, 1.442695
      %v6986 = vpow.pop %v6985
      %v6987 = vmul.f32 %v6962, 1.442695
      %v6988 = vpow.pop %v6987
      %v6989 = vmul.f32 %v6963, 1.442695
      %v6990 = vpow.pop %v6989
      %v6991 = vmul.f32 %v6964, 1.442695
      %v6992 = vpow.pop %v6991
      %v6993 = vmul.f32 %v6965, 1.442695
      %v6994 = vpow.pop %v6993
      %v6995 = vmul.f32 %v6966, 1.442695
      %v6996 = vpow.pop %v6995
      %v6997 = vmul.f32 %v6967, 1.442695
      %v6998 = vpow.pop %v6997
      %v6999 = vmul.f32 %v6968, 1.442695
      %v7000 = vpow.pop %v6999
      %7001 = vadd.xlane.f32.xlu0 %v6970
      %v7002 = vpop.xlane.xlu0 %7001
      %7003 = vadd.xlane.f32.xlu0 %v6972
      %v7004 = vpop.xlane.xlu0 %7003
      %7005 = vadd.xlane.f32.xlu0 %v6974
      %v7006 = vpop.xlane.xlu0 %7005
      %7007 = vadd.xlane.f32.xlu0 %v6976
      %v7008 = vpop.xlane.xlu0 %7007
      %7009 = vadd.xlane.f32.xlu0 %v6978
      %v7010 = vpop.xlane.xlu0 %7009
      %7011 = vadd.xlane.f32.xlu0 %v6980
      %v7012 = vpop.xlane.xlu0 %7011
      %7013 = vadd.xlane.f32.xlu0 %v6982
      %v7014 = vpop.xlane.xlu0 %7013
      %7015 = vadd.xlane.f32.xlu0 %v6984
      %v7016 = vpop.xlane.xlu0 %7015
      %7017 = vadd.xlane.f32.xlu0 %v6986
      %v7018 = vpop.xlane.xlu0 %7017
      %7019 = vadd.xlane.f32.xlu0 %v6988
      %v7020 = vpop.xlane.xlu0 %7019
      %7021 = vadd.xlane.f32.xlu0 %v6990
      %v7022 = vpop.xlane.xlu0 %7021
      %7023 = vadd.xlane.f32.xlu0 %v6992
      %v7024 = vpop.xlane.xlu0 %7023
      %7025 = vadd.xlane.f32.xlu0 %v6994
      %v7026 = vpop.xlane.xlu0 %7025
      %7027 = vadd.xlane.f32.xlu0 %v6996
      %v7028 = vpop.xlane.xlu0 %7027
      %7029 = vadd.xlane.f32.xlu0 %v6998
      %v7030 = vpop.xlane.xlu0 %7029
      %7031 = vadd.xlane.f32.xlu0 %v7000
      %v7032 = vpop.xlane.xlu0 %7031
      %v7033 = vrcp.pop %v7002
      %v7034 = vmul.f32 %v6970, %v7033
      %v7035 = vrcp.pop %v7004
      %v7036 = vmul.f32 %v6972, %v7035
      %v7037 = vrcp.pop %v7006
      %v7038 = vmul.f32 %v6974, %v7037
      %v7039 = vrcp.pop %v7008
      %v7040 = vmul.f32 %v6976, %v7039
      %v7041 = vrcp.pop %v7010
      %v7042 = vmul.f32 %v6978, %v7041
      %v7043 = vrcp.pop %v7012
      %v7044 = vmul.f32 %v6980, %v7043
      %v7045 = vrcp.pop %v7014
      %v7046 = vmul.f32 %v6982, %v7045
      %v7047 = vrcp.pop %v7016
      %v7048 = vmul.f32 %v6984, %v7047
      %v7049 = vrcp.pop %v7018
      %v7050 = vmul.f32 %v6986, %v7049
      %v7051 = vrcp.pop %v7020
      %v7052 = vmul.f32 %v6988, %v7051
      %v7053 = vrcp.pop %v7022
      %v7054 = vmul.f32 %v6990, %v7053
      %v7055 = vrcp.pop %v7024
      %v7056 = vmul.f32 %v6992, %v7055
      %v7057 = vrcp.pop %v7026
      %v7058 = vmul.f32 %v6994, %v7057
      %v7059 = vrcp.pop %v7028
      %v7060 = vmul.f32 %v6996, %v7059
      %v7061 = vrcp.pop %v7030
      %v7062 = vmul.f32 %v6998, %v7061
      %v7063 = vrcp.pop %v7032
      %v7064 = vmul.f32 %v7000, %v7063
      %7081 = vrot.lane.b32.xlu0 %v5978, 112
      %v7082 = vpop.permute.xlu0 %7081
      %7083 = vrot.lane.b32.xlu0 %v5984, 112
      %v7084 = vpop.permute.xlu0 %7083
      %7085 = vrot.lane.b32.xlu0 %v5990, 112
      %v7086 = vpop.permute.xlu0 %7085
      %7087 = vrot.lane.b32.xlu0 %v5996, 112
      %v7088 = vpop.permute.xlu0 %7087
      %7089 = vrot.lane.b32.xlu0 %v6002, 112
      %v7090 = vpop.permute.xlu0 %7089
      %7091 = vrot.lane.b32.xlu0 %v6008, 112
      %v7092 = vpop.permute.xlu0 %7091
      %7093 = vrot.lane.b32.xlu0 %v6014, 112
      %v7094 = vpop.permute.xlu0 %7093
      %7095 = vrot.lane.b32.xlu0 %v6020, 112
      %v7096 = vpop.permute.xlu0 %7095
      %7097 = vrot.lane.b32.xlu0 %v6026, 112
      %v7098 = vpop.permute.xlu0 %7097
      %7099 = vrot.lane.b32.xlu0 %v6032, 112
      %v7100 = vpop.permute.xlu0 %7099
      %7101 = vrot.lane.b32.xlu0 %v6038, 112
      %v7102 = vpop.permute.xlu0 %7101
      %7103 = vrot.lane.b32.xlu0 %v6044, 112
      %v7104 = vpop.permute.xlu0 %7103
      %7105 = vrot.lane.b32.xlu0 %v6050, 112
      %v7106 = vpop.permute.xlu0 %7105
      %7107 = vrot.lane.b32.xlu0 %v6056, 112
      %v7108 = vpop.permute.xlu0 %7107
      %7109 = vrot.lane.b32.xlu0 %v6062, 112
      %v7110 = vpop.permute.xlu0 %7109
      %7111 = vrot.lane.b32.xlu0 %v6068, 112
      %v7112 = vpop.permute.xlu0 %7111
      %7129 = vmatprep.subr.mxu0 0.0
      %7130 = vmatpush1.msra.mxu0 %v7082
      %7131 = vmatprep.subr.mxu0 0.0
      %7132 = vmatpush1.msra.mxu0 %v7084
      %7133 = vmatprep.subr.mxu0 0.0
      %7134 = vmatpush1.msra.mxu0 %v7086
      %7135 = vmatprep.subr.mxu0 0.0
      %7136 = vmatpush1.msra.mxu0 %v7088
      %7137 = vmatprep.subr.mxu0 0.0
      %7138 = vmatpush1.msra.mxu0 %v7090
      %7139 = vmatprep.subr.mxu0 0.0
      %7140 = vmatpush1.msra.mxu0 %v7092
      %7141 = vmatprep.subr.mxu0 0.0
      %7142 = vmatpush1.msra.mxu0 %v7094
      %7143 = vmatprep.subr.mxu0 0.0
      %7144 = vmatpush1.msra.mxu0 %v7096
      %7145 = vmatprep.subr.mxu0 0.0
      %7146 = vmatpush1.msra.mxu0 %v7098
      %7147 = vmatprep.subr.mxu0 0.0
      %7148 = vmatpush1.msra.mxu0 %v7100
      %7149 = vmatprep.subr.mxu0 0.0
      %7150 = vmatpush1.msra.mxu0 %v7102
      %7151 = vmatprep.subr.mxu0 0.0
      %7152 = vmatpush1.msra.mxu0 %v7104
      %7153 = vmatprep.subr.mxu0 0.0
      %7154 = vmatpush1.msra.mxu0 %v7106
      %7155 = vmatprep.subr.mxu0 0.0
      %7156 = vmatpush1.msra.mxu0 %v7108
      %7157 = vmatprep.subr.mxu0 0.0
      %7158 = vmatpush1.msra.mxu0 %v7110
      %7159 = vmatprep.subr.mxu0 0.0
      %7160 = vmatpush1.msra.mxu0 %v7112
      %7161 = vmatprep.subr.mxu0 0.0
      %7162 = vmatpush1.msra.mxu0 0.0
      %7163 = vmatprep.subr.mxu0 0.0
      %7164 = vmatpush1.msra.mxu0 0.0
      %7165 = vmatprep.subr.mxu0 0.0
      %7166 = vmatpush1.msra.mxu0 0.0
      %7167 = vmatprep.subr.mxu0 0.0
      %7168 = vmatpush1.msra.mxu0 0.0
      %7169 = vmatprep.subr.mxu0 0.0
      %7170 = vmatpush1.msra.mxu0 0.0
      %7171 = vmatprep.subr.mxu0 0.0
      %7172 = vmatpush1.msra.mxu0 0.0
      %7173 = vmatprep.subr.mxu0 0.0
      %7174 = vmatpush1.msra.mxu0 0.0
      %7175 = vmatprep.subr.mxu0 0.0
      %7176 = vmatpush1.msra.mxu0 0.0
      %7177 = vmatprep.subr.mxu0 0.0
      %7178 = vmatpush1.msra.mxu0 0.0
      %7179 = vmatprep.subr.mxu0 0.0
      %7180 = vmatpush1.msra.mxu0 0.0
      %7181 = vmatprep.subr.mxu0 0.0
      %7182 = vmatpush1.msra.mxu0 0.0
      %7183 = vmatprep.subr.mxu0 0.0
      %7184 = vmatpush1.msra.mxu0 0.0
      %7185 = vmatprep.subr.mxu0 0.0
      %7186 = vmatpush1.msra.mxu0 0.0
      %7187 = vmatprep.subr.mxu0 0.0
      %7188 = vmatpush1.msra.mxu0 0.0
      %7189 = vmatprep.subr.mxu0 0.0
      %7190 = vmatpush1.msra.mxu0 0.0
      %7191 = vmatprep.subr.mxu0 0.0
      %7192 = vmatpush1.msra.mxu0 0.0
      %7193 = vmatprep.mubr.f32.mxu0 0.0
      %7194 = vmatmul.mubr.f32.gmra.mrb[0].mxu0 %v7034
      %v7195 = vpop.f32.mrb[0].mxu0
      %v7196 = vadd.f32 0.0, %v7195
      %v7197 = vpop.f32.mrb[0].mxu0
      %7198 = vmatprep.mubr.f32.mxu0 0.0
      %7199 = vmatmul.mubr.f32.gmra.mrb[0].mxu0 %v7036
      %v7200 = vpop.f32.mrb[0].mxu0
      %v7201 = vadd.f32 0.0, %v7200
      %v7202 = vpop.f32.mrb[0].mxu0
      %7203 = vmatprep.mubr.f32.mxu0 0.0
      %7204 = vmatmul.mubr.f32.gmra.mrb[0].mxu0 %v7038
      %v7205 = vpop.f32.mrb[0].mxu0
      %v7206 = vadd.f32 0.0, %v7205
      %v7207 = vpop.f32.mrb[0].mxu0
      %7208 = vmatprep.mubr.f32.mxu0 0.0
      %7209 = vmatmul.mubr.f32.gmra.mrb[0].mxu0 %v7040
      %v7210 = vpop.f32.mrb[0].mxu0
      %v7211 = vadd.f32 0.0, %v7210
      %v7212 = vpop.f32.mrb[0].mxu0
      %7213 = vmatprep.mubr.f32.mxu0 0.0
      %7214 = vmatmul.mubr.f32.gmra.mrb[0].mxu0 %v7042
      %v7215 = vpop.f32.mrb[0].mxu0
      %v7216 = vadd.f32 0.0, %v7215
      %v7217 = vpop.f32.mrb[0].mxu0
      %7218 = vmatprep.mubr.f32.mxu0 0.0
      %7219 = vmatmul.mubr.f32.gmra.mrb[0].mxu0 %v7044
      %v7220 = vpop.f32.mrb[0].mxu0
      %v7221 = vadd.f32 0.0, %v7220
      %v7222 = vpop.f32.mrb[0].mxu0
      %7223 = vmatprep.mubr.f32.mxu0 0.0
      %7224 = vmatmul.mubr.f32.gmra.mrb[0].mxu0 %v7046
      %v7225 = vpop.f32.mrb[0].mxu0
      %v7226 = vadd.f32 0.0, %v7225
      %v7227 = vpop.f32.mrb[0].mxu0
      %7228 = vmatprep.mubr.f32.mxu0 0.0
      %7229 = vmatmul.mubr.f32.gmra.mrb[0].mxu0 %v7048
      %v7230 = vpop.f32.mrb[0].mxu0
      %v7231 = vadd.f32 0.0, %v7230
      %v7232 = vpop.f32.mrb[0].mxu0
      %7233 = vmatprep.mubr.f32.mxu0 0.0
      %7234 = vmatmul.mubr.f32.gmra.mrb[0].mxu0 %v7050
      %v7235 = vpop.f32.mrb[0].mxu0
      %v7236 = vadd.f32 0.0, %v7235
      %v7237 = vpop.f32.mrb[0].mxu0
      %7238 = vmatprep.mubr.f32.mxu0 0.0
      %7239 = vmatmul.mubr.f32.gmra.mrb[0].mxu0 %v7052
      %v7240 = vpop.f32.mrb[0].mxu0
      %v7241 = vadd.f32 0.0, %v7240
      %v7242 = vpop.f32.mrb[0].mxu0
      %7243 = vmatprep.mubr.f32.mxu0 0.0
      %7244 = vmatmul.mubr.f32.gmra.mrb[0].mxu0 %v7054
      %v7245 = vpop.f32.mrb[0].mxu0
      %v7246 = vadd.f32 0.0, %v7245
      %v7247 = vpop.f32.mrb[0].mxu0
      %7248 = vmatprep.mubr.f32.mxu0 0.0
      %7249 = vmatmul.mubr.f32.gmra.mrb[0].mxu0 %v7056
      %v7250 = vpop.f32.mrb[0].mxu0
      %v7251 = vadd.f32 0.0, %v7250
      %v7252 = vpop.f32.mrb[0].mxu0
      %7253 = vmatprep.mubr.f32.mxu0 0.0
      %7254 = vmatmul.mubr.f32.gmra.mrb[0].mxu0 %v7058
      %v7255 = vpop.f32.mrb[0].mxu0
      %v7256 = vadd.f32 0.0, %v7255
      %v7257 = vpop.f32.mrb[0].mxu0
      %7258 = vmatprep.mubr.f32.mxu0 0.0
      %7259 = vmatmul.mubr.f32.gmra.mrb[0].mxu0 %v7060
      %v7260 = vpop.f32.mrb[0].mxu0
      %v7261 = vadd.f32 0.0, %v7260
      %v7262 = vpop.f32.mrb[0].mxu0
      %7263 = vmatprep.mubr.f32.mxu0 0.0
      %7264 = vmatmul.mubr.f32.gmra.mrb[0].mxu0 %v7062
      %v7265 = vpop.f32.mrb[0].mxu0
      %v7266 = vadd.f32 0.0, %v7265
      %v7267 = vpop.f32.mrb[0].mxu0
      %7268 = vmatprep.mubr.f32.mxu0 0.0
      %7269 = vmatmul.mubr.f32.gmra.mrb[0].mxu0 %v7064
      %v7270 = vpop.f32.mrb[0].mxu0
      %v7271 = vadd.f32 0.0, %v7270
      %v7272 = vpop.f32.mrb[0].mxu0
      %7273 = vdwg.mxu0
      %7274 = vrot.lane.b32.xlu0 %v6070, 96
      %v7275 = vpop.permute.xlu0 %7274
      %7276 = vrot.lane.b32.xlu0 %v6071, 96
      %v7277 = vpop.permute.xlu0 %7276
      %7278 = vrot.lane.b32.xlu0 %v6072, 96
      %v7279 = vpop.permute.xlu0 %7278
      %7280 = vrot.lane.b32.xlu0 %v6073, 96
      %v7281 = vpop.permute.xlu0 %7280
      %7282 = vrot.lane.b32.xlu0 %v6074, 96
      %v7283 = vpop.permute.xlu0 %7282
      %7284 = vrot.lane.b32.xlu0 %v6075, 96
      %v7285 = vpop.permute.xlu0 %7284
      %7286 = vrot.lane.b32.xlu0 %v6076, 96
      %v7287 = vpop.permute.xlu0 %7286
      %7288 = vrot.lane.b32.xlu0 %v6077, 96
      %v7289 = vpop.permute.xlu0 %7288
      %7290 = vrot.lane.b32.xlu0 %v6078, 96
      %v7291 = vpop.permute.xlu0 %7290
      %7292 = vrot.lane.b32.xlu0 %v6079, 96
      %v7293 = vpop.permute.xlu0 %7292
      %7294 = vrot.lane.b32.xlu0 %v6080, 96
      %v7295 = vpop.permute.xlu0 %7294
      %7296 = vrot.lane.b32.xlu0 %v6081, 96
      %v7297 = vpop.permute.xlu0 %7296
      %7298 = vrot.lane.b32.xlu0 %v6082, 96
      %v7299 = vpop.permute.xlu0 %7298
      %7300 = vrot.lane.b32.xlu0 %v6083, 96
      %v7301 = vpop.permute.xlu0 %7300
      %7302 = vrot.lane.b32.xlu0 %v6084, 96
      %v7303 = vpop.permute.xlu0 %7302
      %7304 = vrot.lane.b32.xlu0 %v6085, 96
      %v7305 = vpop.permute.xlu0 %7304
      %7306 = vrot.lane.b32.xlu0 %v5976, 32
      %v7307 = vpop.permute.xlu0 %7306
      %7308 = vrot.lane.b32.xlu0 %v5982, 32
      %v7309 = vpop.permute.xlu0 %7308
      %7310 = vrot.lane.b32.xlu0 %v5988, 32
      %v7311 = vpop.permute.xlu0 %7310
      %7312 = vrot.lane.b32.xlu0 %v5994, 32
      %v7313 = vpop.permute.xlu0 %7312
      %7314 = vrot.lane.b32.xlu0 %v6000, 32
      %v7315 = vpop.permute.xlu0 %7314
      %7316 = vrot.lane.b32.xlu0 %v6006, 32
      %v7317 = vpop.permute.xlu0 %7316
      %7318 = vrot.lane.b32.xlu0 %v6012, 32
      %v7319 = vpop.permute.xlu0 %7318
      %7320 = vrot.lane.b32.xlu0 %v6018, 32
      %v7321 = vpop.permute.xlu0 %7320
      %7322 = vrot.lane.b32.xlu0 %v6024, 32
      %v7323 = vpop.permute.xlu0 %7322
      %7324 = vrot.lane.b32.xlu0 %v6030, 32
      %v7325 = vpop.permute.xlu0 %7324
      %7326 = vrot.lane.b32.xlu0 %v6036, 32
      %v7327 = vpop.permute.xlu0 %7326
      %7328 = vrot.lane.b32.xlu0 %v6042, 32
      %v7329 = vpop.permute.xlu0 %7328
      %7330 = vrot.lane.b32.xlu0 %v6048, 32
      %v7331 = vpop.permute.xlu0 %7330
      %7332 = vrot.lane.b32.xlu0 %v6054, 32
      %v7333 = vpop.permute.xlu0 %7332
      %7334 = vrot.lane.b32.xlu0 %v6060, 32
      %v7335 = vpop.permute.xlu0 %7334
      %7336 = vrot.lane.b32.xlu0 %v6066, 32
      %v7337 = vpop.permute.xlu0 %7336
      %v7338 = vsel %vm1177, %v7275, 0
      %v7340 = vsel %vm1177, %v7277, 0
      %v7342 = vsel %vm1177, %v7279, 0
      %v7344 = vsel %vm1177, %v7281, 0
      %v7346 = vsel %vm1177, %v7283, 0
      %v7348 = vsel %vm1177, %v7285, 0
      %v7350 = vsel %vm1177, %v7287, 0
      %v7352 = vsel %vm1177, %v7289, 0
      %v7354 = vsel %vm1177, %v7291, 0
      %v7356 = vsel %vm1177, %v7293, 0
      %v7358 = vsel %vm1177, %v7295, 0
      %v7360 = vsel %vm1177, %v7297, 0
      %v7362 = vsel %vm1177, %v7299, 0
      %v7364 = vsel %vm1177, %v7301, 0
      %v7366 = vsel %vm1177, %v7303, 0
      %v7368 = vsel %vm1177, %v7305, 0
      %v7370 = vsel %vm1177, %v7307, 0
      %v7372 = vsel %vm1177, %v7309, 0
      %v7374 = vsel %vm1177, %v7311, 0
      %v7376 = vsel %vm1177, %v7313, 0
      %v7378 = vsel %vm1177, %v7315, 0
      %v7380 = vsel %vm1177, %v7317, 0
      %v7382 = vsel %vm1177, %v7319, 0
      %v7384 = vsel %vm1177, %v7321, 0
      %v7386 = vsel %vm1177, %v7323, 0
      %v7388 = vsel %vm1177, %v7325, 0
      %v7390 = vsel %vm1177, %v7327, 0
      %v7392 = vsel %vm1177, %v7329, 0
      %v7394 = vsel %vm1177, %v7331, 0
      %v7396 = vsel %vm1177, %v7333, 0
      %v7398 = vsel %vm1177, %v7335, 0
      %v7400 = vsel %vm1177, %v7337, 0
      %7402 = vmatprep.subr.mxu0 0.0
      %7403 = vmatpush1.xpose.msra.mxu0 %v7370
      %7404 = vmatprep.subr.mxu0 0.0
      %7405 = vmatpush1.xpose.msra.mxu0 %v7372
      %7406 = vmatprep.subr.mxu0 0.0
      %7407 = vmatpush1.xpose.msra.mxu0 %v7374
      %7408 = vmatprep.subr.mxu0 0.0
      %7409 = vmatpush1.xpose.msra.mxu0 %v7376
      %7410 = vmatprep.subr.mxu0 0.0
      %7411 = vmatpush1.xpose.msra.mxu0 %v7378
      %7412 = vmatprep.subr.mxu0 0.0
      %7413 = vmatpush1.xpose.msra.mxu0 %v7380
      %7414 = vmatprep.subr.mxu0 0.0
      %7415 = vmatpush1.xpose.msra.mxu0 %v7382
      %7416 = vmatprep.subr.mxu0 0.0
      %7417 = vmatpush1.xpose.msra.mxu0 %v7384
      %7418 = vmatprep.subr.mxu0 0.0
      %7419 = vmatpush1.xpose.msra.mxu0 %v7386
      %7420 = vmatprep.subr.mxu0 0.0
      %7421 = vmatpush1.xpose.msra.mxu0 %v7388
      %7422 = vmatprep.subr.mxu0 0.0
      %7423 = vmatpush1.xpose.msra.mxu0 %v7390
      %7424 = vmatprep.subr.mxu0 0.0
      %7425 = vmatpush1.xpose.msra.mxu0 %v7392
      %7426 = vmatprep.subr.mxu0 0.0
      %7427 = vmatpush1.xpose.msra.mxu0 %v7394
      %7428 = vmatprep.subr.mxu0 0.0
      %7429 = vmatpush1.xpose.msra.mxu0 %v7396
      %7430 = vmatprep.subr.mxu0 0.0
      %7431 = vmatpush1.xpose.msra.mxu0 %v7398
      %7432 = vmatprep.subr.mxu0 0.0
      %7433 = vmatpush1.xpose.msra.mxu0 %v7400
      %7434 = vmatprep.subr.mxu0 0.0
      %7435 = vmatpush1.xpose.msra.mxu0 0.0
      %7436 = vmatprep.subr.mxu0 0.0
      %7437 = vmatpush1.xpose.msra.mxu0 0.0
      %7438 = vmatprep.subr.mxu0 0.0
      %7439 = vmatpush1.xpose.msra.mxu0 0.0
      %7440 = vmatprep.subr.mxu0 0.0
      %7441 = vmatpush1.xpose.msra.mxu0 0.0
      %7442 = vmatprep.subr.mxu0 0.0
      %7443 = vmatpush1.xpose.msra.mxu0 0.0
      %7444 = vmatprep.subr.mxu0 0.0
      %7445 = vmatpush1.xpose.msra.mxu0 0.0
      %7446 = vmatprep.subr.mxu0 0.0
      %7447 = vmatpush1.xpose.msra.mxu0 0.0
      %7448 = vmatprep.subr.mxu0 0.0
      %7449 = vmatpush1.xpose.msra.mxu0 0.0
      %7450 = vmatprep.subr.mxu0 0.0
      %7451 = vmatpush1.xpose.msra.mxu0 0.0
      %7452 = vmatprep.subr.mxu0 0.0
      %7453 = vmatpush1.xpose.msra.mxu0 0.0
      %7454 = vmatprep.subr.mxu0 0.0
      %7455 = vmatpush1.xpose.msra.mxu0 0.0
      %7456 = vmatprep.subr.mxu0 0.0
      %7457 = vmatpush1.xpose.msra.mxu0 0.0
      %7458 = vmatprep.subr.mxu0 0.0
      %7459 = vmatpush1.xpose.msra.mxu0 0.0
      %7460 = vmatprep.subr.mxu0 0.0
      %7461 = vmatpush1.xpose.msra.mxu0 0.0
      %7462 = vmatprep.subr.mxu0 0.0
      %7463 = vmatpush1.xpose.msra.mxu0 0.0
      %7464 = vmatprep.subr.mxu0 0.0
      %7465 = vmatpush1.xpose.msra.mxu0 0.0
      %7466 = vmatprep.mubr.f32.mxu0 0.0
      %7467 = vmatmul.mubr.f32.gmra.mrb[0].mxu0 %v7338
      %v7468 = vpop.f32.mrb[0].mxu0
      %v7469 = vadd.f32 %v604, %v7468
      %v7470 = vpop.f32.mrb[0].mxu0
      %7471 = vmatprep.mubr.f32.mxu0 0.0
      %7472 = vmatmul.mubr.f32.gmra.mrb[0].mxu0 %v7340
      %v7473 = vpop.f32.mrb[0].mxu0
      %v7474 = vadd.f32 %v605, %v7473
      %v7475 = vpop.f32.mrb[0].mxu0
      %7476 = vmatprep.mubr.f32.mxu0 0.0
      %7477 = vmatmul.mubr.f32.gmra.mrb[0].mxu0 %v7342
      %v7478 = vpop.f32.mrb[0].mxu0
      %v7479 = vadd.f32 %v606, %v7478
      %v7480 = vpop.f32.mrb[0].mxu0
      %7481 = vmatprep.mubr.f32.mxu0 0.0
      %7482 = vmatmul.mubr.f32.gmra.mrb[0].mxu0 %v7344
      %v7483 = vpop.f32.mrb[0].mxu0
      %v7484 = vadd.f32 %v607, %v7483
      %v7485 = vpop.f32.mrb[0].mxu0
      %7486 = vmatprep.mubr.f32.mxu0 0.0
      %7487 = vmatmul.mubr.f32.gmra.mrb[0].mxu0 %v7346
      %v7488 = vpop.f32.mrb[0].mxu0
      %v7489 = vadd.f32 %v608, %v7488
      %v7490 = vpop.f32.mrb[0].mxu0
      %7491 = vmatprep.mubr.f32.mxu0 0.0
      %7492 = vmatmul.mubr.f32.gmra.mrb[0].mxu0 %v7348
      %v7493 = vpop.f32.mrb[0].mxu0
      %v7494 = vadd.f32 %v609, %v7493
      %v7495 = vpop.f32.mrb[0].mxu0
      %7496 = vmatprep.mubr.f32.mxu0 0.0
      %7497 = vmatmul.mubr.f32.gmra.mrb[0].mxu0 %v7350
      %v7498 = vpop.f32.mrb[0].mxu0
      %v7499 = vadd.f32 %v610, %v7498
      %v7500 = vpop.f32.mrb[0].mxu0
      %7501 = vmatprep.mubr.f32.mxu0 0.0
      %7502 = vmatmul.mubr.f32.gmra.mrb[0].mxu0 %v7352
      %v7503 = vpop.f32.mrb[0].mxu0
      %v7504 = vadd.f32 %v611, %v7503
      %v7505 = vpop.f32.mrb[0].mxu0
      %7506 = vmatprep.mubr.f32.mxu0 0.0
      %7507 = vmatmul.mubr.f32.gmra.mrb[0].mxu0 %v7354
      %v7508 = vpop.f32.mrb[0].mxu0
      %v7509 = vadd.f32 %v612, %v7508
      %v7510 = vpop.f32.mrb[0].mxu0
      %7511 = vmatprep.mubr.f32.mxu0 0.0
      %7512 = vmatmul.mubr.f32.gmra.mrb[0].mxu0 %v7356
      %v7513 = vpop.f32.mrb[0].mxu0
      %v7514 = vadd.f32 %v613, %v7513
      %v7515 = vpop.f32.mrb[0].mxu0
      %7516 = vmatprep.mubr.f32.mxu0 0.0
      %7517 = vmatmul.mubr.f32.gmra.mrb[0].mxu0 %v7358
      %v7518 = vpop.f32.mrb[0].mxu0
      %v7519 = vadd.f32 %v614, %v7518
      %v7520 = vpop.f32.mrb[0].mxu0
      %7521 = vmatprep.mubr.f32.mxu0 0.0
      %7522 = vmatmul.mubr.f32.gmra.mrb[0].mxu0 %v7360
      %v7523 = vpop.f32.mrb[0].mxu0
      %v7524 = vadd.f32 %v615, %v7523
      %v7525 = vpop.f32.mrb[0].mxu0
      %7526 = vmatprep.mubr.f32.mxu0 0.0
      %7527 = vmatmul.mubr.f32.gmra.mrb[0].mxu0 %v7362
      %v7528 = vpop.f32.mrb[0].mxu0
      %v7529 = vadd.f32 %v616, %v7528
      %v7530 = vpop.f32.mrb[0].mxu0
      %7531 = vmatprep.mubr.f32.mxu0 0.0
      %7532 = vmatmul.mubr.f32.gmra.mrb[0].mxu0 %v7364
      %v7533 = vpop.f32.mrb[0].mxu0
      %v7534 = vadd.f32 %v617, %v7533
      %v7535 = vpop.f32.mrb[0].mxu0
      %7536 = vmatprep.mubr.f32.mxu0 0.0
      %7537 = vmatmul.mubr.f32.gmra.mrb[0].mxu0 %v7366
      %v7538 = vpop.f32.mrb[0].mxu0
      %v7539 = vadd.f32 %v618, %v7538
      %v7540 = vpop.f32.mrb[0].mxu0
      %7541 = vmatprep.mubr.f32.mxu0 0.0
      %7542 = vmatmul.mubr.f32.gmra.mrb[0].mxu0 %v7368
      %v7543 = vpop.f32.mrb[0].mxu0
      %v7544 = vadd.f32 %v619, %v7543
      %v7545 = vpop.f32.mrb[0].mxu0
      %7546 = vdwg.mxu0
      %7547 = vmax.xlane.f32.xlu0 %v7469
      %v7548 = vpop.xlane.xlu0 %7547
      %7549 = vmax.xlane.f32.xlu0 %v7474
      %v7550 = vpop.xlane.xlu0 %7549
      %7551 = vmax.xlane.f32.xlu0 %v7479
      %v7552 = vpop.xlane.xlu0 %7551
      %7553 = vmax.xlane.f32.xlu0 %v7484
      %v7554 = vpop.xlane.xlu0 %7553
      %7555 = vmax.xlane.f32.xlu0 %v7489
      %v7556 = vpop.xlane.xlu0 %7555
      %7557 = vmax.xlane.f32.xlu0 %v7494
      %v7558 = vpop.xlane.xlu0 %7557
      %7559 = vmax.xlane.f32.xlu0 %v7499
      %v7560 = vpop.xlane.xlu0 %7559
      %7561 = vmax.xlane.f32.xlu0 %v7504
      %v7562 = vpop.xlane.xlu0 %7561
      %7563 = vmax.xlane.f32.xlu0 %v7509
      %v7564 = vpop.xlane.xlu0 %7563
      %7565 = vmax.xlane.f32.xlu0 %v7514
      %v7566 = vpop.xlane.xlu0 %7565
      %7567 = vmax.xlane.f32.xlu0 %v7519
      %v7568 = vpop.xlane.xlu0 %7567
      %7569 = vmax.xlane.f32.xlu0 %v7524
      %v7570 = vpop.xlane.xlu0 %7569
      %7571 = vmax.xlane.f32.xlu0 %v7529
      %v7572 = vpop.xlane.xlu0 %7571
      %7573 = vmax.xlane.f32.xlu0 %v7534
      %v7574 = vpop.xlane.xlu0 %7573
      %7575 = vmax.xlane.f32.xlu0 %v7539
      %v7576 = vpop.xlane.xlu0 %7575
      %7577 = vmax.xlane.f32.xlu0 %v7544
      %v7578 = vpop.xlane.xlu0 %7577
      %v7579 = vsub.f32 %v7469, %v7548
      %v7580 = vsub.f32 %v7474, %v7550
      %v7581 = vsub.f32 %v7479, %v7552
      %v7582 = vsub.f32 %v7484, %v7554
      %v7583 = vsub.f32 %v7489, %v7556
      %v7584 = vsub.f32 %v7494, %v7558
      %v7585 = vsub.f32 %v7499, %v7560
      %v7586 = vsub.f32 %v7504, %v7562
      %v7587 = vsub.f32 %v7509, %v7564
      %v7588 = vsub.f32 %v7514, %v7566
      %v7589 = vsub.f32 %v7519, %v7568
      %v7590 = vsub.f32 %v7524, %v7570
      %v7591 = vsub.f32 %v7529, %v7572
      %v7592 = vsub.f32 %v7534, %v7574
      %v7593 = vsub.f32 %v7539, %v7576
      %v7594 = vsub.f32 %v7544, %v7578
      %v7595 = vmul.f32 %v7579, 1.442695
      %v7596 = vpow.pop %v7595
      %v7597 = vmul.f32 %v7580, 1.442695
      %v7598 = vpow.pop %v7597
      %v7599 = vmul.f32 %v7581, 1.442695
      %v7600 = vpow.pop %v7599
      %v7601 = vmul.f32 %v7582, 1.442695
      %v7602 = vpow.pop %v7601
      %v7603 = vmul.f32 %v7583, 1.442695
      %v7604 = vpow.pop %v7603
      %v7605 = vmul.f32 %v7584, 1.442695
      %v7606 = vpow.pop %v7605
      %v7607 = vmul.f32 %v7585, 1.442695
      %v7608 = vpow.pop %v7607
      %v7609 = vmul.f32 %v7586, 1.442695
      %v7610 = vpow.pop %v7609
      %v7611 = vmul.f32 %v7587, 1.442695
      %v7612 = vpow.pop %v7611
      %v7613 = vmul.f32 %v7588, 1.442695
      %v7614 = vpow.pop %v7613
      %v7615 = vmul.f32 %v7589, 1.442695
      %v7616 = vpow.pop %v7615
      %v7617 = vmul.f32 %v7590, 1.442695
      %v7618 = vpow.pop %v7617
      %v7619 = vmul.f32 %v7591, 1.442695
      %v7620 = vpow.pop %v7619
      %v7621 = vmul.f32 %v7592, 1.442695
      %v7622 = vpow.pop %v7621
      %v7623 = vmul.f32 %v7593, 1.442695
      %v7624 = vpow.pop %v7623
      %v7625 = vmul.f32 %v7594, 1.442695
      %v7626 = vpow.pop %v7625
      %7627 = vadd.xlane.f32.xlu0 %v7596
      %v7628 = vpop.xlane.xlu0 %7627
      %7629 = vadd.xlane.f32.xlu0 %v7598
      %v7630 = vpop.xlane.xlu0 %7629
      %7631 = vadd.xlane.f32.xlu0 %v7600
      %v7632 = vpop.xlane.xlu0 %7631
      %7633 = vadd.xlane.f32.xlu0 %v7602
      %v7634 = vpop.xlane.xlu0 %7633
      %7635 = vadd.xlane.f32.xlu0 %v7604
      %v7636 = vpop.xlane.xlu0 %7635
      %7637 = vadd.xlane.f32.xlu0 %v7606
      %v7638 = vpop.xlane.xlu0 %7637
      %7639 = vadd.xlane.f32.xlu0 %v7608
      %v7640 = vpop.xlane.xlu0 %7639
      %7641 = vadd.xlane.f32.xlu0 %v7610
      %v7642 = vpop.xlane.xlu0 %7641
      %7643 = vadd.xlane.f32.xlu0 %v7612
      %v7644 = vpop.xlane.xlu0 %7643
      %7645 = vadd.xlane.f32.xlu0 %v7614
      %v7646 = vpop.xlane.xlu0 %7645
      %7647 = vadd.xlane.f32.xlu0 %v7616
      %v7648 = vpop.xlane.xlu0 %7647
      %7649 = vadd.xlane.f32.xlu0 %v7618
      %v7650 = vpop.xlane.xlu0 %7649
      %7651 = vadd.xlane.f32.xlu0 %v7620
      %v7652 = vpop.xlane.xlu0 %7651
      %7653 = vadd.xlane.f32.xlu0 %v7622
      %v7654 = vpop.xlane.xlu0 %7653
      %7655 = vadd.xlane.f32.xlu0 %v7624
      %v7656 = vpop.xlane.xlu0 %7655
      %7657 = vadd.xlane.f32.xlu0 %v7626
      %v7658 = vpop.xlane.xlu0 %7657
      %v7659 = vrcp.pop %v7628
      %v7660 = vmul.f32 %v7596, %v7659
      %v7661 = vrcp.pop %v7630
      %v7662 = vmul.f32 %v7598, %v7661
      %v7663 = vrcp.pop %v7632
      %v7664 = vmul.f32 %v7600, %v7663
      %v7665 = vrcp.pop %v7634
      %v7666 = vmul.f32 %v7602, %v7665
      %v7667 = vrcp.pop %v7636
      %v7668 = vmul.f32 %v7604, %v7667
      %v7669 = vrcp.pop %v7638
      %v7670 = vmul.f32 %v7606, %v7669
      %v7671 = vrcp.pop %v7640
      %v7672 = vmul.f32 %v7608, %v7671
      %v7673 = vrcp.pop %v7642
      %v7674 = vmul.f32 %v7610, %v7673
      %v7675 = vrcp.pop %v7644
      %v7676 = vmul.f32 %v7612, %v7675
      %v7677 = vrcp.pop %v7646
      %v7678 = vmul.f32 %v7614, %v7677
      %v7679 = vrcp.pop %v7648
      %v7680 = vmul.f32 %v7616, %v7679
      %v7681 = vrcp.pop %v7650
      %v7682 = vmul.f32 %v7618, %v7681
      %v7683 = vrcp.pop %v7652
      %v7684 = vmul.f32 %v7620, %v7683
      %v7685 = vrcp.pop %v7654
      %v7686 = vmul.f32 %v7622, %v7685
      %v7687 = vrcp.pop %v7656
      %v7688 = vmul.f32 %v7624, %v7687
      %v7689 = vrcp.pop %v7658
      %v7690 = vmul.f32 %v7626, %v7689
      %7691 = vrot.lane.b32.xlu0 %v5978, 96
      %v7692 = vpop.permute.xlu0 %7691
      %7693 = vrot.lane.b32.xlu0 %v5984, 96
      %v7694 = vpop.permute.xlu0 %7693
      %7695 = vrot.lane.b32.xlu0 %v5990, 96
      %v7696 = vpop.permute.xlu0 %7695
      %7697 = vrot.lane.b32.xlu0 %v5996, 96
      %v7698 = vpop.permute.xlu0 %7697
      %7699 = vrot.lane.b32.xlu0 %v6002, 96
      %v7700 = vpop.permute.xlu0 %7699
      %7701 = vrot.lane.b32.xlu0 %v6008, 96
      %v7702 = vpop.permute.xlu0 %7701
      %7703 = vrot.lane.b32.xlu0 %v6014, 96
      %v7704 = vpop.permute.xlu0 %7703
      %7705 = vrot.lane.b32.xlu0 %v6020, 96
      %v7706 = vpop.permute.xlu0 %7705
      %7707 = vrot.lane.b32.xlu0 %v6026, 96
      %v7708 = vpop.permute.xlu0 %7707
      %7709 = vrot.lane.b32.xlu0 %v6032, 96
      %v7710 = vpop.permute.xlu0 %7709
      %7711 = vrot.lane.b32.xlu0 %v6038, 96
      %v7712 = vpop.permute.xlu0 %7711
      %7713 = vrot.lane.b32.xlu0 %v6044, 96
      %v7714 = vpop.permute.xlu0 %7713
      %7715 = vrot.lane.b32.xlu0 %v6050, 96
      %v7716 = vpop.permute.xlu0 %7715
      %7717 = vrot.lane.b32.xlu0 %v6056, 96
      %v7718 = vpop.permute.xlu0 %7717
      %7719 = vrot.lane.b32.xlu0 %v6062, 96
      %v7720 = vpop.permute.xlu0 %7719
      %7721 = vrot.lane.b32.xlu0 %v6068, 96
      %v7722 = vpop.permute.xlu0 %7721
      %7739 = vmatprep.subr.mxu0 0.0
      %7740 = vmatpush1.msra.mxu0 %v7692
      %7741 = vmatprep.subr.mxu0 0.0
      %7742 = vmatpush1.msra.mxu0 %v7694
      %7743 = vmatprep.subr.mxu0 0.0
      %7744 = vmatpush1.msra.mxu0 %v7696
      %7745 = vmatprep.subr.mxu0 0.0
      %7746 = vmatpush1.msra.mxu0 %v7698
      %7747 = vmatprep.subr.mxu0 0.0
      %7748 = vmatpush1.msra.mxu0 %v7700
      %7749 = vmatprep.subr.mxu0 0.0
      %7750 = vmatpush1.msra.mxu0 %v7702
      %7751 = vmatprep.subr.mxu0 0.0
      %7752 = vmatpush1.msra.mxu0 %v7704
      %7753 = vmatprep.subr.mxu0 0.0
      %7754 = vmatpush1.msra.mxu0 %v7706
      %7755 = vmatprep.subr.mxu0 0.0
      %7756 = vmatpush1.msra.mxu0 %v7708
      %7757 = vmatprep.subr.mxu0 0.0
      %7758 = vmatpush1.msra.mxu0 %v7710
      %7759 = vmatprep.subr.mxu0 0.0
      %7760 = vmatpush1.msra.mxu0 %v7712
      %7761 = vmatprep.subr.mxu0 0.0
      %7762 = vmatpush1.msra.mxu0 %v7714
      %7763 = vmatprep.subr.mxu0 0.0
      %7764 = vmatpush1.msra.mxu0 %v7716
      %7765 = vmatprep.subr.mxu0 0.0
      %7766 = vmatpush1.msra.mxu0 %v7718
      %7767 = vmatprep.subr.mxu0 0.0
      %7768 = vmatpush1.msra.mxu0 %v7720
      %7769 = vmatprep.subr.mxu0 0.0
      %7770 = vmatpush1.msra.mxu0 %v7722
      %7771 = vmatprep.subr.mxu0 0.0
      %7772 = vmatpush1.msra.mxu0 0.0
      %7773 = vmatprep.subr.mxu0 0.0
      %7774 = vmatpush1.msra.mxu0 0.0
      %7775 = vmatprep.subr.mxu0 0.0
      %7776 = vmatpush1.msra.mxu0 0.0
      %7777 = vmatprep.subr.mxu0 0.0
      %7778 = vmatpush1.msra.mxu0 0.0
      %7779 = vmatprep.subr.mxu0 0.0
      %7780 = vmatpush1.msra.mxu0 0.0
      %7781 = vmatprep.subr.mxu0 0.0
      %7782 = vmatpush1.msra.mxu0 0.0
      %7783 = vmatprep.subr.mxu0 0.0
      %7784 = vmatpush1.msra.mxu0 0.0
      %7785 = vmatprep.subr.mxu0 0.0
      %7786 = vmatpush1.msra.mxu0 0.0
      %7787 = vmatprep.subr.mxu0 0.0
      %7788 = vmatpush1.msra.mxu0 0.0
      %7789 = vmatprep.subr.mxu0 0.0
      %7790 = vmatpush1.msra.mxu0 0.0
      %7791 = vmatprep.subr.mxu0 0.0
      %7792 = vmatpush1.msra.mxu0 0.0
      %7793 = vmatprep.subr.mxu0 0.0
      %7794 = vmatpush1.msra.mxu0 0.0
      %7795 = vmatprep.subr.mxu0 0.0
      %7796 = vmatpush1.msra.mxu0 0.0
      %7797 = vmatprep.subr.mxu0 0.0
      %7798 = vmatpush1.msra.mxu0 0.0
      %7799 = vmatprep.subr.mxu0 0.0
      %7800 = vmatpush1.msra.mxu0 0.0
      %7801 = vmatprep.subr.mxu0 0.0
      %7802 = vmatpush1.msra.mxu0 0.0
      %7803 = vmatprep.mubr.f32.mxu0 0.0
      %7804 = vmatmul.mubr.f32.gmra.mrb[0].mxu0 %v7660
      %v7805 = vpop.f32.mrb[0].mxu0
      %v7806 = vadd.f32 0.0, %v7805
      %v7807 = vpop.f32.mrb[0].mxu0
      %7808 = vmatprep.mubr.f32.mxu0 0.0
      %7809 = vmatmul.mubr.f32.gmra.mrb[0].mxu0 %v7662
      %v7810 = vpop.f32.mrb[0].mxu0
      %v7811 = vadd.f32 0.0, %v7810
      %v7812 = vpop.f32.mrb[0].mxu0
      %7813 = vmatprep.mubr.f32.mxu0 0.0
      %7814 = vmatmul.mubr.f32.gmra.mrb[0].mxu0 %v7664
      %v7815 = vpop.f32.mrb[0].mxu0
      %v7816 = vadd.f32 0.0, %v7815
      %v7817 = vpop.f32.mrb[0].mxu0
      %7818 = vmatprep.mubr.f32.mxu0 0.0
      %7819 = vmatmul.mubr.f32.gmra.mrb[0].mxu0 %v7666
      %v7820 = vpop.f32.mrb[0].mxu0
      %v7821 = vadd.f32 0.0, %v7820
      %v7822 = vpop.f32.mrb[0].mxu0
      %7823 = vmatprep.mubr.f32.mxu0 0.0
      %7824 = vmatmul.mubr.f32.gmra.mrb[0].mxu0 %v7668
      %v7825 = vpop.f32.mrb[0].mxu0
      %v7826 = vadd.f32 0.0, %v7825
      %v7827 = vpop.f32.mrb[0].mxu0
      %7828 = vmatprep.mubr.f32.mxu0 0.0
      %7829 = vmatmul.mubr.f32.gmra.mrb[0].mxu0 %v7670
      %v7830 = vpop.f32.mrb[0].mxu0
      %v7831 = vadd.f32 0.0, %v7830
      %v7832 = vpop.f32.mrb[0].mxu0
      %7833 = vmatprep.mubr.f32.mxu0 0.0
      %7834 = vmatmul.mubr.f32.gmra.mrb[0].mxu0 %v7672
      %v7835 = vpop.f32.mrb[0].mxu0
      %v7836 = vadd.f32 0.0, %v7835
      %v7837 = vpop.f32.mrb[0].mxu0
      %7838 = vmatprep.mubr.f32.mxu0 0.0
      %7839 = vmatmul.mubr.f32.gmra.mrb[0].mxu0 %v7674
      %v7840 = vpop.f32.mrb[0].mxu0
      %v7841 = vadd.f32 0.0, %v7840
      %v7842 = vpop.f32.mrb[0].mxu0
      %7843 = vmatprep.mubr.f32.mxu0 0.0
      %7844 = vmatmul.mubr.f32.gmra.mrb[0].mxu0 %v7676
      %v7845 = vpop.f32.mrb[0].mxu0
      %v7846 = vadd.f32 0.0, %v7845
      %v7847 = vpop.f32.mrb[0].mxu0
      %7848 = vmatprep.mubr.f32.mxu0 0.0
      %7849 = vmatmul.mubr.f32.gmra.mrb[0].mxu0 %v7678
      %v7850 = vpop.f32.mrb[0].mxu0
      %v7851 = vadd.f32 0.0, %v7850
      %v7852 = vpop.f32.mrb[0].mxu0
      %7853 = vmatprep.mubr.f32.mxu0 0.0
      %7854 = vmatmul.mubr.f32.gmra.mrb[0].mxu0 %v7680
      %v7855 = vpop.f32.mrb[0].mxu0
      %v7856 = vadd.f32 0.0, %v7855
      %v7857 = vpop.f32.mrb[0].mxu0
      %7858 = vmatprep.mubr.f32.mxu0 0.0
      %7859 = vmatmul.mubr.f32.gmra.mrb[0].mxu0 %v7682
      %v7860 = vpop.f32.mrb[0].mxu0
      %v7861 = vadd.f32 0.0, %v7860
      %v7862 = vpop.f32.mrb[0].mxu0
      %7863 = vmatprep.mubr.f32.mxu0 0.0
      %7864 = vmatmul.mubr.f32.gmra.mrb[0].mxu0 %v7684
      %v7865 = vpop.f32.mrb[0].mxu0
      %v7866 = vadd.f32 0.0, %v7865
      %v7867 = vpop.f32.mrb[0].mxu0
      %7868 = vmatprep.mubr.f32.mxu0 0.0
      %7869 = vmatmul.mubr.f32.gmra.mrb[0].mxu0 %v7686
      %v7870 = vpop.f32.mrb[0].mxu0
      %v7871 = vadd.f32 0.0, %v7870
      %v7872 = vpop.f32.mrb[0].mxu0
      %7873 = vmatprep.mubr.f32.mxu0 0.0
      %7874 = vmatmul.mubr.f32.gmra.mrb[0].mxu0 %v7688
      %v7875 = vpop.f32.mrb[0].mxu0
      %v7876 = vadd.f32 0.0, %v7875
      %v7877 = vpop.f32.mrb[0].mxu0
      %7878 = vmatprep.mubr.f32.mxu0 0.0
      %7879 = vmatmul.mubr.f32.gmra.mrb[0].mxu0 %v7690
      %v7880 = vpop.f32.mrb[0].mxu0
      %v7881 = vadd.f32 0.0, %v7880
      %v7882 = vpop.f32.mrb[0].mxu0
      %7883 = vdwg.mxu0
      %7884 = vrot.lane.b32.xlu0 %v6070, 80
      %v7885 = vpop.permute.xlu0 %7884
      %7886 = vrot.lane.b32.xlu0 %v6071, 80
      %v7887 = vpop.permute.xlu0 %7886
      %7888 = vrot.lane.b32.xlu0 %v6072, 80
      %v7889 = vpop.permute.xlu0 %7888
      %7890 = vrot.lane.b32.xlu0 %v6073, 80
      %v7891 = vpop.permute.xlu0 %7890
      %7892 = vrot.lane.b32.xlu0 %v6074, 80
      %v7893 = vpop.permute.xlu0 %7892
      %7894 = vrot.lane.b32.xlu0 %v6075, 80
      %v7895 = vpop.permute.xlu0 %7894
      %7896 = vrot.lane.b32.xlu0 %v6076, 80
      %v7897 = vpop.permute.xlu0 %7896
      %7898 = vrot.lane.b32.xlu0 %v6077, 80
      %v7899 = vpop.permute.xlu0 %7898
      %7900 = vrot.lane.b32.xlu0 %v6078, 80
      %v7901 = vpop.permute.xlu0 %7900
      %7902 = vrot.lane.b32.xlu0 %v6079, 80
      %v7903 = vpop.permute.xlu0 %7902
      %7904 = vrot.lane.b32.xlu0 %v6080, 80
      %v7905 = vpop.permute.xlu0 %7904
      %7906 = vrot.lane.b32.xlu0 %v6081, 80
      %v7907 = vpop.permute.xlu0 %7906
      %7908 = vrot.lane.b32.xlu0 %v6082, 80
      %v7909 = vpop.permute.xlu0 %7908
      %7910 = vrot.lane.b32.xlu0 %v6083, 80
      %v7911 = vpop.permute.xlu0 %7910
      %7912 = vrot.lane.b32.xlu0 %v6084, 80
      %v7913 = vpop.permute.xlu0 %7912
      %7914 = vrot.lane.b32.xlu0 %v6085, 80
      %v7915 = vpop.permute.xlu0 %7914
      %7916 = vrot.lane.b32.xlu0 %v5976, 16
      %v7917 = vpop.permute.xlu0 %7916
      %7918 = vrot.lane.b32.xlu0 %v5982, 16
      %v7919 = vpop.permute.xlu0 %7918
      %7920 = vrot.lane.b32.xlu0 %v5988, 16
      %v7921 = vpop.permute.xlu0 %7920
      %7922 = vrot.lane.b32.xlu0 %v5994, 16
      %v7923 = vpop.permute.xlu0 %7922
      %7924 = vrot.lane.b32.xlu0 %v6000, 16
      %v7925 = vpop.permute.xlu0 %7924
      %7926 = vrot.lane.b32.xlu0 %v6006, 16
      %v7927 = vpop.permute.xlu0 %7926
      %7928 = vrot.lane.b32.xlu0 %v6012, 16
      %v7929 = vpop.permute.xlu0 %7928
      %7930 = vrot.lane.b32.xlu0 %v6018, 16
      %v7931 = vpop.permute.xlu0 %7930
      %7932 = vrot.lane.b32.xlu0 %v6024, 16
      %v7933 = vpop.permute.xlu0 %7932
      %7934 = vrot.lane.b32.xlu0 %v6030, 16
      %v7935 = vpop.permute.xlu0 %7934
      %7936 = vrot.lane.b32.xlu0 %v6036, 16
      %v7937 = vpop.permute.xlu0 %7936
      %7938 = vrot.lane.b32.xlu0 %v6042, 16
      %v7939 = vpop.permute.xlu0 %7938
      %7940 = vrot.lane.b32.xlu0 %v6048, 16
      %v7941 = vpop.permute.xlu0 %7940
      %7942 = vrot.lane.b32.xlu0 %v6054, 16
      %v7943 = vpop.permute.xlu0 %7942
      %7944 = vrot.lane.b32.xlu0 %v6060, 16
      %v7945 = vpop.permute.xlu0 %7944
      %7946 = vrot.lane.b32.xlu0 %v6066, 16
      %v7947 = vpop.permute.xlu0 %7946
      %v7948 = vsel %vm1177, %v7885, 0
      %v7950 = vsel %vm1177, %v7887, 0
      %v7952 = vsel %vm1177, %v7889, 0
      %v7954 = vsel %vm1177, %v7891, 0
      %v7956 = vsel %vm1177, %v7893, 0
      %v7958 = vsel %vm1177, %v7895, 0
      %v7960 = vsel %vm1177, %v7897, 0
      %v7962 = vsel %vm1177, %v7899, 0
      %v7964 = vsel %vm1177, %v7901, 0
      %v7966 = vsel %vm1177, %v7903, 0
      %v7968 = vsel %vm1177, %v7905, 0
      %v7970 = vsel %vm1177, %v7907, 0
      %v7972 = vsel %vm1177, %v7909, 0
      %v7974 = vsel %vm1177, %v7911, 0
      %v7976 = vsel %vm1177, %v7913, 0
      %v7978 = vsel %vm1177, %v7915, 0
      %v7980 = vsel %vm1177, %v7917, 0
      %v7982 = vsel %vm1177, %v7919, 0
      %v7984 = vsel %vm1177, %v7921, 0
      %v7986 = vsel %vm1177, %v7923, 0
      %v7988 = vsel %vm1177, %v7925, 0
      %v7990 = vsel %vm1177, %v7927, 0
      %v7992 = vsel %vm1177, %v7929, 0
      %v7994 = vsel %vm1177, %v7931, 0
      %v7996 = vsel %vm1177, %v7933, 0
      %v7998 = vsel %vm1177, %v7935, 0
      %v8000 = vsel %vm1177, %v7937, 0
      %v8002 = vsel %vm1177, %v7939, 0
      %v8004 = vsel %vm1177, %v7941, 0
      %v8006 = vsel %vm1177, %v7943, 0
      %v8008 = vsel %vm1177, %v7945, 0
      %v8010 = vsel %vm1177, %v7947, 0
      %8012 = vmatprep.subr.mxu0 0.0
      %8013 = vmatpush1.xpose.msra.mxu0 %v7980
      %8014 = vmatprep.subr.mxu0 0.0
      %8015 = vmatpush1.xpose.msra.mxu0 %v7982
      %8016 = vmatprep.subr.mxu0 0.0
      %8017 = vmatpush1.xpose.msra.mxu0 %v7984
      %8018 = vmatprep.subr.mxu0 0.0
      %8019 = vmatpush1.xpose.msra.mxu0 %v7986
      %8020 = vmatprep.subr.mxu0 0.0
      %8021 = vmatpush1.xpose.msra.mxu0 %v7988
      %8022 = vmatprep.subr.mxu0 0.0
      %8023 = vmatpush1.xpose.msra.mxu0 %v7990
      %8024 = vmatprep.subr.mxu0 0.0
      %8025 = vmatpush1.xpose.msra.mxu0 %v7992
      %8026 = vmatprep.subr.mxu0 0.0
      %8027 = vmatpush1.xpose.msra.mxu0 %v7994
      %8028 = vmatprep.subr.mxu0 0.0
      %8029 = vmatpush1.xpose.msra.mxu0 %v7996
      %8030 = vmatprep.subr.mxu0 0.0
      %8031 = vmatpush1.xpose.msra.mxu0 %v7998
      %8032 = vmatprep.subr.mxu0 0.0
      %8033 = vmatpush1.xpose.msra.mxu0 %v8000
      %8034 = vmatprep.subr.mxu0 0.0
      %8035 = vmatpush1.xpose.msra.mxu0 %v8002
      %8036 = vmatprep.subr.mxu0 0.0
      %8037 = vmatpush1.xpose.msra.mxu0 %v8004
      %8038 = vmatprep.subr.mxu0 0.0
      %8039 = vmatpush1.xpose.msra.mxu0 %v8006
      %8040 = vmatprep.subr.mxu0 0.0
      %8041 = vmatpush1.xpose.msra.mxu0 %v8008
      %8042 = vmatprep.subr.mxu0 0.0
      %8043 = vmatpush1.xpose.msra.mxu0 %v8010
      %8044 = vmatprep.subr.mxu0 0.0
      %8045 = vmatpush1.xpose.msra.mxu0 0.0
      %8046 = vmatprep.subr.mxu0 0.0
      %8047 = vmatpush1.xpose.msra.mxu0 0.0
      %8048 = vmatprep.subr.mxu0 0.0
      %8049 = vmatpush1.xpose.msra.mxu0 0.0
      %8050 = vmatprep.subr.mxu0 0.0
      %8051 = vmatpush1.xpose.msra.mxu0 0.0
      %8052 = vmatprep.subr.mxu0 0.0
      %8053 = vmatpush1.xpose.msra.mxu0 0.0
      %8054 = vmatprep.subr.mxu0 0.0
      %8055 = vmatpush1.xpose.msra.mxu0 0.0
      %8056 = vmatprep.subr.mxu0 0.0
      %8057 = vmatpush1.xpose.msra.mxu0 0.0
      %8058 = vmatprep.subr.mxu0 0.0
      %8059 = vmatpush1.xpose.msra.mxu0 0.0
      %8060 = vmatprep.subr.mxu0 0.0
      %8061 = vmatpush1.xpose.msra.mxu0 0.0
      %8062 = vmatprep.subr.mxu0 0.0
      %8063 = vmatpush1.xpose.msra.mxu0 0.0
      %8064 = vmatprep.subr.mxu0 0.0
      %8065 = vmatpush1.xpose.msra.mxu0 0.0
      %8066 = vmatprep.subr.mxu0 0.0
      %8067 = vmatpush1.xpose.msra.mxu0 0.0
      %8068 = vmatprep.subr.mxu0 0.0
      %8069 = vmatpush1.xpose.msra.mxu0 0.0
      %8070 = vmatprep.subr.mxu0 0.0
      %8071 = vmatpush1.xpose.msra.mxu0 0.0
      %8072 = vmatprep.subr.mxu0 0.0
      %8073 = vmatpush1.xpose.msra.mxu0 0.0
      %8074 = vmatprep.subr.mxu0 0.0
      %8075 = vmatpush1.xpose.msra.mxu0 0.0
      %8076 = vmatprep.mubr.f32.mxu0 0.0
      %8077 = vmatmul.mubr.f32.gmra.mrb[0].mxu0 %v7948
      %v8078 = vpop.f32.mrb[0].mxu0
      %v8079 = vadd.f32 %v604, %v8078
      %v8080 = vpop.f32.mrb[0].mxu0
      %8081 = vmatprep.mubr.f32.mxu0 0.0
      %8082 = vmatmul.mubr.f32.gmra.mrb[0].mxu0 %v7950
      %v8083 = vpop.f32.mrb[0].mxu0
      %v8084 = vadd.f32 %v605, %v8083
      %v8085 = vpop.f32.mrb[0].mxu0
      %8086 = vmatprep.mubr.f32.mxu0 0.0
      %8087 = vmatmul.mubr.f32.gmra.mrb[0].mxu0 %v7952
      %v8088 = vpop.f32.mrb[0].mxu0
      %v8089 = vadd.f32 %v606, %v8088
      %v8090 = vpop.f32.mrb[0].mxu0
      %8091 = vmatprep.mubr.f32.mxu0 0.0
      %8092 = vmatmul.mubr.f32.gmra.mrb[0].mxu0 %v7954
      %v8093 = vpop.f32.mrb[0].mxu0
      %v8094 = vadd.f32 %v607, %v8093
      %v8095 = vpop.f32.mrb[0].mxu0
      %8096 = vmatprep.mubr.f32.mxu0 0.0
      %8097 = vmatmul.mubr.f32.gmra.mrb[0].mxu0 %v7956
      %v8098 = vpop.f32.mrb[0].mxu0
      %v8099 = vadd.f32 %v608, %v8098
      %v8100 = vpop.f32.mrb[0].mxu0
      %8101 = vmatprep.mubr.f32.mxu0 0.0
      %8102 = vmatmul.mubr.f32.gmra.mrb[0].mxu0 %v7958
      %v8103 = vpop.f32.mrb[0].mxu0
      %v8104 = vadd.f32 %v609, %v8103
      %v8105 = vpop.f32.mrb[0].mxu0
      %8106 = vmatprep.mubr.f32.mxu0 0.0
      %8107 = vmatmul.mubr.f32.gmra.mrb[0].mxu0 %v7960
      %v8108 = vpop.f32.mrb[0].mxu0
      %v8109 = vadd.f32 %v610, %v8108
      %v8110 = vpop.f32.mrb[0].mxu0
      %8111 = vmatprep.mubr.f32.mxu0 0.0
      %8112 = vmatmul.mubr.f32.gmra.mrb[0].mxu0 %v7962
      %v8113 = vpop.f32.mrb[0].mxu0
      %v8114 = vadd.f32 %v611, %v8113
      %v8115 = vpop.f32.mrb[0].mxu0
      %8116 = vmatprep.mubr.f32.mxu0 0.0
      %8117 = vmatmul.mubr.f32.gmra.mrb[0].mxu0 %v7964
      %v8118 = vpop.f32.mrb[0].mxu0
      %v8119 = vadd.f32 %v612, %v8118
      %v8120 = vpop.f32.mrb[0].mxu0
      %8121 = vmatprep.mubr.f32.mxu0 0.0
      %8122 = vmatmul.mubr.f32.gmra.mrb[0].mxu0 %v7966
      %v8123 = vpop.f32.mrb[0].mxu0
      %v8124 = vadd.f32 %v613, %v8123
      %v8125 = vpop.f32.mrb[0].mxu0
      %8126 = vmatprep.mubr.f32.mxu0 0.0
      %8127 = vmatmul.mubr.f32.gmra.mrb[0].mxu0 %v7968
      %v8128 = vpop.f32.mrb[0].mxu0
      %v8129 = vadd.f32 %v614, %v8128
      %v8130 = vpop.f32.mrb[0].mxu0
      %8131 = vmatprep.mubr.f32.mxu0 0.0
      %8132 = vmatmul.mubr.f32.gmra.mrb[0].mxu0 %v7970
      %v8133 = vpop.f32.mrb[0].mxu0
      %v8134 = vadd.f32 %v615, %v8133
      %v8135 = vpop.f32.mrb[0].mxu0
      %8136 = vmatprep.mubr.f32.mxu0 0.0
      %8137 = vmatmul.mubr.f32.gmra.mrb[0].mxu0 %v7972
      %v8138 = vpop.f32.mrb[0].mxu0
      %v8139 = vadd.f32 %v616, %v8138
      %v8140 = vpop.f32.mrb[0].mxu0
      %8141 = vmatprep.mubr.f32.mxu0 0.0
      %8142 = vmatmul.mubr.f32.gmra.mrb[0].mxu0 %v7974
      %v8143 = vpop.f32.mrb[0].mxu0
      %v8144 = vadd.f32 %v617, %v8143
      %v8145 = vpop.f32.mrb[0].mxu0
      %8146 = vmatprep.mubr.f32.mxu0 0.0
      %8147 = vmatmul.mubr.f32.gmra.mrb[0].mxu0 %v7976
      %v8148 = vpop.f32.mrb[0].mxu0
      %v8149 = vadd.f32 %v618, %v8148
      %v8150 = vpop.f32.mrb[0].mxu0
      %8151 = vmatprep.mubr.f32.mxu0 0.0
      %8152 = vmatmul.mubr.f32.gmra.mrb[0].mxu0 %v7978
      %v8153 = vpop.f32.mrb[0].mxu0
      %v8154 = vadd.f32 %v619, %v8153
      %v8155 = vpop.f32.mrb[0].mxu0
      %8156 = vdwg.mxu0
      %8157 = vmax.xlane.f32.xlu0 %v8079
      %v8158 = vpop.xlane.xlu0 %8157
      %8159 = vmax.xlane.f32.xlu0 %v8084
      %v8160 = vpop.xlane.xlu0 %8159
      %8161 = vmax.xlane.f32.xlu0 %v8089
      %v8162 = vpop.xlane.xlu0 %8161
      %8163 = vmax.xlane.f32.xlu0 %v8094
      %v8164 = vpop.xlane.xlu0 %8163
      %8165 = vmax.xlane.f32.xlu0 %v8099
      %v8166 = vpop.xlane.xlu0 %8165
      %8167 = vmax.xlane.f32.xlu0 %v8104
      %v8168 = vpop.xlane.xlu0 %8167
      %8169 = vmax.xlane.f32.xlu0 %v8109
      %v8170 = vpop.xlane.xlu0 %8169
      %8171 = vmax.xlane.f32.xlu0 %v8114
      %v8172 = vpop.xlane.xlu0 %8171
      %8173 = vmax.xlane.f32.xlu0 %v8119
      %v8174 = vpop.xlane.xlu0 %8173
      %8175 = vmax.xlane.f32.xlu0 %v8124
      %v8176 = vpop.xlane.xlu0 %8175
      %8177 = vmax.xlane.f32.xlu0 %v8129
      %v8178 = vpop.xlane.xlu0 %8177
      %8179 = vmax.xlane.f32.xlu0 %v8134
      %v8180 = vpop.xlane.xlu0 %8179
      %8181 = vmax.xlane.f32.xlu0 %v8139
      %v8182 = vpop.xlane.xlu0 %8181
      %8183 = vmax.xlane.f32.xlu0 %v8144
      %v8184 = vpop.xlane.xlu0 %8183
      %8185 = vmax.xlane.f32.xlu0 %v8149
      %v8186 = vpop.xlane.xlu0 %8185
      %8187 = vmax.xlane.f32.xlu0 %v8154
      %v8188 = vpop.xlane.xlu0 %8187
      %v8189 = vsub.f32 %v8079, %v8158
      %v8190 = vsub.f32 %v8084, %v8160
      %v8191 = vsub.f32 %v8089, %v8162
      %v8192 = vsub.f32 %v8094, %v8164
      %v8193 = vsub.f32 %v8099, %v8166
      %v8194 = vsub.f32 %v8104, %v8168
      %v8195 = vsub.f32 %v8109, %v8170
      %v8196 = vsub.f32 %v8114, %v8172
      %v8197 = vsub.f32 %v8119, %v8174
      %v8198 = vsub.f32 %v8124, %v8176
      %v8199 = vsub.f32 %v8129, %v8178
      %v8200 = vsub.f32 %v8134, %v8180
      %v8201 = vsub.f32 %v8139, %v8182
      %v8202 = vsub.f32 %v8144, %v8184
      %v8203 = vsub.f32 %v8149, %v8186
      %v8204 = vsub.f32 %v8154, %v8188
      %v8205 = vmul.f32 %v8189, 1.442695
      %v8206 = vpow.pop %v8205
      %v8207 = vmul.f32 %v8190, 1.442695
      %v8208 = vpow.pop %v8207
      %v8209 = vmul.f32 %v8191, 1.442695
      %v8210 = vpow.pop %v8209
      %v8211 = vmul.f32 %v8192, 1.442695
      %v8212 = vpow.pop %v8211
      %v8213 = vmul.f32 %v8193, 1.442695
      %v8214 = vpow.pop %v8213
      %v8215 = vmul.f32 %v8194, 1.442695
      %v8216 = vpow.pop %v8215
      %v8217 = vmul.f32 %v8195, 1.442695
      %v8218 = vpow.pop %v8217
      %v8219 = vmul.f32 %v8196, 1.442695
      %v8220 = vpow.pop %v8219
      %v8221 = vmul.f32 %v8197, 1.442695
      %v8222 = vpow.pop %v8221
      %v8223 = vmul.f32 %v8198, 1.442695
      %v8224 = vpow.pop %v8223
      %v8225 = vmul.f32 %v8199, 1.442695
      %v8226 = vpow.pop %v8225
      %v8227 = vmul.f32 %v8200, 1.442695
      %v8228 = vpow.pop %v8227
      %v8229 = vmul.f32 %v8201, 1.442695
      %v8230 = vpow.pop %v8229
      %v8231 = vmul.f32 %v8202, 1.442695
      %v8232 = vpow.pop %v8231
      %v8233 = vmul.f32 %v8203, 1.442695
      %v8234 = vpow.pop %v8233
      %v8235 = vmul.f32 %v8204, 1.442695
      %v8236 = vpow.pop %v8235
      %8237 = vadd.xlane.f32.xlu0 %v8206
      %v8238 = vpop.xlane.xlu0 %8237
      %8239 = vadd.xlane.f32.xlu0 %v8208
      %v8240 = vpop.xlane.xlu0 %8239
      %8241 = vadd.xlane.f32.xlu0 %v8210
      %v8242 = vpop.xlane.xlu0 %8241
      %8243 = vadd.xlane.f32.xlu0 %v8212
      %v8244 = vpop.xlane.xlu0 %8243
      %8245 = vadd.xlane.f32.xlu0 %v8214
      %v8246 = vpop.xlane.xlu0 %8245
      %8247 = vadd.xlane.f32.xlu0 %v8216
      %v8248 = vpop.xlane.xlu0 %8247
      %8249 = vadd.xlane.f32.xlu0 %v8218
      %v8250 = vpop.xlane.xlu0 %8249
      %8251 = vadd.xlane.f32.xlu0 %v8220
      %v8252 = vpop.xlane.xlu0 %8251
      %8253 = vadd.xlane.f32.xlu0 %v8222
      %v8254 = vpop.xlane.xlu0 %8253
      %8255 = vadd.xlane.f32.xlu0 %v8224
      %v8256 = vpop.xlane.xlu0 %8255
      %8257 = vadd.xlane.f32.xlu0 %v8226
      %v8258 = vpop.xlane.xlu0 %8257
      %8259 = vadd.xlane.f32.xlu0 %v8228
      %v8260 = vpop.xlane.xlu0 %8259
      %8261 = vadd.xlane.f32.xlu0 %v8230
      %v8262 = vpop.xlane.xlu0 %8261
      %8263 = vadd.xlane.f32.xlu0 %v8232
      %v8264 = vpop.xlane.xlu0 %8263
      %8265 = vadd.xlane.f32.xlu0 %v8234
      %v8266 = vpop.xlane.xlu0 %8265
      %8267 = vadd.xlane.f32.xlu0 %v8236
      %v8268 = vpop.xlane.xlu0 %8267
      %v8269 = vrcp.pop %v8238
      %v8270 = vmul.f32 %v8206, %v8269
      %v8271 = vrcp.pop %v8240
      %v8272 = vmul.f32 %v8208, %v8271
      %v8273 = vrcp.pop %v8242
      %v8274 = vmul.f32 %v8210, %v8273
      %v8275 = vrcp.pop %v8244
      %v8276 = vmul.f32 %v8212, %v8275
      %v8277 = vrcp.pop %v8246
      %v8278 = vmul.f32 %v8214, %v8277
      %v8279 = vrcp.pop %v8248
      %v8280 = vmul.f32 %v8216, %v8279
      %v8281 = vrcp.pop %v8250
      %v8282 = vmul.f32 %v8218, %v8281
      %v8283 = vrcp.pop %v8252
      %v8284 = vmul.f32 %v8220, %v8283
      %v8285 = vrcp.pop %v8254
      %v8286 = vmul.f32 %v8222, %v8285
      %v8287 = vrcp.pop %v8256
      %v8288 = vmul.f32 %v8224, %v8287
      %v8289 = vrcp.pop %v8258
      %v8290 = vmul.f32 %v8226, %v8289
      %v8291 = vrcp.pop %v8260
      %v8292 = vmul.f32 %v8228, %v8291
      %v8293 = vrcp.pop %v8262
      %v8294 = vmul.f32 %v8230, %v8293
      %v8295 = vrcp.pop %v8264
      %v8296 = vmul.f32 %v8232, %v8295
      %v8297 = vrcp.pop %v8266
      %v8298 = vmul.f32 %v8234, %v8297
      %v8299 = vrcp.pop %v8268
      %v8300 = vmul.f32 %v8236, %v8299
      %8301 = vrot.lane.b32.xlu0 %v5978, 80
      %v8302 = vpop.permute.xlu0 %8301
      %8303 = vrot.lane.b32.xlu0 %v5984, 80
      %v8304 = vpop.permute.xlu0 %8303
      %8305 = vrot.lane.b32.xlu0 %v5990, 80
      %v8306 = vpop.permute.xlu0 %8305
      %8307 = vrot.lane.b32.xlu0 %v5996, 80
      %v8308 = vpop.permute.xlu0 %8307
      %8309 = vrot.lane.b32.xlu0 %v6002, 80
      %v8310 = vpop.permute.xlu0 %8309
      %8311 = vrot.lane.b32.xlu0 %v6008, 80
      %v8312 = vpop.permute.xlu0 %8311
      %8313 = vrot.lane.b32.xlu0 %v6014, 80
      %v8314 = vpop.permute.xlu0 %8313
      %8315 = vrot.lane.b32.xlu0 %v6020, 80
      %v8316 = vpop.permute.xlu0 %8315
      %8317 = vrot.lane.b32.xlu0 %v6026, 80
      %v8318 = vpop.permute.xlu0 %8317
      %8319 = vrot.lane.b32.xlu0 %v6032, 80
      %v8320 = vpop.permute.xlu0 %8319
      %8321 = vrot.lane.b32.xlu0 %v6038, 80
      %v8322 = vpop.permute.xlu0 %8321
      %8323 = vrot.lane.b32.xlu0 %v6044, 80
      %v8324 = vpop.permute.xlu0 %8323
      %8325 = vrot.lane.b32.xlu0 %v6050, 80
      %v8326 = vpop.permute.xlu0 %8325
      %8327 = vrot.lane.b32.xlu0 %v6056, 80
      %v8328 = vpop.permute.xlu0 %8327
      %8329 = vrot.lane.b32.xlu0 %v6062, 80
      %v8330 = vpop.permute.xlu0 %8329
      %8331 = vrot.lane.b32.xlu0 %v6068, 80
      %v8332 = vpop.permute.xlu0 %8331
      %8349 = vmatprep.subr.mxu0 0.0
      %8350 = vmatpush1.msra.mxu0 %v8302
      %8351 = vmatprep.subr.mxu0 0.0
      %8352 = vmatpush1.msra.mxu0 %v8304
      %8353 = vmatprep.subr.mxu0 0.0
      %8354 = vmatpush1.msra.mxu0 %v8306
      %8355 = vmatprep.subr.mxu0 0.0
      %8356 = vmatpush1.msra.mxu0 %v8308
      %8357 = vmatprep.subr.mxu0 0.0
      %8358 = vmatpush1.msra.mxu0 %v8310
      %8359 = vmatprep.subr.mxu0 0.0
      %8360 = vmatpush1.msra.mxu0 %v8312
      %8361 = vmatprep.subr.mxu0 0.0
      %8362 = vmatpush1.msra.mxu0 %v8314
      %8363 = vmatprep.subr.mxu0 0.0
      %8364 = vmatpush1.msra.mxu0 %v8316
      %8365 = vmatprep.subr.mxu0 0.0
      %8366 = vmatpush1.msra.mxu0 %v8318
      %8367 = vmatprep.subr.mxu0 0.0
      %8368 = vmatpush1.msra.mxu0 %v8320
      %8369 = vmatprep.subr.mxu0 0.0
      %8370 = vmatpush1.msra.mxu0 %v8322
      %8371 = vmatprep.subr.mxu0 0.0
      %8372 = vmatpush1.msra.mxu0 %v8324
      %8373 = vmatprep.subr.mxu0 0.0
      %8374 = vmatpush1.msra.mxu0 %v8326
      %8375 = vmatprep.subr.mxu0 0.0
      %8376 = vmatpush1.msra.mxu0 %v8328
      %8377 = vmatprep.subr.mxu0 0.0
      %8378 = vmatpush1.msra.mxu0 %v8330
      %8379 = vmatprep.subr.mxu0 0.0
      %8380 = vmatpush1.msra.mxu0 %v8332
      %8381 = vmatprep.subr.mxu0 0.0
      %8382 = vmatpush1.msra.mxu0 0.0
      %8383 = vmatprep.subr.mxu0 0.0
      %8384 = vmatpush1.msra.mxu0 0.0
      %8385 = vmatprep.subr.mxu0 0.0
      %8386 = vmatpush1.msra.mxu0 0.0
      %8387 = vmatprep.subr.mxu0 0.0
      %8388 = vmatpush1.msra.mxu0 0.0
      %8389 = vmatprep.subr.mxu0 0.0
      %8390 = vmatpush1.msra.mxu0 0.0
      %8391 = vmatprep.subr.mxu0 0.0
      %8392 = vmatpush1.msra.mxu0 0.0
      %8393 = vmatprep.subr.mxu0 0.0
      %8394 = vmatpush1.msra.mxu0 0.0
      %8395 = vmatprep.subr.mxu0 0.0
      %8396 = vmatpush1.msra.mxu0 0.0
      %8397 = vmatprep.subr.mxu0 0.0
      %8398 = vmatpush1.msra.mxu0 0.0
      %8399 = vmatprep.subr.mxu0 0.0
      %8400 = vmatpush1.msra.mxu0 0.0
      %8401 = vmatprep.subr.mxu0 0.0
      %8402 = vmatpush1.msra.mxu0 0.0
      %8403 = vmatprep.subr.mxu0 0.0
      %8404 = vmatpush1.msra.mxu0 0.0
      %8405 = vmatprep.subr.mxu0 0.0
      %8406 = vmatpush1.msra.mxu0 0.0
      %8407 = vmatprep.subr.mxu0 0.0
      %8408 = vmatpush1.msra.mxu0 0.0
      %8409 = vmatprep.subr.mxu0 0.0
      %8410 = vmatpush1.msra.mxu0 0.0
      %8411 = vmatprep.subr.mxu0 0.0
      %8412 = vmatpush1.msra.mxu0 0.0
      %8413 = vmatprep.mubr.f32.mxu0 0.0
      %8414 = vmatmul.mubr.f32.gmra.mrb[0].mxu0 %v8270
      %v8415 = vpop.f32.mrb[0].mxu0
      %v8416 = vadd.f32 0.0, %v8415
      %v8417 = vpop.f32.mrb[0].mxu0
      %8418 = vmatprep.mubr.f32.mxu0 0.0
      %8419 = vmatmul.mubr.f32.gmra.mrb[0].mxu0 %v8272
      %v8420 = vpop.f32.mrb[0].mxu0
      %v8421 = vadd.f32 0.0, %v8420
      %v8422 = vpop.f32.mrb[0].mxu0
      %8423 = vmatprep.mubr.f32.mxu0 0.0
      %8424 = vmatmul.mubr.f32.gmra.mrb[0].mxu0 %v8274
      %v8425 = vpop.f32.mrb[0].mxu0
      %v8426 = vadd.f32 0.0, %v8425
      %v8427 = vpop.f32.mrb[0].mxu0
      %8428 = vmatprep.mubr.f32.mxu0 0.0
      %8429 = vmatmul.mubr.f32.gmra.mrb[0].mxu0 %v8276
      %v8430 = vpop.f32.mrb[0].mxu0
      %v8431 = vadd.f32 0.0, %v8430
      %v8432 = vpop.f32.mrb[0].mxu0
      %8433 = vmatprep.mubr.f32.mxu0 0.0
      %8434 = vmatmul.mubr.f32.gmra.mrb[0].mxu0 %v8278
      %v8435 = vpop.f32.mrb[0].mxu0
      %v8436 = vadd.f32 0.0, %v8435
      %v8437 = vpop.f32.mrb[0].mxu0
      %8438 = vmatprep.mubr.f32.mxu0 0.0
      %8439 = vmatmul.mubr.f32.gmra.mrb[0].mxu0 %v8280
      %v8440 = vpop.f32.mrb[0].mxu0
      %v8441 = vadd.f32 0.0, %v8440
      %v8442 = vpop.f32.mrb[0].mxu0
      %8443 = vmatprep.mubr.f32.mxu0 0.0
      %8444 = vmatmul.mubr.f32.gmra.mrb[0].mxu0 %v8282
      %v8445 = vpop.f32.mrb[0].mxu0
      %v8446 = vadd.f32 0.0, %v8445
      %v8447 = vpop.f32.mrb[0].mxu0
      %8448 = vmatprep.mubr.f32.mxu0 0.0
      %8449 = vmatmul.mubr.f32.gmra.mrb[0].mxu0 %v8284
      %v8450 = vpop.f32.mrb[0].mxu0
      %v8451 = vadd.f32 0.0, %v8450
      %v8452 = vpop.f32.mrb[0].mxu0
      %8453 = vmatprep.mubr.f32.mxu0 0.0
      %8454 = vmatmul.mubr.f32.gmra.mrb[0].mxu0 %v8286
      %v8455 = vpop.f32.mrb[0].mxu0
      %v8456 = vadd.f32 0.0, %v8455
      %v8457 = vpop.f32.mrb[0].mxu0
      %8458 = vmatprep.mubr.f32.mxu0 0.0
      %8459 = vmatmul.mubr.f32.gmra.mrb[0].mxu0 %v8288
      %v8460 = vpop.f32.mrb[0].mxu0
      %v8461 = vadd.f32 0.0, %v8460
      %v8462 = vpop.f32.mrb[0].mxu0
      %8463 = vmatprep.mubr.f32.mxu0 0.0
      %8464 = vmatmul.mubr.f32.gmra.mrb[0].mxu0 %v8290
      %v8465 = vpop.f32.mrb[0].mxu0
      %v8466 = vadd.f32 0.0, %v8465
      %v8467 = vpop.f32.mrb[0].mxu0
      %8468 = vmatprep.mubr.f32.mxu0 0.0
      %8469 = vmatmul.mubr.f32.gmra.mrb[0].mxu0 %v8292
      %v8470 = vpop.f32.mrb[0].mxu0
      %v8471 = vadd.f32 0.0, %v8470
      %v8472 = vpop.f32.mrb[0].mxu0
      %8473 = vmatprep.mubr.f32.mxu0 0.0
      %8474 = vmatmul.mubr.f32.gmra.mrb[0].mxu0 %v8294
      %v8475 = vpop.f32.mrb[0].mxu0
      %v8476 = vadd.f32 0.0, %v8475
      %v8477 = vpop.f32.mrb[0].mxu0
      %8478 = vmatprep.mubr.f32.mxu0 0.0
      %8479 = vmatmul.mubr.f32.gmra.mrb[0].mxu0 %v8296
      %v8480 = vpop.f32.mrb[0].mxu0
      %v8481 = vadd.f32 0.0, %v8480
      %v8482 = vpop.f32.mrb[0].mxu0
      %8483 = vmatprep.mubr.f32.mxu0 0.0
      %8484 = vmatmul.mubr.f32.gmra.mrb[0].mxu0 %v8298
      %v8485 = vpop.f32.mrb[0].mxu0
      %v8486 = vadd.f32 0.0, %v8485
      %v8487 = vpop.f32.mrb[0].mxu0
      %8488 = vmatprep.mubr.f32.mxu0 0.0
      %8489 = vmatmul.mubr.f32.gmra.mrb[0].mxu0 %v8300
      %v8490 = vpop.f32.mrb[0].mxu0
      %v8491 = vadd.f32 0.0, %v8490
      %v8492 = vpop.f32.mrb[0].mxu0
      %8493 = vdwg.mxu0
      %8510 = vrot.lane.b32.xlu0 %v7196, 16
      %v8511 = vpop.permute.xlu0 %8510
      %8512 = vrot.lane.b32.xlu0 %v7201, 16
      %v8513 = vpop.permute.xlu0 %8512
      %8514 = vrot.lane.b32.xlu0 %v7206, 16
      %v8515 = vpop.permute.xlu0 %8514
      %8516 = vrot.lane.b32.xlu0 %v7211, 16
      %v8517 = vpop.permute.xlu0 %8516
      %8518 = vrot.lane.b32.xlu0 %v7216, 16
      %v8519 = vpop.permute.xlu0 %8518
      %8520 = vrot.lane.b32.xlu0 %v7221, 16
      %v8521 = vpop.permute.xlu0 %8520
      %8522 = vrot.lane.b32.xlu0 %v7226, 16
      %v8523 = vpop.permute.xlu0 %8522
      %8524 = vrot.lane.b32.xlu0 %v7231, 16
      %v8525 = vpop.permute.xlu0 %8524
      %8526 = vrot.lane.b32.xlu0 %v7236, 16
      %v8527 = vpop.permute.xlu0 %8526
      %8528 = vrot.lane.b32.xlu0 %v7241, 16
      %v8529 = vpop.permute.xlu0 %8528
      %8530 = vrot.lane.b32.xlu0 %v7246, 16
      %v8531 = vpop.permute.xlu0 %8530
      %8532 = vrot.lane.b32.xlu0 %v7251, 16
      %v8533 = vpop.permute.xlu0 %8532
      %8534 = vrot.lane.b32.xlu0 %v7256, 16
      %v8535 = vpop.permute.xlu0 %8534
      %8536 = vrot.lane.b32.xlu0 %v7261, 16
      %v8537 = vpop.permute.xlu0 %8536
      %8538 = vrot.lane.b32.xlu0 %v7266, 16
      %v8539 = vpop.permute.xlu0 %8538
      %8540 = vrot.lane.b32.xlu0 %v7271, 16
      %v8541 = vpop.permute.xlu0 %8540
      %8574 = vrot.lane.b32.xlu0 %v7806, 32
      %v8575 = vpop.permute.xlu0 %8574
      %8576 = vrot.lane.b32.xlu0 %v7811, 32
      %v8577 = vpop.permute.xlu0 %8576
      %8578 = vrot.lane.b32.xlu0 %v7816, 32
      %v8579 = vpop.permute.xlu0 %8578
      %8580 = vrot.lane.b32.xlu0 %v7821, 32
      %v8581 = vpop.permute.xlu0 %8580
      %8582 = vrot.lane.b32.xlu0 %v7826, 32
      %v8583 = vpop.permute.xlu0 %8582
      %8584 = vrot.lane.b32.xlu0 %v7831, 32
      %v8585 = vpop.permute.xlu0 %8584
      %8586 = vrot.lane.b32.xlu0 %v7836, 32
      %v8587 = vpop.permute.xlu0 %8586
      %8588 = vrot.lane.b32.xlu0 %v7841, 32
      %v8589 = vpop.permute.xlu0 %8588
      %8590 = vrot.lane.b32.xlu0 %v7846, 32
      %v8591 = vpop.permute.xlu0 %8590
      %8592 = vrot.lane.b32.xlu0 %v7851, 32
      %v8593 = vpop.permute.xlu0 %8592
      %8594 = vrot.lane.b32.xlu0 %v7856, 32
      %v8595 = vpop.permute.xlu0 %8594
      %8596 = vrot.lane.b32.xlu0 %v7861, 32
      %v8597 = vpop.permute.xlu0 %8596
      %8598 = vrot.lane.b32.xlu0 %v7866, 32
      %v8599 = vpop.permute.xlu0 %8598
      %8600 = vrot.lane.b32.xlu0 %v7871, 32
      %v8601 = vpop.permute.xlu0 %8600
      %8602 = vrot.lane.b32.xlu0 %v7876, 32
      %v8603 = vpop.permute.xlu0 %8602
      %8604 = vrot.lane.b32.xlu0 %v7881, 32
      %v8605 = vpop.permute.xlu0 %8604
      %8638 = vrot.lane.b32.xlu0 %v8416, 48
      %v8639 = vpop.permute.xlu0 %8638
      %8640 = vrot.lane.b32.xlu0 %v8421, 48
      %v8641 = vpop.permute.xlu0 %8640
      %8642 = vrot.lane.b32.xlu0 %v8426, 48
      %v8643 = vpop.permute.xlu0 %8642
      %8644 = vrot.lane.b32.xlu0 %v8431, 48
      %v8645 = vpop.permute.xlu0 %8644
      %8646 = vrot.lane.b32.xlu0 %v8436, 48
      %v8647 = vpop.permute.xlu0 %8646
      %8648 = vrot.lane.b32.xlu0 %v8441, 48
      %v8649 = vpop.permute.xlu0 %8648
      %8650 = vrot.lane.b32.xlu0 %v8446, 48
      %v8651 = vpop.permute.xlu0 %8650
      %8652 = vrot.lane.b32.xlu0 %v8451, 48
      %v8653 = vpop.permute.xlu0 %8652
      %8654 = vrot.lane.b32.xlu0 %v8456, 48
      %v8655 = vpop.permute.xlu0 %8654
      %8656 = vrot.lane.b32.xlu0 %v8461, 48
      %v8657 = vpop.permute.xlu0 %8656
      %8658 = vrot.lane.b32.xlu0 %v8466, 48
      %v8659 = vpop.permute.xlu0 %8658
      %8660 = vrot.lane.b32.xlu0 %v8471, 48
      %v8661 = vpop.permute.xlu0 %8660
      %8662 = vrot.lane.b32.xlu0 %v8476, 48
      %v8663 = vpop.permute.xlu0 %8662
      %8664 = vrot.lane.b32.xlu0 %v8481, 48
      %v8665 = vpop.permute.xlu0 %8664
      %8666 = vrot.lane.b32.xlu0 %v8486, 48
      %v8667 = vpop.permute.xlu0 %8666
      %8668 = vrot.lane.b32.xlu0 %v8491, 48
      %v8669 = vpop.permute.xlu0 %8668
      %v8686 = vsel %vm1177, %v6570, %v8511
      %v8687 = vsel %vm1177, %v6575, %v8513
      %v8688 = vsel %vm1177, %v6580, %v8515
      %v8689 = vsel %vm1177, %v6585, %v8517
      %v8690 = vsel %vm1177, %v6590, %v8519
      %v8691 = vsel %vm1177, %v6595, %v8521
      %v8692 = vsel %vm1177, %v6600, %v8523
      %v8693 = vsel %vm1177, %v6605, %v8525
      %v8694 = vsel %vm1177, %v6610, %v8527
      %v8695 = vsel %vm1177, %v6615, %v8529
      %v8696 = vsel %vm1177, %v6620, %v8531
      %v8697 = vsel %vm1177, %v6625, %v8533
      %v8698 = vsel %vm1177, %v6630, %v8535
      %v8699 = vsel %vm1177, %v6635, %v8537
      %v8700 = vsel %vm1177, %v6640, %v8539
      %v8701 = vsel %vm1177, %v6645, %v8541
      %v8702 = vsel %vm3746, %v8686, %v8575
      %v8703 = vsel %vm3746, %v8687, %v8577
      %v8704 = vsel %vm3746, %v8688, %v8579
      %v8705 = vsel %vm3746, %v8689, %v8581
      %v8706 = vsel %vm3746, %v8690, %v8583
      %v8707 = vsel %vm3746, %v8691, %v8585
      %v8708 = vsel %vm3746, %v8692, %v8587
      %v8709 = vsel %vm3746, %v8693, %v8589
      %v8710 = vsel %vm3746, %v8694, %v8591
      %v8711 = vsel %vm3746, %v8695, %v8593
      %v8712 = vsel %vm3746, %v8696, %v8595
      %v8713 = vsel %vm3746, %v8697, %v8597
      %v8714 = vsel %vm3746, %v8698, %v8599
      %v8715 = vsel %vm3746, %v8699, %v8601
      %v8716 = vsel %vm3746, %v8700, %v8603
      %v8717 = vsel %vm3746, %v8701, %v8605
      %v8718 = vsel %vm3763, %v8702, %v8639
      %v8719 = vsel %vm3763, %v8703, %v8641
      %v8720 = vsel %vm3763, %v8704, %v8643
      %v8721 = vsel %vm3763, %v8705, %v8645
      %v8722 = vsel %vm3763, %v8706, %v8647
      %v8723 = vsel %vm3763, %v8707, %v8649
      %v8724 = vsel %vm3763, %v8708, %v8651
      %v8725 = vsel %vm3763, %v8709, %v8653
      %v8726 = vsel %vm3763, %v8710, %v8655
      %v8727 = vsel %vm3763, %v8711, %v8657
      %v8728 = vsel %vm3763, %v8712, %v8659
      %v8729 = vsel %vm3763, %v8713, %v8661
      %v8730 = vsel %vm3763, %v8714, %v8663
      %v8731 = vsel %vm3763, %v8715, %v8665
      %v8732 = vsel %vm3763, %v8716, %v8667
      %v8733 = vsel %vm3763, %v8717, %v8669
      %s8734 = scalar_lea.vmem %s7, 64
      %v8735 = vld [vmem:[%s8734] sm:$0xff]
      %v8736 = vld [vmem:[%s8734 + $0x8] sm:$0xff]
      %v8737 = vld [vmem:[%s8734 + $0x10] sm:$0xff]
      %v8738 = vld [vmem:[%s8734 + $0x18] sm:$0xff]
      %v8739 = vld [vmem:[%s8734 + $0x20] sm:$0xff]
      %v8740 = vld [vmem:[%s8734 + $0x28] sm:$0xff]
      %v8741 = vld [vmem:[%s8734 + $0x30] sm:$0xff]
      %v8742 = vld [vmem:[%s8734 + $0x38] sm:$0xff]
      %s8743 = scalar_lea.vmem %s8, 1
      %v8744 = vld [vmem:[%s8743] sm:$0x1]
      %v8746 = vlaneseq
      %v8747 = vshrl.u32 %v8746, 7
      %v8748 = vsub.s32 0, %v8747
      %v8749 = vrot.slane %v8744, %v8748
      %v8752 = vsel %vm622, %v8718, 0
      %v8755 = vsel %vm622, %v8719, 0
      %v8758 = vsel %vm622, %v8720, 0
      %v8761 = vsel %vm622, %v8721, 0
      %v8764 = vsel %vm622, %v8722, 0
      %v8767 = vsel %vm622, %v8723, 0
      %v8770 = vsel %vm622, %v8724, 0
      %v8773 = vsel %vm622, %v8725, 0
      %v8776 = vsel %vm622, %v8726, 0
      %v8779 = vsel %vm622, %v8727, 0
      %v8782 = vsel %vm622, %v8728, 0
      %v8785 = vsel %vm622, %v8729, 0
      %v8788 = vsel %vm622, %v8730, 0
      %v8791 = vsel %vm622, %v8731, 0
      %v8794 = vsel %vm622, %v8732, 0
      %v8797 = vsel %vm622, %v8733, 0
      %8799 = vmatprep.subr.mxu0 0.0
      %8800 = vmatpush1.msra.mxu0 %v8735
      %8801 = vmatprep.subr.mxu0 0.0
      %8802 = vmatpush1.msra.mxu0 %v8736
      %8803 = vmatprep.subr.mxu0 0.0
      %8804 = vmatpush1.msra.mxu0 %v8737
      %8805 = vmatprep.subr.mxu0 0.0
      %8806 = vmatpush1.msra.mxu0 %v8738
      %8807 = vmatprep.subr.mxu0 0.0
      %8808 = vmatpush1.msra.mxu0 %v8739
      %8809 = vmatprep.subr.mxu0 0.0
      %8810 = vmatpush1.msra.mxu0 %v8740
      %8811 = vmatprep.subr.mxu0 0.0
      %8812 = vmatpush1.msra.mxu0 %v8741
      %8813 = vmatprep.subr.mxu0 0.0
      %8814 = vmatpush1.msra.mxu0 %v8742
      %8815 = vmatprep.subr.mxu0 0.0
      %8816 = vmatpush1.msra.mxu0 0.0
      %8817 = vmatprep.subr.mxu0 0.0
      %8818 = vmatpush1.msra.mxu0 0.0
      %8819 = vmatprep.subr.mxu0 0.0
      %8820 = vmatpush1.msra.mxu0 0.0
      %8821 = vmatprep.subr.mxu0 0.0
      %8822 = vmatpush1.msra.mxu0 0.0
      %8823 = vmatprep.subr.mxu0 0.0
      %8824 = vmatpush1.msra.mxu0 0.0
      %8825 = vmatprep.subr.mxu0 0.0
      %8826 = vmatpush1.msra.mxu0 0.0
      %8827 = vmatprep.subr.mxu0 0.0
      %8828 = vmatpush1.msra.mxu0 0.0
      %8829 = vmatprep.subr.mxu0 0.0
      %8830 = vmatpush1.msra.mxu0 0.0
      %8831 = vmatprep.subr.mxu0 0.0
      %8832 = vmatpush1.msra.mxu0 0.0
      %8833 = vmatprep.subr.mxu0 0.0
      %8834 = vmatpush1.msra.mxu0 0.0
      %8835 = vmatprep.subr.mxu0 0.0
      %8836 = vmatpush1.msra.mxu0 0.0
      %8837 = vmatprep.subr.mxu0 0.0
      %8838 = vmatpush1.msra.mxu0 0.0
      %8839 = vmatprep.subr.mxu0 0.0
      %8840 = vmatpush1.msra.mxu0 0.0
      %8841 = vmatprep.subr.mxu0 0.0
      %8842 = vmatpush1.msra.mxu0 0.0
      %8843 = vmatprep.subr.mxu0 0.0
      %8844 = vmatpush1.msra.mxu0 0.0
      %8845 = vmatprep.subr.mxu0 0.0
      %8846 = vmatpush1.msra.mxu0 0.0
      %8847 = vmatprep.subr.mxu0 0.0
      %8848 = vmatpush1.msra.mxu0 0.0
      %8849 = vmatprep.subr.mxu0 0.0
      %8850 = vmatpush1.msra.mxu0 0.0
      %8851 = vmatprep.subr.mxu0 0.0
      %8852 = vmatpush1.msra.mxu0 0.0
      %8853 = vmatprep.subr.mxu0 0.0
      %8854 = vmatpush1.msra.mxu0 0.0
      %8855 = vmatprep.subr.mxu0 0.0
      %8856 = vmatpush1.msra.mxu0 0.0
      %8857 = vmatprep.subr.mxu0 0.0
      %8858 = vmatpush1.msra.mxu0 0.0
      %8859 = vmatprep.subr.mxu0 0.0
      %8860 = vmatpush1.msra.mxu0 0.0
      %8861 = vmatprep.subr.mxu0 0.0
      %8862 = vmatpush1.msra.mxu0 0.0
      %8863 = vmatprep.mubr.f32.mxu0 0.0
      %8864 = vmatmul.mubr.f32.gmra.mrb[0].mxu0 %v8752
      %v8865 = vpop.f32.mrb[0].mxu0
      %v8866 = vadd.f32 %v8749, %v8865
      %v8867 = vpop.f32.mrb[0].mxu0
      %8868 = vmatprep.mubr.f32.mxu0 0.0
      %8869 = vmatmul.mubr.f32.gmra.mrb[0].mxu0 %v8755
      %v8870 = vpop.f32.mrb[0].mxu0
      %v8871 = vadd.f32 %v8749, %v8870
      %v8872 = vpop.f32.mrb[0].mxu0
      %8873 = vmatprep.mubr.f32.mxu0 0.0
      %8874 = vmatmul.mubr.f32.gmra.mrb[0].mxu0 %v8758
      %v8875 = vpop.f32.mrb[0].mxu0
      %v8876 = vadd.f32 %v8749, %v8875
      %v8877 = vpop.f32.mrb[0].mxu0
      %8878 = vmatprep.mubr.f32.mxu0 0.0
      %8879 = vmatmul.mubr.f32.gmra.mrb[0].mxu0 %v8761
      %v8880 = vpop.f32.mrb[0].mxu0
      %v8881 = vadd.f32 %v8749, %v8880
      %v8882 = vpop.f32.mrb[0].mxu0
      %8883 = vmatprep.mubr.f32.mxu0 0.0
      %8884 = vmatmul.mubr.f32.gmra.mrb[0].mxu0 %v8764
      %v8885 = vpop.f32.mrb[0].mxu0
      %v8886 = vadd.f32 %v8749, %v8885
      %v8887 = vpop.f32.mrb[0].mxu0
      %8888 = vmatprep.mubr.f32.mxu0 0.0
      %8889 = vmatmul.mubr.f32.gmra.mrb[0].mxu0 %v8767
      %v8890 = vpop.f32.mrb[0].mxu0
      %v8891 = vadd.f32 %v8749, %v8890
      %v8892 = vpop.f32.mrb[0].mxu0
      %8893 = vmatprep.mubr.f32.mxu0 0.0
      %8894 = vmatmul.mubr.f32.gmra.mrb[0].mxu0 %v8770
      %v8895 = vpop.f32.mrb[0].mxu0
      %v8896 = vadd.f32 %v8749, %v8895
      %v8897 = vpop.f32.mrb[0].mxu0
      %8898 = vmatprep.mubr.f32.mxu0 0.0
      %8899 = vmatmul.mubr.f32.gmra.mrb[0].mxu0 %v8773
      %v8900 = vpop.f32.mrb[0].mxu0
      %v8901 = vadd.f32 %v8749, %v8900
      %v8902 = vpop.f32.mrb[0].mxu0
      %8903 = vmatprep.mubr.f32.mxu0 0.0
      %8904 = vmatmul.mubr.f32.gmra.mrb[0].mxu0 %v8776
      %v8905 = vpop.f32.mrb[0].mxu0
      %v8906 = vadd.f32 %v8749, %v8905
      %v8907 = vpop.f32.mrb[0].mxu0
      %8908 = vmatprep.mubr.f32.mxu0 0.0
      %8909 = vmatmul.mubr.f32.gmra.mrb[0].mxu0 %v8779
      %v8910 = vpop.f32.mrb[0].mxu0
      %v8911 = vadd.f32 %v8749, %v8910
      %v8912 = vpop.f32.mrb[0].mxu0
      %8913 = vmatprep.mubr.f32.mxu0 0.0
      %8914 = vmatmul.mubr.f32.gmra.mrb[0].mxu0 %v8782
      %v8915 = vpop.f32.mrb[0].mxu0
      %v8916 = vadd.f32 %v8749, %v8915
      %v8917 = vpop.f32.mrb[0].mxu0
      %8918 = vmatprep.mubr.f32.mxu0 0.0
      %8919 = vmatmul.mubr.f32.gmra.mrb[0].mxu0 %v8785
      %v8920 = vpop.f32.mrb[0].mxu0
      %v8921 = vadd.f32 %v8749, %v8920
      %v8922 = vpop.f32.mrb[0].mxu0
      %8923 = vmatprep.mubr.f32.mxu0 0.0
      %8924 = vmatmul.mubr.f32.gmra.mrb[0].mxu0 %v8788
      %v8925 = vpop.f32.mrb[0].mxu0
      %v8926 = vadd.f32 %v8749, %v8925
      %v8927 = vpop.f32.mrb[0].mxu0
      %8928 = vmatprep.mubr.f32.mxu0 0.0
      %8929 = vmatmul.mubr.f32.gmra.mrb[0].mxu0 %v8791
      %v8930 = vpop.f32.mrb[0].mxu0
      %v8931 = vadd.f32 %v8749, %v8930
      %v8932 = vpop.f32.mrb[0].mxu0
      %8933 = vmatprep.mubr.f32.mxu0 0.0
      %8934 = vmatmul.mubr.f32.gmra.mrb[0].mxu0 %v8794
      %v8935 = vpop.f32.mrb[0].mxu0
      %v8936 = vadd.f32 %v8749, %v8935
      %v8937 = vpop.f32.mrb[0].mxu0
      %8938 = vmatprep.mubr.f32.mxu0 0.0
      %8939 = vmatmul.mubr.f32.gmra.mrb[0].mxu0 %v8797
      %v8940 = vpop.f32.mrb[0].mxu0
      %v8941 = vadd.f32 %v8749, %v8940
      %v8942 = vpop.f32.mrb[0].mxu0
      %8943 = vdwg.mxu0
      %v8944 = vadd.f32 %v5559, %v8866
      %v8945 = vadd.f32 %v5560, %v8871
      %v8946 = vadd.f32 %v5561, %v8876
      %v8947 = vadd.f32 %v5562, %v8881
      %v8948 = vadd.f32 %v5563, %v8886
      %v8949 = vadd.f32 %v5564, %v8891
      %v8950 = vadd.f32 %v5565, %v8896
      %v8951 = vadd.f32 %v5566, %v8901
      %v8952 = vadd.f32 %v5567, %v8906
      %v8953 = vadd.f32 %v5568, %v8911
      %v8954 = vadd.f32 %v5569, %v8916
      %v8955 = vadd.f32 %v5570, %v8921
      %v8956 = vadd.f32 %v5571, %v8926
      %v8957 = vadd.f32 %v5572, %v8931
      %v8958 = vadd.f32 %v5573, %v8936
      %v8959 = vadd.f32 %v5574, %v8941
      %s8960 = scalar_lea.vmem %s9, 1
      %v8961 = vld [vmem:[%s8960] sm:$0x1]
      %s8962 = scalar_lea.vmem %s10, 1
      %v8963 = vld [vmem:[%s8962] sm:$0x1]
      %v8964 = vsel %vm622, %v8944, 0.0
      %8965 = vadd.xlane.f32.xlu0 %v8964
      %v8966 = vpop.xlane.xlu0 %8965
      %v8967 = vsel %vm622, %v8945, 0.0
      %8968 = vadd.xlane.f32.xlu0 %v8967
      %v8969 = vpop.xlane.xlu0 %8968
      %v8970 = vsel %vm622, %v8946, 0.0
      %8971 = vadd.xlane.f32.xlu0 %v8970
      %v8972 = vpop.xlane.xlu0 %8971
      %v8973 = vsel %vm622, %v8947, 0.0
      %8974 = vadd.xlane.f32.xlu0 %v8973
      %v8975 = vpop.xlane.xlu0 %8974
      %v8976 = vsel %vm622, %v8948, 0.0
      %8977 = vadd.xlane.f32.xlu0 %v8976
      %v8978 = vpop.xlane.xlu0 %8977
      %v8979 = vsel %vm622, %v8949, 0.0
      %8980 = vadd.xlane.f32.xlu0 %v8979
      %v8981 = vpop.xlane.xlu0 %8980
      %v8982 = vsel %vm622, %v8950, 0.0
      %8983 = vadd.xlane.f32.xlu0 %v8982
      %v8984 = vpop.xlane.xlu0 %8983
      %v8985 = vsel %vm622, %v8951, 0.0
      %8986 = vadd.xlane.f32.xlu0 %v8985
      %v8987 = vpop.xlane.xlu0 %8986
      %v8988 = vsel %vm622, %v8952, 0.0
      %8989 = vadd.xlane.f32.xlu0 %v8988
      %v8990 = vpop.xlane.xlu0 %8989
      %v8991 = vsel %vm622, %v8953, 0.0
      %8992 = vadd.xlane.f32.xlu0 %v8991
      %v8993 = vpop.xlane.xlu0 %8992
      %v8994 = vsel %vm622, %v8954, 0.0
      %8995 = vadd.xlane.f32.xlu0 %v8994
      %v8996 = vpop.xlane.xlu0 %8995
      %v8997 = vsel %vm622, %v8955, 0.0
      %8998 = vadd.xlane.f32.xlu0 %v8997
      %v8999 = vpop.xlane.xlu0 %8998
      %v9000 = vsel %vm622, %v8956, 0.0
      %9001 = vadd.xlane.f32.xlu0 %v9000
      %v9002 = vpop.xlane.xlu0 %9001
      %v9003 = vsel %vm622, %v8957, 0.0
      %9004 = vadd.xlane.f32.xlu0 %v9003
      %v9005 = vpop.xlane.xlu0 %9004
      %v9006 = vsel %vm622, %v8958, 0.0
      %9007 = vadd.xlane.f32.xlu0 %v9006
      %v9008 = vpop.xlane.xlu0 %9007
      %v9009 = vsel %vm622, %v8959, 0.0
      %9010 = vadd.xlane.f32.xlu0 %v9009
      %v9011 = vpop.xlane.xlu0 %9010
      %v9012 = vmul.f32 %v8966, %v671
      %v9013 = vmul.f32 %v8969, %v671
      %v9014 = vmul.f32 %v8972, %v671
      %v9015 = vmul.f32 %v8975, %v671
      %v9016 = vmul.f32 %v8978, %v671
      %v9017 = vmul.f32 %v8981, %v671
      %v9018 = vmul.f32 %v8984, %v671
      %v9019 = vmul.f32 %v8987, %v671
      %v9020 = vmul.f32 %v8990, %v671
      %v9021 = vmul.f32 %v8993, %v671
      %v9022 = vmul.f32 %v8996, %v671
      %v9023 = vmul.f32 %v8999, %v671
      %v9024 = vmul.f32 %v9002, %v671
      %v9025 = vmul.f32 %v9005, %v671
      %v9026 = vmul.f32 %v9008, %v671
      %v9027 = vmul.f32 %v9011, %v671
      %v9028 = vsub.f32 %v8944, %v9012
      %v9029 = vsub.f32 %v8945, %v9013
      %v9030 = vsub.f32 %v8946, %v9014
      %v9031 = vsub.f32 %v8947, %v9015
      %v9032 = vsub.f32 %v8948, %v9016
      %v9033 = vsub.f32 %v8949, %v9017
      %v9034 = vsub.f32 %v8950, %v9018
      %v9035 = vsub.f32 %v8951, %v9019
      %v9036 = vsub.f32 %v8952, %v9020
      %v9037 = vsub.f32 %v8953, %v9021
      %v9038 = vsub.f32 %v8954, %v9022
      %v9039 = vsub.f32 %v8955, %v9023
      %v9040 = vsub.f32 %v8956, %v9024
      %v9041 = vsub.f32 %v8957, %v9025
      %v9042 = vsub.f32 %v8958, %v9026
      %v9043 = vsub.f32 %v8959, %v9027
      %v9044 = vmul.f32 %v9028, %v9028
      %v9045 = vmul.f32 %v9029, %v9029
      %v9046 = vmul.f32 %v9030, %v9030
      %v9047 = vmul.f32 %v9031, %v9031
      %v9048 = vmul.f32 %v9032, %v9032
      %v9049 = vmul.f32 %v9033, %v9033
      %v9050 = vmul.f32 %v9034, %v9034
      %v9051 = vmul.f32 %v9035, %v9035
      %v9052 = vmul.f32 %v9036, %v9036
      %v9053 = vmul.f32 %v9037, %v9037
      %v9054 = vmul.f32 %v9038, %v9038
      %v9055 = vmul.f32 %v9039, %v9039
      %v9056 = vmul.f32 %v9040, %v9040
      %v9057 = vmul.f32 %v9041, %v9041
      %v9058 = vmul.f32 %v9042, %v9042
      %v9059 = vmul.f32 %v9043, %v9043
      %v9060 = vsel %vm622, %v9044, 0.0
      %9061 = vadd.xlane.f32.xlu0 %v9060
      %v9062 = vpop.xlane.xlu0 %9061
      %v9063 = vsel %vm622, %v9045, 0.0
      %9064 = vadd.xlane.f32.xlu0 %v9063
      %v9065 = vpop.xlane.xlu0 %9064
      %v9066 = vsel %vm622, %v9046, 0.0
      %9067 = vadd.xlane.f32.xlu0 %v9066
      %v9068 = vpop.xlane.xlu0 %9067
      %v9069 = vsel %vm622, %v9047, 0.0
      %9070 = vadd.xlane.f32.xlu0 %v9069
      %v9071 = vpop.xlane.xlu0 %9070
      %v9072 = vsel %vm622, %v9048, 0.0
      %9073 = vadd.xlane.f32.xlu0 %v9072
      %v9074 = vpop.xlane.xlu0 %9073
      %v9075 = vsel %vm622, %v9049, 0.0
      %9076 = vadd.xlane.f32.xlu0 %v9075
      %v9077 = vpop.xlane.xlu0 %9076
      %v9078 = vsel %vm622, %v9050, 0.0
      %9079 = vadd.xlane.f32.xlu0 %v9078
      %v9080 = vpop.xlane.xlu0 %9079
      %v9081 = vsel %vm622, %v9051, 0.0
      %9082 = vadd.xlane.f32.xlu0 %v9081
      %v9083 = vpop.xlane.xlu0 %9082
      %v9084 = vsel %vm622, %v9052, 0.0
      %9085 = vadd.xlane.f32.xlu0 %v9084
      %v9086 = vpop.xlane.xlu0 %9085
      %v9087 = vsel %vm622, %v9053, 0.0
      %9088 = vadd.xlane.f32.xlu0 %v9087
      %v9089 = vpop.xlane.xlu0 %9088
      %v9090 = vsel %vm622, %v9054, 0.0
      %9091 = vadd.xlane.f32.xlu0 %v9090
      %v9092 = vpop.xlane.xlu0 %9091
      %v9093 = vsel %vm622, %v9055, 0.0
      %9094 = vadd.xlane.f32.xlu0 %v9093
      %v9095 = vpop.xlane.xlu0 %9094
      %v9096 = vsel %vm622, %v9056, 0.0
      %9097 = vadd.xlane.f32.xlu0 %v9096
      %v9098 = vpop.xlane.xlu0 %9097
      %v9099 = vsel %vm622, %v9057, 0.0
      %9100 = vadd.xlane.f32.xlu0 %v9099
      %v9101 = vpop.xlane.xlu0 %9100
      %v9102 = vsel %vm622, %v9058, 0.0
      %9103 = vadd.xlane.f32.xlu0 %v9102
      %v9104 = vpop.xlane.xlu0 %9103
      %v9105 = vsel %vm622, %v9059, 0.0
      %9106 = vadd.xlane.f32.xlu0 %v9105
      %v9107 = vpop.xlane.xlu0 %9106
      %v9108 = vmul.f32 %v9062, %v671
      %v9109 = vmul.f32 %v9065, %v671
      %v9110 = vmul.f32 %v9068, %v671
      %v9111 = vmul.f32 %v9071, %v671
      %v9112 = vmul.f32 %v9074, %v671
      %v9113 = vmul.f32 %v9077, %v671
      %v9114 = vmul.f32 %v9080, %v671
      %v9115 = vmul.f32 %v9083, %v671
      %v9116 = vmul.f32 %v9086, %v671
      %v9117 = vmul.f32 %v9089, %v671
      %v9118 = vmul.f32 %v9092, %v671
      %v9119 = vmul.f32 %v9095, %v671
      %v9120 = vmul.f32 %v9098, %v671
      %v9121 = vmul.f32 %v9101, %v671
      %v9122 = vmul.f32 %v9104, %v671
      %v9123 = vmul.f32 %v9107, %v671
      %v9124 = vadd.f32 %v9108, 1e-06
      %v9125 = vadd.f32 %v9109, 1e-06
      %v9126 = vadd.f32 %v9110, 1e-06
      %v9127 = vadd.f32 %v9111, 1e-06
      %v9128 = vadd.f32 %v9112, 1e-06
      %v9129 = vadd.f32 %v9113, 1e-06
      %v9130 = vadd.f32 %v9114, 1e-06
      %v9131 = vadd.f32 %v9115, 1e-06
      %v9132 = vadd.f32 %v9116, 1e-06
      %v9133 = vadd.f32 %v9117, 1e-06
      %v9134 = vadd.f32 %v9118, 1e-06
      %v9135 = vadd.f32 %v9119, 1e-06
      %v9136 = vadd.f32 %v9120, 1e-06
      %v9137 = vadd.f32 %v9121, 1e-06
      %v9138 = vadd.f32 %v9122, 1e-06
      %v9139 = vadd.f32 %v9123, 1e-06
      %v9140 = vrsqrt.pop %v9124
      %v9141 = vrsqrt.pop %v9125
      %v9142 = vrsqrt.pop %v9126
      %v9143 = vrsqrt.pop %v9127
      %v9144 = vrsqrt.pop %v9128
      %v9145 = vrsqrt.pop %v9129
      %v9146 = vrsqrt.pop %v9130
      %v9147 = vrsqrt.pop %v9131
      %v9148 = vrsqrt.pop %v9132
      %v9149 = vrsqrt.pop %v9133
      %v9150 = vrsqrt.pop %v9134
      %v9151 = vrsqrt.pop %v9135
      %v9152 = vrsqrt.pop %v9136
      %v9153 = vrsqrt.pop %v9137
      %v9154 = vrsqrt.pop %v9138
      %v9155 = vrsqrt.pop %v9139
      %v9156 = vmul.f32 %v9028, %v9140
      %v9157 = vmul.f32 %v9029, %v9141
      %v9158 = vmul.f32 %v9030, %v9142
      %v9159 = vmul.f32 %v9031, %v9143
      %v9160 = vmul.f32 %v9032, %v9144
      %v9161 = vmul.f32 %v9033, %v9145
      %v9162 = vmul.f32 %v9034, %v9146
      %v9163 = vmul.f32 %v9035, %v9147
      %v9164 = vmul.f32 %v9036, %v9148
      %v9165 = vmul.f32 %v9037, %v9149
      %v9166 = vmul.f32 %v9038, %v9150
      %v9167 = vmul.f32 %v9039, %v9151
      %v9168 = vmul.f32 %v9040, %v9152
      %v9169 = vmul.f32 %v9041, %v9153
      %v9170 = vmul.f32 %v9042, %v9154
      %v9171 = vmul.f32 %v9043, %v9155
      %v9173 = vlaneseq
      %v9174 = vshrl.u32 %v9173, 7
      %v9175 = vsub.s32 0, %v9174
      %v9176 = vrot.slane %v8961, %v9175
      %v9178 = vmul.f32 %v9156, %v9176
      %v9179 = vmul.f32 %v9157, %v9176
      %v9180 = vmul.f32 %v9158, %v9176
      %v9181 = vmul.f32 %v9159, %v9176
      %v9182 = vmul.f32 %v9160, %v9176
      %v9183 = vmul.f32 %v9161, %v9176
      %v9184 = vmul.f32 %v9162, %v9176
      %v9185 = vmul.f32 %v9163, %v9176
      %v9186 = vmul.f32 %v9164, %v9176
      %v9187 = vmul.f32 %v9165, %v9176
      %v9188 = vmul.f32 %v9166, %v9176
      %v9189 = vmul.f32 %v9167, %v9176
      %v9190 = vmul.f32 %v9168, %v9176
      %v9191 = vmul.f32 %v9169, %v9176
      %v9192 = vmul.f32 %v9170, %v9176
      %v9193 = vmul.f32 %v9171, %v9176
      %v9195 = vlaneseq
      %v9196 = vshrl.u32 %v9195, 7
      %v9197 = vsub.s32 0, %v9196
      %v9198 = vrot.slane %v8963, %v9197
      %v9200 = vadd.f32 %v9178, %v9198
      %v9201 = vadd.f32 %v9179, %v9198
      %v9202 = vadd.f32 %v9180, %v9198
      %v9203 = vadd.f32 %v9181, %v9198
      %v9204 = vadd.f32 %v9182, %v9198
      %v9205 = vadd.f32 %v9183, %v9198
      %v9206 = vadd.f32 %v9184, %v9198
      %v9207 = vadd.f32 %v9185, %v9198
      %v9208 = vadd.f32 %v9186, %v9198
      %v9209 = vadd.f32 %v9187, %v9198
      %v9210 = vadd.f32 %v9188, %v9198
      %v9211 = vadd.f32 %v9189, %v9198
      %v9212 = vadd.f32 %v9190, %v9198
      %v9213 = vadd.f32 %v9191, %v9198
      %v9214 = vadd.f32 %v9192, %v9198
      %v9215 = vadd.f32 %v9193, %v9198
      %s9216 = scalar_lea.vmem %s11, 128
      %v9217 = vld [vmem:[%s9216] sm:$0xff]
      %v9218 = vld [vmem:[%s9216 + $0x8] sm:$0xff]
      %v9219 = vld [vmem:[%s9216 + $0x10] sm:$0xff]
      %v9220 = vld [vmem:[%s9216 + $0x18] sm:$0xff]
      %v9221 = vld [vmem:[%s9216 + $0x20] sm:$0xff]
      %v9222 = vld [vmem:[%s9216 + $0x28] sm:$0xff]
      %v9223 = vld [vmem:[%s9216 + $0x30] sm:$0xff]
      %v9224 = vld [vmem:[%s9216 + $0x38] sm:$0xff]
      %v9225 = vld [vmem:[%s9216 + $0x40] sm:$0xff]
      %v9226 = vld [vmem:[%s9216 + $0x48] sm:$0xff]
      %v9227 = vld [vmem:[%s9216 + $0x50] sm:$0xff]
      %v9228 = vld [vmem:[%s9216 + $0x58] sm:$0xff]
      %v9229 = vld [vmem:[%s9216 + $0x60] sm:$0xff]
      %v9230 = vld [vmem:[%s9216 + $0x68] sm:$0xff]
      %v9231 = vld [vmem:[%s9216 + $0x70] sm:$0xff]
      %v9232 = vld [vmem:[%s9216 + $0x78] sm:$0xff]
      %s9233 = scalar_lea.vmem %s12, 2
      %v9234 = vld [vmem:[%s9233] sm:$0x3]
      %v9236 = vlaneseq
      %v9237 = vshrl.u32 %v9236, 7
      %v9238 = vsub.s32 0, %v9237
      %v9239 = vrot.slane %v9234, %v9238
      %v9240 = vlaneseq
      %v9241 = vshrl.u32 %v9240, 7
      %v9242 = vsub.s32 1, %v9241
      %v9243 = vrot.slane %v9234, %v9242
      %v9247 = vsel %vm622, %v9200, 0
      %v9250 = vsel %vm622, %v9201, 0
      %v9253 = vsel %vm622, %v9202, 0
      %v9256 = vsel %vm622, %v9203, 0
      %v9259 = vsel %vm622, %v9204, 0
      %v9262 = vsel %vm622, %v9205, 0
      %v9265 = vsel %vm622, %v9206, 0
      %v9268 = vsel %vm622, %v9207, 0
      %v9271 = vsel %vm622, %v9208, 0
      %v9274 = vsel %vm622, %v9209, 0
      %v9277 = vsel %vm622, %v9210, 0
      %v9280 = vsel %vm622, %v9211, 0
      %v9283 = vsel %vm622, %v9212, 0
      %v9286 = vsel %vm622, %v9213, 0
      %v9289 = vsel %vm622, %v9214, 0
      %v9292 = vsel %vm622, %v9215, 0
      %9294 = vmatprep.subr.mxu0 %v9218
      %9295 = vmatpush1.msra.mxu0 %v9217
      %9296 = vmatprep.subr.mxu0 %v9220
      %9297 = vmatpush1.msra.mxu0 %v9219
      %9298 = vmatprep.subr.mxu0 %v9222
      %9299 = vmatpush1.msra.mxu0 %v9221
      %9300 = vmatprep.subr.mxu0 %v9224
      %9301 = vmatpush1.msra.mxu0 %v9223
      %9302 = vmatprep.subr.mxu0 %v9226
      %9303 = vmatpush1.msra.mxu0 %v9225
      %9304 = vmatprep.subr.mxu0 %v9228
      %9305 = vmatpush1.msra.mxu0 %v9227
      %9306 = vmatprep.subr.mxu0 %v9230
      %9307 = vmatpush1.msra.mxu0 %v9229
      %9308 = vmatprep.subr.mxu0 %v9232
      %9309 = vmatpush1.msra.mxu0 %v9231
      %9310 = vmatprep.subr.mxu0 0.0
      %9311 = vmatpush1.msra.mxu0 0.0
      %9312 = vmatprep.subr.mxu0 0.0
      %9313 = vmatpush1.msra.mxu0 0.0
      %9314 = vmatprep.subr.mxu0 0.0
      %9315 = vmatpush1.msra.mxu0 0.0
      %9316 = vmatprep.subr.mxu0 0.0
      %9317 = vmatpush1.msra.mxu0 0.0
      %9318 = vmatprep.subr.mxu0 0.0
      %9319 = vmatpush1.msra.mxu0 0.0
      %9320 = vmatprep.subr.mxu0 0.0
      %9321 = vmatpush1.msra.mxu0 0.0
      %9322 = vmatprep.subr.mxu0 0.0
      %9323 = vmatpush1.msra.mxu0 0.0
      %9324 = vmatprep.subr.mxu0 0.0
      %9325 = vmatpush1.msra.mxu0 0.0
      %9326 = vmatprep.subr.mxu0 0.0
      %9327 = vmatpush1.msra.mxu0 0.0
      %9328 = vmatprep.subr.mxu0 0.0
      %9329 = vmatpush1.msra.mxu0 0.0
      %9330 = vmatprep.subr.mxu0 0.0
      %9331 = vmatpush1.msra.mxu0 0.0
      %9332 = vmatprep.subr.mxu0 0.0
      %9333 = vmatpush1.msra.mxu0 0.0
      %9334 = vmatprep.subr.mxu0 0.0
      %9335 = vmatpush1.msra.mxu0 0.0
      %9336 = vmatprep.subr.mxu0 0.0
      %9337 = vmatpush1.msra.mxu0 0.0
      %9338 = vmatprep.subr.mxu0 0.0
      %9339 = vmatpush1.msra.mxu0 0.0
      %9340 = vmatprep.subr.mxu0 0.0
      %9341 = vmatpush1.msra.mxu0 0.0
      %9342 = vmatprep.subr.mxu0 0.0
      %9343 = vmatpush1.msra.mxu0 0.0
      %9344 = vmatprep.subr.mxu0 0.0
      %9345 = vmatpush1.msra.mxu0 0.0
      %9346 = vmatprep.subr.mxu0 0.0
      %9347 = vmatpush1.msra.mxu0 0.0
      %9348 = vmatprep.subr.mxu0 0.0
      %9349 = vmatpush1.msra.mxu0 0.0
      %9350 = vmatprep.subr.mxu0 0.0
      %9351 = vmatpush1.msra.mxu0 0.0
      %9352 = vmatprep.subr.mxu0 0.0
      %9353 = vmatpush1.msra.mxu0 0.0
      %9354 = vmatprep.subr.mxu0 0.0
      %9355 = vmatpush1.msra.mxu0 0.0
      %9356 = vmatprep.subr.mxu0 0.0
      %9357 = vmatpush1.msra.mxu0 0.0
      %9358 = vmatprep.mubr.f32.mxu0 0.0
      %9359 = vmatmul.mubr.f32.gmra.mrb[0].mxu0 %v9247
      %v9360 = vpop.f32.mrb[0].mxu0
      %v9361 = vadd.f32 %v9239, %v9360
      %v9362 = vpop.f32.mrb[0].mxu0
      %v9363 = vadd.f32 %v9243, %v9362
      %9364 = vmatprep.mubr.f32.mxu0 0.0
      %9365 = vmatmul.mubr.f32.gmra.mrb[0].mxu0 %v9250
      %v9366 = vpop.f32.mrb[0].mxu0
      %v9367 = vadd.f32 %v9239, %v9366
      %v9368 = vpop.f32.mrb[0].mxu0
      %v9369 = vadd.f32 %v9243, %v9368
      %9370 = vmatprep.mubr.f32.mxu0 0.0
      %9371 = vmatmul.mubr.f32.gmra.mrb[0].mxu0 %v9253
      %v9372 = vpop.f32.mrb[0].mxu0
      %v9373 = vadd.f32 %v9239, %v9372
      %v9374 = vpop.f32.mrb[0].mxu0
      %v9375 = vadd.f32 %v9243, %v9374
      %9376 = vmatprep.mubr.f32.mxu0 0.0
      %9377 = vmatmul.mubr.f32.gmra.mrb[0].mxu0 %v9256
      %v9378 = vpop.f32.mrb[0].mxu0
      %v9379 = vadd.f32 %v9239, %v9378
      %v9380 = vpop.f32.mrb[0].mxu0
      %v9381 = vadd.f32 %v9243, %v9380
      %9382 = vmatprep.mubr.f32.mxu0 0.0
      %9383 = vmatmul.mubr.f32.gmra.mrb[0].mxu0 %v9259
      %v9384 = vpop.f32.mrb[0].mxu0
      %v9385 = vadd.f32 %v9239, %v9384
      %v9386 = vpop.f32.mrb[0].mxu0
      %v9387 = vadd.f32 %v9243, %v9386
      %9388 = vmatprep.mubr.f32.mxu0 0.0
      %9389 = vmatmul.mubr.f32.gmra.mrb[0].mxu0 %v9262
      %v9390 = vpop.f32.mrb[0].mxu0
      %v9391 = vadd.f32 %v9239, %v9390
      %v9392 = vpop.f32.mrb[0].mxu0
      %v9393 = vadd.f32 %v9243, %v9392
      %9394 = vmatprep.mubr.f32.mxu0 0.0
      %9395 = vmatmul.mubr.f32.gmra.mrb[0].mxu0 %v9265
      %v9396 = vpop.f32.mrb[0].mxu0
      %v9397 = vadd.f32 %v9239, %v9396
      %v9398 = vpop.f32.mrb[0].mxu0
      %v9399 = vadd.f32 %v9243, %v9398
      %9400 = vmatprep.mubr.f32.mxu0 0.0
      %9401 = vmatmul.mubr.f32.gmra.mrb[0].mxu0 %v9268
      %v9402 = vpop.f32.mrb[0].mxu0
      %v9403 = vadd.f32 %v9239, %v9402
      %v9404 = vpop.f32.mrb[0].mxu0
      %v9405 = vadd.f32 %v9243, %v9404
      %9406 = vmatprep.mubr.f32.mxu0 0.0
      %9407 = vmatmul.mubr.f32.gmra.mrb[0].mxu0 %v9271
      %v9408 = vpop.f32.mrb[0].mxu0
      %v9409 = vadd.f32 %v9239, %v9408
      %v9410 = vpop.f32.mrb[0].mxu0
      %v9411 = vadd.f32 %v9243, %v9410
      %9412 = vmatprep.mubr.f32.mxu0 0.0
      %9413 = vmatmul.mubr.f32.gmra.mrb[0].mxu0 %v9274
      %v9414 = vpop.f32.mrb[0].mxu0
      %v9415 = vadd.f32 %v9239, %v9414
      %v9416 = vpop.f32.mrb[0].mxu0
      %v9417 = vadd.f32 %v9243, %v9416
      %9418 = vmatprep.mubr.f32.mxu0 0.0
      %9419 = vmatmul.mubr.f32.gmra.mrb[0].mxu0 %v9277
      %v9420 = vpop.f32.mrb[0].mxu0
      %v9421 = vadd.f32 %v9239, %v9420
      %v9422 = vpop.f32.mrb[0].mxu0
      %v9423 = vadd.f32 %v9243, %v9422
      %9424 = vmatprep.mubr.f32.mxu0 0.0
      %9425 = vmatmul.mubr.f32.gmra.mrb[0].mxu0 %v9280
      %v9426 = vpop.f32.mrb[0].mxu0
      %v9427 = vadd.f32 %v9239, %v9426
      %v9428 = vpop.f32.mrb[0].mxu0
      %v9429 = vadd.f32 %v9243, %v9428
      %9430 = vmatprep.mubr.f32.mxu0 0.0
      %9431 = vmatmul.mubr.f32.gmra.mrb[0].mxu0 %v9283
      %v9432 = vpop.f32.mrb[0].mxu0
      %v9433 = vadd.f32 %v9239, %v9432
      %v9434 = vpop.f32.mrb[0].mxu0
      %v9435 = vadd.f32 %v9243, %v9434
      %9436 = vmatprep.mubr.f32.mxu0 0.0
      %9437 = vmatmul.mubr.f32.gmra.mrb[0].mxu0 %v9286
      %v9438 = vpop.f32.mrb[0].mxu0
      %v9439 = vadd.f32 %v9239, %v9438
      %v9440 = vpop.f32.mrb[0].mxu0
      %v9441 = vadd.f32 %v9243, %v9440
      %9442 = vmatprep.mubr.f32.mxu0 0.0
      %9443 = vmatmul.mubr.f32.gmra.mrb[0].mxu0 %v9289
      %v9444 = vpop.f32.mrb[0].mxu0
      %v9445 = vadd.f32 %v9239, %v9444
      %v9446 = vpop.f32.mrb[0].mxu0
      %v9447 = vadd.f32 %v9243, %v9446
      %9448 = vmatprep.mubr.f32.mxu0 0.0
      %9449 = vmatmul.mubr.f32.gmra.mrb[0].mxu0 %v9292
      %v9450 = vpop.f32.mrb[0].mxu0
      %v9451 = vadd.f32 %v9239, %v9450
      %v9452 = vpop.f32.mrb[0].mxu0
      %v9453 = vadd.f32 %v9243, %v9452
      %9454 = vdwg.mxu0
      %v9455 = vmul.f32 %v9361, 0.5
      %v9456 = vmul.f32 %v9363, 0.5
      %v9457 = vmul.f32 %v9367, 0.5
      %v9458 = vmul.f32 %v9369, 0.5
      %v9459 = vmul.f32 %v9373, 0.5
      %v9460 = vmul.f32 %v9375, 0.5
      %v9461 = vmul.f32 %v9379, 0.5
      %v9462 = vmul.f32 %v9381, 0.5
      %v9463 = vmul.f32 %v9385, 0.5
      %v9464 = vmul.f32 %v9387, 0.5
      %v9465 = vmul.f32 %v9391, 0.5
      %v9466 = vmul.f32 %v9393, 0.5
      %v9467 = vmul.f32 %v9397, 0.5
      %v9468 = vmul.f32 %v9399, 0.5
      %v9469 = vmul.f32 %v9403, 0.5
      %v9470 = vmul.f32 %v9405, 0.5
      %v9471 = vmul.f32 %v9409, 0.5
      %v9472 = vmul.f32 %v9411, 0.5
      %v9473 = vmul.f32 %v9415, 0.5
      %v9474 = vmul.f32 %v9417, 0.5
      %v9475 = vmul.f32 %v9421, 0.5
      %v9476 = vmul.f32 %v9423, 0.5
      %v9477 = vmul.f32 %v9427, 0.5
      %v9478 = vmul.f32 %v9429, 0.5
      %v9479 = vmul.f32 %v9433, 0.5
      %v9480 = vmul.f32 %v9435, 0.5
      %v9481 = vmul.f32 %v9439, 0.5
      %v9482 = vmul.f32 %v9441, 0.5
      %v9483 = vmul.f32 %v9445, 0.5
      %v9484 = vmul.f32 %v9447, 0.5
      %v9485 = vmul.f32 %v9451, 0.5
      %v9486 = vmul.f32 %v9453, 0.5
      %v9487 = vmul.f32 %v9361, 0.70710677
      %v9488 = vmul.f32 %v9363, 0.70710677
      %v9489 = vmul.f32 %v9367, 0.70710677
      %v9490 = vmul.f32 %v9369, 0.70710677
      %v9491 = vmul.f32 %v9373, 0.70710677
      %v9492 = vmul.f32 %v9375, 0.70710677
      %v9493 = vmul.f32 %v9379, 0.70710677
      %v9494 = vmul.f32 %v9381, 0.70710677
      %v9495 = vmul.f32 %v9385, 0.70710677
      %v9496 = vmul.f32 %v9387, 0.70710677
      %v9497 = vmul.f32 %v9391, 0.70710677
      %v9498 = vmul.f32 %v9393, 0.70710677
      %v9499 = vmul.f32 %v9397, 0.70710677
      %v9500 = vmul.f32 %v9399, 0.70710677
      %v9501 = vmul.f32 %v9403, 0.70710677
      %v9502 = vmul.f32 %v9405, 0.70710677
      %v9503 = vmul.f32 %v9409, 0.70710677
      %v9504 = vmul.f32 %v9411, 0.70710677
      %v9505 = vmul.f32 %v9415, 0.70710677
      %v9506 = vmul.f32 %v9417, 0.70710677
      %v9507 = vmul.f32 %v9421, 0.70710677
      %v9508 = vmul.f32 %v9423, 0.70710677
      %v9509 = vmul.f32 %v9427, 0.70710677
      %v9510 = vmul.f32 %v9429, 0.70710677
      %v9511 = vmul.f32 %v9433, 0.70710677
      %v9512 = vmul.f32 %v9435, 0.70710677
      %v9513 = vmul.f32 %v9439, 0.70710677
      %v9514 = vmul.f32 %v9441, 0.70710677
      %v9515 = vmul.f32 %v9445, 0.70710677
      %v9516 = vmul.f32 %v9447, 0.70710677
      %v9517 = vmul.f32 %v9451, 0.70710677
      %v9518 = vmul.f32 %v9453, 0.70710677
      %vm9519 = vcmp.ge.f32.partialorder %v9487, 0.0
      %vm9520 = vcmp.ge.f32.partialorder %v9488, 0.0
      %vm9521 = vcmp.ge.f32.partialorder %v9489, 0.0
      %vm9522 = vcmp.ge.f32.partialorder %v9490, 0.0
      %vm9523 = vcmp.ge.f32.partialorder %v9491, 0.0
      %vm9524 = vcmp.ge.f32.partialorder %v9492, 0.0
      %vm9525 = vcmp.ge.f32.partialorder %v9493, 0.0
      %vm9526 = vcmp.ge.f32.partialorder %v9494, 0.0
      %vm9527 = vcmp.ge.f32.partialorder %v9495, 0.0
      %vm9528 = vcmp.ge.f32.partialorder %v9496, 0.0
      %vm9529 = vcmp.ge.f32.partialorder %v9497, 0.0
      %vm9530 = vcmp.ge.f32.partialorder %v9498, 0.0
      %vm9531 = vcmp.ge.f32.partialorder %v9499, 0.0
      %vm9532 = vcmp.ge.f32.partialorder %v9500, 0.0
      %vm9533 = vcmp.ge.f32.partialorder %v9501, 0.0
      %vm9534 = vcmp.ge.f32.partialorder %v9502, 0.0
      %vm9535 = vcmp.ge.f32.partialorder %v9503, 0.0
      %vm9536 = vcmp.ge.f32.partialorder %v9504, 0.0
      %vm9537 = vcmp.ge.f32.partialorder %v9505, 0.0
      %vm9538 = vcmp.ge.f32.partialorder %v9506, 0.0
      %vm9539 = vcmp.ge.f32.partialorder %v9507, 0.0
      %vm9540 = vcmp.ge.f32.partialorder %v9508, 0.0
      %vm9541 = vcmp.ge.f32.partialorder %v9509, 0.0
      %vm9542 = vcmp.ge.f32.partialorder %v9510, 0.0
      %vm9543 = vcmp.ge.f32.partialorder %v9511, 0.0
      %vm9544 = vcmp.ge.f32.partialorder %v9512, 0.0
      %vm9545 = vcmp.ge.f32.partialorder %v9513, 0.0
      %vm9546 = vcmp.ge.f32.partialorder %v9514, 0.0
      %vm9547 = vcmp.ge.f32.partialorder %v9515, 0.0
      %vm9548 = vcmp.ge.f32.partialorder %v9516, 0.0
      %vm9549 = vcmp.ge.f32.partialorder %v9517, 0.0
      %vm9550 = vcmp.ge.f32.partialorder %v9518, 0.0
      %v9551 = vsel %vm9519, 1.0, -1.0
      %v9552 = vsel %vm9520, 1.0, -1.0
      %v9553 = vsel %vm9521, 1.0, -1.0
      %v9554 = vsel %vm9522, 1.0, -1.0
      %v9555 = vsel %vm9523, 1.0, -1.0
      %v9556 = vsel %vm9524, 1.0, -1.0
      %v9557 = vsel %vm9525, 1.0, -1.0
      %v9558 = vsel %vm9526, 1.0, -1.0
      %v9559 = vsel %vm9527, 1.0, -1.0
      %v9560 = vsel %vm9528, 1.0, -1.0
      %v9561 = vsel %vm9529, 1.0, -1.0
      %v9562 = vsel %vm9530, 1.0, -1.0
      %v9563 = vsel %vm9531, 1.0, -1.0
      %v9564 = vsel %vm9532, 1.0, -1.0
      %v9565 = vsel %vm9533, 1.0, -1.0
      %v9566 = vsel %vm9534, 1.0, -1.0
      %v9567 = vsel %vm9535, 1.0, -1.0
      %v9568 = vsel %vm9536, 1.0, -1.0
      %v9569 = vsel %vm9537, 1.0, -1.0
      %v9570 = vsel %vm9538, 1.0, -1.0
      %v9571 = vsel %vm9539, 1.0, -1.0
      %v9572 = vsel %vm9540, 1.0, -1.0
      %v9573 = vsel %vm9541, 1.0, -1.0
      %v9574 = vsel %vm9542, 1.0, -1.0
      %v9575 = vsel %vm9543, 1.0, -1.0
      %v9576 = vsel %vm9544, 1.0, -1.0
      %v9577 = vsel %vm9545, 1.0, -1.0
      %v9578 = vsel %vm9546, 1.0, -1.0
      %v9579 = vsel %vm9547, 1.0, -1.0
      %v9580 = vsel %vm9548, 1.0, -1.0
      %v9581 = vsel %vm9549, 1.0, -1.0
      %v9582 = vsel %vm9550, 1.0, -1.0
      %v9583 = vand.u32 2147483647, %v9487
      %v9584 = vand.u32 2147483647, %v9488
      %v9585 = vand.u32 2147483647, %v9489
      %v9586 = vand.u32 2147483647, %v9490
      %v9587 = vand.u32 2147483647, %v9491
      %v9588 = vand.u32 2147483647, %v9492
      %v9589 = vand.u32 2147483647, %v9493
      %v9590 = vand.u32 2147483647, %v9494
      %v9591 = vand.u32 2147483647, %v9495
      %v9592 = vand.u32 2147483647, %v9496
      %v9593 = vand.u32 2147483647, %v9497
      %v9594 = vand.u32 2147483647, %v9498
      %v9595 = vand.u32 2147483647, %v9499
      %v9596 = vand.u32 2147483647, %v9500
      %v9597 = vand.u32 2147483647, %v9501
      %v9598 = vand.u32 2147483647, %v9502
      %v9599 = vand.u32 2147483647, %v9503
      %v9600 = vand.u32 2147483647, %v9504
      %v9601 = vand.u32 2147483647, %v9505
      %v9602 = vand.u32 2147483647, %v9506
      %v9603 = vand.u32 2147483647, %v9507
      %v9604 = vand.u32 2147483647, %v9508
      %v9605 = vand.u32 2147483647, %v9509
      %v9606 = vand.u32 2147483647, %v9510
      %v9607 = vand.u32 2147483647, %v9511
      %v9608 = vand.u32 2147483647, %v9512
      %v9609 = vand.u32 2147483647, %v9513
      %v9610 = vand.u32 2147483647, %v9514
      %v9611 = vand.u32 2147483647, %v9515
      %v9612 = vand.u32 2147483647, %v9516
      %v9613 = vand.u32 2147483647, %v9517
      %v9614 = vand.u32 2147483647, %v9518
      %v9615 = vmul.f32 %v9583, 0.3275911
      %v9616 = vmul.f32 %v9584, 0.3275911
      %v9617 = vmul.f32 %v9585, 0.3275911
      %v9618 = vmul.f32 %v9586, 0.3275911
      %v9619 = vmul.f32 %v9587, 0.3275911
      %v9620 = vmul.f32 %v9588, 0.3275911
      %v9621 = vmul.f32 %v9589, 0.3275911
      %v9622 = vmul.f32 %v9590, 0.3275911
      %v9623 = vmul.f32 %v9591, 0.3275911
      %v9624 = vmul.f32 %v9592, 0.3275911
      %v9625 = vmul.f32 %v9593, 0.3275911
      %v9626 = vmul.f32 %v9594, 0.3275911
      %v9627 = vmul.f32 %v9595, 0.3275911
      %v9628 = vmul.f32 %v9596, 0.3275911
      %v9629 = vmul.f32 %v9597, 0.3275911
      %v9630 = vmul.f32 %v9598, 0.3275911
      %v9631 = vmul.f32 %v9599, 0.3275911
      %v9632 = vmul.f32 %v9600, 0.3275911
      %v9633 = vmul.f32 %v9601, 0.3275911
      %v9634 = vmul.f32 %v9602, 0.3275911
      %v9635 = vmul.f32 %v9603, 0.3275911
      %v9636 = vmul.f32 %v9604, 0.3275911
      %v9637 = vmul.f32 %v9605, 0.3275911
      %v9638 = vmul.f32 %v9606, 0.3275911
      %v9639 = vmul.f32 %v9607, 0.3275911
      %v9640 = vmul.f32 %v9608, 0.3275911
      %v9641 = vmul.f32 %v9609, 0.3275911
      %v9642 = vmul.f32 %v9610, 0.3275911
      %v9643 = vmul.f32 %v9611, 0.3275911
      %v9644 = vmul.f32 %v9612, 0.3275911
      %v9645 = vmul.f32 %v9613, 0.3275911
      %v9646 = vmul.f32 %v9614, 0.3275911
      %v9647 = vadd.f32 %v9615, 1.0
      %v9648 = vadd.f32 %v9616, 1.0
      %v9649 = vadd.f32 %v9617, 1.0
      %v9650 = vadd.f32 %v9618, 1.0
      %v9651 = vadd.f32 %v9619, 1.0
      %v9652 = vadd.f32 %v9620, 1.0
      %v9653 = vadd.f32 %v9621, 1.0
      %v9654 = vadd.f32 %v9622, 1.0
      %v9655 = vadd.f32 %v9623, 1.0
      %v9656 = vadd.f32 %v9624, 1.0
      %v9657 = vadd.f32 %v9625, 1.0
      %v9658 = vadd.f32 %v9626, 1.0
      %v9659 = vadd.f32 %v9627, 1.0
      %v9660 = vadd.f32 %v9628, 1.0
      %v9661 = vadd.f32 %v9629, 1.0
      %v9662 = vadd.f32 %v9630, 1.0
      %v9663 = vadd.f32 %v9631, 1.0
      %v9664 = vadd.f32 %v9632, 1.0
      %v9665 = vadd.f32 %v9633, 1.0
      %v9666 = vadd.f32 %v9634, 1.0
      %v9667 = vadd.f32 %v9635, 1.0
      %v9668 = vadd.f32 %v9636, 1.0
      %v9669 = vadd.f32 %v9637, 1.0
      %v9670 = vadd.f32 %v9638, 1.0
      %v9671 = vadd.f32 %v9639, 1.0
      %v9672 = vadd.f32 %v9640, 1.0
      %v9673 = vadd.f32 %v9641, 1.0
      %v9674 = vadd.f32 %v9642, 1.0
      %v9675 = vadd.f32 %v9643, 1.0
      %v9676 = vadd.f32 %v9644, 1.0
      %v9677 = vadd.f32 %v9645, 1.0
      %v9678 = vadd.f32 %v9646, 1.0
      %v9679 = vrcp.pop %v9647
      %v9680 = vmul.f32 1.0, %v9679
      %v9681 = vrcp.pop %v9648
      %v9682 = vmul.f32 1.0, %v9681
      %v9683 = vrcp.pop %v9649
      %v9684 = vmul.f32 1.0, %v9683
      %v9685 = vrcp.pop %v9650
      %v9686 = vmul.f32 1.0, %v9685
      %v9687 = vrcp.pop %v9651
      %v9688 = vmul.f32 1.0, %v9687
      %v9689 = vrcp.pop %v9652
      %v9690 = vmul.f32 1.0, %v9689
      %v9691 = vrcp.pop %v9653
      %v9692 = vmul.f32 1.0, %v9691
      %v9693 = vrcp.pop %v9654
      %v9694 = vmul.f32 1.0, %v9693
      %v9695 = vrcp.pop %v9655
      %v9696 = vmul.f32 1.0, %v9695
      %v9697 = vrcp.pop %v9656
      %v9698 = vmul.f32 1.0, %v9697
      %v9699 = vrcp.pop %v9657
      %v9700 = vmul.f32 1.0, %v9699
      %v9701 = vrcp.pop %v9658
      %v9702 = vmul.f32 1.0, %v9701
      %v9703 = vrcp.pop %v9659
      %v9704 = vmul.f32 1.0, %v9703
      %v9705 = vrcp.pop %v9660
      %v9706 = vmul.f32 1.0, %v9705
      %v9707 = vrcp.pop %v9661
      %v9708 = vmul.f32 1.0, %v9707
      %v9709 = vrcp.pop %v9662
      %v9710 = vmul.f32 1.0, %v9709
      %v9711 = vrcp.pop %v9663
      %v9712 = vmul.f32 1.0, %v9711
      %v9713 = vrcp.pop %v9664
      %v9714 = vmul.f32 1.0, %v9713
      %v9715 = vrcp.pop %v9665
      %v9716 = vmul.f32 1.0, %v9715
      %v9717 = vrcp.pop %v9666
      %v9718 = vmul.f32 1.0, %v9717
      %v9719 = vrcp.pop %v9667
      %v9720 = vmul.f32 1.0, %v9719
      %v9721 = vrcp.pop %v9668
      %v9722 = vmul.f32 1.0, %v9721
      %v9723 = vrcp.pop %v9669
      %v9724 = vmul.f32 1.0, %v9723
      %v9725 = vrcp.pop %v9670
      %v9726 = vmul.f32 1.0, %v9725
      %v9727 = vrcp.pop %v9671
      %v9728 = vmul.f32 1.0, %v9727
      %v9729 = vrcp.pop %v9672
      %v9730 = vmul.f32 1.0, %v9729
      %v9731 = vrcp.pop %v9673
      %v9732 = vmul.f32 1.0, %v9731
      %v9733 = vrcp.pop %v9674
      %v9734 = vmul.f32 1.0, %v9733
      %v9735 = vrcp.pop %v9675
      %v9736 = vmul.f32 1.0, %v9735
      %v9737 = vrcp.pop %v9676
      %v9738 = vmul.f32 1.0, %v9737
      %v9739 = vrcp.pop %v9677
      %v9740 = vmul.f32 1.0, %v9739
      %v9741 = vrcp.pop %v9678
      %v9742 = vmul.f32 1.0, %v9741
      %v9743 = vmul.f32 %v9680, 1.0614054
      %v9744 = vmul.f32 %v9682, 1.0614054
      %v9745 = vmul.f32 %v9684, 1.0614054
      %v9746 = vmul.f32 %v9686, 1.0614054
      %v9747 = vmul.f32 %v9688, 1.0614054
      %v9748 = vmul.f32 %v9690, 1.0614054
      %v9749 = vmul.f32 %v9692, 1.0614054
      %v9750 = vmul.f32 %v9694, 1.0614054
      %v9751 = vmul.f32 %v9696, 1.0614054
      %v9752 = vmul.f32 %v9698, 1.0614054
      %v9753 = vmul.f32 %v9700, 1.0614054
      %v9754 = vmul.f32 %v9702, 1.0614054
      %v9755 = vmul.f32 %v9704, 1.0614054
      %v9756 = vmul.f32 %v9706, 1.0614054
      %v9757 = vmul.f32 %v9708, 1.0614054
      %v9758 = vmul.f32 %v9710, 1.0614054
      %v9759 = vmul.f32 %v9712, 1.0614054
      %v9760 = vmul.f32 %v9714, 1.0614054
      %v9761 = vmul.f32 %v9716, 1.0614054
      %v9762 = vmul.f32 %v9718, 1.0614054
      %v9763 = vmul.f32 %v9720, 1.0614054
      %v9764 = vmul.f32 %v9722, 1.0614054
      %v9765 = vmul.f32 %v9724, 1.0614054
      %v9766 = vmul.f32 %v9726, 1.0614054
      %v9767 = vmul.f32 %v9728, 1.0614054
      %v9768 = vmul.f32 %v9730, 1.0614054
      %v9769 = vmul.f32 %v9732, 1.0614054
      %v9770 = vmul.f32 %v9734, 1.0614054
      %v9771 = vmul.f32 %v9736, 1.0614054
      %v9772 = vmul.f32 %v9738, 1.0614054
      %v9773 = vmul.f32 %v9740, 1.0614054
      %v9774 = vmul.f32 %v9742, 1.0614054
      %v9775 = vadd.f32 %v9743, -1.4531521
      %v9776 = vadd.f32 %v9744, -1.4531521
      %v9777 = vadd.f32 %v9745, -1.4531521
      %v9778 = vadd.f32 %v9746, -1.4531521
      %v9779 = vadd.f32 %v9747, -1.4531521
      %v9780 = vadd.f32 %v9748, -1.4531521
      %v9781 = vadd.f32 %v9749, -1.4531521
      %v9782 = vadd.f32 %v9750, -1.4531521
      %v9783 = vadd.f32 %v9751, -1.4531521
      %v9784 = vadd.f32 %v9752, -1.4531521
      %v9785 = vadd.f32 %v9753, -1.4531521
      %v9786 = vadd.f32 %v9754, -1.4531521
      %v9787 = vadd.f32 %v9755, -1.4531521
      %v9788 = vadd.f32 %v9756, -1.4531521
      %v9789 = vadd.f32 %v9757, -1.4531521
      %v9790 = vadd.f32 %v9758, -1.4531521
      %v9791 = vadd.f32 %v9759, -1.4531521
      %v9792 = vadd.f32 %v9760, -1.4531521
      %v9793 = vadd.f32 %v9761, -1.4531521
      %v9794 = vadd.f32 %v9762, -1.4531521
      %v9795 = vadd.f32 %v9763, -1.4531521
      %v9796 = vadd.f32 %v9764, -1.4531521
      %v9797 = vadd.f32 %v9765, -1.4531521
      %v9798 = vadd.f32 %v9766, -1.4531521
      %v9799 = vadd.f32 %v9767, -1.4531521
      %v9800 = vadd.f32 %v9768, -1.4531521
      %v9801 = vadd.f32 %v9769, -1.4531521
      %v9802 = vadd.f32 %v9770, -1.4531521
      %v9803 = vadd.f32 %v9771, -1.4531521
      %v9804 = vadd.f32 %v9772, -1.4531521
      %v9805 = vadd.f32 %v9773, -1.4531521
      %v9806 = vadd.f32 %v9774, -1.4531521
      %v9807 = vmul.f32 %v9775, %v9680
      %v9808 = vmul.f32 %v9776, %v9682
      %v9809 = vmul.f32 %v9777, %v9684
      %v9810 = vmul.f32 %v9778, %v9686
      %v9811 = vmul.f32 %v9779, %v9688
      %v9812 = vmul.f32 %v9780, %v9690
      %v9813 = vmul.f32 %v9781, %v9692
      %v9814 = vmul.f32 %v9782, %v9694
      %v9815 = vmul.f32 %v9783, %v9696
      %v9816 = vmul.f32 %v9784, %v9698
      %v9817 = vmul.f32 %v9785, %v9700
      %v9818 = vmul.f32 %v9786, %v9702
      %v9819 = vmul.f32 %v9787, %v9704
      %v9820 = vmul.f32 %v9788, %v9706
      %v9821 = vmul.f32 %v9789, %v9708
      %v9822 = vmul.f32 %v9790, %v9710
      %v9823 = vmul.f32 %v9791, %v9712
      %v9824 = vmul.f32 %v9792, %v9714
      %v9825 = vmul.f32 %v9793, %v9716
      %v9826 = vmul.f32 %v9794, %v9718
      %v9827 = vmul.f32 %v9795, %v9720
      %v9828 = vmul.f32 %v9796, %v9722
      %v9829 = vmul.f32 %v9797, %v9724
      %v9830 = vmul.f32 %v9798, %v9726
      %v9831 = vmul.f32 %v9799, %v9728
      %v9832 = vmul.f32 %v9800, %v9730
      %v9833 = vmul.f32 %v9801, %v9732
      %v9834 = vmul.f32 %v9802, %v9734
      %v9835 = vmul.f32 %v9803, %v9736
      %v9836 = vmul.f32 %v9804, %v9738
      %v9837 = vmul.f32 %v9805, %v9740
      %v9838 = vmul.f32 %v9806, %v9742
      %v9839 = vadd.f32 %v9807, 1.4214138
      %v9840 = vadd.f32 %v9808, 1.4214138
      %v9841 = vadd.f32 %v9809, 1.4214138
      %v9842 = vadd.f32 %v9810, 1.4214138
      %v9843 = vadd.f32 %v9811, 1.4214138
      %v9844 = vadd.f32 %v9812, 1.4214138
      %v9845 = vadd.f32 %v9813, 1.4214138
      %v9846 = vadd.f32 %v9814, 1.4214138
      %v9847 = vadd.f32 %v9815, 1.4214138
      %v9848 = vadd.f32 %v9816, 1.4214138
      %v9849 = vadd.f32 %v9817, 1.4214138
      %v9850 = vadd.f32 %v9818, 1.4214138
      %v9851 = vadd.f32 %v9819, 1.4214138
      %v9852 = vadd.f32 %v9820, 1.4214138
      %v9853 = vadd.f32 %v9821, 1.4214138
      %v9854 = vadd.f32 %v9822, 1.4214138
      %v9855 = vadd.f32 %v9823, 1.4214138
      %v9856 = vadd.f32 %v9824, 1.4214138
      %v9857 = vadd.f32 %v9825, 1.4214138
      %v9858 = vadd.f32 %v9826, 1.4214138
      %v9859 = vadd.f32 %v9827, 1.4214138
      %v9860 = vadd.f32 %v9828, 1.4214138
      %v9861 = vadd.f32 %v9829, 1.4214138
      %v9862 = vadd.f32 %v9830, 1.4214138
      %v9863 = vadd.f32 %v9831, 1.4214138
      %v9864 = vadd.f32 %v9832, 1.4214138
      %v9865 = vadd.f32 %v9833, 1.4214138
      %v9866 = vadd.f32 %v9834, 1.4214138
      %v9867 = vadd.f32 %v9835, 1.4214138
      %v9868 = vadd.f32 %v9836, 1.4214138
      %v9869 = vadd.f32 %v9837, 1.4214138
      %v9870 = vadd.f32 %v9838, 1.4214138
      %v9871 = vmul.f32 %v9839, %v9680
      %v9872 = vmul.f32 %v9840, %v9682
      %v9873 = vmul.f32 %v9841, %v9684
      %v9874 = vmul.f32 %v9842, %v9686
      %v9875 = vmul.f32 %v9843, %v9688
      %v9876 = vmul.f32 %v9844, %v9690
      %v9877 = vmul.f32 %v9845, %v9692
      %v9878 = vmul.f32 %v9846, %v9694
      %v9879 = vmul.f32 %v9847, %v9696
      %v9880 = vmul.f32 %v9848, %v9698
      %v9881 = vmul.f32 %v9849, %v9700
      %v9882 = vmul.f32 %v9850, %v9702
      %v9883 = vmul.f32 %v9851, %v9704
      %v9884 = vmul.f32 %v9852, %v9706
      %v9885 = vmul.f32 %v9853, %v9708
      %v9886 = vmul.f32 %v9854, %v9710
      %v9887 = vmul.f32 %v9855, %v9712
      %v9888 = vmul.f32 %v9856, %v9714
      %v9889 = vmul.f32 %v9857, %v9716
      %v9890 = vmul.f32 %v9858, %v9718
      %v9891 = vmul.f32 %v9859, %v9720
      %v9892 = vmul.f32 %v9860, %v9722
      %v9893 = vmul.f32 %v9861, %v9724
      %v9894 = vmul.f32 %v9862, %v9726
      %v9895 = vmul.f32 %v9863, %v9728
      %v9896 = vmul.f32 %v9864, %v9730
      %v9897 = vmul.f32 %v9865, %v9732
      %v9898 = vmul.f32 %v9866, %v9734
      %v9899 = vmul.f32 %v9867, %v9736
      %v9900 = vmul.f32 %v9868, %v9738
      %v9901 = vmul.f32 %v9869, %v9740
      %v9902 = vmul.f32 %v9870, %v9742
      %v9903 = vadd.f32 %v9871, -0.28449672
      %v9904 = vadd.f32 %v9872, -0.28449672
      %v9905 = vadd.f32 %v9873, -0.28449672
      %v9906 = vadd.f32 %v9874, -0.28449672
      %v9907 = vadd.f32 %v9875, -0.28449672
      %v9908 = vadd.f32 %v9876, -0.28449672
      %v9909 = vadd.f32 %v9877, -0.28449672
      %v9910 = vadd.f32 %v9878, -0.28449672
      %v9911 = vadd.f32 %v9879, -0.28449672
      %v9912 = vadd.f32 %v9880, -0.28449672
      %v9913 = vadd.f32 %v9881, -0.28449672
      %v9914 = vadd.f32 %v9882, -0.28449672
      %v9915 = vadd.f32 %v9883, -0.28449672
      %v9916 = vadd.f32 %v9884, -0.28449672
      %v9917 = vadd.f32 %v9885, -0.28449672
      %v9918 = vadd.f32 %v9886, -0.28449672
      %v9919 = vadd.f32 %v9887, -0.28449672
      %v9920 = vadd.f32 %v9888, -0.28449672
      %v9921 = vadd.f32 %v9889, -0.28449672
      %v9922 = vadd.f32 %v9890, -0.28449672
      %v9923 = vadd.f32 %v9891, -0.28449672
      %v9924 = vadd.f32 %v9892, -0.28449672
      %v9925 = vadd.f32 %v9893, -0.28449672
      %v9926 = vadd.f32 %v9894, -0.28449672
      %v9927 = vadd.f32 %v9895, -0.28449672
      %v9928 = vadd.f32 %v9896, -0.28449672
      %v9929 = vadd.f32 %v9897, -0.28449672
      %v9930 = vadd.f32 %v9898, -0.28449672
      %v9931 = vadd.f32 %v9899, -0.28449672
      %v9932 = vadd.f32 %v9900, -0.28449672
      %v9933 = vadd.f32 %v9901, -0.28449672
      %v9934 = vadd.f32 %v9902, -0.28449672
      %v9935 = vmul.f32 %v9903, %v9680
      %v9936 = vmul.f32 %v9904, %v9682
      %v9937 = vmul.f32 %v9905, %v9684
      %v9938 = vmul.f32 %v9906, %v9686
      %v9939 = vmul.f32 %v9907, %v9688
      %v9940 = vmul.f32 %v9908, %v9690
      %v9941 = vmul.f32 %v9909, %v9692
      %v9942 = vmul.f32 %v9910, %v9694
      %v9943 = vmul.f32 %v9911, %v9696
      %v9944 = vmul.f32 %v9912, %v9698
      %v9945 = vmul.f32 %v9913, %v9700
      %v9946 = vmul.f32 %v9914, %v9702
      %v9947 = vmul.f32 %v9915, %v9704
      %v9948 = vmul.f32 %v9916, %v9706
      %v9949 = vmul.f32 %v9917, %v9708
      %v9950 = vmul.f32 %v9918, %v9710
      %v9951 = vmul.f32 %v9919, %v9712
      %v9952 = vmul.f32 %v9920, %v9714
      %v9953 = vmul.f32 %v9921, %v9716
      %v9954 = vmul.f32 %v9922, %v9718
      %v9955 = vmul.f32 %v9923, %v9720
      %v9956 = vmul.f32 %v9924, %v9722
      %v9957 = vmul.f32 %v9925, %v9724
      %v9958 = vmul.f32 %v9926, %v9726
      %v9959 = vmul.f32 %v9927, %v9728
      %v9960 = vmul.f32 %v9928, %v9730
      %v9961 = vmul.f32 %v9929, %v9732
      %v9962 = vmul.f32 %v9930, %v9734
      %v9963 = vmul.f32 %v9931, %v9736
      %v9964 = vmul.f32 %v9932, %v9738
      %v9965 = vmul.f32 %v9933, %v9740
      %v9966 = vmul.f32 %v9934, %v9742
      %v9967 = vadd.f32 %v9935, 0.2548296
      %v9968 = vadd.f32 %v9936, 0.2548296
      %v9969 = vadd.f32 %v9937, 0.2548296
      %v9970 = vadd.f32 %v9938, 0.2548296
      %v9971 = vadd.f32 %v9939, 0.2548296
      %v9972 = vadd.f32 %v9940, 0.2548296
      %v9973 = vadd.f32 %v9941, 0.2548296
      %v9974 = vadd.f32 %v9942, 0.2548296
      %v9975 = vadd.f32 %v9943, 0.2548296
      %v9976 = vadd.f32 %v9944, 0.2548296
      %v9977 = vadd.f32 %v9945, 0.2548296
      %v9978 = vadd.f32 %v9946, 0.2548296
      %v9979 = vadd.f32 %v9947, 0.2548296
      %v9980 = vadd.f32 %v9948, 0.2548296
      %v9981 = vadd.f32 %v9949, 0.2548296
      %v9982 = vadd.f32 %v9950, 0.2548296
      %v9983 = vadd.f32 %v9951, 0.2548296
      %v9984 = vadd.f32 %v9952, 0.2548296
      %v9985 = vadd.f32 %v9953, 0.2548296
      %v9986 = vadd.f32 %v9954, 0.2548296
      %v9987 = vadd.f32 %v9955, 0.2548296
      %v9988 = vadd.f32 %v9956, 0.2548296
      %v9989 = vadd.f32 %v9957, 0.2548296
      %v9990 = vadd.f32 %v9958, 0.2548296
      %v9991 = vadd.f32 %v9959, 0.2548296
      %v9992 = vadd.f32 %v9960, 0.2548296
      %v9993 = vadd.f32 %v9961, 0.2548296
      %v9994 = vadd.f32 %v9962, 0.2548296
      %v9995 = vadd.f32 %v9963, 0.2548296
      %v9996 = vadd.f32 %v9964, 0.2548296
      %v9997 = vadd.f32 %v9965, 0.2548296
      %v9998 = vadd.f32 %v9966, 0.2548296
      %v9999 = vmul.f32 %v9967, %v9680
      %v10000 = vmul.f32 %v9968, %v9682
      %v10001 = vmul.f32 %v9969, %v9684
      %v10002 = vmul.f32 %v9970, %v9686
      %v10003 = vmul.f32 %v9971, %v9688
      %v10004 = vmul.f32 %v9972, %v9690
      %v10005 = vmul.f32 %v9973, %v9692
      %v10006 = vmul.f32 %v9974, %v9694
      %v10007 = vmul.f32 %v9975, %v9696
      %v10008 = vmul.f32 %v9976, %v9698
      %v10009 = vmul.f32 %v9977, %v9700
      %v10010 = vmul.f32 %v9978, %v9702
      %v10011 = vmul.f32 %v9979, %v9704
      %v10012 = vmul.f32 %v9980, %v9706
      %v10013 = vmul.f32 %v9981, %v9708
      %v10014 = vmul.f32 %v9982, %v9710
      %v10015 = vmul.f32 %v9983, %v9712
      %v10016 = vmul.f32 %v9984, %v9714
      %v10017 = vmul.f32 %v9985, %v9716
      %v10018 = vmul.f32 %v9986, %v9718
      %v10019 = vmul.f32 %v9987, %v9720
      %v10020 = vmul.f32 %v9988, %v9722
      %v10021 = vmul.f32 %v9989, %v9724
      %v10022 = vmul.f32 %v9990, %v9726
      %v10023 = vmul.f32 %v9991, %v9728
      %v10024 = vmul.f32 %v9992, %v9730
      %v10025 = vmul.f32 %v9993, %v9732
      %v10026 = vmul.f32 %v9994, %v9734
      %v10027 = vmul.f32 %v9995, %v9736
      %v10028 = vmul.f32 %v9996, %v9738
      %v10029 = vmul.f32 %v9997, %v9740
      %v10030 = vmul.f32 %v9998, %v9742
      %v10031 = vsub.f32 0.0, %v9583
      %v10032 = vsub.f32 0.0, %v9584
      %v10033 = vsub.f32 0.0, %v9585
      %v10034 = vsub.f32 0.0, %v9586
      %v10035 = vsub.f32 0.0, %v9587
      %v10036 = vsub.f32 0.0, %v9588
      %v10037 = vsub.f32 0.0, %v9589
      %v10038 = vsub.f32 0.0, %v9590
      %v10039 = vsub.f32 0.0, %v9591
      %v10040 = vsub.f32 0.0, %v9592
      %v10041 = vsub.f32 0.0, %v9593
      %v10042 = vsub.f32 0.0, %v9594
      %v10043 = vsub.f32 0.0, %v9595
      %v10044 = vsub.f32 0.0, %v9596
      %v10045 = vsub.f32 0.0, %v9597
      %v10046 = vsub.f32 0.0, %v9598
      %v10047 = vsub.f32 0.0, %v9599
      %v10048 = vsub.f32 0.0, %v9600
      %v10049 = vsub.f32 0.0, %v9601
      %v10050 = vsub.f32 0.0, %v9602
      %v10051 = vsub.f32 0.0, %v9603
      %v10052 = vsub.f32 0.0, %v9604
      %v10053 = vsub.f32 0.0, %v9605
      %v10054 = vsub.f32 0.0, %v9606
      %v10055 = vsub.f32 0.0, %v9607
      %v10056 = vsub.f32 0.0, %v9608
      %v10057 = vsub.f32 0.0, %v9609
      %v10058 = vsub.f32 0.0, %v9610
      %v10059 = vsub.f32 0.0, %v9611
      %v10060 = vsub.f32 0.0, %v9612
      %v10061 = vsub.f32 0.0, %v9613
      %v10062 = vsub.f32 0.0, %v9614
      %v10063 = vmul.f32 %v10031, %v9583
      %v10064 = vmul.f32 %v10032, %v9584
      %v10065 = vmul.f32 %v10033, %v9585
      %v10066 = vmul.f32 %v10034, %v9586
      %v10067 = vmul.f32 %v10035, %v9587
      %v10068 = vmul.f32 %v10036, %v9588
      %v10069 = vmul.f32 %v10037, %v9589
      %v10070 = vmul.f32 %v10038, %v9590
      %v10071 = vmul.f32 %v10039, %v9591
      %v10072 = vmul.f32 %v10040, %v9592
      %v10073 = vmul.f32 %v10041, %v9593
      %v10074 = vmul.f32 %v10042, %v9594
      %v10075 = vmul.f32 %v10043, %v9595
      %v10076 = vmul.f32 %v10044, %v9596
      %v10077 = vmul.f32 %v10045, %v9597
      %v10078 = vmul.f32 %v10046, %v9598
      %v10079 = vmul.f32 %v10047, %v9599
      %v10080 = vmul.f32 %v10048, %v9600
      %v10081 = vmul.f32 %v10049, %v9601
      %v10082 = vmul.f32 %v10050, %v9602
      %v10083 = vmul.f32 %v10051, %v9603
      %v10084 = vmul.f32 %v10052, %v9604
      %v10085 = vmul.f32 %v10053, %v9605
      %v10086 = vmul.f32 %v10054, %v9606
      %v10087 = vmul.f32 %v10055, %v9607
      %v10088 = vmul.f32 %v10056, %v9608
      %v10089 = vmul.f32 %v10057, %v9609
      %v10090 = vmul.f32 %v10058, %v9610
      %v10091 = vmul.f32 %v10059, %v9611
      %v10092 = vmul.f32 %v10060, %v9612
      %v10093 = vmul.f32 %v10061, %v9613
      %v10094 = vmul.f32 %v10062, %v9614
      %v10095 = vmul.f32 %v10063, 1.442695
      %v10096 = vpow.pop %v10095
      %v10097 = vmul.f32 %v10064, 1.442695
      %v10098 = vpow.pop %v10097
      %v10099 = vmul.f32 %v10065, 1.442695
      %v10100 = vpow.pop %v10099
      %v10101 = vmul.f32 %v10066, 1.442695
      %v10102 = vpow.pop %v10101
      %v10103 = vmul.f32 %v10067, 1.442695
      %v10104 = vpow.pop %v10103
      %v10105 = vmul.f32 %v10068, 1.442695
      %v10106 = vpow.pop %v10105
      %v10107 = vmul.f32 %v10069, 1.442695
      %v10108 = vpow.pop %v10107
      %v10109 = vmul.f32 %v10070, 1.442695
      %v10110 = vpow.pop %v10109
      %v10111 = vmul.f32 %v10071, 1.442695
      %v10112 = vpow.pop %v10111
      %v10113 = vmul.f32 %v10072, 1.442695
      %v10114 = vpow.pop %v10113
      %v10115 = vmul.f32 %v10073, 1.442695
      %v10116 = vpow.pop %v10115
      %v10117 = vmul.f32 %v10074, 1.442695
      %v10118 = vpow.pop %v10117
      %v10119 = vmul.f32 %v10075, 1.442695
      %v10120 = vpow.pop %v10119
      %v10121 = vmul.f32 %v10076, 1.442695
      %v10122 = vpow.pop %v10121
      %v10123 = vmul.f32 %v10077, 1.442695
      %v10124 = vpow.pop %v10123
      %v10125 = vmul.f32 %v10078, 1.442695
      %v10126 = vpow.pop %v10125
      %v10127 = vmul.f32 %v10079, 1.442695
      %v10128 = vpow.pop %v10127
      %v10129 = vmul.f32 %v10080, 1.442695
      %v10130 = vpow.pop %v10129
      %v10131 = vmul.f32 %v10081, 1.442695
      %v10132 = vpow.pop %v10131
      %v10133 = vmul.f32 %v10082, 1.442695
      %v10134 = vpow.pop %v10133
      %v10135 = vmul.f32 %v10083, 1.442695
      %v10136 = vpow.pop %v10135
      %v10137 = vmul.f32 %v10084, 1.442695
      %v10138 = vpow.pop %v10137
      %v10139 = vmul.f32 %v10085, 1.442695
      %v10140 = vpow.pop %v10139
      %v10141 = vmul.f32 %v10086, 1.442695
      %v10142 = vpow.pop %v10141
      %v10143 = vmul.f32 %v10087, 1.442695
      %v10144 = vpow.pop %v10143
      %v10145 = vmul.f32 %v10088, 1.442695
      %v10146 = vpow.pop %v10145
      %v10147 = vmul.f32 %v10089, 1.442695
      %v10148 = vpow.pop %v10147
      %v10149 = vmul.f32 %v10090, 1.442695
      %v10150 = vpow.pop %v10149
      %v10151 = vmul.f32 %v10091, 1.442695
      %v10152 = vpow.pop %v10151
      %v10153 = vmul.f32 %v10092, 1.442695
      %v10154 = vpow.pop %v10153
      %v10155 = vmul.f32 %v10093, 1.442695
      %v10156 = vpow.pop %v10155
      %v10157 = vmul.f32 %v10094, 1.442695
      %v10158 = vpow.pop %v10157
      %v10159 = vmul.f32 %v9999, %v10096
      %v10160 = vmul.f32 %v10000, %v10098
      %v10161 = vmul.f32 %v10001, %v10100
      %v10162 = vmul.f32 %v10002, %v10102
      %v10163 = vmul.f32 %v10003, %v10104
      %v10164 = vmul.f32 %v10004, %v10106
      %v10165 = vmul.f32 %v10005, %v10108
      %v10166 = vmul.f32 %v10006, %v10110
      %v10167 = vmul.f32 %v10007, %v10112
      %v10168 = vmul.f32 %v10008, %v10114
      %v10169 = vmul.f32 %v10009, %v10116
      %v10170 = vmul.f32 %v10010, %v10118
      %v10171 = vmul.f32 %v10011, %v10120
      %v10172 = vmul.f32 %v10012, %v10122
      %v10173 = vmul.f32 %v10013, %v10124
      %v10174 = vmul.f32 %v10014, %v10126
      %v10175 = vmul.f32 %v10015, %v10128
      %v10176 = vmul.f32 %v10016, %v10130
      %v10177 = vmul.f32 %v10017, %v10132
      %v10178 = vmul.f32 %v10018, %v10134
      %v10179 = vmul.f32 %v10019, %v10136
      %v10180 = vmul.f32 %v10020, %v10138
      %v10181 = vmul.f32 %v10021, %v10140
      %v10182 = vmul.f32 %v10022, %v10142
      %v10183 = vmul.f32 %v10023, %v10144
      %v10184 = vmul.f32 %v10024, %v10146
      %v10185 = vmul.f32 %v10025, %v10148
      %v10186 = vmul.f32 %v10026, %v10150
      %v10187 = vmul.f32 %v10027, %v10152
      %v10188 = vmul.f32 %v10028, %v10154
      %v10189 = vmul.f32 %v10029, %v10156
      %v10190 = vmul.f32 %v10030, %v10158
      %v10191 = vsub.f32 1.0, %v10159
      %v10192 = vsub.f32 1.0, %v10160
      %v10193 = vsub.f32 1.0, %v10161
      %v10194 = vsub.f32 1.0, %v10162
      %v10195 = vsub.f32 1.0, %v10163
      %v10196 = vsub.f32 1.0, %v10164
      %v10197 = vsub.f32 1.0, %v10165
      %v10198 = vsub.f32 1.0, %v10166
      %v10199 = vsub.f32 1.0, %v10167
      %v10200 = vsub.f32 1.0, %v10168
      %v10201 = vsub.f32 1.0, %v10169
      %v10202 = vsub.f32 1.0, %v10170
      %v10203 = vsub.f32 1.0, %v10171
      %v10204 = vsub.f32 1.0, %v10172
      %v10205 = vsub.f32 1.0, %v10173
      %v10206 = vsub.f32 1.0, %v10174
      %v10207 = vsub.f32 1.0, %v10175
      %v10208 = vsub.f32 1.0, %v10176
      %v10209 = vsub.f32 1.0, %v10177
      %v10210 = vsub.f32 1.0, %v10178
      %v10211 = vsub.f32 1.0, %v10179
      %v10212 = vsub.f32 1.0, %v10180
      %v10213 = vsub.f32 1.0, %v10181
      %v10214 = vsub.f32 1.0, %v10182
      %v10215 = vsub.f32 1.0, %v10183
      %v10216 = vsub.f32 1.0, %v10184
      %v10217 = vsub.f32 1.0, %v10185
      %v10218 = vsub.f32 1.0, %v10186
      %v10219 = vsub.f32 1.0, %v10187
      %v10220 = vsub.f32 1.0, %v10188
      %v10221 = vsub.f32 1.0, %v10189
      %v10222 = vsub.f32 1.0, %v10190
      %v10223 = vmul.f32 %v9551, %v10191
      %v10224 = vmul.f32 %v9552, %v10192
      %v10225 = vmul.f32 %v9553, %v10193
      %v10226 = vmul.f32 %v9554, %v10194
      %v10227 = vmul.f32 %v9555, %v10195
      %v10228 = vmul.f32 %v9556, %v10196
      %v10229 = vmul.f32 %v9557, %v10197
      %v10230 = vmul.f32 %v9558, %v10198
      %v10231 = vmul.f32 %v9559, %v10199
      %v10232 = vmul.f32 %v9560, %v10200
      %v10233 = vmul.f32 %v9561, %v10201
      %v10234 = vmul.f32 %v9562, %v10202
      %v10235 = vmul.f32 %v9563, %v10203
      %v10236 = vmul.f32 %v9564, %v10204
      %v10237 = vmul.f32 %v9565, %v10205
      %v10238 = vmul.f32 %v9566, %v10206
      %v10239 = vmul.f32 %v9567, %v10207
      %v10240 = vmul.f32 %v9568, %v10208
      %v10241 = vmul.f32 %v9569, %v10209
      %v10242 = vmul.f32 %v9570, %v10210
      %v10243 = vmul.f32 %v9571, %v10211
      %v10244 = vmul.f32 %v9572, %v10212
      %v10245 = vmul.f32 %v9573, %v10213
      %v10246 = vmul.f32 %v9574, %v10214
      %v10247 = vmul.f32 %v9575, %v10215
      %v10248 = vmul.f32 %v9576, %v10216
      %v10249 = vmul.f32 %v9577, %v10217
      %v10250 = vmul.f32 %v9578, %v10218
      %v10251 = vmul.f32 %v9579, %v10219
      %v10252 = vmul.f32 %v9580, %v10220
      %v10253 = vmul.f32 %v9581, %v10221
      %v10254 = vmul.f32 %v9582, %v10222
      %v10255 = vadd.f32 %v10223, 1.0
      %v10256 = vadd.f32 %v10224, 1.0
      %v10257 = vadd.f32 %v10225, 1.0
      %v10258 = vadd.f32 %v10226, 1.0
      %v10259 = vadd.f32 %v10227, 1.0
      %v10260 = vadd.f32 %v10228, 1.0
      %v10261 = vadd.f32 %v10229, 1.0
      %v10262 = vadd.f32 %v10230, 1.0
      %v10263 = vadd.f32 %v10231, 1.0
      %v10264 = vadd.f32 %v10232, 1.0
      %v10265 = vadd.f32 %v10233, 1.0
      %v10266 = vadd.f32 %v10234, 1.0
      %v10267 = vadd.f32 %v10235, 1.0
      %v10268 = vadd.f32 %v10236, 1.0
      %v10269 = vadd.f32 %v10237, 1.0
      %v10270 = vadd.f32 %v10238, 1.0
      %v10271 = vadd.f32 %v10239, 1.0
      %v10272 = vadd.f32 %v10240, 1.0
      %v10273 = vadd.f32 %v10241, 1.0
      %v10274 = vadd.f32 %v10242, 1.0
      %v10275 = vadd.f32 %v10243, 1.0
      %v10276 = vadd.f32 %v10244, 1.0
      %v10277 = vadd.f32 %v10245, 1.0
      %v10278 = vadd.f32 %v10246, 1.0
      %v10279 = vadd.f32 %v10247, 1.0
      %v10280 = vadd.f32 %v10248, 1.0
      %v10281 = vadd.f32 %v10249, 1.0
      %v10282 = vadd.f32 %v10250, 1.0
      %v10283 = vadd.f32 %v10251, 1.0
      %v10284 = vadd.f32 %v10252, 1.0
      %v10285 = vadd.f32 %v10253, 1.0
      %v10286 = vadd.f32 %v10254, 1.0
      %v10287 = vmul.f32 %v9455, %v10255
      %v10288 = vmul.f32 %v9456, %v10256
      %v10289 = vmul.f32 %v9457, %v10257
      %v10290 = vmul.f32 %v9458, %v10258
      %v10291 = vmul.f32 %v9459, %v10259
      %v10292 = vmul.f32 %v9460, %v10260
      %v10293 = vmul.f32 %v9461, %v10261
      %v10294 = vmul.f32 %v9462, %v10262
      %v10295 = vmul.f32 %v9463, %v10263
      %v10296 = vmul.f32 %v9464, %v10264
      %v10297 = vmul.f32 %v9465, %v10265
      %v10298 = vmul.f32 %v9466, %v10266
      %v10299 = vmul.f32 %v9467, %v10267
      %v10300 = vmul.f32 %v9468, %v10268
      %v10301 = vmul.f32 %v9469, %v10269
      %v10302 = vmul.f32 %v9470, %v10270
      %v10303 = vmul.f32 %v9471, %v10271
      %v10304 = vmul.f32 %v9472, %v10272
      %v10305 = vmul.f32 %v9473, %v10273
      %v10306 = vmul.f32 %v9474, %v10274
      %v10307 = vmul.f32 %v9475, %v10275
      %v10308 = vmul.f32 %v9476, %v10276
      %v10309 = vmul.f32 %v9477, %v10277
      %v10310 = vmul.f32 %v9478, %v10278
      %v10311 = vmul.f32 %v9479, %v10279
      %v10312 = vmul.f32 %v9480, %v10280
      %v10313 = vmul.f32 %v9481, %v10281
      %v10314 = vmul.f32 %v9482, %v10282
      %v10315 = vmul.f32 %v9483, %v10283
      %v10316 = vmul.f32 %v9484, %v10284
      %v10317 = vmul.f32 %v9485, %v10285
      %v10318 = vmul.f32 %v9486, %v10286
      %s10319 = scalar_lea.vmem %s13, 256
      %v10320 = vld [vmem:[%s10319] sm:$0xff]
      %v10321 = vld [vmem:[%s10319 + $0x8] sm:$0xff]
      %v10322 = vld [vmem:[%s10319 + $0x10] sm:$0xff]
      %v10323 = vld [vmem:[%s10319 + $0x18] sm:$0xff]
      %v10324 = vld [vmem:[%s10319 + $0x20] sm:$0xff]
      %v10325 = vld [vmem:[%s10319 + $0x28] sm:$0xff]
      %v10326 = vld [vmem:[%s10319 + $0x30] sm:$0xff]
      %v10327 = vld [vmem:[%s10319 + $0x38] sm:$0xff]
      %v10328 = vld [vmem:[%s10319 + $0x40] sm:$0xff]
      %v10329 = vld [vmem:[%s10319 + $0x48] sm:$0xff]
      %v10330 = vld [vmem:[%s10319 + $0x50] sm:$0xff]
      %v10331 = vld [vmem:[%s10319 + $0x58] sm:$0xff]
      %v10332 = vld [vmem:[%s10319 + $0x60] sm:$0xff]
      %v10333 = vld [vmem:[%s10319 + $0x68] sm:$0xff]
      %v10334 = vld [vmem:[%s10319 + $0x70] sm:$0xff]
      %v10335 = vld [vmem:[%s10319 + $0x78] sm:$0xff]
      %v10336 = vld [vmem:[%s10319 + $0x80] sm:$0xff]
      %v10337 = vld [vmem:[%s10319 + $0x88] sm:$0xff]
      %v10338 = vld [vmem:[%s10319 + $0x90] sm:$0xff]
      %v10339 = vld [vmem:[%s10319 + $0x98] sm:$0xff]
      %v10340 = vld [vmem:[%s10319 + $0xa0] sm:$0xff]
      %v10341 = vld [vmem:[%s10319 + $0xa8] sm:$0xff]
      %v10342 = vld [vmem:[%s10319 + $0xb0] sm:$0xff]
      %v10343 = vld [vmem:[%s10319 + $0xb8] sm:$0xff]
      %v10344 = vld [vmem:[%s10319 + $0xc0] sm:$0xff]
      %v10345 = vld [vmem:[%s10319 + $0xc8] sm:$0xff]
      %v10346 = vld [vmem:[%s10319 + $0xd0] sm:$0xff]
      %v10347 = vld [vmem:[%s10319 + $0xd8] sm:$0xff]
      %v10348 = vld [vmem:[%s10319 + $0xe0] sm:$0xff]
      %v10349 = vld [vmem:[%s10319 + $0xe8] sm:$0xff]
      %v10350 = vld [vmem:[%s10319 + $0xf0] sm:$0xff]
      %v10351 = vld [vmem:[%s10319 + $0xf8] sm:$0xff]
      %10352 = vmatprep.subr.mxu0 0.0
      %10353 = vmatpush1.msra.mxu0 %v10320
      %10354 = vmatprep.subr.mxu0 0.0
      %10355 = vmatpush1.msra.mxu0 %v10321
      %10356 = vmatprep.subr.mxu0 0.0
      %10357 = vmatpush1.msra.mxu0 %v10322
      %10358 = vmatprep.subr.mxu0 0.0
      %10359 = vmatpush1.msra.mxu0 %v10323
      %10360 = vmatprep.subr.mxu0 0.0
      %10361 = vmatpush1.msra.mxu0 %v10324
      %10362 = vmatprep.subr.mxu0 0.0
      %10363 = vmatpush1.msra.mxu0 %v10325
      %10364 = vmatprep.subr.mxu0 0.0
      %10365 = vmatpush1.msra.mxu0 %v10326
      %10366 = vmatprep.subr.mxu0 0.0
      %10367 = vmatpush1.msra.mxu0 %v10327
      %10368 = vmatprep.subr.mxu0 0.0
      %10369 = vmatpush1.msra.mxu0 %v10328
      %10370 = vmatprep.subr.mxu0 0.0
      %10371 = vmatpush1.msra.mxu0 %v10329
      %10372 = vmatprep.subr.mxu0 0.0
      %10373 = vmatpush1.msra.mxu0 %v10330
      %10374 = vmatprep.subr.mxu0 0.0
      %10375 = vmatpush1.msra.mxu0 %v10331
      %10376 = vmatprep.subr.mxu0 0.0
      %10377 = vmatpush1.msra.mxu0 %v10332
      %10378 = vmatprep.subr.mxu0 0.0
      %10379 = vmatpush1.msra.mxu0 %v10333
      %10380 = vmatprep.subr.mxu0 0.0
      %10381 = vmatpush1.msra.mxu0 %v10334
      %10382 = vmatprep.subr.mxu0 0.0
      %10383 = vmatpush1.msra.mxu0 %v10335
      %10384 = vmatprep.subr.mxu0 0.0
      %10385 = vmatpush1.msra.mxu0 %v10336
      %10386 = vmatprep.subr.mxu0 0.0
      %10387 = vmatpush1.msra.mxu0 %v10337
      %10388 = vmatprep.subr.mxu0 0.0
      %10389 = vmatpush1.msra.mxu0 %v10338
      %10390 = vmatprep.subr.mxu0 0.0
      %10391 = vmatpush1.msra.mxu0 %v10339
      %10392 = vmatprep.subr.mxu0 0.0
      %10393 = vmatpush1.msra.mxu0 %v10340
      %10394 = vmatprep.subr.mxu0 0.0
      %10395 = vmatpush1.msra.mxu0 %v10341
      %10396 = vmatprep.subr.mxu0 0.0
      %10397 = vmatpush1.msra.mxu0 %v10342
      %10398 = vmatprep.subr.mxu0 0.0
      %10399 = vmatpush1.msra.mxu0 %v10343
      %10400 = vmatprep.subr.mxu0 0.0
      %10401 = vmatpush1.msra.mxu0 %v10344
      %10402 = vmatprep.subr.mxu0 0.0
      %10403 = vmatpush1.msra.mxu0 %v10345
      %10404 = vmatprep.subr.mxu0 0.0
      %10405 = vmatpush1.msra.mxu0 %v10346
      %10406 = vmatprep.subr.mxu0 0.0
      %10407 = vmatpush1.msra.mxu0 %v10347
      %10408 = vmatprep.subr.mxu0 0.0
      %10409 = vmatpush1.msra.mxu0 %v10348
      %10410 = vmatprep.subr.mxu0 0.0
      %10411 = vmatpush1.msra.mxu0 %v10349
      %10412 = vmatprep.subr.mxu0 0.0
      %10413 = vmatpush1.msra.mxu0 %v10350
      %10414 = vmatprep.subr.mxu0 0.0
      %10415 = vmatpush1.msra.mxu0 %v10351
      %10416 = vmatprep.mubr.f32.mxu0 %v10288
      %10417 = vmatmul.mubr.f32.gmra.mrb[0].mxu0 %v10287
      %v10418 = vpop.f32.mrb[0].mxu0
      %v10419 = vadd.f32 0.0, %v10418
      %v10420 = vpop.f32.mrb[0].mxu0
      %10421 = vmatprep.mubr.f32.mxu0 %v10290
      %10422 = vmatmul.mubr.f32.gmra.mrb[0].mxu0 %v10289
      %v10423 = vpop.f32.mrb[0].mxu0
      %v10424 = vadd.f32 0.0, %v10423
      %v10425 = vpop.f32.mrb[0].mxu0
      %10426 = vmatprep.mubr.f32.mxu0 %v10292
      %10427 = vmatmul.mubr.f32.gmra.mrb[0].mxu0 %v10291
      %v10428 = vpop.f32.mrb[0].mxu0
      %v10429 = vadd.f32 0.0, %v10428
      %v10430 = vpop.f32.mrb[0].mxu0
      %10431 = vmatprep.mubr.f32.mxu0 %v10294
      %10432 = vmatmul.mubr.f32.gmra.mrb[0].mxu0 %v10293
      %v10433 = vpop.f32.mrb[0].mxu0
      %v10434 = vadd.f32 0.0, %v10433
      %v10435 = vpop.f32.mrb[0].mxu0
      %10436 = vmatprep.mubr.f32.mxu0 %v10296
      %10437 = vmatmul.mubr.f32.gmra.mrb[0].mxu0 %v10295
      %v10438 = vpop.f32.mrb[0].mxu0
      %v10439 = vadd.f32 0.0, %v10438
      %v10440 = vpop.f32.mrb[0].mxu0
      %10441 = vmatprep.mubr.f32.mxu0 %v10298
      %10442 = vmatmul.mubr.f32.gmra.mrb[0].mxu0 %v10297
      %v10443 = vpop.f32.mrb[0].mxu0
      %v10444 = vadd.f32 0.0, %v10443
      %v10445 = vpop.f32.mrb[0].mxu0
      %10446 = vmatprep.mubr.f32.mxu0 %v10300
      %10447 = vmatmul.mubr.f32.gmra.mrb[0].mxu0 %v10299
      %v10448 = vpop.f32.mrb[0].mxu0
      %v10449 = vadd.f32 0.0, %v10448
      %v10450 = vpop.f32.mrb[0].mxu0
      %10451 = vmatprep.mubr.f32.mxu0 %v10302
      %10452 = vmatmul.mubr.f32.gmra.mrb[0].mxu0 %v10301
      %v10453 = vpop.f32.mrb[0].mxu0
      %v10454 = vadd.f32 0.0, %v10453
      %v10455 = vpop.f32.mrb[0].mxu0
      %10456 = vmatprep.mubr.f32.mxu0 %v10304
      %10457 = vmatmul.mubr.f32.gmra.mrb[0].mxu0 %v10303
      %v10458 = vpop.f32.mrb[0].mxu0
      %v10459 = vadd.f32 0.0, %v10458
      %v10460 = vpop.f32.mrb[0].mxu0
      %10461 = vmatprep.mubr.f32.mxu0 %v10306
      %10462 = vmatmul.mubr.f32.gmra.mrb[0].mxu0 %v10305
      %v10463 = vpop.f32.mrb[0].mxu0
      %v10464 = vadd.f32 0.0, %v10463
      %v10465 = vpop.f32.mrb[0].mxu0
      %10466 = vmatprep.mubr.f32.mxu0 %v10308
      %10467 = vmatmul.mubr.f32.gmra.mrb[0].mxu0 %v10307
      %v10468 = vpop.f32.mrb[0].mxu0
      %v10469 = vadd.f32 0.0, %v10468
      %v10470 = vpop.f32.mrb[0].mxu0
      %10471 = vmatprep.mubr.f32.mxu0 %v10310
      %10472 = vmatmul.mubr.f32.gmra.mrb[0].mxu0 %v10309
      %v10473 = vpop.f32.mrb[0].mxu0
      %v10474 = vadd.f32 0.0, %v10473
      %v10475 = vpop.f32.mrb[0].mxu0
      %10476 = vmatprep.mubr.f32.mxu0 %v10312
      %10477 = vmatmul.mubr.f32.gmra.mrb[0].mxu0 %v10311
      %v10478 = vpop.f32.mrb[0].mxu0
      %v10479 = vadd.f32 0.0, %v10478
      %v10480 = vpop.f32.mrb[0].mxu0
      %10481 = vmatprep.mubr.f32.mxu0 %v10314
      %10482 = vmatmul.mubr.f32.gmra.mrb[0].mxu0 %v10313
      %v10483 = vpop.f32.mrb[0].mxu0
      %v10484 = vadd.f32 0.0, %v10483
      %v10485 = vpop.f32.mrb[0].mxu0
      %10486 = vmatprep.mubr.f32.mxu0 %v10316
      %10487 = vmatmul.mubr.f32.gmra.mrb[0].mxu0 %v10315
      %v10488 = vpop.f32.mrb[0].mxu0
      %v10489 = vadd.f32 0.0, %v10488
      %v10490 = vpop.f32.mrb[0].mxu0
      %10491 = vmatprep.mubr.f32.mxu0 %v10318
      %10492 = vmatmul.mubr.f32.gmra.mrb[0].mxu0 %v10317
      %v10493 = vpop.f32.mrb[0].mxu0
      %v10494 = vadd.f32 0.0, %v10493
      %v10495 = vpop.f32.mrb[0].mxu0
      %10496 = vdwg.mxu0
      %v10497 = vadd.f32 %v8944, %v10419
      %v10498 = vadd.f32 %v8945, %v10424
      %v10499 = vadd.f32 %v8946, %v10429
      %v10500 = vadd.f32 %v8947, %v10434
      %v10501 = vadd.f32 %v8948, %v10439
      %v10502 = vadd.f32 %v8949, %v10444
      %v10503 = vadd.f32 %v8950, %v10449
      %v10504 = vadd.f32 %v8951, %v10454
      %v10505 = vadd.f32 %v8952, %v10459
      %v10506 = vadd.f32 %v8953, %v10464
      %v10507 = vadd.f32 %v8954, %v10469
      %v10508 = vadd.f32 %v8955, %v10474
      %v10509 = vadd.f32 %v8956, %v10479
      %v10510 = vadd.f32 %v8957, %v10484
      %v10511 = vadd.f32 %v8958, %v10489
      %v10512 = vadd.f32 %v8959, %v10494
      %s10513 = scalar_lea.vmem %s14, 1
      %v10514 = vld [vmem:[%s10513] sm:$0x1]
      %v10516 = vlaneseq
      %v10517 = vshrl.u32 %v10516, 7
      %v10518 = vsub.s32 0, %v10517
      %v10519 = vrot.slane %v10514, %v10518
      %v10521 = vadd.f32 %v10497, %v10519
      %v10522 = vadd.f32 %v10498, %v10519
      %v10523 = vadd.f32 %v10499, %v10519
      %v10524 = vadd.f32 %v10500, %v10519
      %v10525 = vadd.f32 %v10501, %v10519
      %v10526 = vadd.f32 %v10502, %v10519
      %v10527 = vadd.f32 %v10503, %v10519
      %v10528 = vadd.f32 %v10504, %v10519
      %v10529 = vadd.f32 %v10505, %v10519
      %v10530 = vadd.f32 %v10506, %v10519
      %v10531 = vadd.f32 %v10507, %v10519
      %v10532 = vadd.f32 %v10508, %v10519
      %v10533 = vadd.f32 %v10509, %v10519
      %v10534 = vadd.f32 %v10510, %v10519
      %v10535 = vadd.f32 %v10511, %v10519
      %v10536 = vadd.f32 %v10512, %v10519
      %10537 = vst.msk [vmem:[%s554] sm:$0xff] %vm622, %v10521
      %10538 = vst.msk [vmem:[%s554 + $0x8] sm:$0xff] %vm622, %v10522
      %10539 = vst.msk [vmem:[%s554 + $0x10] sm:$0xff] %vm622, %v10523
      %10540 = vst.msk [vmem:[%s554 + $0x18] sm:$0xff] %vm622, %v10524
      %10541 = vst.msk [vmem:[%s554 + $0x20] sm:$0xff] %vm622, %v10525
      %10542 = vst.msk [vmem:[%s554 + $0x28] sm:$0xff] %vm622, %v10526
      %10543 = vst.msk [vmem:[%s554 + $0x30] sm:$0xff] %vm622, %v10527
      %10544 = vst.msk [vmem:[%s554 + $0x38] sm:$0xff] %vm622, %v10528
      %10545 = vst.msk [vmem:[%s554 + $0x40] sm:$0xff] %vm622, %v10529
      %10546 = vst.msk [vmem:[%s554 + $0x48] sm:$0xff] %vm622, %v10530
      %10547 = vst.msk [vmem:[%s554 + $0x50] sm:$0xff] %vm622, %v10531
      %10548 = vst.msk [vmem:[%s554 + $0x58] sm:$0xff] %vm622, %v10532
      %10549 = vst.msk [vmem:[%s554 + $0x60] sm:$0xff] %vm622, %v10533
      %10550 = vst.msk [vmem:[%s554 + $0x68] sm:$0xff] %vm622, %v10534
      %10551 = vst.msk [vmem:[%s554 + $0x70] sm:$0xff] %vm622, %v10535
      %10552 = vst.msk [vmem:[%s554 + $0x78] sm:$0xff] %vm622, %v10536
      %s10553 = smul.u32 16, %s31
      %p10554 = scmp.lt.s32.totalorder %s30, 1
      %s10555 = scalar_select %p10554, %s30, 1
      %p10556 = scmp.lt.s32.totalorder %s10553, 31
      %s10557 = scalar_select %p10556, %s10553, 31
      %s10558 = smul.addr %s10555, 32
      %s10559 = sadd.s32 %s10557, %s10558
      %s10560 = smul.addr %s10559, 8
      %s10561 = scalar_lea.vmem %s15, %s10560
      // Predicated region
      $region81: #{tpu_custom_call.1} parent=79 // pred_check
        %p10562 = pneg %p385
      $region82: #{tpu_custom_call.1} parent=79 // pred_check_branch
        %10564 = sbr.rel (%p10562) target = $region84
      $region83: #{tpu_custom_call.1} parent=79 // pred_region
        %s10565 = smul.u32 16, %s31
      $region84: #{tpu_custom_call.1} parent=79 // pred_fallthru
        _
    $region80: #{tpu_custom_call.1} parent=5 // pred_fallthru
      _
    %p10566 = scmp.le.s32.totalorder 2, %s21
    // Predicated region
    $region85: #{tpu_custom_call.1} parent=5 // pred_check
      %p10567 = pneg %p10566
    $region86: #{tpu_custom_call.1} parent=5 // pred_check_branch
      %10569 = sbr.rel (%p10567) target = $region88
    $region87: #{tpu_custom_call.1} parent=5 // pred_region
      %s10570 = ssub.s32 %s21, 2
      // Predicated region
      $region89: #{tpu_custom_call.1} parent=87 // pred_check
        %p10571 = pneg %p391
      $region90: #{tpu_custom_call.1} parent=87 // pred_check_branch
        %10573 = sbr.rel (%p10571) target = $region92
      $region91: #{tpu_custom_call.1} parent=87 // pred_region
        %s10574 = smul.u32 16, %s33
        %p10575 = scmp.lt.s32.totalorder %s32, 1
        %s10576 = scalar_select %p10575, %s32, 1
        %p10577 = scmp.lt.s32.totalorder %s10574, 31
        %s10578 = scalar_select %p10577, %s10574, 31
        %s10579 = smul.addr %s10576, 32
        %s10580 = sadd.s32 %s10578, %s10579
        %s10581 = smul.addr %s10580, 8
        %s10582 = scalar_lea.vmem %s15, %s10581
      $region92: #{tpu_custom_call.1} parent=87 // pred_fallthru
        _
    $region88: #{tpu_custom_call.1} parent=5 // pred_fallthru
      _
  $region6: #{tpu_custom_call.1} parent=0 // loop_footer
    %s25 = sadd.s32 1, %s21
  $region7: #{tpu_custom_call.1} parent=0 // loop_footer_branch
    %20 = sbr.rel target = $region3
  $region8: #{tpu_custom_call.1} parent=0 // loop_exit
    _

</llo_original>
